<compile_context>
chip_gen: v6e
topology: v6e:2x2x1
jax: 0.10.0
libtpu: 0.0.40
codegen_flags: <defaults>
</compile_context>

<pallas_src>
import functools

import numpy as np
import jax
import jax.numpy as jnp
from jax import lax
from jax.experimental import pallas as pl
from jax.experimental.pallas import tpu as pltpu

LRELU_SLOPE = 0.01   # nn.LeakyReLU default
BN_EPS = 1e-5        # nn.BatchNorm2d default


def _vmem_spec():
    # whole array resident in VMEM (grid = (), single kernel invocation)
    return pl.BlockSpec(memory_space=pltpu.MemorySpace.VMEM)


# --------------------- constant spatial selection matrices ------------------

def _selection_matrices(hin, win, hu, wu):
    """Per-image 0/1 selection matrices folding nearest-resize
    (hin,win)->(hu,wu), zero pad=1 and 3x3 stride-2 tap extraction.

    Returns (g, ho, wo) with g of shape (9, hin*win, ho*wo); for an activation
    row a (one channel of one image, pixels on lanes):
        (a @ g[k])[p_out] = resized_padded_input[2i+ky-1, 2j+kx-1]
    """
    ho = (hu - 1) // 2 + 1
    wo = (wu - 1) // 2 + 1
    g = np.zeros((9, hin * win, ho * wo), np.float32)
    for ky in range(3):
        for kx in range(3):
            k = ky * 3 + kx
            for i in range(ho):
                yu = 2 * i + ky - 1
                if yu < 0 or yu >= hu:          # zero padding row
                    continue
                ys = (yu * hin) // hu           # F.interpolate 'nearest'
                for j in range(wo):
                    xu = 2 * j + kx - 1
                    if xu < 0 or xu >= wu:      # zero padding col
                        continue
                    xs = (xu * win) // wu
                    g[k, ys * win + xs, i * wo + j] = 1.0
    return g, ho, wo


_FOLD_OFFSETS = ((-1, -1), (-1, 0), (0, -1), (0, 0))


def _folded_selection_matrices(h, w):
    """Selection matrices for the exact fold of 'nearest x2 upsample -> pad=1
    -> 3x3 stride-2 conv' into a 4-tap conv on the pre-upsample (h, w) grid.
    Shape (4, h*w, h*w); tap order matches _fold_weights_2x."""
    g = np.zeros((4, h * w, h * w), np.float32)
    for k, (dy, dx) in enumerate(_FOLD_OFFSETS):
        for i in range(h):
            ys = i + dy
            if ys < 0:
                continue
            for j in range(w):
                xs = j + dx
                if xs < 0:
                    continue
                g[k, ys * w + xs, i * w + j] = 1.0
    return g


def _fold_weights_2x(wt):
    """(cout, cin, 3, 3) 3x3 weights -> (4, cout, cin) weights of the folded
    4-tap conv (source offsets {-1,0}^2), exact for a scale-2 nearest resize."""
    w00 = wt[:, :, 0, 0]
    w0p = wt[:, :, 0, 1] + wt[:, :, 0, 2]
    wp0 = wt[:, :, 1, 0] + wt[:, :, 2, 0]
    wpp = wt[:, :, 1, 1] + wt[:, :, 1, 2] + wt[:, :, 2, 1] + wt[:, :, 2, 2]
    return np.stack([w00, w0p, wp0, wpp], axis=0)


def _block_diag_weights(w_taps, batch):
    """(T, cout, cin) per-tap weights -> (B*cout, T*B*cin) block-diagonal-over-
    batch matrix; rows ordered (b, cout), columns ordered (k, b, cin) to match
    the in-kernel im2col row order."""
    taps, cout, cin = w_taps.shape
    w = np.zeros((batch * cout, taps * batch * cin), np.float32)
    for k in range(taps):
        for b in range(batch):
            w[b * cout:(b + 1) * cout,
              k * batch * cin + b * cin:k * batch * cin + (b + 1) * cin] = w_taps[k]
    return w


def _block_diag(m, batch):
    o, i = m.shape
    out = np.zeros((batch * o, batch * i), np.float32)
    for b in range(batch):
        out[b * o:(b + 1) * o, b * i:(b + 1) * i] = m
    return out


# ------------------------------ parameters ----------------------------------

def init_params(key, batch, cin_x, z_dim, in_hw):
    hidden = [32, 64, 32, 8]
    h, w = in_hw
    hw = [(h, w)]
    for _ in hidden:
        h = (h - 1) // 2 + 1
        w = (w - 1) // 2 + 1
        hw.append((h, w))
    # TODO(synk): the fused latent path assumes a 1x1 bottleneck (true for the
    # default 16x16 config); for a larger bottleneck the fc weights would need
    # a one-time column permutation to match the (C,H,W) flatten order.
    assert hw[-1] == (1, 1), "fused latent path assumes 1x1 bottleneck"

    keys = iter(jax.random.split(key, 64))

    def rnd(shape):
        return np.asarray(jax.random.normal(next(keys), shape, jnp.float32))

    def conv33(cin, cout):
        # PyTorch Conv2d weight (cout, cin, 3, 3); no conv bias (cancels under
        # training-mode BatchNorm).
        return rnd((cout, cin, 3, 3)) / np.sqrt(9.0 * cin)

    conv_inputs = []   # flat list, (w_bd, g_cat) per layer, bf16
    layer_meta = []    # static per-layer metadata (closure for the kernel)
    gammas, betas = [], []
    bn_off = 0

    def add_layer(w_taps, g_taps, cin, cout, hw_out, act):
        nonlocal bn_off
        taps = w_taps.shape[0]
        w_bd = _block_diag_weights(w_taps, batch)
        g_cat = np.concatenate(list(g_taps), axis=1)     # (hw_in, taps*hw_out)
        conv_inputs.append(jnp.asarray(w_bd, jnp.bfloat16))
        # 0/1 values are exact in bf16; bf16 halves the dominant G DMA.
        conv_inputs.append(jnp.asarray(g_cat, jnp.bfloat16))
        gammas.append(np.ones((cout,), np.float32))
        betas.append(np.zeros((cout,), np.float32))
        layer_meta.append(dict(taps=taps, cin=cin, cout=cout,
                               hw_out=hw_out, act=act, bn_off=bn_off))
        bn_off += cout

    # -------- encoder: Conv(3,2,1) -> BN -> LeakyReLU (no upsample) ---------
    cin = cin_x
    for idx, hdim in enumerate(hidden):
        hin, win = hw[idx]
        wt = conv33(cin, hdim)
        w_taps = np.transpose(wt.reshape(hdim, cin, 9), (2, 0, 1))
        g_taps, ho, wo = _selection_matrices(hin, win, hin, win)
        add_layer(w_taps, g_taps, cin, hdim, ho * wo, True)
        cin = hdim
    n_enc = len(hidden)
    flat = hidden[-1]                       # 1x1 bottleneck

    hidden_r = list(reversed(hidden))       # [8, 32, 64, 32]
    hw_r = list(reversed(hw))               # [(1,1),(2,2),(4,4),(8,8),(16,16)]

    # -------- decoder: Upsampler(out_size) -> BN -> LeakyReLU ---------------
    for i in range(len(hidden_r) - 1):
        hin, win = hw_r[i]
        hu, wu = 2 * hw_r[i + 1][0], 2 * hw_r[i + 1][1]
        wt = conv33(hidden_r[i], hidden_r[i + 1])
        w_taps = np.transpose(wt.reshape(hidden_r[i + 1], hidden_r[i], 9), (2, 0, 1))
        g_taps, ho, wo = _selection_matrices(hin, win, hu, wu)
        add_layer(w_taps, g_taps, hidden_r[i], hidden_r[i + 1], ho * wo, True)

    # -------- final layer part 1: Upsampler -> BN -> LeakyReLU --------------
    hin, win = hw_r[-2]
    hu, wu = 2 * hw_r[-1][0], 2 * hw_r[-1][1]
    wt = conv33(hidden_r[-1], hidden_r[-1])
    w_taps = np.transpose(wt.reshape(hidden_r[-1], hidden_r[-1], 9), (2, 0, 1))
    g_taps, ho, wo = _selection_matrices(hin, win, hu, wu)
    add_layer(w_taps, g_taps, hidden_r[-1], hidden_r[-1], ho * wo, True)

    # -------- final layer part 2: Upsampler(->1 channel) -> BN (no act) -----
    # exact fold of the x2 nearest upsample + pad + 3x3/s2 conv into 4 taps
    hin, win = hw_r[-1]
    wt = conv33(hidden_r[-1], 1)
    add_layer(_fold_weights_2x(wt), _folded_selection_matrices(hin, win),
              hidden_r[-1], 1, hin * win, False)

    # packed BatchNorm affine parameters: column 0 = gamma, column 1 = beta
    bn = np.stack([np.concatenate(gammas), np.concatenate(betas)], axis=1)

    # -------- fused latent path (block-diagonal over the batch) -------------
    wmu = rnd((z_dim, flat)) / np.sqrt(flat)
    wvar = rnd((z_dim, flat)) / np.sqrt(flat)
    wd = rnd((flat, z_dim)) / np.sqrt(z_dim)
    bmu = 0.01 * rnd((z_dim,))
    bvar = 0.01 * rnd((z_dim,))
    bd = 0.01 * rnd((flat,))

    wmv = np.concatenate([_block_diag(wmu, batch), _block_diag(wvar, batch)], 0)
    bmv = np.concatenate([np.tile(bmu, batch), np.tile(bvar, batch)])[:, None]
    wdd = _block_diag(wd, batch)
    bdd = np.tile(bd, batch)[:, None]

    params = {
        "conv": conv_inputs,
        "bn": jnp.asarray(bn, jnp.float32),
        "wmv": jnp.asarray(wmv, jnp.float32),
        "bmv": jnp.asarray(bmv, jnp.float32),
        "wd": jnp.asarray(wdd, jnp.float32),
        "bd": jnp.asarray(bdd, jnp.float32),
    }
    cfg = {"layers": tuple(layer_meta), "n_enc": n_enc, "batch": batch,
           "z_dim": z_dim, "out_hw": hw_r[-1]}
    return params, cfg


# ------------------------------- the kernel ---------------------------------

def _vae_kernel(*refs, layers, n_enc, batch, z_dim):
    n_layers = len(layers)
    x_ref, eps_ref = refs[0], refs[1]
    conv_refs = refs[2:2 + 2 * n_layers]
    (bn_ref, wmv_ref, bmv_ref,
     wd_ref, bd_ref) = refs[2 + 2 * n_layers:7 + 2 * n_layers]
    recon_ref, mu_ref, lv_ref = refs[7 + 2 * n_layers:]

    def conv_bn_act(a, li):
        meta = layers[li]
        w_ref = conv_refs[2 * li]
        g_ref = conv_refs[2 * li + 1]
        taps, cout, hw_out = meta["taps"], meta["cout"], meta["hw_out"]

        # ---- one fused selection matmul for all taps (per-image G) ----
        if a.shape[1] == 1:
            # 1x1 spatial input: selection is an outer-product broadcast (VPU)
            p = a * g_ref[...].astype(jnp.float32)            # (B*cin, taps*hw_out)
        else:
            p = jnp.dot(a.astype(jnp.bfloat16), g_ref[...],
                        preferred_element_type=jnp.float32)    # (B*cin, taps*hw_out)

        # ---- im2col: move the tap index onto the row axis (static slices) --
        cols = [p[:, k * hw_out:(k + 1) * hw_out] for k in range(taps)]
        im2col = jnp.concatenate(cols, axis=0).astype(jnp.bfloat16)

        # ---- one channel-mixing matmul (weights block-diag over the batch) -
        acc = jnp.dot(w_ref[...], im2col,
                      preferred_element_type=jnp.float32)      # (B*cout, hw_out)

        # ---- BatchNorm2d (training mode, batch stats), one-pass sum/sumsq --
        off = meta["bn_off"]
        gamma = bn_ref[off:off + cout, 0:1]
        beta = bn_ref[off:off + cout, 1:2]
        row_s = jnp.sum(acc, axis=1, keepdims=True)            # (B*cout, 1)
        row_q = jnp.sum(acc * acc, axis=1, keepdims=True)
        ch_s = row_s[0:cout]
        ch_q = row_q[0:cout]
        for b in range(1, batch):
            ch_s = ch_s + row_s[b * cout:(b + 1) * cout]
            ch_q = ch_q + row_q[b * cout:(b + 1) * cout]
        inv_n = 1.0 / float(batch * hw_out)
        mean = ch_s * inv_n
        var = ch_q * inv_n - mean * mean
        inv = lax.rsqrt(jnp.maximum(var, 0.0) + BN_EPS)
        scale = gamma * inv                                    # (cout, 1)
        shift = beta - mean * scale
        scale_full = jnp.concatenate([scale] * batch, axis=0)  # (B*cout, 1)
        shift_full = jnp.concatenate([shift] * batch, axis=0)
        y = acc * scale_full + shift_full
        if meta["act"]:
            y = jnp.where(y >= 0, y, LRELU_SLOPE * y)
        return y

    # ---------------- encoder ----------------
    a = x_ref[...]                                   # (B*Cin, H*W) f32
    for li in range(n_enc):
        a = conv_bn_act(a, li)

    # ---- latent: fused fc_mu/fc_var, reparameterise, decoder_input ----
    bz = batch * z_dim
    mulv = jnp.dot(wmv_ref[...], a,
                   preferred_element_type=jnp.float32) + bmv_ref[...]
    mu = mulv[0:bz]                                  # (B*z, 1), rows (b, j)
    lv = mulv[bz:2 * bz]
    zlat = mu + eps_ref[...] * jnp.exp(0.5 * lv)
    a = jnp.dot(wd_ref[...], zlat,
                preferred_element_type=jnp.float32) + bd_ref[...]   # (B*flat, 1)

    # ---------------- decoder + final ----------------
    for li in range(n_enc, n_layers):
        a = conv_bn_act(a, li)

    recon_ref[...] = a                               # (B, H*W) lane-dense
    mu_ref[...] = mu
    lv_ref[...] = lv


# ------------------------------ forward glue ---------------------------------

def make_vae_forward(cfg):
    layers, n_enc = cfg["layers"], cfg["n_enc"]
    batch, z_dim = cfg["batch"], cfg["z_dim"]
    out_h, out_w = cfg["out_hw"]
    kern = functools.partial(_vae_kernel, layers=layers, n_enc=n_enc,
                             batch=batch, z_dim=z_dim)

    @jax.jit
    def forward(params, x_nchw, eps):
        b, c, h, w = x_nchw.shape
        # NCHW -> (B*C, H*W): batch+channel on sublanes, pixels on lanes.
        x2 = x_nchw.reshape(b * c, h * w)
        eps2 = eps.reshape(b * z_dim, 1)

        inputs = [x2, eps2] + list(params["conv"]) + [
            params["bn"], params["wmv"], params["bmv"],
            params["wd"], params["bd"]]

        out_shape = (
            jax.ShapeDtypeStruct((b * 1, out_h * out_w), jnp.float32),
            jax.ShapeDtypeStruct((b * z_dim, 1), jnp.float32),
            jax.ShapeDtypeStruct((b * z_dim, 1), jnp.float32),
        )

        # VMEM budget derived from the actual operand footprint (+ headroom
        # for in-flight activations), clamped to the physical capacity.
        op_bytes = sum(int(np.prod(a.shape)) * a.dtype.itemsize for a in inputs)
        vmem_limit = 2 * op_bytes + 24 * 1024 * 1024
        try:
            vmem_limit = min(vmem_limit,
                             int(pltpu.get_tpu_info().vmem_capacity_bytes))
        except Exception:
            pass

        recon2, mu2, lv2 = pl.pallas_call(
            kern,
            out_shape=out_shape,
            in_specs=[_vmem_spec()] * len(inputs),
            out_specs=(_vmem_spec(),) * 3,
            compiler_params=pltpu.CompilerParams(
                vmem_limit_bytes=int(vmem_limit)),
        )(*inputs)

        recon = recon2.reshape(b, 1, out_h, out_w)
        return recon, mu2.reshape(b, z_dim), lv2.reshape(b, z_dim)

    return forward


if __name__ == "__main__":
    key = jax.random.PRNGKey(0)
    kx, kp, ke = jax.random.split(key, 3)

    B, C, H, W = 2, 4, 16, 16
    z_dim = 16

    x = jax.random.normal(kx, (B, C, H, W), jnp.float32)
    params, cfg = init_params(kp, B, C, z_dim, (H, W))
    # eps supplied externally (torch.randn_like equivalent), kept deterministic
    eps = jax.random.normal(ke, (B, z_dim), jnp.float32)

    forward = make_vae_forward(cfg)
    recon, mu, log_var = forward(params, x, eps)
    jax.block_until_ready((recon, mu, log_var))

    assert recon.shape == (B, 1, H, W), recon.shape
    assert mu.shape == (B, z_dim) and log_var.shape == (B, z_dim)
    assert bool(jnp.all(jnp.isfinite(recon)))
    assert bool(jnp.all(jnp.isfinite(mu))) and bool(jnp.all(jnp.isfinite(log_var)))
    print("KERNEL_OK")
</pallas_src>

<mosaic_0001>
module attributes {stable_mosaic.version = 11 : i64} {
  func.func @_vae_kernel(%arg0: memref<8x256xf32, #tpu.memory_space<vmem>>, %arg1: memref<32x1xf32, #tpu.memory_space<vmem>>, %arg2: memref<64x72xbf16, #tpu.memory_space<vmem>>, %arg3: memref<256x576xbf16, #tpu.memory_space<vmem>>, %arg4: memref<128x576xbf16, #tpu.memory_space<vmem>>, %arg5: memref<64x144xbf16, #tpu.memory_space<vmem>>, %arg6: memref<64x1152xbf16, #tpu.memory_space<vmem>>, %arg7: memref<16x36xbf16, #tpu.memory_space<vmem>>, %arg8: memref<16x576xbf16, #tpu.memory_space<vmem>>, %arg9: memref<4x9xbf16, #tpu.memory_space<vmem>>, %arg10: memref<64x144xbf16, #tpu.memory_space<vmem>>, %arg11: memref<1x36xbf16, #tpu.memory_space<vmem>>, %arg12: memref<128x576xbf16, #tpu.memory_space<vmem>>, %arg13: memref<4x144xbf16, #tpu.memory_space<vmem>>, %arg14: memref<64x1152xbf16, #tpu.memory_space<vmem>>, %arg15: memref<16x576xbf16, #tpu.memory_space<vmem>>, %arg16: memref<64x576xbf16, #tpu.memory_space<vmem>>, %arg17: memref<64x2304xbf16, #tpu.memory_space<vmem>>, %arg18: memref<2x256xbf16, #tpu.memory_space<vmem>>, %arg19: memref<256x1024xbf16, #tpu.memory_space<vmem>>, %arg20: memref<297x2xf32, #tpu.memory_space<vmem>>, %arg21: memref<64x16xf32, #tpu.memory_space<vmem>>, %arg22: memref<64x1xf32, #tpu.memory_space<vmem>>, %arg23: memref<16x32xf32, #tpu.memory_space<vmem>>, %arg24: memref<16x1xf32, #tpu.memory_space<vmem>>, %arg25: memref<2x256xf32, #tpu.memory_space<vmem>>, %arg26: memref<32x1xf32, #tpu.memory_space<vmem>>, %arg27: memref<32x1xf32, #tpu.memory_space<vmem>>) attributes {dimension_semantics = [], scalar_prefetch = 0 : i64, scratch_operands = 0 : i64, tpu.core_type = #tpu.core_type<tc>} {
    %c0 = arith.constant 0 : index
    %c0_0 = arith.constant 0 : index
    %0 = vector.load %arg0[%c0, %c0_0] : memref<8x256xf32, #tpu.memory_space<vmem>>, vector<8x256xf32>
    %1 = arith.truncf %0 : vector<8x256xf32> to vector<8x256xbf16>
    %c0_1 = arith.constant 0 : index
    %c0_2 = arith.constant 0 : index
    %2 = vector.load %arg3[%c0_1, %c0_2] : memref<256x576xbf16, #tpu.memory_space<vmem>>, vector<256x576xbf16>
    %cst = arith.constant dense<0.000000e+00> : vector<8x576xf32>
    %3 = tpu.matmul %1, %2, %cst {dimension_numbers = #tpu.dot_dimension_numbers<[1], [0], [0], [1], [0, 0, 1, 1], [], []>} : vector<8x256xbf16>, vector<256x576xbf16>, vector<8x576xf32> -> vector<8x576xf32>
    %4 = vector.extract_strided_slice %3 {offsets = [0, 0], sizes = [8, 64], strides = [1, 1]} : vector<8x576xf32> to vector<8x64xf32>
    %5 = vector.extract_strided_slice %3 {offsets = [0, 64], sizes = [8, 64], strides = [1, 1]} : vector<8x576xf32> to vector<8x64xf32>
    %6 = vector.extract_strided_slice %3 {offsets = [0, 128], sizes = [8, 64], strides = [1, 1]} : vector<8x576xf32> to vector<8x64xf32>
    %7 = vector.extract_strided_slice %3 {offsets = [0, 192], sizes = [8, 64], strides = [1, 1]} : vector<8x576xf32> to vector<8x64xf32>
    %8 = vector.extract_strided_slice %3 {offsets = [0, 256], sizes = [8, 64], strides = [1, 1]} : vector<8x576xf32> to vector<8x64xf32>
    %9 = vector.extract_strided_slice %3 {offsets = [0, 320], sizes = [8, 64], strides = [1, 1]} : vector<8x576xf32> to vector<8x64xf32>
    %10 = vector.extract_strided_slice %3 {offsets = [0, 384], sizes = [8, 64], strides = [1, 1]} : vector<8x576xf32> to vector<8x64xf32>
    %11 = vector.extract_strided_slice %3 {offsets = [0, 448], sizes = [8, 64], strides = [1, 1]} : vector<8x576xf32> to vector<8x64xf32>
    %12 = vector.extract_strided_slice %3 {offsets = [0, 512], sizes = [8, 64], strides = [1, 1]} : vector<8x576xf32> to vector<8x64xf32>
    %13 = tpu.concatenate %4, %5, %6, %7, %8, %9, %10, %11, %12 in 0 : vector<8x64xf32>, vector<8x64xf32>, vector<8x64xf32>, vector<8x64xf32>, vector<8x64xf32>, vector<8x64xf32>, vector<8x64xf32>, vector<8x64xf32>, vector<8x64xf32> -> vector<72x64xf32>
    %14 = arith.truncf %13 : vector<72x64xf32> to vector<72x64xbf16>
    %c0_3 = arith.constant 0 : index
    %c0_4 = arith.constant 0 : index
    %15 = vector.load %arg2[%c0_3, %c0_4] : memref<64x72xbf16, #tpu.memory_space<vmem>>, vector<64x72xbf16>
    %cst_5 = arith.constant dense<0.000000e+00> : vector<64x64xf32>
    %16 = tpu.matmul %15, %14, %cst_5 {dimension_numbers = #tpu.dot_dimension_numbers<[1], [0], [0], [1], [0, 0, 1, 1], [], []>} : vector<64x72xbf16>, vector<72x64xbf16>, vector<64x64xf32> -> vector<64x64xf32>
    %c0_6 = arith.constant 0 : index
    %c0_7 = arith.constant 0 : index
    %17 = vector.load %arg20[%c0_6, %c0_7] : memref<297x2xf32, #tpu.memory_space<vmem>>, vector<32x1xf32>
    %c0_8 = arith.constant 0 : index
    %c1 = arith.constant 1 : index
    %18 = vector.load %arg20[%c0_8, %c1] : memref<297x2xf32, #tpu.memory_space<vmem>>, vector<32x1xf32>
    %cst_9 = arith.constant dense<0.000000e+00> : vector<64xf32>
    %19 = vector.multi_reduction <add>, %16, %cst_9 [1] : vector<64x64xf32> to vector<64xf32>
    %20 = vector.shape_cast %19 : vector<64xf32> to vector<64x1xf32>
    %21 = arith.mulf %16, %16 : vector<64x64xf32>
    %cst_10 = arith.constant dense<0.000000e+00> : vector<64xf32>
    %22 = vector.multi_reduction <add>, %21, %cst_10 [1] : vector<64x64xf32> to vector<64xf32>
    %23 = vector.shape_cast %22 : vector<64xf32> to vector<64x1xf32>
    %24 = vector.extract_strided_slice %20 {offsets = [0, 0], sizes = [32, 1], strides = [1, 1]} : vector<64x1xf32> to vector<32x1xf32>
    %25 = vector.extract_strided_slice %23 {offsets = [0, 0], sizes = [32, 1], strides = [1, 1]} : vector<64x1xf32> to vector<32x1xf32>
    %26 = vector.extract_strided_slice %20 {offsets = [32, 0], sizes = [32, 1], strides = [1, 1]} : vector<64x1xf32> to vector<32x1xf32>
    %27 = arith.addf %24, %26 : vector<32x1xf32>
    %28 = vector.extract_strided_slice %23 {offsets = [32, 0], sizes = [32, 1], strides = [1, 1]} : vector<64x1xf32> to vector<32x1xf32>
    %29 = arith.addf %25, %28 : vector<32x1xf32>
    %cst_11 = arith.constant 7.812500e-03 : f32
    %30 = vector.broadcast %cst_11 : f32 to vector<32x1xf32>
    %31 = arith.mulf %27, %30 : vector<32x1xf32>
    %cst_12 = arith.constant 7.812500e-03 : f32
    %32 = vector.broadcast %cst_12 : f32 to vector<32x1xf32>
    %33 = arith.mulf %29, %32 : vector<32x1xf32>
    %34 = arith.mulf %31, %31 : vector<32x1xf32>
    %35 = arith.subf %33, %34 : vector<32x1xf32>
    %cst_13 = arith.constant 0.000000e+00 : f32
    %36 = vector.broadcast %cst_13 : f32 to vector<32x1xf32>
    %37 = arith.maximumf %35, %36 : vector<32x1xf32>
    %cst_14 = arith.constant 9.99999974E-6 : f32
    %38 = vector.broadcast %cst_14 : f32 to vector<32x1xf32>
    %39 = arith.addf %37, %38 : vector<32x1xf32>
    %40 = math.rsqrt %39 : vector<32x1xf32>
    %41 = arith.mulf %17, %40 : vector<32x1xf32>
    %42 = arith.mulf %31, %41 : vector<32x1xf32>
    %43 = arith.subf %18, %42 : vector<32x1xf32>
    %44 = tpu.concatenate %41, %41 in 0 : vector<32x1xf32>, vector<32x1xf32> -> vector<64x1xf32>
    %45 = tpu.concatenate %43, %43 in 0 : vector<32x1xf32>, vector<32x1xf32> -> vector<64x1xf32>
    %46 = vector.broadcast %44 : vector<64x1xf32> to vector<64x64xf32>
    %47 = arith.mulf %16, %46 : vector<64x64xf32>
    %48 = vector.broadcast %45 : vector<64x1xf32> to vector<64x64xf32>
    %49 = arith.addf %47, %48 : vector<64x64xf32>
    %cst_15 = arith.constant 0.000000e+00 : f32
    %50 = vector.broadcast %cst_15 : f32 to vector<64x64xf32>
    %51 = arith.cmpf oge, %49, %50 : vector<64x64xf32>
    %cst_16 = arith.constant 0.00999999977 : f32
    %52 = vector.broadcast %cst_16 : f32 to vector<64x64xf32>
    %53 = arith.mulf %52, %49 : vector<64x64xf32>
    %54 = arith.select %51, %49, %53 : vector<64x64xi1>, vector<64x64xf32>
    %55 = arith.truncf %54 : vector<64x64xf32> to vector<64x64xbf16>
    %c0_17 = arith.constant 0 : index
    %c0_18 = arith.constant 0 : index
    %56 = vector.load %arg5[%c0_17, %c0_18] : memref<64x144xbf16, #tpu.memory_space<vmem>>, vector<64x144xbf16>
    %cst_19 = arith.constant dense<0.000000e+00> : vector<64x144xf32>
    %57 = tpu.matmul %55, %56, %cst_19 {dimension_numbers = #tpu.dot_dimension_numbers<[1], [0], [0], [1], [0, 0, 1, 1], [], []>} : vector<64x64xbf16>, vector<64x144xbf16>, vector<64x144xf32> -> vector<64x144xf32>
    %58 = vector.extract_strided_slice %57 {offsets = [0, 0], sizes = [64, 16], strides = [1, 1]} : vector<64x144xf32> to vector<64x16xf32>
    %59 = vector.extract_strided_slice %57 {offsets = [0, 16], sizes = [64, 16], strides = [1, 1]} : vector<64x144xf32> to vector<64x16xf32>
    %60 = vector.extract_strided_slice %57 {offsets = [0, 32], sizes = [64, 16], strides = [1, 1]} : vector<64x144xf32> to vector<64x16xf32>
    %61 = vector.extract_strided_slice %57 {offsets = [0, 48], sizes = [64, 16], strides = [1, 1]} : vector<64x144xf32> to vector<64x16xf32>
    %62 = vector.extract_strided_slice %57 {offsets = [0, 64], sizes = [64, 16], strides = [1, 1]} : vector<64x144xf32> to vector<64x16xf32>
    %63 = vector.extract_strided_slice %57 {offsets = [0, 80], sizes = [64, 16], strides = [1, 1]} : vector<64x144xf32> to vector<64x16xf32>
    %64 = vector.extract_strided_slice %57 {offsets = [0, 96], sizes = [64, 16], strides = [1, 1]} : vector<64x144xf32> to vector<64x16xf32>
    %65 = vector.extract_strided_slice %57 {offsets = [0, 112], sizes = [64, 16], strides = [1, 1]} : vector<64x144xf32> to vector<64x16xf32>
    %66 = vector.extract_strided_slice %57 {offsets = [0, 128], sizes = [64, 16], strides = [1, 1]} : vector<64x144xf32> to vector<64x16xf32>
    %67 = tpu.concatenate %58, %59, %60, %61, %62, %63, %64, %65, %66 in 0 : vector<64x16xf32>, vector<64x16xf32>, vector<64x16xf32>, vector<64x16xf32>, vector<64x16xf32>, vector<64x16xf32>, vector<64x16xf32>, vector<64x16xf32>, vector<64x16xf32> -> vector<576x16xf32>
    %68 = arith.truncf %67 : vector<576x16xf32> to vector<576x16xbf16>
    %c0_20 = arith.constant 0 : index
    %c0_21 = arith.constant 0 : index
    %69 = vector.load %arg4[%c0_20, %c0_21] : memref<128x576xbf16, #tpu.memory_space<vmem>>, vector<128x576xbf16>
    %cst_22 = arith.constant dense<0.000000e+00> : vector<128x16xf32>
    %70 = tpu.matmul %69, %68, %cst_22 {dimension_numbers = #tpu.dot_dimension_numbers<[1], [0], [0], [1], [0, 0, 1, 1], [], []>} : vector<128x576xbf16>, vector<576x16xbf16>, vector<128x16xf32> -> vector<128x16xf32>
    %c32 = arith.constant 32 : index
    %c0_23 = arith.constant 0 : index
    %71 = vector.load %arg20[%c32, %c0_23] : memref<297x2xf32, #tpu.memory_space<vmem>>, vector<64x1xf32>
    %c32_24 = arith.constant 32 : index
    %c1_25 = arith.constant 1 : index
    %72 = vector.load %arg20[%c32_24, %c1_25] : memref<297x2xf32, #tpu.memory_space<vmem>>, vector<64x1xf32>
    %cst_26 = arith.constant dense<0.000000e+00> : vector<128xf32>
    %73 = vector.multi_reduction <add>, %70, %cst_26 [1] : vector<128x16xf32> to vector<128xf32>
    %74 = vector.shape_cast %73 : vector<128xf32> to vector<128x1xf32>
    %75 = arith.mulf %70, %70 : vector<128x16xf32>
    %cst_27 = arith.constant dense<0.000000e+00> : vector<128xf32>
    %76 = vector.multi_reduction <add>, %75, %cst_27 [1] : vector<128x16xf32> to vector<128xf32>
    %77 = vector.shape_cast %76 : vector<128xf32> to vector<128x1xf32>
    %78 = vector.extract_strided_slice %74 {offsets = [0, 0], sizes = [64, 1], strides = [1, 1]} : vector<128x1xf32> to vector<64x1xf32>
    %79 = vector.extract_strided_slice %77 {offsets = [0, 0], sizes = [64, 1], strides = [1, 1]} : vector<128x1xf32> to vector<64x1xf32>
    %80 = vector.extract_strided_slice %74 {offsets = [64, 0], sizes = [64, 1], strides = [1, 1]} : vector<128x1xf32> to vector<64x1xf32>
    %81 = arith.addf %78, %80 : vector<64x1xf32>
    %82 = vector.extract_strided_slice %77 {offsets = [64, 0], sizes = [64, 1], strides = [1, 1]} : vector<128x1xf32> to vector<64x1xf32>
    %83 = arith.addf %79, %82 : vector<64x1xf32>
    %cst_28 = arith.constant 3.125000e-02 : f32
    %84 = vector.broadcast %cst_28 : f32 to vector<64x1xf32>
    %85 = arith.mulf %81, %84 : vector<64x1xf32>
    %cst_29 = arith.constant 3.125000e-02 : f32
    %86 = vector.broadcast %cst_29 : f32 to vector<64x1xf32>
    %87 = arith.mulf %83, %86 : vector<64x1xf32>
    %88 = arith.mulf %85, %85 : vector<64x1xf32>
    %89 = arith.subf %87, %88 : vector<64x1xf32>
    %cst_30 = arith.constant 0.000000e+00 : f32
    %90 = vector.broadcast %cst_30 : f32 to vector<64x1xf32>
    %91 = arith.maximumf %89, %90 : vector<64x1xf32>
    %cst_31 = arith.constant 9.99999974E-6 : f32
    %92 = vector.broadcast %cst_31 : f32 to vector<64x1xf32>
    %93 = arith.addf %91, %92 : vector<64x1xf32>
    %94 = math.rsqrt %93 : vector<64x1xf32>
    %95 = arith.mulf %71, %94 : vector<64x1xf32>
    %96 = arith.mulf %85, %95 : vector<64x1xf32>
    %97 = arith.subf %72, %96 : vector<64x1xf32>
    %98 = tpu.concatenate %95, %95 in 0 : vector<64x1xf32>, vector<64x1xf32> -> vector<128x1xf32>
    %99 = tpu.concatenate %97, %97 in 0 : vector<64x1xf32>, vector<64x1xf32> -> vector<128x1xf32>
    %100 = vector.broadcast %98 : vector<128x1xf32> to vector<128x16xf32>
    %101 = arith.mulf %70, %100 : vector<128x16xf32>
    %102 = vector.broadcast %99 : vector<128x1xf32> to vector<128x16xf32>
    %103 = arith.addf %101, %102 : vector<128x16xf32>
    %cst_32 = arith.constant 0.000000e+00 : f32
    %104 = vector.broadcast %cst_32 : f32 to vector<128x16xf32>
    %105 = arith.cmpf oge, %103, %104 : vector<128x16xf32>
    %cst_33 = arith.constant 0.00999999977 : f32
    %106 = vector.broadcast %cst_33 : f32 to vector<128x16xf32>
    %107 = arith.mulf %106, %103 : vector<128x16xf32>
    %108 = arith.select %105, %103, %107 : vector<128x16xi1>, vector<128x16xf32>
    %109 = arith.truncf %108 : vector<128x16xf32> to vector<128x16xbf16>
    %c0_34 = arith.constant 0 : index
    %c0_35 = arith.constant 0 : index
    %110 = vector.load %arg7[%c0_34, %c0_35] : memref<16x36xbf16, #tpu.memory_space<vmem>>, vector<16x36xbf16>
    %cst_36 = arith.constant dense<0.000000e+00> : vector<128x36xf32>
    %111 = tpu.matmul %109, %110, %cst_36 {dimension_numbers = #tpu.dot_dimension_numbers<[1], [0], [0], [1], [0, 0, 1, 1], [], []>} : vector<128x16xbf16>, vector<16x36xbf16>, vector<128x36xf32> -> vector<128x36xf32>
    %112 = vector.extract_strided_slice %111 {offsets = [0, 0], sizes = [128, 4], strides = [1, 1]} : vector<128x36xf32> to vector<128x4xf32>
    %113 = vector.extract_strided_slice %111 {offsets = [0, 4], sizes = [128, 4], strides = [1, 1]} : vector<128x36xf32> to vector<128x4xf32>
    %114 = vector.extract_strided_slice %111 {offsets = [0, 8], sizes = [128, 4], strides = [1, 1]} : vector<128x36xf32> to vector<128x4xf32>
    %115 = vector.extract_strided_slice %111 {offsets = [0, 12], sizes = [128, 4], strides = [1, 1]} : vector<128x36xf32> to vector<128x4xf32>
    %116 = vector.extract_strided_slice %111 {offsets = [0, 16], sizes = [128, 4], strides = [1, 1]} : vector<128x36xf32> to vector<128x4xf32>
    %117 = vector.extract_strided_slice %111 {offsets = [0, 20], sizes = [128, 4], strides = [1, 1]} : vector<128x36xf32> to vector<128x4xf32>
    %118 = vector.extract_strided_slice %111 {offsets = [0, 24], sizes = [128, 4], strides = [1, 1]} : vector<128x36xf32> to vector<128x4xf32>
    %119 = vector.extract_strided_slice %111 {offsets = [0, 28], sizes = [128, 4], strides = [1, 1]} : vector<128x36xf32> to vector<128x4xf32>
    %120 = vector.extract_strided_slice %111 {offsets = [0, 32], sizes = [128, 4], strides = [1, 1]} : vector<128x36xf32> to vector<128x4xf32>
    %121 = tpu.concatenate %112, %113, %114, %115, %116, %117, %118, %119, %120 in 0 : vector<128x4xf32>, vector<128x4xf32>, vector<128x4xf32>, vector<128x4xf32>, vector<128x4xf32>, vector<128x4xf32>, vector<128x4xf32>, vector<128x4xf32>, vector<128x4xf32> -> vector<1152x4xf32>
    %122 = arith.truncf %121 : vector<1152x4xf32> to vector<1152x4xbf16>
    %c0_37 = arith.constant 0 : index
    %c0_38 = arith.constant 0 : index
    %123 = vector.load %arg6[%c0_37, %c0_38] : memref<64x1152xbf16, #tpu.memory_space<vmem>>, vector<64x1152xbf16>
    %cst_39 = arith.constant dense<0.000000e+00> : vector<64x4xf32>
    %124 = tpu.matmul %123, %122, %cst_39 {dimension_numbers = #tpu.dot_dimension_numbers<[1], [0], [0], [1], [0, 0, 1, 1], [], []>} : vector<64x1152xbf16>, vector<1152x4xbf16>, vector<64x4xf32> -> vector<64x4xf32>
    %c96 = arith.constant 96 : index
    %c0_40 = arith.constant 0 : index
    %125 = vector.load %arg20[%c96, %c0_40] : memref<297x2xf32, #tpu.memory_space<vmem>>, vector<32x1xf32>
    %c96_41 = arith.constant 96 : index
    %c1_42 = arith.constant 1 : index
    %126 = vector.load %arg20[%c96_41, %c1_42] : memref<297x2xf32, #tpu.memory_space<vmem>>, vector<32x1xf32>
    %cst_43 = arith.constant dense<0.000000e+00> : vector<64xf32>
    %127 = vector.multi_reduction <add>, %124, %cst_43 [1] : vector<64x4xf32> to vector<64xf32>
    %128 = vector.shape_cast %127 : vector<64xf32> to vector<64x1xf32>
    %129 = arith.mulf %124, %124 : vector<64x4xf32>
    %cst_44 = arith.constant dense<0.000000e+00> : vector<64xf32>
    %130 = vector.multi_reduction <add>, %129, %cst_44 [1] : vector<64x4xf32> to vector<64xf32>
    %131 = vector.shape_cast %130 : vector<64xf32> to vector<64x1xf32>
    %132 = vector.extract_strided_slice %128 {offsets = [0, 0], sizes = [32, 1], strides = [1, 1]} : vector<64x1xf32> to vector<32x1xf32>
    %133 = vector.extract_strided_slice %131 {offsets = [0, 0], sizes = [32, 1], strides = [1, 1]} : vector<64x1xf32> to vector<32x1xf32>
    %134 = vector.extract_strided_slice %128 {offsets = [32, 0], sizes = [32, 1], strides = [1, 1]} : vector<64x1xf32> to vector<32x1xf32>
    %135 = arith.addf %132, %134 : vector<32x1xf32>
    %136 = vector.extract_strided_slice %131 {offsets = [32, 0], sizes = [32, 1], strides = [1, 1]} : vector<64x1xf32> to vector<32x1xf32>
    %137 = arith.addf %133, %136 : vector<32x1xf32>
    %cst_45 = arith.constant 1.250000e-01 : f32
    %138 = vector.broadcast %cst_45 : f32 to vector<32x1xf32>
    %139 = arith.mulf %135, %138 : vector<32x1xf32>
    %cst_46 = arith.constant 1.250000e-01 : f32
    %140 = vector.broadcast %cst_46 : f32 to vector<32x1xf32>
    %141 = arith.mulf %137, %140 : vector<32x1xf32>
    %142 = arith.mulf %139, %139 : vector<32x1xf32>
    %143 = arith.subf %141, %142 : vector<32x1xf32>
    %cst_47 = arith.constant 0.000000e+00 : f32
    %144 = vector.broadcast %cst_47 : f32 to vector<32x1xf32>
    %145 = arith.maximumf %143, %144 : vector<32x1xf32>
    %cst_48 = arith.constant 9.99999974E-6 : f32
    %146 = vector.broadcast %cst_48 : f32 to vector<32x1xf32>
    %147 = arith.addf %145, %146 : vector<32x1xf32>
    %148 = math.rsqrt %147 : vector<32x1xf32>
    %149 = arith.mulf %125, %148 : vector<32x1xf32>
    %150 = arith.mulf %139, %149 : vector<32x1xf32>
    %151 = arith.subf %126, %150 : vector<32x1xf32>
    %152 = tpu.concatenate %149, %149 in 0 : vector<32x1xf32>, vector<32x1xf32> -> vector<64x1xf32>
    %153 = tpu.concatenate %151, %151 in 0 : vector<32x1xf32>, vector<32x1xf32> -> vector<64x1xf32>
    %154 = vector.broadcast %152 : vector<64x1xf32> to vector<64x4xf32>
    %155 = arith.mulf %124, %154 : vector<64x4xf32>
    %156 = vector.broadcast %153 : vector<64x1xf32> to vector<64x4xf32>
    %157 = arith.addf %155, %156 : vector<64x4xf32>
    %cst_49 = arith.constant 0.000000e+00 : f32
    %158 = vector.broadcast %cst_49 : f32 to vector<64x4xf32>
    %159 = arith.cmpf oge, %157, %158 : vector<64x4xf32>
    %cst_50 = arith.constant 0.00999999977 : f32
    %160 = vector.broadcast %cst_50 : f32 to vector<64x4xf32>
    %161 = arith.mulf %160, %157 : vector<64x4xf32>
    %162 = arith.select %159, %157, %161 : vector<64x4xi1>, vector<64x4xf32>
    %163 = arith.truncf %162 : vector<64x4xf32> to vector<64x4xbf16>
    %c0_51 = arith.constant 0 : index
    %c0_52 = arith.constant 0 : index
    %164 = vector.load %arg9[%c0_51, %c0_52] : memref<4x9xbf16, #tpu.memory_space<vmem>>, vector<4x9xbf16>
    %cst_53 = arith.constant dense<0.000000e+00> : vector<64x9xf32>
    %165 = tpu.matmul %163, %164, %cst_53 {dimension_numbers = #tpu.dot_dimension_numbers<[1], [0], [0], [1], [0, 0, 1, 1], [], []>} : vector<64x4xbf16>, vector<4x9xbf16>, vector<64x9xf32> -> vector<64x9xf32>
    %166 = vector.extract_strided_slice %165 {offsets = [0, 0], sizes = [64, 1], strides = [1, 1]} : vector<64x9xf32> to vector<64x1xf32>
    %167 = vector.extract_strided_slice %165 {offsets = [0, 1], sizes = [64, 1], strides = [1, 1]} : vector<64x9xf32> to vector<64x1xf32>
    %168 = vector.extract_strided_slice %165 {offsets = [0, 2], sizes = [64, 1], strides = [1, 1]} : vector<64x9xf32> to vector<64x1xf32>
    %169 = vector.extract_strided_slice %165 {offsets = [0, 3], sizes = [64, 1], strides = [1, 1]} : vector<64x9xf32> to vector<64x1xf32>
    %170 = vector.extract_strided_slice %165 {offsets = [0, 4], sizes = [64, 1], strides = [1, 1]} : vector<64x9xf32> to vector<64x1xf32>
    %171 = vector.extract_strided_slice %165 {offsets = [0, 5], sizes = [64, 1], strides = [1, 1]} : vector<64x9xf32> to vector<64x1xf32>
    %172 = vector.extract_strided_slice %165 {offsets = [0, 6], sizes = [64, 1], strides = [1, 1]} : vector<64x9xf32> to vector<64x1xf32>
    %173 = vector.extract_strided_slice %165 {offsets = [0, 7], sizes = [64, 1], strides = [1, 1]} : vector<64x9xf32> to vector<64x1xf32>
    %174 = vector.extract_strided_slice %165 {offsets = [0, 8], sizes = [64, 1], strides = [1, 1]} : vector<64x9xf32> to vector<64x1xf32>
    %175 = tpu.concatenate %166, %167, %168, %169, %170, %171, %172, %173, %174 in 0 : vector<64x1xf32>, vector<64x1xf32>, vector<64x1xf32>, vector<64x1xf32>, vector<64x1xf32>, vector<64x1xf32>, vector<64x1xf32>, vector<64x1xf32>, vector<64x1xf32> -> vector<576x1xf32>
    %176 = arith.truncf %175 : vector<576x1xf32> to vector<576x1xbf16>
    %c0_54 = arith.constant 0 : index
    %c0_55 = arith.constant 0 : index
    %177 = vector.load %arg8[%c0_54, %c0_55] : memref<16x576xbf16, #tpu.memory_space<vmem>>, vector<16x576xbf16>
    %cst_56 = arith.constant dense<0.000000e+00> : vector<16x1xf32>
    %178 = tpu.matmul %177, %176, %cst_56 {dimension_numbers = #tpu.dot_dimension_numbers<[1], [0], [0], [1], [0, 0, 1, 1], [], []>} : vector<16x576xbf16>, vector<576x1xbf16>, vector<16x1xf32> -> vector<16x1xf32>
    %c128 = arith.constant 128 : index
    %c0_57 = arith.constant 0 : index
    %179 = vector.load %arg20[%c128, %c0_57] : memref<297x2xf32, #tpu.memory_space<vmem>>, vector<8x1xf32>
    %c128_58 = arith.constant 128 : index
    %c1_59 = arith.constant 1 : index
    %180 = vector.load %arg20[%c128_58, %c1_59] : memref<297x2xf32, #tpu.memory_space<vmem>>, vector<8x1xf32>
    %cst_60 = arith.constant dense<0.000000e+00> : vector<16xf32>
    %181 = vector.multi_reduction <add>, %178, %cst_60 [1] : vector<16x1xf32> to vector<16xf32>
    %182 = vector.shape_cast %181 : vector<16xf32> to vector<16x1xf32>
    %183 = arith.mulf %178, %178 : vector<16x1xf32>
    %cst_61 = arith.constant dense<0.000000e+00> : vector<16xf32>
    %184 = vector.multi_reduction <add>, %183, %cst_61 [1] : vector<16x1xf32> to vector<16xf32>
    %185 = vector.shape_cast %184 : vector<16xf32> to vector<16x1xf32>
    %186 = vector.extract_strided_slice %182 {offsets = [0, 0], sizes = [8, 1], strides = [1, 1]} : vector<16x1xf32> to vector<8x1xf32>
    %187 = vector.extract_strided_slice %185 {offsets = [0, 0], sizes = [8, 1], strides = [1, 1]} : vector<16x1xf32> to vector<8x1xf32>
    %188 = vector.extract_strided_slice %182 {offsets = [8, 0], sizes = [8, 1], strides = [1, 1]} : vector<16x1xf32> to vector<8x1xf32>
    %189 = arith.addf %186, %188 : vector<8x1xf32>
    %190 = vector.extract_strided_slice %185 {offsets = [8, 0], sizes = [8, 1], strides = [1, 1]} : vector<16x1xf32> to vector<8x1xf32>
    %191 = arith.addf %187, %190 : vector<8x1xf32>
    %cst_62 = arith.constant 5.000000e-01 : f32
    %192 = vector.broadcast %cst_62 : f32 to vector<8x1xf32>
    %193 = arith.mulf %189, %192 : vector<8x1xf32>
    %cst_63 = arith.constant 5.000000e-01 : f32
    %194 = vector.broadcast %cst_63 : f32 to vector<8x1xf32>
    %195 = arith.mulf %191, %194 : vector<8x1xf32>
    %196 = arith.mulf %193, %193 : vector<8x1xf32>
    %197 = arith.subf %195, %196 : vector<8x1xf32>
    %cst_64 = arith.constant 0.000000e+00 : f32
    %198 = vector.broadcast %cst_64 : f32 to vector<8x1xf32>
    %199 = arith.maximumf %197, %198 : vector<8x1xf32>
    %cst_65 = arith.constant 9.99999974E-6 : f32
    %200 = vector.broadcast %cst_65 : f32 to vector<8x1xf32>
    %201 = arith.addf %199, %200 : vector<8x1xf32>
    %202 = math.rsqrt %201 : vector<8x1xf32>
    %203 = arith.mulf %179, %202 : vector<8x1xf32>
    %204 = arith.mulf %193, %203 : vector<8x1xf32>
    %205 = arith.subf %180, %204 : vector<8x1xf32>
    %206 = tpu.concatenate %203, %203 in 0 : vector<8x1xf32>, vector<8x1xf32> -> vector<16x1xf32>
    %207 = tpu.concatenate %205, %205 in 0 : vector<8x1xf32>, vector<8x1xf32> -> vector<16x1xf32>
    %208 = arith.mulf %178, %206 : vector<16x1xf32>
    %209 = arith.addf %208, %207 : vector<16x1xf32>
    %cst_66 = arith.constant 0.000000e+00 : f32
    %210 = vector.broadcast %cst_66 : f32 to vector<16x1xf32>
    %211 = arith.cmpf oge, %209, %210 : vector<16x1xf32>
    %cst_67 = arith.constant 0.00999999977 : f32
    %212 = vector.broadcast %cst_67 : f32 to vector<16x1xf32>
    %213 = arith.mulf %212, %209 : vector<16x1xf32>
    %214 = arith.select %211, %209, %213 : vector<16x1xi1>, vector<16x1xf32>
    %c0_68 = arith.constant 0 : index
    %c0_69 = arith.constant 0 : index
    %215 = vector.load %arg21[%c0_68, %c0_69] : memref<64x16xf32, #tpu.memory_space<vmem>>, vector<64x16xf32>
    %cst_70 = arith.constant dense<0.000000e+00> : vector<64x1xf32>
    %216 = tpu.matmul %215, %214, %cst_70 {dimension_numbers = #tpu.dot_dimension_numbers<[1], [0], [0], [1], [0, 0, 1, 1], [], []>} : vector<64x16xf32>, vector<16x1xf32>, vector<64x1xf32> -> vector<64x1xf32>
    %c0_71 = arith.constant 0 : index
    %c0_72 = arith.constant 0 : index
    %217 = vector.load %arg22[%c0_71, %c0_72] : memref<64x1xf32, #tpu.memory_space<vmem>>, vector<64x1xf32>
    %218 = arith.addf %216, %217 : vector<64x1xf32>
    %219 = vector.extract_strided_slice %218 {offsets = [0, 0], sizes = [32, 1], strides = [1, 1]} : vector<64x1xf32> to vector<32x1xf32>
    %220 = vector.extract_strided_slice %218 {offsets = [32, 0], sizes = [32, 1], strides = [1, 1]} : vector<64x1xf32> to vector<32x1xf32>
    %c0_73 = arith.constant 0 : index
    %c0_74 = arith.constant 0 : index
    %221 = vector.load %arg1[%c0_73, %c0_74] : memref<32x1xf32, #tpu.memory_space<vmem>>, vector<32x1xf32>
    %cst_75 = arith.constant 5.000000e-01 : f32
    %222 = vector.broadcast %cst_75 : f32 to vector<32x1xf32>
    %223 = arith.mulf %222, %220 : vector<32x1xf32>
    %224 = math.exp %223 : vector<32x1xf32>
    %225 = arith.mulf %221, %224 : vector<32x1xf32>
    %226 = arith.addf %219, %225 : vector<32x1xf32>
    %c0_76 = arith.constant 0 : index
    %c0_77 = arith.constant 0 : index
    %227 = vector.load %arg23[%c0_76, %c0_77] : memref<16x32xf32, #tpu.memory_space<vmem>>, vector<16x32xf32>
    %cst_78 = arith.constant dense<0.000000e+00> : vector<16x1xf32>
    %228 = tpu.matmul %227, %226, %cst_78 {dimension_numbers = #tpu.dot_dimension_numbers<[1], [0], [0], [1], [0, 0, 1, 1], [], []>} : vector<16x32xf32>, vector<32x1xf32>, vector<16x1xf32> -> vector<16x1xf32>
    %c0_79 = arith.constant 0 : index
    %c0_80 = arith.constant 0 : index
    %229 = vector.load %arg24[%c0_79, %c0_80] : memref<16x1xf32, #tpu.memory_space<vmem>>, vector<16x1xf32>
    %230 = arith.addf %228, %229 : vector<16x1xf32>
    %c0_81 = arith.constant 0 : index
    %c0_82 = arith.constant 0 : index
    %231 = vector.load %arg11[%c0_81, %c0_82] : memref<1x36xbf16, #tpu.memory_space<vmem>>, vector<1x36xbf16>
    %232 = arith.extf %231 : vector<1x36xbf16> to vector<1x36xf32>
    %233 = vector.broadcast %230 : vector<16x1xf32> to vector<16x36xf32>
    %234 = vector.broadcast %232 : vector<1x36xf32> to vector<16x36xf32>
    %235 = arith.mulf %233, %234 : vector<16x36xf32>
    %236 = vector.extract_strided_slice %235 {offsets = [0, 0], sizes = [16, 4], strides = [1, 1]} : vector<16x36xf32> to vector<16x4xf32>
    %237 = vector.extract_strided_slice %235 {offsets = [0, 4], sizes = [16, 4], strides = [1, 1]} : vector<16x36xf32> to vector<16x4xf32>
    %238 = vector.extract_strided_slice %235 {offsets = [0, 8], sizes = [16, 4], strides = [1, 1]} : vector<16x36xf32> to vector<16x4xf32>
    %239 = vector.extract_strided_slice %235 {offsets = [0, 12], sizes = [16, 4], strides = [1, 1]} : vector<16x36xf32> to vector<16x4xf32>
    %240 = vector.extract_strided_slice %235 {offsets = [0, 16], sizes = [16, 4], strides = [1, 1]} : vector<16x36xf32> to vector<16x4xf32>
    %241 = vector.extract_strided_slice %235 {offsets = [0, 20], sizes = [16, 4], strides = [1, 1]} : vector<16x36xf32> to vector<16x4xf32>
    %242 = vector.extract_strided_slice %235 {offsets = [0, 24], sizes = [16, 4], strides = [1, 1]} : vector<16x36xf32> to vector<16x4xf32>
    %243 = vector.extract_strided_slice %235 {offsets = [0, 28], sizes = [16, 4], strides = [1, 1]} : vector<16x36xf32> to vector<16x4xf32>
    %244 = vector.extract_strided_slice %235 {offsets = [0, 32], sizes = [16, 4], strides = [1, 1]} : vector<16x36xf32> to vector<16x4xf32>
    %245 = tpu.concatenate %236, %237, %238, %239, %240, %241, %242, %243, %244 in 0 : vector<16x4xf32>, vector<16x4xf32>, vector<16x4xf32>, vector<16x4xf32>, vector<16x4xf32>, vector<16x4xf32>, vector<16x4xf32>, vector<16x4xf32>, vector<16x4xf32> -> vector<144x4xf32>
    %246 = arith.truncf %245 : vector<144x4xf32> to vector<144x4xbf16>
    %c0_83 = arith.constant 0 : index
    %c0_84 = arith.constant 0 : index
    %247 = vector.load %arg10[%c0_83, %c0_84] : memref<64x144xbf16, #tpu.memory_space<vmem>>, vector<64x144xbf16>
    %cst_85 = arith.constant dense<0.000000e+00> : vector<64x4xf32>
    %248 = tpu.matmul %247, %246, %cst_85 {dimension_numbers = #tpu.dot_dimension_numbers<[1], [0], [0], [1], [0, 0, 1, 1], [], []>} : vector<64x144xbf16>, vector<144x4xbf16>, vector<64x4xf32> -> vector<64x4xf32>
    %c136 = arith.constant 136 : index
    %c0_86 = arith.constant 0 : index
    %249 = vector.load %arg20[%c136, %c0_86] : memref<297x2xf32, #tpu.memory_space<vmem>>, vector<32x1xf32>
    %c136_87 = arith.constant 136 : index
    %c1_88 = arith.constant 1 : index
    %250 = vector.load %arg20[%c136_87, %c1_88] : memref<297x2xf32, #tpu.memory_space<vmem>>, vector<32x1xf32>
    %cst_89 = arith.constant dense<0.000000e+00> : vector<64xf32>
    %251 = vector.multi_reduction <add>, %248, %cst_89 [1] : vector<64x4xf32> to vector<64xf32>
    %252 = vector.shape_cast %251 : vector<64xf32> to vector<64x1xf32>
    %253 = arith.mulf %248, %248 : vector<64x4xf32>
    %cst_90 = arith.constant dense<0.000000e+00> : vector<64xf32>
    %254 = vector.multi_reduction <add>, %253, %cst_90 [1] : vector<64x4xf32> to vector<64xf32>
    %255 = vector.shape_cast %254 : vector<64xf32> to vector<64x1xf32>
    %256 = vector.extract_strided_slice %252 {offsets = [0, 0], sizes = [32, 1], strides = [1, 1]} : vector<64x1xf32> to vector<32x1xf32>
    %257 = vector.extract_strided_slice %255 {offsets = [0, 0], sizes = [32, 1], strides = [1, 1]} : vector<64x1xf32> to vector<32x1xf32>
    %258 = vector.extract_strided_slice %252 {offsets = [32, 0], sizes = [32, 1], strides = [1, 1]} : vector<64x1xf32> to vector<32x1xf32>
    %259 = arith.addf %256, %258 : vector<32x1xf32>
    %260 = vector.extract_strided_slice %255 {offsets = [32, 0], sizes = [32, 1], strides = [1, 1]} : vector<64x1xf32> to vector<32x1xf32>
    %261 = arith.addf %257, %260 : vector<32x1xf32>
    %cst_91 = arith.constant 1.250000e-01 : f32
    %262 = vector.broadcast %cst_91 : f32 to vector<32x1xf32>
    %263 = arith.mulf %259, %262 : vector<32x1xf32>
    %cst_92 = arith.constant 1.250000e-01 : f32
    %264 = vector.broadcast %cst_92 : f32 to vector<32x1xf32>
    %265 = arith.mulf %261, %264 : vector<32x1xf32>
    %266 = arith.mulf %263, %263 : vector<32x1xf32>
    %267 = arith.subf %265, %266 : vector<32x1xf32>
    %cst_93 = arith.constant 0.000000e+00 : f32
    %268 = vector.broadcast %cst_93 : f32 to vector<32x1xf32>
    %269 = arith.maximumf %267, %268 : vector<32x1xf32>
    %cst_94 = arith.constant 9.99999974E-6 : f32
    %270 = vector.broadcast %cst_94 : f32 to vector<32x1xf32>
    %271 = arith.addf %269, %270 : vector<32x1xf32>
    %272 = math.rsqrt %271 : vector<32x1xf32>
    %273 = arith.mulf %249, %272 : vector<32x1xf32>
    %274 = arith.mulf %263, %273 : vector<32x1xf32>
    %275 = arith.subf %250, %274 : vector<32x1xf32>
    %276 = tpu.concatenate %273, %273 in 0 : vector<32x1xf32>, vector<32x1xf32> -> vector<64x1xf32>
    %277 = tpu.concatenate %275, %275 in 0 : vector<32x1xf32>, vector<32x1xf32> -> vector<64x1xf32>
    %278 = vector.broadcast %276 : vector<64x1xf32> to vector<64x4xf32>
    %279 = arith.mulf %248, %278 : vector<64x4xf32>
    %280 = vector.broadcast %277 : vector<64x1xf32> to vector<64x4xf32>
    %281 = arith.addf %279, %280 : vector<64x4xf32>
    %cst_95 = arith.constant 0.000000e+00 : f32
    %282 = vector.broadcast %cst_95 : f32 to vector<64x4xf32>
    %283 = arith.cmpf oge, %281, %282 : vector<64x4xf32>
    %cst_96 = arith.constant 0.00999999977 : f32
    %284 = vector.broadcast %cst_96 : f32 to vector<64x4xf32>
    %285 = arith.mulf %284, %281 : vector<64x4xf32>
    %286 = arith.select %283, %281, %285 : vector<64x4xi1>, vector<64x4xf32>
    %287 = arith.truncf %286 : vector<64x4xf32> to vector<64x4xbf16>
    %c0_97 = arith.constant 0 : index
    %c0_98 = arith.constant 0 : index
    %288 = vector.load %arg13[%c0_97, %c0_98] : memref<4x144xbf16, #tpu.memory_space<vmem>>, vector<4x144xbf16>
    %cst_99 = arith.constant dense<0.000000e+00> : vector<64x144xf32>
    %289 = tpu.matmul %287, %288, %cst_99 {dimension_numbers = #tpu.dot_dimension_numbers<[1], [0], [0], [1], [0, 0, 1, 1], [], []>} : vector<64x4xbf16>, vector<4x144xbf16>, vector<64x144xf32> -> vector<64x144xf32>
    %290 = vector.extract_strided_slice %289 {offsets = [0, 0], sizes = [64, 16], strides = [1, 1]} : vector<64x144xf32> to vector<64x16xf32>
    %291 = vector.extract_strided_slice %289 {offsets = [0, 16], sizes = [64, 16], strides = [1, 1]} : vector<64x144xf32> to vector<64x16xf32>
    %292 = vector.extract_strided_slice %289 {offsets = [0, 32], sizes = [64, 16], strides = [1, 1]} : vector<64x144xf32> to vector<64x16xf32>
    %293 = vector.extract_strided_slice %289 {offsets = [0, 48], sizes = [64, 16], strides = [1, 1]} : vector<64x144xf32> to vector<64x16xf32>
    %294 = vector.extract_strided_slice %289 {offsets = [0, 64], sizes = [64, 16], strides = [1, 1]} : vector<64x144xf32> to vector<64x16xf32>
    %295 = vector.extract_strided_slice %289 {offsets = [0, 80], sizes = [64, 16], strides = [1, 1]} : vector<64x144xf32> to vector<64x16xf32>
    %296 = vector.extract_strided_slice %289 {offsets = [0, 96], sizes = [64, 16], strides = [1, 1]} : vector<64x144xf32> to vector<64x16xf32>
    %297 = vector.extract_strided_slice %289 {offsets = [0, 112], sizes = [64, 16], strides = [1, 1]} : vector<64x144xf32> to vector<64x16xf32>
    %298 = vector.extract_strided_slice %289 {offsets = [0, 128], sizes = [64, 16], strides = [1, 1]} : vector<64x144xf32> to vector<64x16xf32>
    %299 = tpu.concatenate %290, %291, %292, %293, %294, %295, %296, %297, %298 in 0 : vector<64x16xf32>, vector<64x16xf32>, vector<64x16xf32>, vector<64x16xf32>, vector<64x16xf32>, vector<64x16xf32>, vector<64x16xf32>, vector<64x16xf32>, vector<64x16xf32> -> vector<576x16xf32>
    %300 = arith.truncf %299 : vector<576x16xf32> to vector<576x16xbf16>
    %c0_100 = arith.constant 0 : index
    %c0_101 = arith.constant 0 : index
    %301 = vector.load %arg12[%c0_100, %c0_101] : memref<128x576xbf16, #tpu.memory_space<vmem>>, vector<128x576xbf16>
    %cst_102 = arith.constant dense<0.000000e+00> : vector<128x16xf32>
    %302 = tpu.matmul %301, %300, %cst_102 {dimension_numbers = #tpu.dot_dimension_numbers<[1], [0], [0], [1], [0, 0, 1, 1], [], []>} : vector<128x576xbf16>, vector<576x16xbf16>, vector<128x16xf32> -> vector<128x16xf32>
    %c168 = arith.constant 168 : index
    %c0_103 = arith.constant 0 : index
    %303 = vector.load %arg20[%c168, %c0_103] : memref<297x2xf32, #tpu.memory_space<vmem>>, vector<64x1xf32>
    %c168_104 = arith.constant 168 : index
    %c1_105 = arith.constant 1 : index
    %304 = vector.load %arg20[%c168_104, %c1_105] : memref<297x2xf32, #tpu.memory_space<vmem>>, vector<64x1xf32>
    %cst_106 = arith.constant dense<0.000000e+00> : vector<128xf32>
    %305 = vector.multi_reduction <add>, %302, %cst_106 [1] : vector<128x16xf32> to vector<128xf32>
    %306 = vector.shape_cast %305 : vector<128xf32> to vector<128x1xf32>
    %307 = arith.mulf %302, %302 : vector<128x16xf32>
    %cst_107 = arith.constant dense<0.000000e+00> : vector<128xf32>
    %308 = vector.multi_reduction <add>, %307, %cst_107 [1] : vector<128x16xf32> to vector<128xf32>
    %309 = vector.shape_cast %308 : vector<128xf32> to vector<128x1xf32>
    %310 = vector.extract_strided_slice %306 {offsets = [0, 0], sizes = [64, 1], strides = [1, 1]} : vector<128x1xf32> to vector<64x1xf32>
    %311 = vector.extract_strided_slice %309 {offsets = [0, 0], sizes = [64, 1], strides = [1, 1]} : vector<128x1xf32> to vector<64x1xf32>
    %312 = vector.extract_strided_slice %306 {offsets = [64, 0], sizes = [64, 1], strides = [1, 1]} : vector<128x1xf32> to vector<64x1xf32>
    %313 = arith.addf %310, %312 : vector<64x1xf32>
    %314 = vector.extract_strided_slice %309 {offsets = [64, 0], sizes = [64, 1], strides = [1, 1]} : vector<128x1xf32> to vector<64x1xf32>
    %315 = arith.addf %311, %314 : vector<64x1xf32>
    %cst_108 = arith.constant 3.125000e-02 : f32
    %316 = vector.broadcast %cst_108 : f32 to vector<64x1xf32>
    %317 = arith.mulf %313, %316 : vector<64x1xf32>
    %cst_109 = arith.constant 3.125000e-02 : f32
    %318 = vector.broadcast %cst_109 : f32 to vector<64x1xf32>
    %319 = arith.mulf %315, %318 : vector<64x1xf32>
    %320 = arith.mulf %317, %317 : vector<64x1xf32>
    %321 = arith.subf %319, %320 : vector<64x1xf32>
    %cst_110 = arith.constant 0.000000e+00 : f32
    %322 = vector.broadcast %cst_110 : f32 to vector<64x1xf32>
    %323 = arith.maximumf %321, %322 : vector<64x1xf32>
    %cst_111 = arith.constant 9.99999974E-6 : f32
    %324 = vector.broadcast %cst_111 : f32 to vector<64x1xf32>
    %325 = arith.addf %323, %324 : vector<64x1xf32>
    %326 = math.rsqrt %325 : vector<64x1xf32>
    %327 = arith.mulf %303, %326 : vector<64x1xf32>
    %328 = arith.mulf %317, %327 : vector<64x1xf32>
    %329 = arith.subf %304, %328 : vector<64x1xf32>
    %330 = tpu.concatenate %327, %327 in 0 : vector<64x1xf32>, vector<64x1xf32> -> vector<128x1xf32>
    %331 = tpu.concatenate %329, %329 in 0 : vector<64x1xf32>, vector<64x1xf32> -> vector<128x1xf32>
    %332 = vector.broadcast %330 : vector<128x1xf32> to vector<128x16xf32>
    %333 = arith.mulf %302, %332 : vector<128x16xf32>
    %334 = vector.broadcast %331 : vector<128x1xf32> to vector<128x16xf32>
    %335 = arith.addf %333, %334 : vector<128x16xf32>
    %cst_112 = arith.constant 0.000000e+00 : f32
    %336 = vector.broadcast %cst_112 : f32 to vector<128x16xf32>
    %337 = arith.cmpf oge, %335, %336 : vector<128x16xf32>
    %cst_113 = arith.constant 0.00999999977 : f32
    %338 = vector.broadcast %cst_113 : f32 to vector<128x16xf32>
    %339 = arith.mulf %338, %335 : vector<128x16xf32>
    %340 = arith.select %337, %335, %339 : vector<128x16xi1>, vector<128x16xf32>
    %341 = arith.truncf %340 : vector<128x16xf32> to vector<128x16xbf16>
    %c0_114 = arith.constant 0 : index
    %c0_115 = arith.constant 0 : index
    %342 = vector.load %arg15[%c0_114, %c0_115] : memref<16x576xbf16, #tpu.memory_space<vmem>>, vector<16x576xbf16>
    %cst_116 = arith.constant dense<0.000000e+00> : vector<128x576xf32>
    %343 = tpu.matmul %341, %342, %cst_116 {dimension_numbers = #tpu.dot_dimension_numbers<[1], [0], [0], [1], [0, 0, 1, 1], [], []>} : vector<128x16xbf16>, vector<16x576xbf16>, vector<128x576xf32> -> vector<128x576xf32>
    %344 = vector.extract_strided_slice %343 {offsets = [0, 0], sizes = [128, 64], strides = [1, 1]} : vector<128x576xf32> to vector<128x64xf32>
    %345 = vector.extract_strided_slice %343 {offsets = [0, 64], sizes = [128, 64], strides = [1, 1]} : vector<128x576xf32> to vector<128x64xf32>
    %346 = vector.extract_strided_slice %343 {offsets = [0, 128], sizes = [128, 64], strides = [1, 1]} : vector<128x576xf32> to vector<128x64xf32>
    %347 = vector.extract_strided_slice %343 {offsets = [0, 192], sizes = [128, 64], strides = [1, 1]} : vector<128x576xf32> to vector<128x64xf32>
    %348 = vector.extract_strided_slice %343 {offsets = [0, 256], sizes = [128, 64], strides = [1, 1]} : vector<128x576xf32> to vector<128x64xf32>
    %349 = vector.extract_strided_slice %343 {offsets = [0, 320], sizes = [128, 64], strides = [1, 1]} : vector<128x576xf32> to vector<128x64xf32>
    %350 = vector.extract_strided_slice %343 {offsets = [0, 384], sizes = [128, 64], strides = [1, 1]} : vector<128x576xf32> to vector<128x64xf32>
    %351 = vector.extract_strided_slice %343 {offsets = [0, 448], sizes = [128, 64], strides = [1, 1]} : vector<128x576xf32> to vector<128x64xf32>
    %352 = vector.extract_strided_slice %343 {offsets = [0, 512], sizes = [128, 64], strides = [1, 1]} : vector<128x576xf32> to vector<128x64xf32>
    %353 = tpu.concatenate %344, %345, %346, %347, %348, %349, %350, %351, %352 in 0 : vector<128x64xf32>, vector<128x64xf32>, vector<128x64xf32>, vector<128x64xf32>, vector<128x64xf32>, vector<128x64xf32>, vector<128x64xf32>, vector<128x64xf32>, vector<128x64xf32> -> vector<1152x64xf32>
    %354 = arith.truncf %353 : vector<1152x64xf32> to vector<1152x64xbf16>
    %c0_117 = arith.constant 0 : index
    %c0_118 = arith.constant 0 : index
    %355 = vector.load %arg14[%c0_117, %c0_118] : memref<64x1152xbf16, #tpu.memory_space<vmem>>, vector<64x1152xbf16>
    %cst_119 = arith.constant dense<0.000000e+00> : vector<64x64xf32>
    %356 = tpu.matmul %355, %354, %cst_119 {dimension_numbers = #tpu.dot_dimension_numbers<[1], [0], [0], [1], [0, 0, 1, 1], [], []>} : vector<64x1152xbf16>, vector<1152x64xbf16>, vector<64x64xf32> -> vector<64x64xf32>
    %c232 = arith.constant 232 : index
    %c0_120 = arith.constant 0 : index
    %357 = vector.load %arg20[%c232, %c0_120] : memref<297x2xf32, #tpu.memory_space<vmem>>, vector<32x1xf32>
    %c232_121 = arith.constant 232 : index
    %c1_122 = arith.constant 1 : index
    %358 = vector.load %arg20[%c232_121, %c1_122] : memref<297x2xf32, #tpu.memory_space<vmem>>, vector<32x1xf32>
    %cst_123 = arith.constant dense<0.000000e+00> : vector<64xf32>
    %359 = vector.multi_reduction <add>, %356, %cst_123 [1] : vector<64x64xf32> to vector<64xf32>
    %360 = vector.shape_cast %359 : vector<64xf32> to vector<64x1xf32>
    %361 = arith.mulf %356, %356 : vector<64x64xf32>
    %cst_124 = arith.constant dense<0.000000e+00> : vector<64xf32>
    %362 = vector.multi_reduction <add>, %361, %cst_124 [1] : vector<64x64xf32> to vector<64xf32>
    %363 = vector.shape_cast %362 : vector<64xf32> to vector<64x1xf32>
    %364 = vector.extract_strided_slice %360 {offsets = [0, 0], sizes = [32, 1], strides = [1, 1]} : vector<64x1xf32> to vector<32x1xf32>
    %365 = vector.extract_strided_slice %363 {offsets = [0, 0], sizes = [32, 1], strides = [1, 1]} : vector<64x1xf32> to vector<32x1xf32>
    %366 = vector.extract_strided_slice %360 {offsets = [32, 0], sizes = [32, 1], strides = [1, 1]} : vector<64x1xf32> to vector<32x1xf32>
    %367 = arith.addf %364, %366 : vector<32x1xf32>
    %368 = vector.extract_strided_slice %363 {offsets = [32, 0], sizes = [32, 1], strides = [1, 1]} : vector<64x1xf32> to vector<32x1xf32>
    %369 = arith.addf %365, %368 : vector<32x1xf32>
    %cst_125 = arith.constant 7.812500e-03 : f32
    %370 = vector.broadcast %cst_125 : f32 to vector<32x1xf32>
    %371 = arith.mulf %367, %370 : vector<32x1xf32>
    %cst_126 = arith.constant 7.812500e-03 : f32
    %372 = vector.broadcast %cst_126 : f32 to vector<32x1xf32>
    %373 = arith.mulf %369, %372 : vector<32x1xf32>
    %374 = arith.mulf %371, %371 : vector<32x1xf32>
    %375 = arith.subf %373, %374 : vector<32x1xf32>
    %cst_127 = arith.constant 0.000000e+00 : f32
    %376 = vector.broadcast %cst_127 : f32 to vector<32x1xf32>
    %377 = arith.maximumf %375, %376 : vector<32x1xf32>
    %cst_128 = arith.constant 9.99999974E-6 : f32
    %378 = vector.broadcast %cst_128 : f32 to vector<32x1xf32>
    %379 = arith.addf %377, %378 : vector<32x1xf32>
    %380 = math.rsqrt %379 : vector<32x1xf32>
    %381 = arith.mulf %357, %380 : vector<32x1xf32>
    %382 = arith.mulf %371, %381 : vector<32x1xf32>
    %383 = arith.subf %358, %382 : vector<32x1xf32>
    %384 = tpu.concatenate %381, %381 in 0 : vector<32x1xf32>, vector<32x1xf32> -> vector<64x1xf32>
    %385 = tpu.concatenate %383, %383 in 0 : vector<32x1xf32>, vector<32x1xf32> -> vector<64x1xf32>
    %386 = vector.broadcast %384 : vector<64x1xf32> to vector<64x64xf32>
    %387 = arith.mulf %356, %386 : vector<64x64xf32>
    %388 = vector.broadcast %385 : vector<64x1xf32> to vector<64x64xf32>
    %389 = arith.addf %387, %388 : vector<64x64xf32>
    %cst_129 = arith.constant 0.000000e+00 : f32
    %390 = vector.broadcast %cst_129 : f32 to vector<64x64xf32>
    %391 = arith.cmpf oge, %389, %390 : vector<64x64xf32>
    %cst_130 = arith.constant 0.00999999977 : f32
    %392 = vector.broadcast %cst_130 : f32 to vector<64x64xf32>
    %393 = arith.mulf %392, %389 : vector<64x64xf32>
    %394 = arith.select %391, %389, %393 : vector<64x64xi1>, vector<64x64xf32>
    %395 = arith.truncf %394 : vector<64x64xf32> to vector<64x64xbf16>
    %c0_131 = arith.constant 0 : index
    %c0_132 = arith.constant 0 : index
    %396 = vector.load %arg17[%c0_131, %c0_132] : memref<64x2304xbf16, #tpu.memory_space<vmem>>, vector<64x2304xbf16>
    %cst_133 = arith.constant dense<0.000000e+00> : vector<64x2304xf32>
    %397 = tpu.matmul %395, %396, %cst_133 {dimension_numbers = #tpu.dot_dimension_numbers<[1], [0], [0], [1], [0, 0, 1, 1], [], []>} : vector<64x64xbf16>, vector<64x2304xbf16>, vector<64x2304xf32> -> vector<64x2304xf32>
    %398 = vector.extract_strided_slice %397 {offsets = [0, 0], sizes = [64, 256], strides = [1, 1]} : vector<64x2304xf32> to vector<64x256xf32>
    %399 = vector.extract_strided_slice %397 {offsets = [0, 256], sizes = [64, 256], strides = [1, 1]} : vector<64x2304xf32> to vector<64x256xf32>
    %400 = vector.extract_strided_slice %397 {offsets = [0, 512], sizes = [64, 256], strides = [1, 1]} : vector<64x2304xf32> to vector<64x256xf32>
    %401 = vector.extract_strided_slice %397 {offsets = [0, 768], sizes = [64, 256], strides = [1, 1]} : vector<64x2304xf32> to vector<64x256xf32>
    %402 = vector.extract_strided_slice %397 {offsets = [0, 1024], sizes = [64, 256], strides = [1, 1]} : vector<64x2304xf32> to vector<64x256xf32>
    %403 = vector.extract_strided_slice %397 {offsets = [0, 1280], sizes = [64, 256], strides = [1, 1]} : vector<64x2304xf32> to vector<64x256xf32>
    %404 = vector.extract_strided_slice %397 {offsets = [0, 1536], sizes = [64, 256], strides = [1, 1]} : vector<64x2304xf32> to vector<64x256xf32>
    %405 = vector.extract_strided_slice %397 {offsets = [0, 1792], sizes = [64, 256], strides = [1, 1]} : vector<64x2304xf32> to vector<64x256xf32>
    %406 = vector.extract_strided_slice %397 {offsets = [0, 2048], sizes = [64, 256], strides = [1, 1]} : vector<64x2304xf32> to vector<64x256xf32>
    %407 = tpu.concatenate %398, %399, %400, %401, %402, %403, %404, %405, %406 in 0 : vector<64x256xf32>, vector<64x256xf32>, vector<64x256xf32>, vector<64x256xf32>, vector<64x256xf32>, vector<64x256xf32>, vector<64x256xf32>, vector<64x256xf32>, vector<64x256xf32> -> vector<576x256xf32>
    %408 = arith.truncf %407 : vector<576x256xf32> to vector<576x256xbf16>
    %c0_134 = arith.constant 0 : index
    %c0_135 = arith.constant 0 : index
    %409 = vector.load %arg16[%c0_134, %c0_135] : memref<64x576xbf16, #tpu.memory_space<vmem>>, vector<64x576xbf16>
    %cst_136 = arith.constant dense<0.000000e+00> : vector<64x256xf32>
    %410 = tpu.matmul %409, %408, %cst_136 {dimension_numbers = #tpu.dot_dimension_numbers<[1], [0], [0], [1], [0, 0, 1, 1], [], []>} : vector<64x576xbf16>, vector<576x256xbf16>, vector<64x256xf32> -> vector<64x256xf32>
    %c264 = arith.constant 264 : index
    %c0_137 = arith.constant 0 : index
    %411 = vector.load %arg20[%c264, %c0_137] : memref<297x2xf32, #tpu.memory_space<vmem>>, vector<32x1xf32>
    %c264_138 = arith.constant 264 : index
    %c1_139 = arith.constant 1 : index
    %412 = vector.load %arg20[%c264_138, %c1_139] : memref<297x2xf32, #tpu.memory_space<vmem>>, vector<32x1xf32>
    %cst_140 = arith.constant dense<0.000000e+00> : vector<64xf32>
    %413 = vector.multi_reduction <add>, %410, %cst_140 [1] : vector<64x256xf32> to vector<64xf32>
    %414 = vector.shape_cast %413 : vector<64xf32> to vector<64x1xf32>
    %415 = arith.mulf %410, %410 : vector<64x256xf32>
    %cst_141 = arith.constant dense<0.000000e+00> : vector<64xf32>
    %416 = vector.multi_reduction <add>, %415, %cst_141 [1] : vector<64x256xf32> to vector<64xf32>
    %417 = vector.shape_cast %416 : vector<64xf32> to vector<64x1xf32>
    %418 = vector.extract_strided_slice %414 {offsets = [0, 0], sizes = [32, 1], strides = [1, 1]} : vector<64x1xf32> to vector<32x1xf32>
    %419 = vector.extract_strided_slice %417 {offsets = [0, 0], sizes = [32, 1], strides = [1, 1]} : vector<64x1xf32> to vector<32x1xf32>
    %420 = vector.extract_strided_slice %414 {offsets = [32, 0], sizes = [32, 1], strides = [1, 1]} : vector<64x1xf32> to vector<32x1xf32>
    %421 = arith.addf %418, %420 : vector<32x1xf32>
    %422 = vector.extract_strided_slice %417 {offsets = [32, 0], sizes = [32, 1], strides = [1, 1]} : vector<64x1xf32> to vector<32x1xf32>
    %423 = arith.addf %419, %422 : vector<32x1xf32>
    %cst_142 = arith.constant 0.001953125 : f32
    %424 = vector.broadcast %cst_142 : f32 to vector<32x1xf32>
    %425 = arith.mulf %421, %424 : vector<32x1xf32>
    %cst_143 = arith.constant 0.001953125 : f32
    %426 = vector.broadcast %cst_143 : f32 to vector<32x1xf32>
    %427 = arith.mulf %423, %426 : vector<32x1xf32>
    %428 = arith.mulf %425, %425 : vector<32x1xf32>
    %429 = arith.subf %427, %428 : vector<32x1xf32>
    %cst_144 = arith.constant 0.000000e+00 : f32
    %430 = vector.broadcast %cst_144 : f32 to vector<32x1xf32>
    %431 = arith.maximumf %429, %430 : vector<32x1xf32>
    %cst_145 = arith.constant 9.99999974E-6 : f32
    %432 = vector.broadcast %cst_145 : f32 to vector<32x1xf32>
    %433 = arith.addf %431, %432 : vector<32x1xf32>
    %434 = math.rsqrt %433 : vector<32x1xf32>
    %435 = arith.mulf %411, %434 : vector<32x1xf32>
    %436 = arith.mulf %425, %435 : vector<32x1xf32>
    %437 = arith.subf %412, %436 : vector<32x1xf32>
    %438 = tpu.concatenate %435, %435 in 0 : vector<32x1xf32>, vector<32x1xf32> -> vector<64x1xf32>
    %439 = tpu.concatenate %437, %437 in 0 : vector<32x1xf32>, vector<32x1xf32> -> vector<64x1xf32>
    %440 = vector.broadcast %438 : vector<64x1xf32> to vector<64x256xf32>
    %441 = arith.mulf %410, %440 : vector<64x256xf32>
    %442 = vector.broadcast %439 : vector<64x1xf32> to vector<64x256xf32>
    %443 = arith.addf %441, %442 : vector<64x256xf32>
    %cst_146 = arith.constant 0.000000e+00 : f32
    %444 = vector.broadcast %cst_146 : f32 to vector<64x256xf32>
    %445 = arith.cmpf oge, %443, %444 : vector<64x256xf32>
    %cst_147 = arith.constant 0.00999999977 : f32
    %446 = vector.broadcast %cst_147 : f32 to vector<64x256xf32>
    %447 = arith.mulf %446, %443 : vector<64x256xf32>
    %448 = arith.select %445, %443, %447 : vector<64x256xi1>, vector<64x256xf32>
    %449 = arith.truncf %448 : vector<64x256xf32> to vector<64x256xbf16>
    %c0_148 = arith.constant 0 : index
    %c0_149 = arith.constant 0 : index
    %450 = vector.load %arg19[%c0_148, %c0_149] : memref<256x1024xbf16, #tpu.memory_space<vmem>>, vector<256x1024xbf16>
    %cst_150 = arith.constant dense<0.000000e+00> : vector<64x1024xf32>
    %451 = tpu.matmul %449, %450, %cst_150 {dimension_numbers = #tpu.dot_dimension_numbers<[1], [0], [0], [1], [0, 0, 1, 1], [], []>} : vector<64x256xbf16>, vector<256x1024xbf16>, vector<64x1024xf32> -> vector<64x1024xf32>
    %452 = vector.extract_strided_slice %451 {offsets = [0, 0], sizes = [64, 256], strides = [1, 1]} : vector<64x1024xf32> to vector<64x256xf32>
    %453 = vector.extract_strided_slice %451 {offsets = [0, 256], sizes = [64, 256], strides = [1, 1]} : vector<64x1024xf32> to vector<64x256xf32>
    %454 = vector.extract_strided_slice %451 {offsets = [0, 512], sizes = [64, 256], strides = [1, 1]} : vector<64x1024xf32> to vector<64x256xf32>
    %455 = vector.extract_strided_slice %451 {offsets = [0, 768], sizes = [64, 256], strides = [1, 1]} : vector<64x1024xf32> to vector<64x256xf32>
    %456 = tpu.concatenate %452, %453, %454, %455 in 0 : vector<64x256xf32>, vector<64x256xf32>, vector<64x256xf32>, vector<64x256xf32> -> vector<256x256xf32>
    %457 = arith.truncf %456 : vector<256x256xf32> to vector<256x256xbf16>
    %c0_151 = arith.constant 0 : index
    %c0_152 = arith.constant 0 : index
    %458 = vector.load %arg18[%c0_151, %c0_152] : memref<2x256xbf16, #tpu.memory_space<vmem>>, vector<2x256xbf16>
    %cst_153 = arith.constant dense<0.000000e+00> : vector<2x256xf32>
    %459 = tpu.matmul %458, %457, %cst_153 {dimension_numbers = #tpu.dot_dimension_numbers<[1], [0], [0], [1], [0, 0, 1, 1], [], []>} : vector<2x256xbf16>, vector<256x256xbf16>, vector<2x256xf32> -> vector<2x256xf32>
    %c296 = arith.constant 296 : index
    %c0_154 = arith.constant 0 : index
    %460 = vector.load %arg20[%c296, %c0_154] : memref<297x2xf32, #tpu.memory_space<vmem>>, vector<1x1xf32>
    %c296_155 = arith.constant 296 : index
    %c1_156 = arith.constant 1 : index
    %461 = vector.load %arg20[%c296_155, %c1_156] : memref<297x2xf32, #tpu.memory_space<vmem>>, vector<1x1xf32>
    %cst_157 = arith.constant dense<0.000000e+00> : vector<2xf32>
    %462 = vector.multi_reduction <add>, %459, %cst_157 [1] : vector<2x256xf32> to vector<2xf32>
    %463 = vector.shape_cast %462 : vector<2xf32> to vector<2x1xf32>
    %464 = arith.mulf %459, %459 : vector<2x256xf32>
    %cst_158 = arith.constant dense<0.000000e+00> : vector<2xf32>
    %465 = vector.multi_reduction <add>, %464, %cst_158 [1] : vector<2x256xf32> to vector<2xf32>
    %466 = vector.shape_cast %465 : vector<2xf32> to vector<2x1xf32>
    %467 = vector.extract_strided_slice %463 {offsets = [0, 0], sizes = [1, 1], strides = [1, 1]} : vector<2x1xf32> to vector<1x1xf32>
    %468 = vector.extract_strided_slice %466 {offsets = [0, 0], sizes = [1, 1], strides = [1, 1]} : vector<2x1xf32> to vector<1x1xf32>
    %469 = vector.extract_strided_slice %463 {offsets = [1, 0], sizes = [1, 1], strides = [1, 1]} : vector<2x1xf32> to vector<1x1xf32>
    %470 = arith.addf %467, %469 : vector<1x1xf32>
    %471 = vector.extract_strided_slice %466 {offsets = [1, 0], sizes = [1, 1], strides = [1, 1]} : vector<2x1xf32> to vector<1x1xf32>
    %472 = arith.addf %468, %471 : vector<1x1xf32>
    %cst_159 = arith.constant 0.001953125 : f32
    %473 = vector.broadcast %cst_159 : f32 to vector<1x1xf32>
    %474 = arith.mulf %470, %473 : vector<1x1xf32>
    %cst_160 = arith.constant 0.001953125 : f32
    %475 = vector.broadcast %cst_160 : f32 to vector<1x1xf32>
    %476 = arith.mulf %472, %475 : vector<1x1xf32>
    %477 = arith.mulf %474, %474 : vector<1x1xf32>
    %478 = arith.subf %476, %477 : vector<1x1xf32>
    %cst_161 = arith.constant 0.000000e+00 : f32
    %479 = vector.broadcast %cst_161 : f32 to vector<1x1xf32>
    %480 = arith.maximumf %478, %479 : vector<1x1xf32>
    %cst_162 = arith.constant 9.99999974E-6 : f32
    %481 = vector.broadcast %cst_162 : f32 to vector<1x1xf32>
    %482 = arith.addf %480, %481 : vector<1x1xf32>
    %483 = math.rsqrt %482 : vector<1x1xf32>
    %484 = arith.mulf %460, %483 : vector<1x1xf32>
    %485 = arith.mulf %474, %484 : vector<1x1xf32>
    %486 = arith.subf %461, %485 : vector<1x1xf32>
    %487 = tpu.concatenate %484, %484 in 0 : vector<1x1xf32>, vector<1x1xf32> -> vector<2x1xf32>
    %488 = tpu.concatenate %486, %486 in 0 : vector<1x1xf32>, vector<1x1xf32> -> vector<2x1xf32>
    %489 = vector.broadcast %487 : vector<2x1xf32> to vector<2x256xf32>
    %490 = arith.mulf %459, %489 : vector<2x256xf32>
    %491 = vector.broadcast %488 : vector<2x1xf32> to vector<2x256xf32>
    %492 = arith.addf %490, %491 : vector<2x256xf32>
    %c0_163 = arith.constant 0 : index
    %c0_164 = arith.constant 0 : index
    %493 = vector.load %arg25[%c0_163, %c0_164] : memref<2x256xf32, #tpu.memory_space<vmem>>, vector<2x256xf32>
    tpu.vector_store %arg25[%c0_163, %c0_164], %492 {strides = array<i32>} : memref<2x256xf32, #tpu.memory_space<vmem>>, vector<2x256xf32>,
    %c0_165 = arith.constant 0 : index
    %c0_166 = arith.constant 0 : index
    %494 = vector.load %arg26[%c0_165, %c0_166] : memref<32x1xf32, #tpu.memory_space<vmem>>, vector<32x1xf32>
    tpu.vector_store %arg26[%c0_165, %c0_166], %219 {strides = array<i32>} : memref<32x1xf32, #tpu.memory_space<vmem>>, vector<32x1xf32>,
    %c0_167 = arith.constant 0 : index
    %c0_168 = arith.constant 0 : index
    %495 = vector.load %arg27[%c0_167, %c0_168] : memref<32x1xf32, #tpu.memory_space<vmem>>, vector<32x1xf32>
    tpu.vector_store %arg27[%c0_167, %c0_168], %220 {strides = array<i32>} : memref<32x1xf32, #tpu.memory_space<vmem>>, vector<32x1xf32>,
    return
  }
}

</mosaic_0001>

<llo_original>
// kernel: forward.1
$region0: #{forward.1}
  #allocation0 [shape = 'u32[]', space=smem, size = 0x4, offset = 0x4, fixed_abs, tag = 'smem constant byte address 0x4 - core index']
  #allocation1 [shape = 'u32[144,128]{1,0:T(1,128)}', space=vmem, size = 0x12000, scoped, tag = 'internal scratch']
  %s0 = inlined_call_operand.vmem [shape: f32[8,256], index: 0, kind: input, shape index: {}]
  %s1 = inlined_call_operand.vmem [shape: f32[32,1], index: 1, kind: input, shape index: {}]
  %s2 = inlined_call_operand.hbm [shape: bf16[64,72], index: 2, kind: input, shape index: {}]
  %s3 = inlined_call_operand.vmem [shape: bf16[256,576], index: 3, kind: input, shape index: {}]
  %s4 = inlined_call_operand.vmem [shape: bf16[128,576], index: 4, kind: input, shape index: {}]
  %s5 = inlined_call_operand.hbm [shape: bf16[64,144], index: 5, kind: input, shape index: {}]
  %s6 = inlined_call_operand.vmem [shape: bf16[64,1152], index: 6, kind: input, shape index: {}]
  %s7 = inlined_call_operand.hbm [shape: bf16[16,36], index: 7, kind: input, shape index: {}]
  %s8 = inlined_call_operand.vmem [shape: bf16[16,576], index: 8, kind: input, shape index: {}]
  %s9 = inlined_call_operand.hbm [shape: bf16[4,9], index: 9, kind: input, shape index: {}]
  %s10 = inlined_call_operand.hbm [shape: bf16[64,144], index: 10, kind: input, shape index: {}]
  %s11 = inlined_call_operand.hbm [shape: bf16[1,36], index: 11, kind: input, shape index: {}]
  %s12 = inlined_call_operand.vmem [shape: bf16[128,576], index: 12, kind: input, shape index: {}]
  %s13 = inlined_call_operand.hbm [shape: bf16[4,144], index: 13, kind: input, shape index: {}]
  %s14 = inlined_call_operand.vmem [shape: bf16[64,1152], index: 14, kind: input, shape index: {}]
  %s15 = inlined_call_operand.hbm [shape: bf16[16,576], index: 15, kind: input, shape index: {}]
  %s16 = inlined_call_operand.hbm [shape: bf16[64,576], index: 16, kind: input, shape index: {}]
  %s17 = inlined_call_operand.vmem [shape: bf16[64,2304], index: 17, kind: input, shape index: {}]
  %s18 = inlined_call_operand.hbm [shape: bf16[2,256], index: 18, kind: input, shape index: {}]
  %s19 = inlined_call_operand.vmem [shape: bf16[256,1024], index: 19, kind: input, shape index: {}]
  %s20 = inlined_call_operand.vmem [shape: f32[297,2], index: 20, kind: input, shape index: {}]
  %s21 = inlined_call_operand.vmem [shape: f32[64,16], index: 21, kind: input, shape index: {}]
  %s22 = inlined_call_operand.vmem [shape: f32[64,1], index: 22, kind: input, shape index: {}]
  %s23 = inlined_call_operand.vmem [shape: f32[16,32], index: 23, kind: input, shape index: {}]
  %s24 = inlined_call_operand.vmem [shape: f32[16,1], index: 24, kind: input, shape index: {}]
  %s25 = inlined_call_operand.vmem [shape: f32[2,256], index: 25, kind: output, shape index: {0}]
  %s26 = inlined_call_operand.vmem [shape: f32[32,1], index: 26, kind: output, shape index: {1}]
  %s27 = inlined_call_operand.vmem [shape: f32[32,1], index: 27, kind: output, shape index: {2}]
  %28 = xla_tuple %s25, %s26, %s27
  %s29 = sld [smem:[#allocation0]]
  $region166: #{forward.1} parent=0
    _
  %s31 = ssub.s32 1, %s29
  %s32 = scalar_select 0, %s31, %s29
  $region1: #{forward.1} parent=0
    #allocation2 [shape = 'u8[16384]{0}', space=vmem, size = 0x4000, scoped, tag = 'input window, operand 2, single buffered']
    #allocation3 [shape = 's32[1]{0}', space=sflag, size = 0x4, scoped, tag = 'scoped memory for forward.1']
    #allocation4 [shape = 'u8[32768]{0}', space=vmem, size = 0x8000, scoped, tag = 'input window, operand 5, single buffered']
    #allocation5 [shape = 's32[1]{0}', space=sflag, size = 0x4, scoped, tag = 'scoped memory for forward.1']
    #allocation6 [shape = 'u8[4096]{0}', space=vmem, size = 0x1000, scoped, tag = 'input window, operand 7, single buffered']
    #allocation7 [shape = 'u8[1024]{0}', space=vmem, size = 0x400, scoped, tag = 'input window, operand 9, single buffered']
    #allocation8 [shape = 's32[1]{0}', space=sflag, size = 0x4, scoped, tag = 'scoped memory for forward.1']
    #allocation9 [shape = 'u8[32768]{0}', space=vmem, size = 0x8000, scoped, tag = 'input window, operand 10, single buffered']
    #allocation10 [shape = 'u8[512]{0}', space=vmem, size = 0x400, scoped, tag = 'input window, operand 11, single buffered']
    #allocation11 [shape = 's32[1]{0}', space=sflag, size = 0x4, scoped, tag = 'scoped memory for forward.1']
    #allocation12 [shape = 'u8[2048]{0}', space=vmem, size = 0x800, scoped, tag = 'input window, operand 13, single buffered']
    #allocation13 [shape = 'u8[20480]{0}', space=vmem, size = 0x5000, scoped, tag = 'input window, operand 15, single buffered']
    #allocation14 [shape = 's32[1]{0}', space=sflag, size = 0x4, scoped, tag = 'scoped memory for forward.1']
    #allocation15 [shape = 'u8[81920]{0}', space=vmem, size = 0x14000, scoped, tag = 'input window, operand 16, single buffered']
    #allocation16 [shape = 'u8[1024]{0}', space=vmem, size = 0x400, scoped, tag = 'input window, operand 18, single buffered']
    #allocation17 [shape = 's32[1]{0}', space=sflag, size = 0x4, scoped, tag = 'scoped memory for forward.1']
    %33 = vsyncpa [#allocation3], 0
    %34 = vsyncpa [#allocation5], 0
    %35 = vsyncpa [#allocation8], 0
    %36 = vsyncpa [#allocation11], 0
    %37 = vsyncpa [#allocation14], 0
    %38 = vsyncpa [#allocation17], 0
    // Predicated region
    $region2: #{forward.1} parent=1 // pred_check
      _
    $region3: #{forward.1} parent=1 // pred_check_branch
      %40 = sbr.rel (0) target = $region5
    $region4: #{forward.1} parent=1 // pred_region
      _
    $region5: #{forward.1} parent=1 // pred_fallthru
      _
    // Predicated region
    $region6: #{forward.1} parent=1 // pred_check
      _
    $region7: #{forward.1} parent=1 // pred_check_branch
      %42 = sbr.rel (0) target = $region9
    $region8: #{forward.1} parent=1 // pred_region
      _
    $region9: #{forward.1} parent=1 // pred_fallthru
      _
    // Predicated region
    $region10: #{forward.1} parent=1 // pred_check
      _
    $region11: #{forward.1} parent=1 // pred_check_branch
      %44 = sbr.rel (0) target = $region13
    $region12: #{forward.1} parent=1 // pred_region
      %s46 = ssub.s32 512, 512
      %47 = vsyncadd [#allocation3], %s46
      %s48 = sshll.u32 [#allocation2], 4
      %s49 = int_to_ptr.vmem [resolvable:$true] %s48
      %54 = dma.hbm_to_vmem [thread:$0]  %s2, 512, %s49, [#allocation3], 64, 64, 4
    $region13: #{forward.1} parent=1 // pred_fallthru
      _
    // Predicated region
    $region14: #{forward.1} parent=1 // pred_check
      _
    $region15: #{forward.1} parent=1 // pred_check_branch
      %56 = sbr.rel (0) target = $region17
    $region16: #{forward.1} parent=1 // pred_region
      _
    $region17: #{forward.1} parent=1 // pred_fallthru
      _
    // Predicated region
    $region18: #{forward.1} parent=1 // pred_check
      _
    $region19: #{forward.1} parent=1 // pred_check_branch
      %58 = sbr.rel (0) target = $region21
    $region20: #{forward.1} parent=1 // pred_region
      _
    $region21: #{forward.1} parent=1 // pred_fallthru
      _
    // Predicated region
    $region22: #{forward.1} parent=1 // pred_check
      _
    $region23: #{forward.1} parent=1 // pred_check_branch
      %60 = sbr.rel (0) target = $region25
    $region24: #{forward.1} parent=1 // pred_region
      %s62 = ssub.s32 1024, 1024
      %63 = vsyncadd [#allocation5], %s62
      %s64 = sshll.u32 [#allocation4], 4
      %s65 = int_to_ptr.vmem [resolvable:$true] %s64
      %70 = dma.hbm_to_vmem [thread:$0]  %s5, 1024, %s65, [#allocation5], 128, 128, 8
    $region25: #{forward.1} parent=1 // pred_fallthru
      _
    // Predicated region
    $region26: #{forward.1} parent=1 // pred_check
      _
    $region27: #{forward.1} parent=1 // pred_check_branch
      %72 = sbr.rel (0) target = $region29
    $region28: #{forward.1} parent=1 // pred_region
      _
    $region29: #{forward.1} parent=1 // pred_fallthru
      _
    // Predicated region
    $region30: #{forward.1} parent=1 // pred_check
      _
    $region31: #{forward.1} parent=1 // pred_check_branch
      %74 = sbr.rel (0) target = $region33
    $region32: #{forward.1} parent=1 // pred_region
      %s76 = ssub.s32 128, 128
      %77 = vsyncadd [#allocation5], %s76
      %s78 = sshll.u32 [#allocation6], 4
      %s79 = int_to_ptr.vmem [resolvable:$true] %s78
      %84 = dma.hbm_to_vmem [thread:$0]  %s7, 128, %s79, [#allocation5], 64, 64, 4
    $region33: #{forward.1} parent=1 // pred_fallthru
      _
    // Predicated region
    $region34: #{forward.1} parent=1 // pred_check
      _
    $region35: #{forward.1} parent=1 // pred_check_branch
      %86 = sbr.rel (0) target = $region37
    $region36: #{forward.1} parent=1 // pred_region
      _
    $region37: #{forward.1} parent=1 // pred_fallthru
      _
    // Predicated region
    $region38: #{forward.1} parent=1 // pred_check
      _
    $region39: #{forward.1} parent=1 // pred_check_branch
      %88 = sbr.rel (0) target = $region41
    $region40: #{forward.1} parent=1 // pred_region
      %s90 = ssub.s32 32, 32
      %91 = vsyncadd [#allocation8], %s90
      %s93 = sshll.u32 [#allocation7], 4
      %s94 = int_to_ptr.vmem [resolvable:$true] %s93
      %96 = dma.hbm_to_vmem [thread:$0]  %s9, 32, %s94, [#allocation8]
    $region41: #{forward.1} parent=1 // pred_fallthru
      _
    // Predicated region
    $region42: #{forward.1} parent=1 // pred_check
      _
    $region43: #{forward.1} parent=1 // pred_check_branch
      %98 = sbr.rel (0) target = $region45
    $region44: #{forward.1} parent=1 // pred_region
      %s100 = ssub.s32 1024, 1024
      %101 = vsyncadd [#allocation8], %s100
      %s102 = sshll.u32 [#allocation9], 4
      %s103 = int_to_ptr.vmem [resolvable:$true] %s102
      %108 = dma.hbm_to_vmem [thread:$0]  %s10, 1024, %s103, [#allocation8], 128, 128, 8
    $region45: #{forward.1} parent=1 // pred_fallthru
      _
    // Predicated region
    $region46: #{forward.1} parent=1 // pred_check
      _
    $region47: #{forward.1} parent=1 // pred_check_branch
      %110 = sbr.rel (0) target = $region49
    $region48: #{forward.1} parent=1 // pred_region
      %s112 = ssub.s32 16, 16
      %113 = vsyncadd [#allocation11], %s112
      %s115 = sshll.u32 [#allocation10], 4
      %s116 = int_to_ptr.vmem [resolvable:$true] %s115
      %118 = dma.hbm_to_vmem [thread:$0]  %s11, 16, %s116, [#allocation11]
    $region49: #{forward.1} parent=1 // pred_fallthru
      _
    // Predicated region
    $region50: #{forward.1} parent=1 // pred_check
      _
    $region51: #{forward.1} parent=1 // pred_check_branch
      %120 = sbr.rel (0) target = $region53
    $region52: #{forward.1} parent=1 // pred_region
      _
    $region53: #{forward.1} parent=1 // pred_fallthru
      _
    // Predicated region
    $region54: #{forward.1} parent=1 // pred_check
      _
    $region55: #{forward.1} parent=1 // pred_check_branch
      %122 = sbr.rel (0) target = $region57
    $region56: #{forward.1} parent=1 // pred_region
      %s124 = ssub.s32 64, 64
      %125 = vsyncadd [#allocation11], %s124
      %s127 = sshll.u32 [#allocation12], 4
      %s128 = int_to_ptr.vmem [resolvable:$true] %s127
      %130 = dma.hbm_to_vmem [thread:$0]  %s13, 64, %s128, [#allocation11]
    $region57: #{forward.1} parent=1 // pred_fallthru
      _
    // Predicated region
    $region58: #{forward.1} parent=1 // pred_check
      _
    $region59: #{forward.1} parent=1 // pred_check_branch
      %132 = sbr.rel (0) target = $region61
    $region60: #{forward.1} parent=1 // pred_region
      _
    $region61: #{forward.1} parent=1 // pred_fallthru
      _
    // Predicated region
    $region62: #{forward.1} parent=1 // pred_check
      _
    $region63: #{forward.1} parent=1 // pred_check_branch
      %134 = sbr.rel (0) target = $region65
    $region64: #{forward.1} parent=1 // pred_region
      %s136 = ssub.s32 640, 640
      %137 = vsyncadd [#allocation14], %s136
      %s138 = sshll.u32 [#allocation13], 4
      %s139 = int_to_ptr.vmem [resolvable:$true] %s138
      %144 = dma.hbm_to_vmem [thread:$0]  %s15, 640, %s139, [#allocation14], 320, 320, 20
    $region65: #{forward.1} parent=1 // pred_fallthru
      _
    // Predicated region
    $region66: #{forward.1} parent=1 // pred_check
      _
    $region67: #{forward.1} parent=1 // pred_check_branch
      %146 = sbr.rel (0) target = $region69
    $region68: #{forward.1} parent=1 // pred_region
      %s148 = ssub.s32 2560, 2560
      %149 = vsyncadd [#allocation14], %s148
      %s150 = sshll.u32 [#allocation15], 4
      %s151 = int_to_ptr.vmem [resolvable:$true] %s150
      %156 = dma.hbm_to_vmem [thread:$0]  %s16, 2560, %s151, [#allocation14], 320, 320, 20
    $region69: #{forward.1} parent=1 // pred_fallthru
      _
    // Predicated region
    $region70: #{forward.1} parent=1 // pred_check
      _
    $region71: #{forward.1} parent=1 // pred_check_branch
      %158 = sbr.rel (0) target = $region73
    $region72: #{forward.1} parent=1 // pred_region
      _
    $region73: #{forward.1} parent=1 // pred_fallthru
      _
    // Predicated region
    $region74: #{forward.1} parent=1 // pred_check
      _
    $region75: #{forward.1} parent=1 // pred_check_branch
      %160 = sbr.rel (0) target = $region77
    $region76: #{forward.1} parent=1 // pred_region
      %s162 = ssub.s32 32, 32
      %163 = vsyncadd [#allocation17], %s162
      %s165 = sshll.u32 [#allocation16], 4
      %s166 = int_to_ptr.vmem [resolvable:$true] %s165
      %168 = dma.hbm_to_vmem [thread:$0]  %s18, 32, %s166, [#allocation17]
    $region77: #{forward.1} parent=1 // pred_fallthru
      _
    // Predicated region
    $region78: #{forward.1} parent=1 // pred_check
      _
    $region79: #{forward.1} parent=1 // pred_check_branch
      %170 = sbr.rel (0) target = $region81
    $region80: #{forward.1} parent=1 // pred_region
      _
    $region81: #{forward.1} parent=1 // pred_fallthru
      _
    // Predicated region
    $region82: #{forward.1} parent=1 // pred_check
      _
    $region83: #{forward.1} parent=1 // pred_check_branch
      %172 = sbr.rel (0) target = $region85
    $region84: #{forward.1} parent=1 // pred_region
      _
    $region85: #{forward.1} parent=1 // pred_fallthru
      _
    // Predicated region
    $region86: #{forward.1} parent=1 // pred_check
      _
    $region87: #{forward.1} parent=1 // pred_check_branch
      %174 = sbr.rel (0) target = $region89
    $region88: #{forward.1} parent=1 // pred_region
      _
    $region89: #{forward.1} parent=1 // pred_fallthru
      _
    // Predicated region
    $region90: #{forward.1} parent=1 // pred_check
      _
    $region91: #{forward.1} parent=1 // pred_check_branch
      %176 = sbr.rel (0) target = $region93
    $region92: #{forward.1} parent=1 // pred_region
      _
    $region93: #{forward.1} parent=1 // pred_fallthru
      _
    // Predicated region
    $region94: #{forward.1} parent=1 // pred_check
      _
    $region95: #{forward.1} parent=1 // pred_check_branch
      %178 = sbr.rel (0) target = $region97
    $region96: #{forward.1} parent=1 // pred_region
      _
    $region97: #{forward.1} parent=1 // pred_fallthru
      _
    // Predicated region
    $region98: #{forward.1} parent=1 // pred_check
      _
    $region99: #{forward.1} parent=1 // pred_check_branch
      %180 = sbr.rel (0) target = $region101
    $region100: #{forward.1} parent=1 // pred_region
      _
    $region101: #{forward.1} parent=1 // pred_fallthru
      _
    // Predicated region
    $region102: #{forward.1} parent=1 // pred_check
      _
    $region103: #{forward.1} parent=1 // pred_check_branch
      %182 = sbr.rel (0) target = $region105
    $region104: #{forward.1} parent=1 // pred_region
      %183 = dma.done [#allocation3], 512
    $region105: #{forward.1} parent=1 // pred_fallthru
      _
    // Predicated region
    $region106: #{forward.1} parent=1 // pred_check
      _
    $region107: #{forward.1} parent=1 // pred_check_branch
      %185 = sbr.rel (0) target = $region109
    $region108: #{forward.1} parent=1 // pred_region
      %186 = dma.done [#allocation5], 1024
    $region109: #{forward.1} parent=1 // pred_fallthru
      _
    // Predicated region
    $region110: #{forward.1} parent=1 // pred_check
      _
    $region111: #{forward.1} parent=1 // pred_check_branch
      %188 = sbr.rel (0) target = $region113
    $region112: #{forward.1} parent=1 // pred_region
      %189 = dma.done [#allocation5], 128
    $region113: #{forward.1} parent=1 // pred_fallthru
      _
    // Predicated region
    $region114: #{forward.1} parent=1 // pred_check
      _
    $region115: #{forward.1} parent=1 // pred_check_branch
      %191 = sbr.rel (0) target = $region117
    $region116: #{forward.1} parent=1 // pred_region
      %192 = dma.done [#allocation8], 32
    $region117: #{forward.1} parent=1 // pred_fallthru
      _
    // Predicated region
    $region118: #{forward.1} parent=1 // pred_check
      _
    $region119: #{forward.1} parent=1 // pred_check_branch
      %194 = sbr.rel (0) target = $region121
    $region120: #{forward.1} parent=1 // pred_region
      %195 = dma.done [#allocation8], 1024
    $region121: #{forward.1} parent=1 // pred_fallthru
      _
    // Predicated region
    $region122: #{forward.1} parent=1 // pred_check
      _
    $region123: #{forward.1} parent=1 // pred_check_branch
      %197 = sbr.rel (0) target = $region125
    $region124: #{forward.1} parent=1 // pred_region
      %198 = dma.done [#allocation11], 16
    $region125: #{forward.1} parent=1 // pred_fallthru
      _
    // Predicated region
    $region126: #{forward.1} parent=1 // pred_check
      _
    $region127: #{forward.1} parent=1 // pred_check_branch
      %200 = sbr.rel (0) target = $region129
    $region128: #{forward.1} parent=1 // pred_region
      %201 = dma.done [#allocation11], 64
    $region129: #{forward.1} parent=1 // pred_fallthru
      _
    // Predicated region
    $region130: #{forward.1} parent=1 // pred_check
      _
    $region131: #{forward.1} parent=1 // pred_check_branch
      %203 = sbr.rel (0) target = $region133
    $region132: #{forward.1} parent=1 // pred_region
      %204 = dma.done [#allocation14], 640
    $region133: #{forward.1} parent=1 // pred_fallthru
      _
    // Predicated region
    $region134: #{forward.1} parent=1 // pred_check
      _
    $region135: #{forward.1} parent=1 // pred_check_branch
      %206 = sbr.rel (0) target = $region137
    $region136: #{forward.1} parent=1 // pred_region
      %207 = dma.done [#allocation14], 2560
    $region137: #{forward.1} parent=1 // pred_fallthru
      _
    // Predicated region
    $region138: #{forward.1} parent=1 // pred_check
      _
    $region139: #{forward.1} parent=1 // pred_check_branch
      %209 = sbr.rel (0) target = $region141
    $region140: #{forward.1} parent=1 // pred_region
      %210 = dma.done [#allocation17], 32
    $region141: #{forward.1} parent=1 // pred_fallthru
      _
    %v212 = vld [vmem:[%s0] sm:$0xff]
    %v213 = vld [vmem:[%s0 + $0x8] sm:$0xff]
    %v214 = vpack.c.bf16 %v212, %v212
    %v215 = vpack.c.bf16 %v213, %v213
    %v216 = vld [vmem:[%s3] sm:$0xff]
    %v217 = vld [vmem:[%s3 + $0x8] sm:$0xff]
    %v218 = vld [vmem:[%s3 + $0x10] sm:$0xf]
    %v219 = vld [vmem:[%s3 + $0x14] sm:$0xff]
    %v220 = vld [vmem:[%s3 + $0x1c] sm:$0xff]
    %v221 = vld [vmem:[%s3 + $0x24] sm:$0xf]
    %v222 = vld [vmem:[%s3 + $0x28] sm:$0xff]
    %v223 = vld [vmem:[%s3 + $0x30] sm:$0xff]
    %v224 = vld [vmem:[%s3 + $0x38] sm:$0xf]
    %v225 = vld [vmem:[%s3 + $0x3c] sm:$0xff]
    %v226 = vld [vmem:[%s3 + $0x44] sm:$0xff]
    %v227 = vld [vmem:[%s3 + $0x4c] sm:$0xf]
    %v228 = vld [vmem:[%s3 + $0x50] sm:$0xff]
    %v229 = vld [vmem:[%s3 + $0x58] sm:$0xff]
    %v230 = vld [vmem:[%s3 + $0x60] sm:$0xf]
    %v231 = vld [vmem:[%s3 + $0x64] sm:$0xff]
    %v232 = vld [vmem:[%s3 + $0x6c] sm:$0xff]
    %v233 = vld [vmem:[%s3 + $0x74] sm:$0xf]
    %v234 = vld [vmem:[%s3 + $0x78] sm:$0xff]
    %v235 = vld [vmem:[%s3 + $0x80] sm:$0xff]
    %v236 = vld [vmem:[%s3 + $0x88] sm:$0xf]
    %v237 = vld [vmem:[%s3 + $0x8c] sm:$0xff]
    %v238 = vld [vmem:[%s3 + $0x94] sm:$0xff]
    %v239 = vld [vmem:[%s3 + $0x9c] sm:$0xf]
    %v240 = vld [vmem:[%s3 + $0xa0] sm:$0xff]
    %v241 = vld [vmem:[%s3 + $0xa8] sm:$0xff]
    %v242 = vld [vmem:[%s3 + $0xb0] sm:$0xf]
    %v243 = vld [vmem:[%s3 + $0xb4] sm:$0xff]
    %v244 = vld [vmem:[%s3 + $0xbc] sm:$0xff]
    %v245 = vld [vmem:[%s3 + $0xc4] sm:$0xf]
    %v246 = vld [vmem:[%s3 + $0xc8] sm:$0xff]
    %v247 = vld [vmem:[%s3 + $0xd0] sm:$0xff]
    %v248 = vld [vmem:[%s3 + $0xd8] sm:$0xf]
    %v249 = vld [vmem:[%s3 + $0xdc] sm:$0xff]
    %v250 = vld [vmem:[%s3 + $0xe4] sm:$0xff]
    %v251 = vld [vmem:[%s3 + $0xec] sm:$0xf]
    %v252 = vld [vmem:[%s3 + $0xf0] sm:$0xff]
    %v253 = vld [vmem:[%s3 + $0xf8] sm:$0xff]
    %v254 = vld [vmem:[%s3 + $0x100] sm:$0xf]
    %v255 = vld [vmem:[%s3 + $0x104] sm:$0xff]
    %v256 = vld [vmem:[%s3 + $0x10c] sm:$0xff]
    %v257 = vld [vmem:[%s3 + $0x114] sm:$0xf]
    %v258 = vld [vmem:[%s3 + $0x118] sm:$0xff]
    %v259 = vld [vmem:[%s3 + $0x120] sm:$0xff]
    %v260 = vld [vmem:[%s3 + $0x128] sm:$0xf]
    %v261 = vld [vmem:[%s3 + $0x12c] sm:$0xff]
    %v262 = vld [vmem:[%s3 + $0x134] sm:$0xff]
    %v263 = vld [vmem:[%s3 + $0x13c] sm:$0xf]
    %v264 = vld [vmem:[%s3 + $0x140] sm:$0xff]
    %v265 = vld [vmem:[%s3 + $0x148] sm:$0xff]
    %v266 = vld [vmem:[%s3 + $0x150] sm:$0xf]
    %v267 = vld [vmem:[%s3 + $0x154] sm:$0xff]
    %v268 = vld [vmem:[%s3 + $0x15c] sm:$0xff]
    %v269 = vld [vmem:[%s3 + $0x164] sm:$0xf]
    %v270 = vld [vmem:[%s3 + $0x168] sm:$0xff]
    %v271 = vld [vmem:[%s3 + $0x170] sm:$0xff]
    %v272 = vld [vmem:[%s3 + $0x178] sm:$0xf]
    %v273 = vld [vmem:[%s3 + $0x17c] sm:$0xff]
    %v274 = vld [vmem:[%s3 + $0x184] sm:$0xff]
    %v275 = vld [vmem:[%s3 + $0x18c] sm:$0xf]
    %v276 = vld [vmem:[%s3 + $0x190] sm:$0xff]
    %v277 = vld [vmem:[%s3 + $0x198] sm:$0xff]
    %v278 = vld [vmem:[%s3 + $0x1a0] sm:$0xf]
    %v279 = vld [vmem:[%s3 + $0x1a4] sm:$0xff]
    %v280 = vld [vmem:[%s3 + $0x1ac] sm:$0xff]
    %v281 = vld [vmem:[%s3 + $0x1b4] sm:$0xf]
    %v282 = vld [vmem:[%s3 + $0x1b8] sm:$0xff]
    %v283 = vld [vmem:[%s3 + $0x1c0] sm:$0xff]
    %v284 = vld [vmem:[%s3 + $0x1c8] sm:$0xf]
    %v285 = vld [vmem:[%s3 + $0x1cc] sm:$0xff]
    %v286 = vld [vmem:[%s3 + $0x1d4] sm:$0xff]
    %v287 = vld [vmem:[%s3 + $0x1dc] sm:$0xf]
    %v288 = vld [vmem:[%s3 + $0x1e0] sm:$0xff]
    %v289 = vld [vmem:[%s3 + $0x1e8] sm:$0xff]
    %v290 = vld [vmem:[%s3 + $0x1f0] sm:$0xf]
    %v291 = vld [vmem:[%s3 + $0x1f4] sm:$0xff]
    %v292 = vld [vmem:[%s3 + $0x1fc] sm:$0xff]
    %v293 = vld [vmem:[%s3 + $0x204] sm:$0xf]
    %v294 = vld [vmem:[%s3 + $0x208] sm:$0xff]
    %v295 = vld [vmem:[%s3 + $0x210] sm:$0xff]
    %v296 = vld [vmem:[%s3 + $0x218] sm:$0xf]
    %v297 = vld [vmem:[%s3 + $0x21c] sm:$0xff]
    %v298 = vld [vmem:[%s3 + $0x224] sm:$0xff]
    %v299 = vld [vmem:[%s3 + $0x22c] sm:$0xf]
    %v300 = vld [vmem:[%s3 + $0x230] sm:$0xff]
    %v301 = vld [vmem:[%s3 + $0x238] sm:$0xff]
    %v302 = vld [vmem:[%s3 + $0x240] sm:$0xf]
    %v303 = vld [vmem:[%s3 + $0x244] sm:$0xff]
    %v304 = vld [vmem:[%s3 + $0x24c] sm:$0xff]
    %v305 = vld [vmem:[%s3 + $0x254] sm:$0xf]
    %v306 = vld [vmem:[%s3 + $0x258] sm:$0xff]
    %v307 = vld [vmem:[%s3 + $0x260] sm:$0xff]
    %v308 = vld [vmem:[%s3 + $0x268] sm:$0xf]
    %v309 = vld [vmem:[%s3 + $0x26c] sm:$0xff]
    %v310 = vld [vmem:[%s3 + $0x274] sm:$0xff]
    %v311 = vld [vmem:[%s3 + $0x27c] sm:$0xf]
    %v408 = vunpack.c.l.b16 %v216
    %v409 = vunpack.c.h.b16 %v216
    %v410 = vunpack.c.l.b16 %v217
    %v411 = vunpack.c.h.b16 %v217
    %v412 = vunpack.c.l.b16 %v218
    %v413 = vunpack.c.l.b16 %v219
    %v414 = vunpack.c.h.b16 %v219
    %v415 = vunpack.c.l.b16 %v220
    %v416 = vunpack.c.h.b16 %v220
    %v417 = vunpack.c.l.b16 %v221
    %v418 = vunpack.c.l.b16 %v222
    %v419 = vunpack.c.h.b16 %v222
    %v420 = vunpack.c.l.b16 %v223
    %v421 = vunpack.c.h.b16 %v223
    %v422 = vunpack.c.l.b16 %v224
    %v423 = vunpack.c.l.b16 %v225
    %v424 = vunpack.c.h.b16 %v225
    %v425 = vunpack.c.l.b16 %v226
    %v426 = vunpack.c.h.b16 %v226
    %v427 = vunpack.c.l.b16 %v227
    %v428 = vunpack.c.l.b16 %v228
    %v429 = vunpack.c.h.b16 %v228
    %v430 = vunpack.c.l.b16 %v229
    %v431 = vunpack.c.h.b16 %v229
    %v432 = vunpack.c.l.b16 %v230
    %v433 = vunpack.c.l.b16 %v231
    %v434 = vunpack.c.h.b16 %v231
    %v435 = vunpack.c.l.b16 %v232
    %v436 = vunpack.c.h.b16 %v232
    %v437 = vunpack.c.l.b16 %v233
    %v438 = vunpack.c.l.b16 %v234
    %v439 = vunpack.c.h.b16 %v234
    %v440 = vunpack.c.l.b16 %v235
    %v441 = vunpack.c.h.b16 %v235
    %v442 = vunpack.c.l.b16 %v236
    %v443 = vunpack.c.l.b16 %v237
    %v444 = vunpack.c.h.b16 %v237
    %v445 = vunpack.c.l.b16 %v238
    %v446 = vunpack.c.h.b16 %v238
    %v447 = vunpack.c.l.b16 %v239
    %v448 = vunpack.c.l.b16 %v240
    %v449 = vunpack.c.h.b16 %v240
    %v450 = vunpack.c.l.b16 %v241
    %v451 = vunpack.c.h.b16 %v241
    %v452 = vunpack.c.l.b16 %v242
    %v453 = vunpack.c.l.b16 %v243
    %v454 = vunpack.c.h.b16 %v243
    %v455 = vunpack.c.l.b16 %v244
    %v456 = vunpack.c.h.b16 %v244
    %v457 = vunpack.c.l.b16 %v245
    %v458 = vunpack.c.l.b16 %v246
    %v459 = vunpack.c.h.b16 %v246
    %v460 = vunpack.c.l.b16 %v247
    %v461 = vunpack.c.h.b16 %v247
    %v462 = vunpack.c.l.b16 %v248
    %v463 = vunpack.c.l.b16 %v249
    %v464 = vunpack.c.h.b16 %v249
    %v465 = vunpack.c.l.b16 %v250
    %v466 = vunpack.c.h.b16 %v250
    %v467 = vunpack.c.l.b16 %v251
    %v468 = vunpack.c.l.b16 %v252
    %v469 = vunpack.c.h.b16 %v252
    %v470 = vunpack.c.l.b16 %v253
    %v471 = vunpack.c.h.b16 %v253
    %v472 = vunpack.c.l.b16 %v254
    %v473 = vunpack.c.l.b16 %v255
    %v474 = vunpack.c.h.b16 %v255
    %v475 = vunpack.c.l.b16 %v256
    %v476 = vunpack.c.h.b16 %v256
    %v477 = vunpack.c.l.b16 %v257
    %v478 = vunpack.c.l.b16 %v258
    %v479 = vunpack.c.h.b16 %v258
    %v480 = vunpack.c.l.b16 %v259
    %v481 = vunpack.c.h.b16 %v259
    %v482 = vunpack.c.l.b16 %v260
    %v483 = vunpack.c.l.b16 %v261
    %v484 = vunpack.c.h.b16 %v261
    %v485 = vunpack.c.l.b16 %v262
    %v486 = vunpack.c.h.b16 %v262
    %v487 = vunpack.c.l.b16 %v263
    %v488 = vunpack.c.l.b16 %v264
    %v489 = vunpack.c.h.b16 %v264
    %v490 = vunpack.c.l.b16 %v265
    %v491 = vunpack.c.h.b16 %v265
    %v492 = vunpack.c.l.b16 %v266
    %v493 = vunpack.c.l.b16 %v267
    %v494 = vunpack.c.h.b16 %v267
    %v495 = vunpack.c.l.b16 %v268
    %v496 = vunpack.c.h.b16 %v268
    %v497 = vunpack.c.l.b16 %v269
    %v498 = vunpack.c.l.b16 %v270
    %v499 = vunpack.c.h.b16 %v270
    %v500 = vunpack.c.l.b16 %v271
    %v501 = vunpack.c.h.b16 %v271
    %v502 = vunpack.c.l.b16 %v272
    %v503 = vunpack.c.l.b16 %v273
    %v504 = vunpack.c.h.b16 %v273
    %v505 = vunpack.c.l.b16 %v274
    %v506 = vunpack.c.h.b16 %v274
    %v507 = vunpack.c.l.b16 %v275
    %v508 = vunpack.c.l.b16 %v276
    %v509 = vunpack.c.h.b16 %v276
    %v510 = vunpack.c.l.b16 %v277
    %v511 = vunpack.c.h.b16 %v277
    %v512 = vunpack.c.l.b16 %v278
    %v513 = vunpack.c.l.b16 %v279
    %v514 = vunpack.c.h.b16 %v279
    %v515 = vunpack.c.l.b16 %v280
    %v516 = vunpack.c.h.b16 %v280
    %v517 = vunpack.c.l.b16 %v281
    %v518 = vunpack.c.l.b16 %v282
    %v519 = vunpack.c.h.b16 %v282
    %v520 = vunpack.c.l.b16 %v283
    %v521 = vunpack.c.h.b16 %v283
    %v522 = vunpack.c.l.b16 %v284
    %v523 = vunpack.c.l.b16 %v285
    %v524 = vunpack.c.h.b16 %v285
    %v525 = vunpack.c.l.b16 %v286
    %v526 = vunpack.c.h.b16 %v286
    %v527 = vunpack.c.l.b16 %v287
    %v528 = vunpack.c.l.b16 %v288
    %v529 = vunpack.c.h.b16 %v288
    %v530 = vunpack.c.l.b16 %v289
    %v531 = vunpack.c.h.b16 %v289
    %v532 = vunpack.c.l.b16 %v290
    %v533 = vunpack.c.l.b16 %v291
    %v534 = vunpack.c.h.b16 %v291
    %v535 = vunpack.c.l.b16 %v292
    %v536 = vunpack.c.h.b16 %v292
    %v537 = vunpack.c.l.b16 %v293
    %v538 = vunpack.c.l.b16 %v294
    %v539 = vunpack.c.h.b16 %v294
    %v540 = vunpack.c.l.b16 %v295
    %v541 = vunpack.c.h.b16 %v295
    %v542 = vunpack.c.l.b16 %v296
    %v543 = vunpack.c.l.b16 %v297
    %v544 = vunpack.c.h.b16 %v297
    %v545 = vunpack.c.l.b16 %v298
    %v546 = vunpack.c.h.b16 %v298
    %v547 = vunpack.c.l.b16 %v299
    %v548 = vunpack.c.l.b16 %v300
    %v549 = vunpack.c.h.b16 %v300
    %v550 = vunpack.c.l.b16 %v301
    %v551 = vunpack.c.h.b16 %v301
    %v552 = vunpack.c.l.b16 %v302
    %v553 = vunpack.c.l.b16 %v303
    %v554 = vunpack.c.h.b16 %v303
    %v555 = vunpack.c.l.b16 %v304
    %v556 = vunpack.c.h.b16 %v304
    %v557 = vunpack.c.l.b16 %v305
    %v558 = vunpack.c.l.b16 %v306
    %v559 = vunpack.c.h.b16 %v306
    %v560 = vunpack.c.l.b16 %v307
    %v561 = vunpack.c.h.b16 %v307
    %v562 = vunpack.c.l.b16 %v308
    %v563 = vunpack.c.l.b16 %v309
    %v564 = vunpack.c.h.b16 %v309
    %v565 = vunpack.c.l.b16 %v310
    %v566 = vunpack.c.h.b16 %v310
    %v567 = vunpack.c.l.b16 %v311
    %v568 = vpack.c.b16 %v413, %v408
    %v569 = vpack.c.b16 %v414, %v409
    %v570 = vpack.c.b16 %v415, %v410
    %v571 = vpack.c.b16 %v416, %v411
    %v572 = vpack.c.b16 %v417, %v412
    %v573 = vpack.c.b16 %v423, %v418
    %v574 = vpack.c.b16 %v424, %v419
    %v575 = vpack.c.b16 %v425, %v420
    %v576 = vpack.c.b16 %v426, %v421
    %v577 = vpack.c.b16 %v427, %v422
    %v578 = vpack.c.b16 %v433, %v428
    %v579 = vpack.c.b16 %v434, %v429
    %v580 = vpack.c.b16 %v435, %v430
    %v581 = vpack.c.b16 %v436, %v431
    %v582 = vpack.c.b16 %v437, %v432
    %v583 = vpack.c.b16 %v443, %v438
    %v584 = vpack.c.b16 %v444, %v439
    %v585 = vpack.c.b16 %v445, %v440
    %v586 = vpack.c.b16 %v446, %v441
    %v587 = vpack.c.b16 %v447, %v442
    %v588 = vpack.c.b16 %v453, %v448
    %v589 = vpack.c.b16 %v454, %v449
    %v590 = vpack.c.b16 %v455, %v450
    %v591 = vpack.c.b16 %v456, %v451
    %v592 = vpack.c.b16 %v457, %v452
    %v593 = vpack.c.b16 %v463, %v458
    %v594 = vpack.c.b16 %v464, %v459
    %v595 = vpack.c.b16 %v465, %v460
    %v596 = vpack.c.b16 %v466, %v461
    %v597 = vpack.c.b16 %v467, %v462
    %v598 = vpack.c.b16 %v473, %v468
    %v599 = vpack.c.b16 %v474, %v469
    %v600 = vpack.c.b16 %v475, %v470
    %v601 = vpack.c.b16 %v476, %v471
    %v602 = vpack.c.b16 %v477, %v472
    %v603 = vpack.c.b16 %v483, %v478
    %v604 = vpack.c.b16 %v484, %v479
    %v605 = vpack.c.b16 %v485, %v480
    %v606 = vpack.c.b16 %v486, %v481
    %v607 = vpack.c.b16 %v487, %v482
    %v608 = vpack.c.b16 %v493, %v488
    %v609 = vpack.c.b16 %v494, %v489
    %v610 = vpack.c.b16 %v495, %v490
    %v611 = vpack.c.b16 %v496, %v491
    %v612 = vpack.c.b16 %v497, %v492
    %v613 = vpack.c.b16 %v503, %v498
    %v614 = vpack.c.b16 %v504, %v499
    %v615 = vpack.c.b16 %v505, %v500
    %v616 = vpack.c.b16 %v506, %v501
    %v617 = vpack.c.b16 %v507, %v502
    %v618 = vpack.c.b16 %v513, %v508
    %v619 = vpack.c.b16 %v514, %v509
    %v620 = vpack.c.b16 %v515, %v510
    %v621 = vpack.c.b16 %v516, %v511
    %v622 = vpack.c.b16 %v517, %v512
    %v623 = vpack.c.b16 %v523, %v518
    %v624 = vpack.c.b16 %v524, %v519
    %v625 = vpack.c.b16 %v525, %v520
    %v626 = vpack.c.b16 %v526, %v521
    %v627 = vpack.c.b16 %v527, %v522
    %v628 = vpack.c.b16 %v533, %v528
    %v629 = vpack.c.b16 %v534, %v529
    %v630 = vpack.c.b16 %v535, %v530
    %v631 = vpack.c.b16 %v536, %v531
    %v632 = vpack.c.b16 %v537, %v532
    %v633 = vpack.c.b16 %v543, %v538
    %v634 = vpack.c.b16 %v544, %v539
    %v635 = vpack.c.b16 %v545, %v540
    %v636 = vpack.c.b16 %v546, %v541
    %v637 = vpack.c.b16 %v547, %v542
    %v638 = vpack.c.b16 %v553, %v548
    %v639 = vpack.c.b16 %v554, %v549
    %v640 = vpack.c.b16 %v555, %v550
    %v641 = vpack.c.b16 %v556, %v551
    %v642 = vpack.c.b16 %v557, %v552
    %v643 = vpack.c.b16 %v563, %v558
    %v644 = vpack.c.b16 %v564, %v559
    %v645 = vpack.c.b16 %v565, %v560
    %v646 = vpack.c.b16 %v566, %v561
    %v647 = vpack.c.b16 %v567, %v562
    %728 = vmatprep.subr.bf16.mxu0 %v604
    %729 = vmatpush1.bf16.msra.mxu0 %v603
    %730 = vmatprep.subr.bf16.mxu0 %v599
    %731 = vmatpush1.bf16.msra.mxu0 %v598
    %732 = vmatprep.subr.bf16.mxu0 %v594
    %733 = vmatpush1.bf16.msra.mxu0 %v593
    %734 = vmatprep.subr.bf16.mxu0 %v589
    %735 = vmatpush1.bf16.msra.mxu0 %v588
    %736 = vmatprep.subr.bf16.mxu0 %v584
    %737 = vmatpush1.bf16.msra.mxu0 %v583
    %738 = vmatprep.subr.bf16.mxu0 %v579
    %739 = vmatpush1.bf16.msra.mxu0 %v578
    %740 = vmatprep.subr.bf16.mxu0 %v574
    %741 = vmatpush1.bf16.msra.mxu0 %v573
    %742 = vmatprep.subr.bf16.mxu0 %v569
    %743 = vmatpush1.bf16.msra.mxu0 %v568
    %744 = vmatprep.subr.bf16.mxu0 %v644
    %745 = vmatpush2.bf16.msra.mxu0 %v643
    %746 = vmatprep.subr.bf16.mxu0 %v639
    %747 = vmatpush2.bf16.msra.mxu0 %v638
    %748 = vmatprep.subr.bf16.mxu0 %v634
    %749 = vmatpush2.bf16.msra.mxu0 %v633
    %750 = vmatprep.subr.bf16.mxu0 %v629
    %751 = vmatpush2.bf16.msra.mxu0 %v628
    %752 = vmatprep.subr.bf16.mxu0 %v624
    %753 = vmatpush2.bf16.msra.mxu0 %v623
    %754 = vmatprep.subr.bf16.mxu0 %v619
    %755 = vmatpush2.bf16.msra.mxu0 %v618
    %756 = vmatprep.subr.bf16.mxu0 %v614
    %757 = vmatpush2.bf16.msra.mxu0 %v613
    %758 = vmatprep.subr.bf16.mxu0 %v609
    %759 = vmatpush2.bf16.msra.mxu0 %v608
    %760 = vmatprep.mubr.bf16.mxu0 %v215
    %761 = vmatmul.mubr.bf16.gmra.mxu0 %v214
    %v762 = vpop.f32.mrf.mxu0
    %v763 = vadd.f32 0.0, %v762
    %v764 = vpop.f32.mrf.mxu0
    %v765 = vadd.f32 0.0, %v764
    %v766 = vpop.f32.mrf.mxu0
    %v767 = vpop.f32.mrf.mxu0
    %768 = vdwg.mxu0
    %769 = vmatprep.subr.bf16.mxu0 %v606
    %770 = vmatpush1.bf16.msra.mxu0 %v605
    %771 = vmatprep.subr.bf16.mxu0 %v601
    %772 = vmatpush1.bf16.msra.mxu0 %v600
    %773 = vmatprep.subr.bf16.mxu0 %v596
    %774 = vmatpush1.bf16.msra.mxu0 %v595
    %775 = vmatprep.subr.bf16.mxu0 %v591
    %776 = vmatpush1.bf16.msra.mxu0 %v590
    %777 = vmatprep.subr.bf16.mxu0 %v586
    %778 = vmatpush1.bf16.msra.mxu0 %v585
    %779 = vmatprep.subr.bf16.mxu0 %v581
    %780 = vmatpush1.bf16.msra.mxu0 %v580
    %781 = vmatprep.subr.bf16.mxu0 %v576
    %782 = vmatpush1.bf16.msra.mxu0 %v575
    %783 = vmatprep.subr.bf16.mxu0 %v571
    %784 = vmatpush1.bf16.msra.mxu0 %v570
    %785 = vmatprep.subr.bf16.mxu0 %v646
    %786 = vmatpush2.bf16.msra.mxu0 %v645
    %787 = vmatprep.subr.bf16.mxu0 %v641
    %788 = vmatpush2.bf16.msra.mxu0 %v640
    %789 = vmatprep.subr.bf16.mxu0 %v636
    %790 = vmatpush2.bf16.msra.mxu0 %v635
    %791 = vmatprep.subr.bf16.mxu0 %v631
    %792 = vmatpush2.bf16.msra.mxu0 %v630
    %793 = vmatprep.subr.bf16.mxu0 %v626
    %794 = vmatpush2.bf16.msra.mxu0 %v625
    %795 = vmatprep.subr.bf16.mxu0 %v621
    %796 = vmatpush2.bf16.msra.mxu0 %v620
    %797 = vmatprep.subr.bf16.mxu0 %v616
    %798 = vmatpush2.bf16.msra.mxu0 %v615
    %799 = vmatprep.subr.bf16.mxu0 %v611
    %800 = vmatpush2.bf16.msra.mxu0 %v610
    %801 = vmatprep.mubr.bf16.mxu0 %v215
    %802 = vmatmul.mubr.bf16.gmra.mxu0 %v214
    %v803 = vpop.f32.mrf.mxu0
    %v804 = vadd.f32 0.0, %v803
    %v805 = vpop.f32.mrf.mxu0
    %v806 = vadd.f32 0.0, %v805
    %v807 = vpop.f32.mrf.mxu0
    %v808 = vpop.f32.mrf.mxu0
    %809 = vdwg.mxu0
    %810 = vmatprep.subr.bf16.mxu0 0
    %811 = vmatpush1.bf16.msra.mxu0 %v607
    %812 = vmatprep.subr.bf16.mxu0 0
    %813 = vmatpush1.bf16.msra.mxu0 %v602
    %814 = vmatprep.subr.bf16.mxu0 0
    %815 = vmatpush1.bf16.msra.mxu0 %v597
    %816 = vmatprep.subr.bf16.mxu0 0
    %817 = vmatpush1.bf16.msra.mxu0 %v592
    %818 = vmatprep.subr.bf16.mxu0 0
    %819 = vmatpush1.bf16.msra.mxu0 %v587
    %820 = vmatprep.subr.bf16.mxu0 0
    %821 = vmatpush1.bf16.msra.mxu0 %v582
    %822 = vmatprep.subr.bf16.mxu0 0
    %823 = vmatpush1.bf16.msra.mxu0 %v577
    %824 = vmatprep.subr.bf16.mxu0 0
    %825 = vmatpush1.bf16.msra.mxu0 %v572
    %826 = vmatprep.subr.bf16.mxu0 0
    %827 = vmatpush2.bf16.msra.mxu0 %v647
    %828 = vmatprep.subr.bf16.mxu0 0
    %829 = vmatpush2.bf16.msra.mxu0 %v642
    %830 = vmatprep.subr.bf16.mxu0 0
    %831 = vmatpush2.bf16.msra.mxu0 %v637
    %832 = vmatprep.subr.bf16.mxu0 0
    %833 = vmatpush2.bf16.msra.mxu0 %v632
    %834 = vmatprep.subr.bf16.mxu0 0
    %835 = vmatpush2.bf16.msra.mxu0 %v627
    %836 = vmatprep.subr.bf16.mxu0 0
    %837 = vmatpush2.bf16.msra.mxu0 %v622
    %838 = vmatprep.subr.bf16.mxu0 0
    %839 = vmatpush2.bf16.msra.mxu0 %v617
    %840 = vmatprep.subr.bf16.mxu0 0
    %841 = vmatpush2.bf16.msra.mxu0 %v612
    %842 = vmatprep.mubr.bf16.mxu0 %v215
    %843 = vmatmul.mubr.bf16.gmra.mxu0 %v214
    %v844 = vpop.f32.mrf.mxu0
    %v845 = vadd.f32 0.0, %v844
    %v846 = vpop.f32.mrf.mxu0
    %v847 = vpop.f32.mrf.mxu0
    %v848 = vpop.f32.mrf.mxu0
    %849 = vdwg.mxu0
    %851 = vrot.lane.b32.xlu0 %v763, 64
    %v852 = vpop.permute.xlu0 %851
    %855 = vrot.lane.b32.xlu0 %v765, 64
    %v856 = vpop.permute.xlu0 %855
    %859 = vrot.lane.b32.xlu0 %v804, 64
    %v860 = vpop.permute.xlu0 %859
    %863 = vrot.lane.b32.xlu0 %v806, 64
    %v864 = vpop.permute.xlu0 %863
    %v866 = vpack.c.bf16 %v852, %v763
    %v867 = vpack.c.bf16 %v856, %v765
    %v868 = vpack.c.bf16 %v860, %v804
    %v869 = vpack.c.bf16 %v864, %v806
    %v870 = vpack.c.bf16 %v845, %v845
    %v871 = vld [vmem:[#allocation2] sm:$0xf]
    %v872 = vld [vmem:[#allocation2 + $0x4] sm:$0xf]
    %v873 = vld [vmem:[#allocation2 + $0x8] sm:$0xf]
    %v874 = vld [vmem:[#allocation2 + $0xc] sm:$0xf]
    %v875 = vld [vmem:[#allocation2 + $0x10] sm:$0xf]
    %v876 = vld [vmem:[#allocation2 + $0x14] sm:$0xf]
    %v877 = vld [vmem:[#allocation2 + $0x18] sm:$0xf]
    %v878 = vld [vmem:[#allocation2 + $0x1c] sm:$0xf]
    %v887 = vunpack.c.l.b16 %v871
    %v888 = vunpack.c.l.b16 %v872
    %v889 = vunpack.c.l.b16 %v873
    %v890 = vunpack.c.l.b16 %v874
    %v891 = vunpack.c.l.b16 %v875
    %v892 = vunpack.c.l.b16 %v876
    %v893 = vunpack.c.l.b16 %v877
    %v894 = vunpack.c.l.b16 %v878
    %v895 = vpack.c.b16 %v888, %v887
    %v896 = vpack.c.b16 %v890, %v889
    %v897 = vpack.c.b16 %v892, %v891
    %v898 = vpack.c.b16 %v894, %v893
    %vm899 = vcmask 588800
    %v901 = vsel %vm899, %v895, 0
    %v904 = vsel %vm899, %v896, 0
    %v907 = vsel %vm899, %v897, 0
    %v910 = vsel %vm899, %v898, 0
    %vm912 = vcmask 1043456
    %v914 = vsel %vm912, %v870, 0
    %916 = vmatprep.subr.bf16.mxu0 0
    %917 = vmatpush1.bf16.msra.mxu0 0
    %918 = vmatprep.subr.bf16.mxu0 0
    %919 = vmatpush1.bf16.msra.mxu0 0
    %920 = vmatprep.subr.bf16.mxu0 0
    %921 = vmatpush1.bf16.msra.mxu0 0
    %922 = vmatprep.subr.bf16.mxu0 0
    %923 = vmatpush1.bf16.msra.mxu0 %v914
    %924 = vmatprep.subr.bf16.mxu0 0
    %925 = vmatpush1.bf16.msra.mxu0 %v869
    %926 = vmatprep.subr.bf16.mxu0 0
    %927 = vmatpush1.bf16.msra.mxu0 %v868
    %928 = vmatprep.subr.bf16.mxu0 0
    %929 = vmatpush1.bf16.msra.mxu0 %v867
    %930 = vmatprep.subr.bf16.mxu0 0
    %931 = vmatpush1.bf16.msra.mxu0 %v866
    %932 = vmatprep.subr.bf16.mxu0 0
    %933 = vmatpush2.bf16.msra.mxu0 0
    %934 = vmatprep.subr.bf16.mxu0 0
    %935 = vmatpush2.bf16.msra.mxu0 0
    %936 = vmatprep.subr.bf16.mxu0 0
    %937 = vmatpush2.bf16.msra.mxu0 0
    %938 = vmatprep.subr.bf16.mxu0 0
    %939 = vmatpush2.bf16.msra.mxu0 0
    %940 = vmatprep.subr.bf16.mxu0 0
    %941 = vmatpush2.bf16.msra.mxu0 0
    %942 = vmatprep.subr.bf16.mxu0 0
    %943 = vmatpush2.bf16.msra.mxu0 0
    %944 = vmatprep.subr.bf16.mxu0 0
    %945 = vmatpush2.bf16.msra.mxu0 0
    %946 = vmatprep.subr.bf16.mxu0 0
    %947 = vmatpush2.bf16.msra.mxu0 0
    %948 = vmatprep.mubr.bf16.mxu0 0
    %949 = vmatmul.mubr.bf16.gmra.mxu0 %v901
    %v950 = vpop.f32.mrf.mxu0
    %v951 = vadd.f32 0.0, %v950
    %v952 = vpop.f32.mrf.mxu0
    %v953 = vpop.f32.mrf.mxu0
    %v954 = vadd.f32 0.0, %v953
    %v955 = vpop.f32.mrf.mxu0
    %956 = vmatprep.mubr.bf16.mxu0 0
    %957 = vmatmul.mubr.bf16.gmra.mxu0 %v904
    %v958 = vpop.f32.mrf.mxu0
    %v959 = vadd.f32 0.0, %v958
    %v960 = vpop.f32.mrf.mxu0
    %v961 = vpop.f32.mrf.mxu0
    %v962 = vadd.f32 0.0, %v961
    %v963 = vpop.f32.mrf.mxu0
    %964 = vmatprep.mubr.bf16.mxu0 0
    %965 = vmatmul.mubr.bf16.gmra.mxu0 %v907
    %v966 = vpop.f32.mrf.mxu0
    %v967 = vadd.f32 0.0, %v966
    %v968 = vpop.f32.mrf.mxu0
    %v969 = vpop.f32.mrf.mxu0
    %v970 = vadd.f32 0.0, %v969
    %v971 = vpop.f32.mrf.mxu0
    %972 = vmatprep.mubr.bf16.mxu0 0
    %973 = vmatmul.mubr.bf16.gmra.mxu0 %v910
    %v974 = vpop.f32.mrf.mxu0
    %v975 = vadd.f32 0.0, %v974
    %v976 = vpop.f32.mrf.mxu0
    %v977 = vpop.f32.mrf.mxu0
    %v978 = vadd.f32 0.0, %v977
    %v979 = vpop.f32.mrf.mxu0
    %980 = vdwg.mxu0
    %v981 = vld [vmem:[%s20] sm:$0xff]
    %v982 = vld [vmem:[%s20 + $0x8] sm:$0xff]
    %v983 = vld [vmem:[%s20 + $0x10] sm:$0xff]
    %v984 = vld [vmem:[%s20 + $0x18] sm:$0xff]
    %vm985 = vcmask 523264
    %v986 = vsel %vm985, %v951, 0.0
    %987 = vadd.xlane.f32.xlu0 %v986
    %v988 = vpop.xlane.xlu0 %987
    %v989 = vsel %vm985, %v954, 0.0
    %990 = vadd.xlane.f32.xlu0 %v989
    %v991 = vpop.xlane.xlu0 %990
    %v992 = vsel %vm985, %v959, 0.0
    %993 = vadd.xlane.f32.xlu0 %v992
    %v994 = vpop.xlane.xlu0 %993
    %v995 = vsel %vm985, %v962, 0.0
    %996 = vadd.xlane.f32.xlu0 %v995
    %v997 = vpop.xlane.xlu0 %996
    %v998 = vsel %vm985, %v967, 0.0
    %999 = vadd.xlane.f32.xlu0 %v998
    %v1000 = vpop.xlane.xlu0 %999
    %v1001 = vsel %vm985, %v970, 0.0
    %1002 = vadd.xlane.f32.xlu0 %v1001
    %v1003 = vpop.xlane.xlu0 %1002
    %v1004 = vsel %vm985, %v975, 0.0
    %1005 = vadd.xlane.f32.xlu0 %v1004
    %v1006 = vpop.xlane.xlu0 %1005
    %v1007 = vsel %vm985, %v978, 0.0
    %1008 = vadd.xlane.f32.xlu0 %v1007
    %v1009 = vpop.xlane.xlu0 %1008
    %v1010 = vmul.f32 %v951, %v951
    %v1011 = vmul.f32 %v954, %v954
    %v1012 = vmul.f32 %v959, %v959
    %v1013 = vmul.f32 %v962, %v962
    %v1014 = vmul.f32 %v967, %v967
    %v1015 = vmul.f32 %v970, %v970
    %v1016 = vmul.f32 %v975, %v975
    %v1017 = vmul.f32 %v978, %v978
    %v1018 = vsel %vm985, %v1010, 0.0
    %1019 = vadd.xlane.f32.xlu0 %v1018
    %v1020 = vpop.xlane.xlu0 %1019
    %v1021 = vsel %vm985, %v1011, 0.0
    %1022 = vadd.xlane.f32.xlu0 %v1021
    %v1023 = vpop.xlane.xlu0 %1022
    %v1024 = vsel %vm985, %v1012, 0.0
    %1025 = vadd.xlane.f32.xlu0 %v1024
    %v1026 = vpop.xlane.xlu0 %1025
    %v1027 = vsel %vm985, %v1013, 0.0
    %1028 = vadd.xlane.f32.xlu0 %v1027
    %v1029 = vpop.xlane.xlu0 %1028
    %v1030 = vsel %vm985, %v1014, 0.0
    %1031 = vadd.xlane.f32.xlu0 %v1030
    %v1032 = vpop.xlane.xlu0 %1031
    %v1033 = vsel %vm985, %v1015, 0.0
    %1034 = vadd.xlane.f32.xlu0 %v1033
    %v1035 = vpop.xlane.xlu0 %1034
    %v1036 = vsel %vm985, %v1016, 0.0
    %1037 = vadd.xlane.f32.xlu0 %v1036
    %v1038 = vpop.xlane.xlu0 %1037
    %v1039 = vsel %vm985, %v1017, 0.0
    %1040 = vadd.xlane.f32.xlu0 %v1039
    %v1041 = vpop.xlane.xlu0 %1040
    %v1042 = vadd.f32 %v988, %v1000
    %v1043 = vadd.f32 %v991, %v1003
    %v1044 = vadd.f32 %v994, %v1006
    %v1045 = vadd.f32 %v997, %v1009
    %v1046 = vadd.f32 %v1020, %v1032
    %v1047 = vadd.f32 %v1023, %v1035
    %v1048 = vadd.f32 %v1026, %v1038
    %v1049 = vadd.f32 %v1029, %v1041
    %v1050 = vmul.f32 %v1042, 0.0078125
    %v1051 = vmul.f32 %v1043, 0.0078125
    %v1052 = vmul.f32 %v1044, 0.0078125
    %v1053 = vmul.f32 %v1045, 0.0078125
    %v1054 = vmul.f32 %v1046, 0.0078125
    %v1055 = vmul.f32 %v1047, 0.0078125
    %v1056 = vmul.f32 %v1048, 0.0078125
    %v1057 = vmul.f32 %v1049, 0.0078125
    %v1058 = vmul.f32 %v1050, %v1050
    %v1059 = vmul.f32 %v1051, %v1051
    %v1060 = vmul.f32 %v1052, %v1052
    %v1061 = vmul.f32 %v1053, %v1053
    %v1062 = vsub.f32 %v1054, %v1058
    %v1063 = vsub.f32 %v1055, %v1059
    %v1064 = vsub.f32 %v1056, %v1060
    %v1065 = vsub.f32 %v1057, %v1061
    %v1066 = vmax.f32 %v1062, 0.0
    %v1067 = vmax.f32 %v1063, 0.0
    %v1068 = vmax.f32 %v1064, 0.0
    %v1069 = vmax.f32 %v1065, 0.0
    %v1070 = vadd.f32 %v1066, 1e-05
    %v1071 = vadd.f32 %v1067, 1e-05
    %v1072 = vadd.f32 %v1068, 1e-05
    %v1073 = vadd.f32 %v1069, 1e-05
    %v1074 = vrsqrt.pop %v1070
    %v1075 = vrsqrt.pop %v1071
    %v1076 = vrsqrt.pop %v1072
    %v1077 = vrsqrt.pop %v1073
    %v1078 = vmul.f32 %v981, %v1074
    %v1079 = vmul.f32 %v982, %v1075
    %v1080 = vmul.f32 %v983, %v1076
    %v1081 = vmul.f32 %v984, %v1077
    %v1082 = vmul.f32 %v1050, %v1078
    %v1083 = vmul.f32 %v1051, %v1079
    %v1084 = vmul.f32 %v1052, %v1080
    %v1085 = vmul.f32 %v1053, %v1081
    %1090 = vrot.lane.b32.xlu0 %v1082, 1
    %v1091 = vpop.permute.xlu0 %1090
    %1092 = vrot.lane.b32.xlu0 %v1083, 1
    %v1093 = vpop.permute.xlu0 %1092
    %1094 = vrot.lane.b32.xlu0 %v1084, 1
    %v1095 = vpop.permute.xlu0 %1094
    %1096 = vrot.lane.b32.xlu0 %v1085, 1
    %v1097 = vpop.permute.xlu0 %1096
    %v1102 = vsub.f32 %v981, %v1091
    %v1103 = vsub.f32 %v982, %v1093
    %v1104 = vsub.f32 %v983, %v1095
    %v1105 = vsub.f32 %v984, %v1097
    %1107 = vset.pattern.permute.xlu0 0
    %1108 = vperm.xlu0 %1107, %v1078
    %v1109 = vpop.permute.xlu0 %1108
    %1112 = vset.pattern.permute.xlu0 0
    %1113 = vperm.xlu0 %1112, %v1079
    %v1114 = vpop.permute.xlu0 %1113
    %1117 = vset.pattern.permute.xlu0 0
    %1118 = vperm.xlu0 %1117, %v1080
    %v1119 = vpop.permute.xlu0 %1118
    %1122 = vset.pattern.permute.xlu0 0
    %1123 = vperm.xlu0 %1122, %v1081
    %v1124 = vpop.permute.xlu0 %1123
    %v1126 = vmul.f32 %v951, %v1109
    %v1127 = vmul.f32 %v954, %v1114
    %v1128 = vmul.f32 %v959, %v1119
    %v1129 = vmul.f32 %v962, %v1124
    %v1130 = vmul.f32 %v967, %v1109
    %v1131 = vmul.f32 %v970, %v1114
    %v1132 = vmul.f32 %v975, %v1119
    %v1133 = vmul.f32 %v978, %v1124
    %1135 = vset.pattern.permute.xlu0 1
    %1136 = vperm.xlu0 %1135, %v1102
    %v1137 = vpop.permute.xlu0 %1136
    %1140 = vset.pattern.permute.xlu0 1
    %1141 = vperm.xlu0 %1140, %v1103
    %v1142 = vpop.permute.xlu0 %1141
    %1145 = vset.pattern.permute.xlu0 1
    %1146 = vperm.xlu0 %1145, %v1104
    %v1147 = vpop.permute.xlu0 %1146
    %1150 = vset.pattern.permute.xlu0 1
    %1151 = vperm.xlu0 %1150, %v1105
    %v1152 = vpop.permute.xlu0 %1151
    %v1154 = vadd.f32 %v1126, %v1137
    %v1155 = vadd.f32 %v1127, %v1142
    %v1156 = vadd.f32 %v1128, %v1147
    %v1157 = vadd.f32 %v1129, %v1152
    %v1158 = vadd.f32 %v1130, %v1137
    %v1159 = vadd.f32 %v1131, %v1142
    %v1160 = vadd.f32 %v1132, %v1147
    %v1161 = vadd.f32 %v1133, %v1152
    %vm1162 = vcmp.ge.f32.partialorder %v1154, 0.0
    %vm1163 = vcmp.ge.f32.partialorder %v1155, 0.0
    %vm1164 = vcmp.ge.f32.partialorder %v1156, 0.0
    %vm1165 = vcmp.ge.f32.partialorder %v1157, 0.0
    %vm1166 = vcmp.ge.f32.partialorder %v1158, 0.0
    %vm1167 = vcmp.ge.f32.partialorder %v1159, 0.0
    %vm1168 = vcmp.ge.f32.partialorder %v1160, 0.0
    %vm1169 = vcmp.ge.f32.partialorder %v1161, 0.0
    %v1170 = vmul.f32 %v1154, 0.01
    %v1171 = vmul.f32 %v1155, 0.01
    %v1172 = vmul.f32 %v1156, 0.01
    %v1173 = vmul.f32 %v1157, 0.01
    %v1174 = vmul.f32 %v1158, 0.01
    %v1175 = vmul.f32 %v1159, 0.01
    %v1176 = vmul.f32 %v1160, 0.01
    %v1177 = vmul.f32 %v1161, 0.01
    %v1178 = vsel %vm1162, %v1154, %v1170
    %v1179 = vsel %vm1163, %v1155, %v1171
    %v1180 = vsel %vm1164, %v1156, %v1172
    %v1181 = vsel %vm1165, %v1157, %v1173
    %v1182 = vsel %vm1166, %v1158, %v1174
    %v1183 = vsel %vm1167, %v1159, %v1175
    %v1184 = vsel %vm1168, %v1160, %v1176
    %v1185 = vsel %vm1169, %v1161, %v1177
    %v1186 = vpack.c.bf16 %v1179, %v1178
    %v1187 = vpack.c.bf16 %v1181, %v1180
    %v1188 = vpack.c.bf16 %v1183, %v1182
    %v1189 = vpack.c.bf16 %v1185, %v1184
    %v1190 = vld [vmem:[#allocation4] sm:$0xff]
    %v1191 = vld [vmem:[#allocation4 + $0x8] sm:$0xff]
    %v1192 = vld [vmem:[#allocation4 + $0x10] sm:$0xff]
    %v1193 = vld [vmem:[#allocation4 + $0x18] sm:$0xff]
    %v1194 = vld [vmem:[#allocation4 + $0x20] sm:$0xff]
    %v1195 = vld [vmem:[#allocation4 + $0x28] sm:$0xff]
    %v1196 = vld [vmem:[#allocation4 + $0x30] sm:$0xff]
    %v1197 = vld [vmem:[#allocation4 + $0x38] sm:$0xff]
    %v1206 = vunpack.c.l.b16 %v1190
    %v1207 = vunpack.c.h.b16 %v1190
    %v1208 = vunpack.c.l.b16 %v1191
    %v1209 = vunpack.c.h.b16 %v1191
    %v1210 = vunpack.c.l.b16 %v1192
    %v1211 = vunpack.c.h.b16 %v1192
    %v1212 = vunpack.c.l.b16 %v1193
    %v1213 = vunpack.c.h.b16 %v1193
    %v1214 = vunpack.c.l.b16 %v1194
    %v1215 = vunpack.c.h.b16 %v1194
    %v1216 = vunpack.c.l.b16 %v1195
    %v1217 = vunpack.c.h.b16 %v1195
    %v1218 = vunpack.c.l.b16 %v1196
    %v1219 = vunpack.c.h.b16 %v1196
    %v1220 = vunpack.c.l.b16 %v1197
    %v1221 = vunpack.c.h.b16 %v1197
    %v1222 = vpack.c.b16 %v1208, %v1206
    %v1223 = vpack.c.b16 %v1209, %v1207
    %v1224 = vpack.c.b16 %v1212, %v1210
    %v1225 = vpack.c.b16 %v1213, %v1211
    %v1226 = vpack.c.b16 %v1216, %v1214
    %v1227 = vpack.c.b16 %v1217, %v1215
    %v1228 = vpack.c.b16 %v1220, %v1218
    %v1229 = vpack.c.b16 %v1221, %v1219
    %v1239 = vsel %vm985, %v1186, 0
    %v1242 = vsel %vm985, %v1187, 0
    %v1245 = vsel %vm985, %v1188, 0
    %v1248 = vsel %vm985, %v1189, 0
    %1250 = vmatprep.subr.bf16.mxu0 0
    %1251 = vmatpush1.bf16.msra.mxu0 0
    %1252 = vmatprep.subr.bf16.mxu0 0
    %1253 = vmatpush1.bf16.msra.mxu0 0
    %1254 = vmatprep.subr.bf16.mxu0 0
    %1255 = vmatpush1.bf16.msra.mxu0 0
    %1256 = vmatprep.subr.bf16.mxu0 0
    %1257 = vmatpush1.bf16.msra.mxu0 0
    %1258 = vmatprep.subr.bf16.mxu0 %v1229
    %1259 = vmatpush1.bf16.msra.mxu0 %v1228
    %1260 = vmatprep.subr.bf16.mxu0 %v1227
    %1261 = vmatpush1.bf16.msra.mxu0 %v1226
    %1262 = vmatprep.subr.bf16.mxu0 %v1225
    %1263 = vmatpush1.bf16.msra.mxu0 %v1224
    %1264 = vmatprep.subr.bf16.mxu0 %v1223
    %1265 = vmatpush1.bf16.msra.mxu0 %v1222
    %1266 = vmatprep.subr.bf16.mxu0 0
    %1267 = vmatpush2.bf16.msra.mxu0 0
    %1268 = vmatprep.subr.bf16.mxu0 0
    %1269 = vmatpush2.bf16.msra.mxu0 0
    %1270 = vmatprep.subr.bf16.mxu0 0
    %1271 = vmatpush2.bf16.msra.mxu0 0
    %1272 = vmatprep.subr.bf16.mxu0 0
    %1273 = vmatpush2.bf16.msra.mxu0 0
    %1274 = vmatprep.subr.bf16.mxu0 0
    %1275 = vmatpush2.bf16.msra.mxu0 0
    %1276 = vmatprep.subr.bf16.mxu0 0
    %1277 = vmatpush2.bf16.msra.mxu0 0
    %1278 = vmatprep.subr.bf16.mxu0 0
    %1279 = vmatpush2.bf16.msra.mxu0 0
    %1280 = vmatprep.subr.bf16.mxu0 0
    %1281 = vmatpush2.bf16.msra.mxu0 0
    %1282 = vmatprep.mubr.bf16.mxu0 0
    %1283 = vmatmul.mubr.bf16.gmra.mxu0 %v1239
    %v1284 = vpop.f32.mrf.mxu0
    %v1285 = vadd.f32 0.0, %v1284
    %v1286 = vpop.f32.mrf.mxu0
    %v1287 = vadd.f32 0.0, %v1286
    %v1288 = vpop.f32.mrf.mxu0
    %v1289 = vadd.f32 0.0, %v1288
    %v1290 = vpop.f32.mrf.mxu0
    %v1291 = vadd.f32 0.0, %v1290
    %1292 = vmatprep.mubr.bf16.mxu0 0
    %1293 = vmatmul.mubr.bf16.gmra.mxu0 %v1242
    %v1294 = vpop.f32.mrf.mxu0
    %v1295 = vadd.f32 0.0, %v1294
    %v1296 = vpop.f32.mrf.mxu0
    %v1297 = vadd.f32 0.0, %v1296
    %v1298 = vpop.f32.mrf.mxu0
    %v1299 = vadd.f32 0.0, %v1298
    %v1300 = vpop.f32.mrf.mxu0
    %v1301 = vadd.f32 0.0, %v1300
    %1302 = vmatprep.mubr.bf16.mxu0 0
    %1303 = vmatmul.mubr.bf16.gmra.mxu0 %v1245
    %v1304 = vpop.f32.mrf.mxu0
    %v1305 = vadd.f32 0.0, %v1304
    %v1306 = vpop.f32.mrf.mxu0
    %v1307 = vadd.f32 0.0, %v1306
    %v1308 = vpop.f32.mrf.mxu0
    %v1309 = vadd.f32 0.0, %v1308
    %v1310 = vpop.f32.mrf.mxu0
    %v1311 = vadd.f32 0.0, %v1310
    %1312 = vmatprep.mubr.bf16.mxu0 0
    %1313 = vmatmul.mubr.bf16.gmra.mxu0 %v1248
    %v1314 = vpop.f32.mrf.mxu0
    %v1315 = vadd.f32 0.0, %v1314
    %v1316 = vpop.f32.mrf.mxu0
    %v1317 = vadd.f32 0.0, %v1316
    %v1318 = vpop.f32.mrf.mxu0
    %v1319 = vadd.f32 0.0, %v1318
    %v1320 = vpop.f32.mrf.mxu0
    %v1321 = vadd.f32 0.0, %v1320
    %1322 = vdwg.mxu0
    %1331 = vrot.lane.b32.xlu0 %v1285, 112
    %v1332 = vpop.permute.xlu0 %1331
    %1333 = vrot.lane.b32.xlu0 %v1289, 112
    %v1334 = vpop.permute.xlu0 %1333
    %1335 = vrot.lane.b32.xlu0 %v1295, 112
    %v1336 = vpop.permute.xlu0 %1335
    %1337 = vrot.lane.b32.xlu0 %v1299, 112
    %v1338 = vpop.permute.xlu0 %1337
    %1339 = vrot.lane.b32.xlu0 %v1305, 112
    %v1340 = vpop.permute.xlu0 %1339
    %1341 = vrot.lane.b32.xlu0 %v1309, 112
    %v1342 = vpop.permute.xlu0 %1341
    %1343 = vrot.lane.b32.xlu0 %v1315, 112
    %v1344 = vpop.permute.xlu0 %1343
    %1345 = vrot.lane.b32.xlu0 %v1319, 112
    %v1346 = vpop.permute.xlu0 %1345
    %1355 = vrot.lane.b32.xlu0 %v1285, 96
    %v1356 = vpop.permute.xlu0 %1355
    %1357 = vrot.lane.b32.xlu0 %v1289, 96
    %v1358 = vpop.permute.xlu0 %1357
    %1359 = vrot.lane.b32.xlu0 %v1295, 96
    %v1360 = vpop.permute.xlu0 %1359
    %1361 = vrot.lane.b32.xlu0 %v1299, 96
    %v1362 = vpop.permute.xlu0 %1361
    %1363 = vrot.lane.b32.xlu0 %v1305, 96
    %v1364 = vpop.permute.xlu0 %1363
    %1365 = vrot.lane.b32.xlu0 %v1309, 96
    %v1366 = vpop.permute.xlu0 %1365
    %1367 = vrot.lane.b32.xlu0 %v1315, 96
    %v1368 = vpop.permute.xlu0 %1367
    %1369 = vrot.lane.b32.xlu0 %v1319, 96
    %v1370 = vpop.permute.xlu0 %1369
    %1379 = vrot.lane.b32.xlu0 %v1285, 80
    %v1380 = vpop.permute.xlu0 %1379
    %1381 = vrot.lane.b32.xlu0 %v1289, 80
    %v1382 = vpop.permute.xlu0 %1381
    %1383 = vrot.lane.b32.xlu0 %v1295, 80
    %v1384 = vpop.permute.xlu0 %1383
    %1385 = vrot.lane.b32.xlu0 %v1299, 80
    %v1386 = vpop.permute.xlu0 %1385
    %1387 = vrot.lane.b32.xlu0 %v1305, 80
    %v1388 = vpop.permute.xlu0 %1387
    %1389 = vrot.lane.b32.xlu0 %v1309, 80
    %v1390 = vpop.permute.xlu0 %1389
    %1391 = vrot.lane.b32.xlu0 %v1315, 80
    %v1392 = vpop.permute.xlu0 %1391
    %1393 = vrot.lane.b32.xlu0 %v1319, 80
    %v1394 = vpop.permute.xlu0 %1393
    %1403 = vrot.lane.b32.xlu0 %v1285, 64
    %v1404 = vpop.permute.xlu0 %1403
    %1405 = vrot.lane.b32.xlu0 %v1289, 64
    %v1406 = vpop.permute.xlu0 %1405
    %1407 = vrot.lane.b32.xlu0 %v1295, 64
    %v1408 = vpop.permute.xlu0 %1407
    %1409 = vrot.lane.b32.xlu0 %v1299, 64
    %v1410 = vpop.permute.xlu0 %1409
    %1411 = vrot.lane.b32.xlu0 %v1305, 64
    %v1412 = vpop.permute.xlu0 %1411
    %1413 = vrot.lane.b32.xlu0 %v1309, 64
    %v1414 = vpop.permute.xlu0 %1413
    %1415 = vrot.lane.b32.xlu0 %v1315, 64
    %v1416 = vpop.permute.xlu0 %1415
    %1417 = vrot.lane.b32.xlu0 %v1319, 64
    %v1418 = vpop.permute.xlu0 %1417
    %1427 = vrot.lane.b32.xlu0 %v1285, 48
    %v1428 = vpop.permute.xlu0 %1427
    %1429 = vrot.lane.b32.xlu0 %v1289, 48
    %v1430 = vpop.permute.xlu0 %1429
    %1431 = vrot.lane.b32.xlu0 %v1295, 48
    %v1432 = vpop.permute.xlu0 %1431
    %1433 = vrot.lane.b32.xlu0 %v1299, 48
    %v1434 = vpop.permute.xlu0 %1433
    %1435 = vrot.lane.b32.xlu0 %v1305, 48
    %v1436 = vpop.permute.xlu0 %1435
    %1437 = vrot.lane.b32.xlu0 %v1309, 48
    %v1438 = vpop.permute.xlu0 %1437
    %1439 = vrot.lane.b32.xlu0 %v1315, 48
    %v1440 = vpop.permute.xlu0 %1439
    %1441 = vrot.lane.b32.xlu0 %v1319, 48
    %v1442 = vpop.permute.xlu0 %1441
    %1451 = vrot.lane.b32.xlu0 %v1285, 32
    %v1452 = vpop.permute.xlu0 %1451
    %1453 = vrot.lane.b32.xlu0 %v1289, 32
    %v1454 = vpop.permute.xlu0 %1453
    %1455 = vrot.lane.b32.xlu0 %v1295, 32
    %v1456 = vpop.permute.xlu0 %1455
    %1457 = vrot.lane.b32.xlu0 %v1299, 32
    %v1458 = vpop.permute.xlu0 %1457
    %1459 = vrot.lane.b32.xlu0 %v1305, 32
    %v1460 = vpop.permute.xlu0 %1459
    %1461 = vrot.lane.b32.xlu0 %v1309, 32
    %v1462 = vpop.permute.xlu0 %1461
    %1463 = vrot.lane.b32.xlu0 %v1315, 32
    %v1464 = vpop.permute.xlu0 %1463
    %1465 = vrot.lane.b32.xlu0 %v1319, 32
    %v1466 = vpop.permute.xlu0 %1465
    %1475 = vrot.lane.b32.xlu0 %v1285, 16
    %v1476 = vpop.permute.xlu0 %1475
    %1477 = vrot.lane.b32.xlu0 %v1289, 16
    %v1478 = vpop.permute.xlu0 %1477
    %1479 = vrot.lane.b32.xlu0 %v1295, 16
    %v1480 = vpop.permute.xlu0 %1479
    %1481 = vrot.lane.b32.xlu0 %v1299, 16
    %v1482 = vpop.permute.xlu0 %1481
    %1483 = vrot.lane.b32.xlu0 %v1305, 16
    %v1484 = vpop.permute.xlu0 %1483
    %1485 = vrot.lane.b32.xlu0 %v1309, 16
    %v1486 = vpop.permute.xlu0 %1485
    %1487 = vrot.lane.b32.xlu0 %v1315, 16
    %v1488 = vpop.permute.xlu0 %1487
    %1489 = vrot.lane.b32.xlu0 %v1319, 16
    %v1490 = vpop.permute.xlu0 %1489
    %v1499 = vpack.c.bf16 %v1289, %v1285
    %v1500 = vpack.c.bf16 %v1299, %v1295
    %v1501 = vpack.c.bf16 %v1309, %v1305
    %v1502 = vpack.c.bf16 %v1319, %v1315
    %v1503 = vpack.c.bf16 %v1334, %v1332
    %v1504 = vpack.c.bf16 %v1338, %v1336
    %v1505 = vpack.c.bf16 %v1342, %v1340
    %v1506 = vpack.c.bf16 %v1346, %v1344
    %v1507 = vpack.c.bf16 %v1358, %v1356
    %v1508 = vpack.c.bf16 %v1362, %v1360
    %v1509 = vpack.c.bf16 %v1366, %v1364
    %v1510 = vpack.c.bf16 %v1370, %v1368
    %v1511 = vpack.c.bf16 %v1382, %v1380
    %v1512 = vpack.c.bf16 %v1386, %v1384
    %v1513 = vpack.c.bf16 %v1390, %v1388
    %v1514 = vpack.c.bf16 %v1394, %v1392
    %v1515 = vpack.c.bf16 %v1406, %v1404
    %v1516 = vpack.c.bf16 %v1410, %v1408
    %v1517 = vpack.c.bf16 %v1414, %v1412
    %v1518 = vpack.c.bf16 %v1418, %v1416
    %v1519 = vpack.c.bf16 %v1430, %v1428
    %v1520 = vpack.c.bf16 %v1434, %v1432
    %v1521 = vpack.c.bf16 %v1438, %v1436
    %v1522 = vpack.c.bf16 %v1442, %v1440
    %v1523 = vpack.c.bf16 %v1454, %v1452
    %v1524 = vpack.c.bf16 %v1458, %v1456
    %v1525 = vpack.c.bf16 %v1462, %v1460
    %v1526 = vpack.c.bf16 %v1466, %v1464
    %v1527 = vpack.c.bf16 %v1478, %v1476
    %v1528 = vpack.c.bf16 %v1482, %v1480
    %v1529 = vpack.c.bf16 %v1486, %v1484
    %v1530 = vpack.c.bf16 %v1490, %v1488
    %v1531 = vpack.c.bf16 %v1291, %v1287
    %v1532 = vpack.c.bf16 %v1301, %v1297
    %v1533 = vpack.c.bf16 %v1311, %v1307
    %v1534 = vpack.c.bf16 %v1321, %v1317
    %v1535 = vld [vmem:[%s4] sm:$0xff]
    %v1536 = vld [vmem:[%s4 + $0x8] sm:$0xff]
    %v1537 = vld [vmem:[%s4 + $0x10] sm:$0xf]
    %v1538 = vld [vmem:[%s4 + $0x14] sm:$0xff]
    %v1539 = vld [vmem:[%s4 + $0x1c] sm:$0xff]
    %v1540 = vld [vmem:[%s4 + $0x24] sm:$0xf]
    %v1541 = vld [vmem:[%s4 + $0x28] sm:$0xff]
    %v1542 = vld [vmem:[%s4 + $0x30] sm:$0xff]
    %v1543 = vld [vmem:[%s4 + $0x38] sm:$0xf]
    %v1544 = vld [vmem:[%s4 + $0x3c] sm:$0xff]
    %v1545 = vld [vmem:[%s4 + $0x44] sm:$0xff]
    %v1546 = vld [vmem:[%s4 + $0x4c] sm:$0xf]
    %v1547 = vld [vmem:[%s4 + $0x50] sm:$0xff]
    %v1548 = vld [vmem:[%s4 + $0x58] sm:$0xff]
    %v1549 = vld [vmem:[%s4 + $0x60] sm:$0xf]
    %v1550 = vld [vmem:[%s4 + $0x64] sm:$0xff]
    %v1551 = vld [vmem:[%s4 + $0x6c] sm:$0xff]
    %v1552 = vld [vmem:[%s4 + $0x74] sm:$0xf]
    %v1553 = vld [vmem:[%s4 + $0x78] sm:$0xff]
    %v1554 = vld [vmem:[%s4 + $0x80] sm:$0xff]
    %v1555 = vld [vmem:[%s4 + $0x88] sm:$0xf]
    %v1556 = vld [vmem:[%s4 + $0x8c] sm:$0xff]
    %v1557 = vld [vmem:[%s4 + $0x94] sm:$0xff]
    %v1558 = vld [vmem:[%s4 + $0x9c] sm:$0xf]
    %v1559 = vld [vmem:[%s4 + $0xa0] sm:$0xff]
    %v1560 = vld [vmem:[%s4 + $0xa8] sm:$0xff]
    %v1561 = vld [vmem:[%s4 + $0xb0] sm:$0xf]
    %v1562 = vld [vmem:[%s4 + $0xb4] sm:$0xff]
    %v1563 = vld [vmem:[%s4 + $0xbc] sm:$0xff]
    %v1564 = vld [vmem:[%s4 + $0xc4] sm:$0xf]
    %v1565 = vld [vmem:[%s4 + $0xc8] sm:$0xff]
    %v1566 = vld [vmem:[%s4 + $0xd0] sm:$0xff]
    %v1567 = vld [vmem:[%s4 + $0xd8] sm:$0xf]
    %v1568 = vld [vmem:[%s4 + $0xdc] sm:$0xff]
    %v1569 = vld [vmem:[%s4 + $0xe4] sm:$0xff]
    %v1570 = vld [vmem:[%s4 + $0xec] sm:$0xf]
    %v1571 = vld [vmem:[%s4 + $0xf0] sm:$0xff]
    %v1572 = vld [vmem:[%s4 + $0xf8] sm:$0xff]
    %v1573 = vld [vmem:[%s4 + $0x100] sm:$0xf]
    %v1574 = vld [vmem:[%s4 + $0x104] sm:$0xff]
    %v1575 = vld [vmem:[%s4 + $0x10c] sm:$0xff]
    %v1576 = vld [vmem:[%s4 + $0x114] sm:$0xf]
    %v1577 = vld [vmem:[%s4 + $0x118] sm:$0xff]
    %v1578 = vld [vmem:[%s4 + $0x120] sm:$0xff]
    %v1579 = vld [vmem:[%s4 + $0x128] sm:$0xf]
    %v1580 = vld [vmem:[%s4 + $0x12c] sm:$0xff]
    %v1581 = vld [vmem:[%s4 + $0x134] sm:$0xff]
    %v1582 = vld [vmem:[%s4 + $0x13c] sm:$0xf]
    %v1631 = vunpack.c.l.b16 %v1535
    %v1632 = vunpack.c.h.b16 %v1535
    %v1633 = vunpack.c.l.b16 %v1536
    %v1634 = vunpack.c.h.b16 %v1536
    %v1635 = vunpack.c.l.b16 %v1537
    %v1636 = vunpack.c.l.b16 %v1538
    %v1637 = vunpack.c.h.b16 %v1538
    %v1638 = vunpack.c.l.b16 %v1539
    %v1639 = vunpack.c.h.b16 %v1539
    %v1640 = vunpack.c.l.b16 %v1540
    %v1641 = vunpack.c.l.b16 %v1541
    %v1642 = vunpack.c.h.b16 %v1541
    %v1643 = vunpack.c.l.b16 %v1542
    %v1644 = vunpack.c.h.b16 %v1542
    %v1645 = vunpack.c.l.b16 %v1543
    %v1646 = vunpack.c.l.b16 %v1544
    %v1647 = vunpack.c.h.b16 %v1544
    %v1648 = vunpack.c.l.b16 %v1545
    %v1649 = vunpack.c.h.b16 %v1545
    %v1650 = vunpack.c.l.b16 %v1546
    %v1651 = vunpack.c.l.b16 %v1547
    %v1652 = vunpack.c.h.b16 %v1547
    %v1653 = vunpack.c.l.b16 %v1548
    %v1654 = vunpack.c.h.b16 %v1548
    %v1655 = vunpack.c.l.b16 %v1549
    %v1656 = vunpack.c.l.b16 %v1550
    %v1657 = vunpack.c.h.b16 %v1550
    %v1658 = vunpack.c.l.b16 %v1551
    %v1659 = vunpack.c.h.b16 %v1551
    %v1660 = vunpack.c.l.b16 %v1552
    %v1661 = vunpack.c.l.b16 %v1553
    %v1662 = vunpack.c.h.b16 %v1553
    %v1663 = vunpack.c.l.b16 %v1554
    %v1664 = vunpack.c.h.b16 %v1554
    %v1665 = vunpack.c.l.b16 %v1555
    %v1666 = vunpack.c.l.b16 %v1556
    %v1667 = vunpack.c.h.b16 %v1556
    %v1668 = vunpack.c.l.b16 %v1557
    %v1669 = vunpack.c.h.b16 %v1557
    %v1670 = vunpack.c.l.b16 %v1558
    %v1671 = vunpack.c.l.b16 %v1559
    %v1672 = vunpack.c.h.b16 %v1559
    %v1673 = vunpack.c.l.b16 %v1560
    %v1674 = vunpack.c.h.b16 %v1560
    %v1675 = vunpack.c.l.b16 %v1561
    %v1676 = vunpack.c.l.b16 %v1562
    %v1677 = vunpack.c.h.b16 %v1562
    %v1678 = vunpack.c.l.b16 %v1563
    %v1679 = vunpack.c.h.b16 %v1563
    %v1680 = vunpack.c.l.b16 %v1564
    %v1681 = vunpack.c.l.b16 %v1565
    %v1682 = vunpack.c.h.b16 %v1565
    %v1683 = vunpack.c.l.b16 %v1566
    %v1684 = vunpack.c.h.b16 %v1566
    %v1685 = vunpack.c.l.b16 %v1567
    %v1686 = vunpack.c.l.b16 %v1568
    %v1687 = vunpack.c.h.b16 %v1568
    %v1688 = vunpack.c.l.b16 %v1569
    %v1689 = vunpack.c.h.b16 %v1569
    %v1690 = vunpack.c.l.b16 %v1570
    %v1691 = vunpack.c.l.b16 %v1571
    %v1692 = vunpack.c.h.b16 %v1571
    %v1693 = vunpack.c.l.b16 %v1572
    %v1694 = vunpack.c.h.b16 %v1572
    %v1695 = vunpack.c.l.b16 %v1573
    %v1696 = vunpack.c.l.b16 %v1574
    %v1697 = vunpack.c.h.b16 %v1574
    %v1698 = vunpack.c.l.b16 %v1575
    %v1699 = vunpack.c.h.b16 %v1575
    %v1700 = vunpack.c.l.b16 %v1576
    %v1701 = vunpack.c.l.b16 %v1577
    %v1702 = vunpack.c.h.b16 %v1577
    %v1703 = vunpack.c.l.b16 %v1578
    %v1704 = vunpack.c.h.b16 %v1578
    %v1705 = vunpack.c.l.b16 %v1579
    %v1706 = vunpack.c.l.b16 %v1580
    %v1707 = vunpack.c.h.b16 %v1580
    %v1708 = vunpack.c.l.b16 %v1581
    %v1709 = vunpack.c.h.b16 %v1581
    %v1710 = vunpack.c.l.b16 %v1582
    %v1711 = vpack.c.b16 %v1636, %v1631
    %v1712 = vpack.c.b16 %v1637, %v1632
    %v1713 = vpack.c.b16 %v1638, %v1633
    %v1714 = vpack.c.b16 %v1639, %v1634
    %v1715 = vpack.c.b16 %v1640, %v1635
    %v1716 = vpack.c.b16 %v1646, %v1641
    %v1717 = vpack.c.b16 %v1647, %v1642
    %v1718 = vpack.c.b16 %v1648, %v1643
    %v1719 = vpack.c.b16 %v1649, %v1644
    %v1720 = vpack.c.b16 %v1650, %v1645
    %v1721 = vpack.c.b16 %v1656, %v1651
    %v1722 = vpack.c.b16 %v1657, %v1652
    %v1723 = vpack.c.b16 %v1658, %v1653
    %v1724 = vpack.c.b16 %v1659, %v1654
    %v1725 = vpack.c.b16 %v1660, %v1655
    %v1726 = vpack.c.b16 %v1666, %v1661
    %v1727 = vpack.c.b16 %v1667, %v1662
    %v1728 = vpack.c.b16 %v1668, %v1663
    %v1729 = vpack.c.b16 %v1669, %v1664
    %v1730 = vpack.c.b16 %v1670, %v1665
    %v1731 = vpack.c.b16 %v1676, %v1671
    %v1732 = vpack.c.b16 %v1677, %v1672
    %v1733 = vpack.c.b16 %v1678, %v1673
    %v1734 = vpack.c.b16 %v1679, %v1674
    %v1735 = vpack.c.b16 %v1680, %v1675
    %v1736 = vpack.c.b16 %v1686, %v1681
    %v1737 = vpack.c.b16 %v1687, %v1682
    %v1738 = vpack.c.b16 %v1688, %v1683
    %v1739 = vpack.c.b16 %v1689, %v1684
    %v1740 = vpack.c.b16 %v1690, %v1685
    %v1741 = vpack.c.b16 %v1696, %v1691
    %v1742 = vpack.c.b16 %v1697, %v1692
    %v1743 = vpack.c.b16 %v1698, %v1693
    %v1744 = vpack.c.b16 %v1699, %v1694
    %v1745 = vpack.c.b16 %v1700, %v1695
    %v1746 = vpack.c.b16 %v1706, %v1701
    %v1747 = vpack.c.b16 %v1707, %v1702
    %v1748 = vpack.c.b16 %v1708, %v1703
    %v1749 = vpack.c.b16 %v1709, %v1704
    %v1750 = vpack.c.b16 %v1710, %v1705
    %v1784 = vsel %vm985, %v1715, 0
    %v1787 = vsel %vm985, %v1720, 0
    %v1790 = vsel %vm985, %v1725, 0
    %v1793 = vsel %vm985, %v1730, 0
    %v1796 = vsel %vm985, %v1735, 0
    %v1799 = vsel %vm985, %v1740, 0
    %v1802 = vsel %vm985, %v1745, 0
    %v1805 = vsel %vm985, %v1750, 0
    %1807 = vmatprep.subr.bf16.mxu0 0
    %1808 = vmatpush1.bf16.msra.mxu0 %v1506
    %1809 = vmatprep.subr.bf16.mxu0 0
    %1810 = vmatpush1.bf16.msra.mxu0 %v1505
    %1811 = vmatprep.subr.bf16.mxu0 0
    %1812 = vmatpush1.bf16.msra.mxu0 %v1504
    %1813 = vmatprep.subr.bf16.mxu0 0
    %1814 = vmatpush1.bf16.msra.mxu0 %v1503
    %1815 = vmatprep.subr.bf16.mxu0 0
    %1816 = vmatpush1.bf16.msra.mxu0 %v1502
    %1817 = vmatprep.subr.bf16.mxu0 0
    %1818 = vmatpush1.bf16.msra.mxu0 %v1501
    %1819 = vmatprep.subr.bf16.mxu0 0
    %1820 = vmatpush1.bf16.msra.mxu0 %v1500
    %1821 = vmatprep.subr.bf16.mxu0 0
    %1822 = vmatpush1.bf16.msra.mxu0 %v1499
    %1823 = vmatprep.subr.bf16.mxu0 0
    %1824 = vmatpush2.bf16.msra.mxu0 %v1514
    %1825 = vmatprep.subr.bf16.mxu0 0
    %1826 = vmatpush2.bf16.msra.mxu0 %v1513
    %1827 = vmatprep.subr.bf16.mxu0 0
    %1828 = vmatpush2.bf16.msra.mxu0 %v1512
    %1829 = vmatprep.subr.bf16.mxu0 0
    %1830 = vmatpush2.bf16.msra.mxu0 %v1511
    %1831 = vmatprep.subr.bf16.mxu0 0
    %1832 = vmatpush2.bf16.msra.mxu0 %v1510
    %1833 = vmatprep.subr.bf16.mxu0 0
    %1834 = vmatpush2.bf16.msra.mxu0 %v1509
    %1835 = vmatprep.subr.bf16.mxu0 0
    %1836 = vmatpush2.bf16.msra.mxu0 %v1508
    %1837 = vmatprep.subr.bf16.mxu0 0
    %1838 = vmatpush2.bf16.msra.mxu0 %v1507
    %1839 = vmatprep.mubr.bf16.mxu0 %v1712
    %1840 = vmatmul.mubr.bf16.gmra.mxu0 %v1711
    %v1841 = vpop.f32.mrf.mxu0
    %v1842 = vadd.f32 0.0, %v1841
    %v1843 = vpop.f32.mrf.mxu0
    %v1844 = vpop.f32.mrf.mxu0
    %v1845 = vadd.f32 0.0, %v1844
    %v1846 = vpop.f32.mrf.mxu0
    %1847 = vmatprep.mubr.bf16.mxu0 %v1717
    %1848 = vmatmul.mubr.bf16.gmra.mxu0 %v1716
    %v1849 = vpop.f32.mrf.mxu0
    %v1850 = vadd.f32 0.0, %v1849
    %v1851 = vpop.f32.mrf.mxu0
    %v1852 = vpop.f32.mrf.mxu0
    %v1853 = vadd.f32 0.0, %v1852
    %v1854 = vpop.f32.mrf.mxu0
    %1855 = vmatprep.mubr.bf16.mxu0 %v1722
    %1856 = vmatmul.mubr.bf16.gmra.mxu0 %v1721
    %v1857 = vpop.f32.mrf.mxu0
    %v1858 = vadd.f32 0.0, %v1857
    %v1859 = vpop.f32.mrf.mxu0
    %v1860 = vpop.f32.mrf.mxu0
    %v1861 = vadd.f32 0.0, %v1860
    %v1862 = vpop.f32.mrf.mxu0
    %1863 = vmatprep.mubr.bf16.mxu0 %v1727
    %1864 = vmatmul.mubr.bf16.gmra.mxu0 %v1726
    %v1865 = vpop.f32.mrf.mxu0
    %v1866 = vadd.f32 0.0, %v1865
    %v1867 = vpop.f32.mrf.mxu0
    %v1868 = vpop.f32.mrf.mxu0
    %v1869 = vadd.f32 0.0, %v1868
    %v1870 = vpop.f32.mrf.mxu0
    %1871 = vmatprep.mubr.bf16.mxu0 %v1732
    %1872 = vmatmul.mubr.bf16.gmra.mxu0 %v1731
    %v1873 = vpop.f32.mrf.mxu0
    %v1874 = vadd.f32 0.0, %v1873
    %v1875 = vpop.f32.mrf.mxu0
    %v1876 = vpop.f32.mrf.mxu0
    %v1877 = vadd.f32 0.0, %v1876
    %v1878 = vpop.f32.mrf.mxu0
    %1879 = vmatprep.mubr.bf16.mxu0 %v1737
    %1880 = vmatmul.mubr.bf16.gmra.mxu0 %v1736
    %v1881 = vpop.f32.mrf.mxu0
    %v1882 = vadd.f32 0.0, %v1881
    %v1883 = vpop.f32.mrf.mxu0
    %v1884 = vpop.f32.mrf.mxu0
    %v1885 = vadd.f32 0.0, %v1884
    %v1886 = vpop.f32.mrf.mxu0
    %1887 = vmatprep.mubr.bf16.mxu0 %v1742
    %1888 = vmatmul.mubr.bf16.gmra.mxu0 %v1741
    %v1889 = vpop.f32.mrf.mxu0
    %v1890 = vadd.f32 0.0, %v1889
    %v1891 = vpop.f32.mrf.mxu0
    %v1892 = vpop.f32.mrf.mxu0
    %v1893 = vadd.f32 0.0, %v1892
    %v1894 = vpop.f32.mrf.mxu0
    %1895 = vmatprep.mubr.bf16.mxu0 %v1747
    %1896 = vmatmul.mubr.bf16.gmra.mxu0 %v1746
    %v1897 = vpop.f32.mrf.mxu0
    %v1898 = vadd.f32 0.0, %v1897
    %v1899 = vpop.f32.mrf.mxu0
    %v1900 = vpop.f32.mrf.mxu0
    %v1901 = vadd.f32 0.0, %v1900
    %v1902 = vpop.f32.mrf.mxu0
    %1903 = vdwg.mxu0
    %1904 = vmatprep.subr.bf16.mxu0 0
    %1905 = vmatpush1.bf16.msra.mxu0 %v1522
    %1906 = vmatprep.subr.bf16.mxu0 0
    %1907 = vmatpush1.bf16.msra.mxu0 %v1521
    %1908 = vmatprep.subr.bf16.mxu0 0
    %1909 = vmatpush1.bf16.msra.mxu0 %v1520
    %1910 = vmatprep.subr.bf16.mxu0 0
    %1911 = vmatpush1.bf16.msra.mxu0 %v1519
    %1912 = vmatprep.subr.bf16.mxu0 0
    %1913 = vmatpush1.bf16.msra.mxu0 %v1518
    %1914 = vmatprep.subr.bf16.mxu0 0
    %1915 = vmatpush1.bf16.msra.mxu0 %v1517
    %1916 = vmatprep.subr.bf16.mxu0 0
    %1917 = vmatpush1.bf16.msra.mxu0 %v1516
    %1918 = vmatprep.subr.bf16.mxu0 0
    %1919 = vmatpush1.bf16.msra.mxu0 %v1515
    %1920 = vmatprep.subr.bf16.mxu0 0
    %1921 = vmatpush2.bf16.msra.mxu0 %v1530
    %1922 = vmatprep.subr.bf16.mxu0 0
    %1923 = vmatpush2.bf16.msra.mxu0 %v1529
    %1924 = vmatprep.subr.bf16.mxu0 0
    %1925 = vmatpush2.bf16.msra.mxu0 %v1528
    %1926 = vmatprep.subr.bf16.mxu0 0
    %1927 = vmatpush2.bf16.msra.mxu0 %v1527
    %1928 = vmatprep.subr.bf16.mxu0 0
    %1929 = vmatpush2.bf16.msra.mxu0 %v1526
    %1930 = vmatprep.subr.bf16.mxu0 0
    %1931 = vmatpush2.bf16.msra.mxu0 %v1525
    %1932 = vmatprep.subr.bf16.mxu0 0
    %1933 = vmatpush2.bf16.msra.mxu0 %v1524
    %1934 = vmatprep.subr.bf16.mxu0 0
    %1935 = vmatpush2.bf16.msra.mxu0 %v1523
    %1936 = vmatprep.mubr.bf16.mxu0 %v1714
    %1937 = vmatmul.mubr.bf16.gmra.mxu0 %v1713
    %v1938 = vpop.f32.mrf.mxu0
    %v1939 = vadd.f32 %v1842, %v1938
    %v1940 = vpop.f32.mrf.mxu0
    %v1941 = vpop.f32.mrf.mxu0
    %v1942 = vadd.f32 %v1845, %v1941
    %v1943 = vpop.f32.mrf.mxu0
    %1944 = vmatprep.mubr.bf16.mxu0 %v1719
    %1945 = vmatmul.mubr.bf16.gmra.mxu0 %v1718
    %v1946 = vpop.f32.mrf.mxu0
    %v1947 = vadd.f32 %v1850, %v1946
    %v1948 = vpop.f32.mrf.mxu0
    %v1949 = vpop.f32.mrf.mxu0
    %v1950 = vadd.f32 %v1853, %v1949
    %v1951 = vpop.f32.mrf.mxu0
    %1952 = vmatprep.mubr.bf16.mxu0 %v1724
    %1953 = vmatmul.mubr.bf16.gmra.mxu0 %v1723
    %v1954 = vpop.f32.mrf.mxu0
    %v1955 = vadd.f32 %v1858, %v1954
    %v1956 = vpop.f32.mrf.mxu0
    %v1957 = vpop.f32.mrf.mxu0
    %v1958 = vadd.f32 %v1861, %v1957
    %v1959 = vpop.f32.mrf.mxu0
    %1960 = vmatprep.mubr.bf16.mxu0 %v1729
    %1961 = vmatmul.mubr.bf16.gmra.mxu0 %v1728
    %v1962 = vpop.f32.mrf.mxu0
    %v1963 = vadd.f32 %v1866, %v1962
    %v1964 = vpop.f32.mrf.mxu0
    %v1965 = vpop.f32.mrf.mxu0
    %v1966 = vadd.f32 %v1869, %v1965
    %v1967 = vpop.f32.mrf.mxu0
    %1968 = vmatprep.mubr.bf16.mxu0 %v1734
    %1969 = vmatmul.mubr.bf16.gmra.mxu0 %v1733
    %v1970 = vpop.f32.mrf.mxu0
    %v1971 = vadd.f32 %v1874, %v1970
    %v1972 = vpop.f32.mrf.mxu0
    %v1973 = vpop.f32.mrf.mxu0
    %v1974 = vadd.f32 %v1877, %v1973
    %v1975 = vpop.f32.mrf.mxu0
    %1976 = vmatprep.mubr.bf16.mxu0 %v1739
    %1977 = vmatmul.mubr.bf16.gmra.mxu0 %v1738
    %v1978 = vpop.f32.mrf.mxu0
    %v1979 = vadd.f32 %v1882, %v1978
    %v1980 = vpop.f32.mrf.mxu0
    %v1981 = vpop.f32.mrf.mxu0
    %v1982 = vadd.f32 %v1885, %v1981
    %v1983 = vpop.f32.mrf.mxu0
    %1984 = vmatprep.mubr.bf16.mxu0 %v1744
    %1985 = vmatmul.mubr.bf16.gmra.mxu0 %v1743
    %v1986 = vpop.f32.mrf.mxu0
    %v1987 = vadd.f32 %v1890, %v1986
    %v1988 = vpop.f32.mrf.mxu0
    %v1989 = vpop.f32.mrf.mxu0
    %v1990 = vadd.f32 %v1893, %v1989
    %v1991 = vpop.f32.mrf.mxu0
    %1992 = vmatprep.mubr.bf16.mxu0 %v1749
    %1993 = vmatmul.mubr.bf16.gmra.mxu0 %v1748
    %v1994 = vpop.f32.mrf.mxu0
    %v1995 = vadd.f32 %v1898, %v1994
    %v1996 = vpop.f32.mrf.mxu0
    %v1997 = vpop.f32.mrf.mxu0
    %v1998 = vadd.f32 %v1901, %v1997
    %v1999 = vpop.f32.mrf.mxu0
    %2000 = vdwg.mxu0
    %2001 = vmatprep.subr.bf16.mxu0 0
    %2002 = vmatpush1.bf16.msra.mxu0 0
    %2003 = vmatprep.subr.bf16.mxu0 0
    %2004 = vmatpush1.bf16.msra.mxu0 0
    %2005 = vmatprep.subr.bf16.mxu0 0
    %2006 = vmatpush1.bf16.msra.mxu0 0
    %2007 = vmatprep.subr.bf16.mxu0 0
    %2008 = vmatpush1.bf16.msra.mxu0 0
    %2009 = vmatprep.subr.bf16.mxu0 0
    %2010 = vmatpush1.bf16.msra.mxu0 %v1534
    %2011 = vmatprep.subr.bf16.mxu0 0
    %2012 = vmatpush1.bf16.msra.mxu0 %v1533
    %2013 = vmatprep.subr.bf16.mxu0 0
    %2014 = vmatpush1.bf16.msra.mxu0 %v1532
    %2015 = vmatprep.subr.bf16.mxu0 0
    %2016 = vmatpush1.bf16.msra.mxu0 %v1531
    %2017 = vmatprep.subr.bf16.mxu0 0
    %2018 = vmatpush2.bf16.msra.mxu0 0
    %2019 = vmatprep.subr.bf16.mxu0 0
    %2020 = vmatpush2.bf16.msra.mxu0 0
    %2021 = vmatprep.subr.bf16.mxu0 0
    %2022 = vmatpush2.bf16.msra.mxu0 0
    %2023 = vmatprep.subr.bf16.mxu0 0
    %2024 = vmatpush2.bf16.msra.mxu0 0
    %2025 = vmatprep.subr.bf16.mxu0 0
    %2026 = vmatpush2.bf16.msra.mxu0 0
    %2027 = vmatprep.subr.bf16.mxu0 0
    %2028 = vmatpush2.bf16.msra.mxu0 0
    %2029 = vmatprep.subr.bf16.mxu0 0
    %2030 = vmatpush2.bf16.msra.mxu0 0
    %2031 = vmatprep.subr.bf16.mxu0 0
    %2032 = vmatpush2.bf16.msra.mxu0 0
    %2033 = vmatprep.mubr.bf16.mxu0 0
    %2034 = vmatmul.mubr.bf16.gmra.mxu0 %v1784
    %v2035 = vpop.f32.mrf.mxu0
    %v2036 = vadd.f32 %v1939, %v2035
    %v2037 = vpop.f32.mrf.mxu0
    %v2038 = vpop.f32.mrf.mxu0
    %v2039 = vadd.f32 %v1942, %v2038
    %v2040 = vpop.f32.mrf.mxu0
    %2041 = vmatprep.mubr.bf16.mxu0 0
    %2042 = vmatmul.mubr.bf16.gmra.mxu0 %v1787
    %v2043 = vpop.f32.mrf.mxu0
    %v2044 = vadd.f32 %v1947, %v2043
    %v2045 = vpop.f32.mrf.mxu0
    %v2046 = vpop.f32.mrf.mxu0
    %v2047 = vadd.f32 %v1950, %v2046
    %v2048 = vpop.f32.mrf.mxu0
    %2049 = vmatprep.mubr.bf16.mxu0 0
    %2050 = vmatmul.mubr.bf16.gmra.mxu0 %v1790
    %v2051 = vpop.f32.mrf.mxu0
    %v2052 = vadd.f32 %v1955, %v2051
    %v2053 = vpop.f32.mrf.mxu0
    %v2054 = vpop.f32.mrf.mxu0
    %v2055 = vadd.f32 %v1958, %v2054
    %v2056 = vpop.f32.mrf.mxu0
    %2057 = vmatprep.mubr.bf16.mxu0 0
    %2058 = vmatmul.mubr.bf16.gmra.mxu0 %v1793
    %v2059 = vpop.f32.mrf.mxu0
    %v2060 = vadd.f32 %v1963, %v2059
    %v2061 = vpop.f32.mrf.mxu0
    %v2062 = vpop.f32.mrf.mxu0
    %v2063 = vadd.f32 %v1966, %v2062
    %v2064 = vpop.f32.mrf.mxu0
    %2065 = vmatprep.mubr.bf16.mxu0 0
    %2066 = vmatmul.mubr.bf16.gmra.mxu0 %v1796
    %v2067 = vpop.f32.mrf.mxu0
    %v2068 = vadd.f32 %v1971, %v2067
    %v2069 = vpop.f32.mrf.mxu0
    %v2070 = vpop.f32.mrf.mxu0
    %v2071 = vadd.f32 %v1974, %v2070
    %v2072 = vpop.f32.mrf.mxu0
    %2073 = vmatprep.mubr.bf16.mxu0 0
    %2074 = vmatmul.mubr.bf16.gmra.mxu0 %v1799
    %v2075 = vpop.f32.mrf.mxu0
    %v2076 = vadd.f32 %v1979, %v2075
    %v2077 = vpop.f32.mrf.mxu0
    %v2078 = vpop.f32.mrf.mxu0
    %v2079 = vadd.f32 %v1982, %v2078
    %v2080 = vpop.f32.mrf.mxu0
    %2081 = vmatprep.mubr.bf16.mxu0 0
    %2082 = vmatmul.mubr.bf16.gmra.mxu0 %v1802
    %v2083 = vpop.f32.mrf.mxu0
    %v2084 = vadd.f32 %v1987, %v2083
    %v2085 = vpop.f32.mrf.mxu0
    %v2086 = vpop.f32.mrf.mxu0
    %v2087 = vadd.f32 %v1990, %v2086
    %v2088 = vpop.f32.mrf.mxu0
    %2089 = vmatprep.mubr.bf16.mxu0 0
    %2090 = vmatmul.mubr.bf16.gmra.mxu0 %v1805
    %v2091 = vpop.f32.mrf.mxu0
    %v2092 = vadd.f32 %v1995, %v2091
    %v2093 = vpop.f32.mrf.mxu0
    %v2094 = vpop.f32.mrf.mxu0
    %v2095 = vadd.f32 %v1998, %v2094
    %v2096 = vpop.f32.mrf.mxu0
    %2097 = vdwg.mxu0
    %v2098 = vld [vmem:[%s20 + $0x20] sm:$0xff]
    %v2099 = vld [vmem:[%s20 + $0x28] sm:$0xff]
    %v2100 = vld [vmem:[%s20 + $0x30] sm:$0xff]
    %v2101 = vld [vmem:[%s20 + $0x38] sm:$0xff]
    %v2102 = vld [vmem:[%s20 + $0x40] sm:$0xff]
    %v2103 = vld [vmem:[%s20 + $0x48] sm:$0xff]
    %v2104 = vld [vmem:[%s20 + $0x50] sm:$0xff]
    %v2105 = vld [vmem:[%s20 + $0x58] sm:$0xff]
    %vm2106 = vcmask 130048
    %v2107 = vsel %vm2106, %v2036, 0.0
    %2108 = vadd.xlane.f32.xlu0 %v2107
    %v2109 = vpop.xlane.xlu0 %2108
    %v2110 = vsel %vm2106, %v2039, 0.0
    %2111 = vadd.xlane.f32.xlu0 %v2110
    %v2112 = vpop.xlane.xlu0 %2111
    %v2113 = vsel %vm2106, %v2044, 0.0
    %2114 = vadd.xlane.f32.xlu0 %v2113
    %v2115 = vpop.xlane.xlu0 %2114
    %v2116 = vsel %vm2106, %v2047, 0.0
    %2117 = vadd.xlane.f32.xlu0 %v2116
    %v2118 = vpop.xlane.xlu0 %2117
    %v2119 = vsel %vm2106, %v2052, 0.0
    %2120 = vadd.xlane.f32.xlu0 %v2119
    %v2121 = vpop.xlane.xlu0 %2120
    %v2122 = vsel %vm2106, %v2055, 0.0
    %2123 = vadd.xlane.f32.xlu0 %v2122
    %v2124 = vpop.xlane.xlu0 %2123
    %v2125 = vsel %vm2106, %v2060, 0.0
    %2126 = vadd.xlane.f32.xlu0 %v2125
    %v2127 = vpop.xlane.xlu0 %2126
    %v2128 = vsel %vm2106, %v2063, 0.0
    %2129 = vadd.xlane.f32.xlu0 %v2128
    %v2130 = vpop.xlane.xlu0 %2129
    %v2131 = vsel %vm2106, %v2068, 0.0
    %2132 = vadd.xlane.f32.xlu0 %v2131
    %v2133 = vpop.xlane.xlu0 %2132
    %v2134 = vsel %vm2106, %v2071, 0.0
    %2135 = vadd.xlane.f32.xlu0 %v2134
    %v2136 = vpop.xlane.xlu0 %2135
    %v2137 = vsel %vm2106, %v2076, 0.0
    %2138 = vadd.xlane.f32.xlu0 %v2137
    %v2139 = vpop.xlane.xlu0 %2138
    %v2140 = vsel %vm2106, %v2079, 0.0
    %2141 = vadd.xlane.f32.xlu0 %v2140
    %v2142 = vpop.xlane.xlu0 %2141
    %v2143 = vsel %vm2106, %v2084, 0.0
    %2144 = vadd.xlane.f32.xlu0 %v2143
    %v2145 = vpop.xlane.xlu0 %2144
    %v2146 = vsel %vm2106, %v2087, 0.0
    %2147 = vadd.xlane.f32.xlu0 %v2146
    %v2148 = vpop.xlane.xlu0 %2147
    %v2149 = vsel %vm2106, %v2092, 0.0
    %2150 = vadd.xlane.f32.xlu0 %v2149
    %v2151 = vpop.xlane.xlu0 %2150
    %v2152 = vsel %vm2106, %v2095, 0.0
    %2153 = vadd.xlane.f32.xlu0 %v2152
    %v2154 = vpop.xlane.xlu0 %2153
    %v2155 = vmul.f32 %v2036, %v2036
    %v2156 = vmul.f32 %v2039, %v2039
    %v2157 = vmul.f32 %v2044, %v2044
    %v2158 = vmul.f32 %v2047, %v2047
    %v2159 = vmul.f32 %v2052, %v2052
    %v2160 = vmul.f32 %v2055, %v2055
    %v2161 = vmul.f32 %v2060, %v2060
    %v2162 = vmul.f32 %v2063, %v2063
    %v2163 = vmul.f32 %v2068, %v2068
    %v2164 = vmul.f32 %v2071, %v2071
    %v2165 = vmul.f32 %v2076, %v2076
    %v2166 = vmul.f32 %v2079, %v2079
    %v2167 = vmul.f32 %v2084, %v2084
    %v2168 = vmul.f32 %v2087, %v2087
    %v2169 = vmul.f32 %v2092, %v2092
    %v2170 = vmul.f32 %v2095, %v2095
    %v2171 = vsel %vm2106, %v2155, 0.0
    %2172 = vadd.xlane.f32.xlu0 %v2171
    %v2173 = vpop.xlane.xlu0 %2172
    %v2174 = vsel %vm2106, %v2156, 0.0
    %2175 = vadd.xlane.f32.xlu0 %v2174
    %v2176 = vpop.xlane.xlu0 %2175
    %v2177 = vsel %vm2106, %v2157, 0.0
    %2178 = vadd.xlane.f32.xlu0 %v2177
    %v2179 = vpop.xlane.xlu0 %2178
    %v2180 = vsel %vm2106, %v2158, 0.0
    %2181 = vadd.xlane.f32.xlu0 %v2180
    %v2182 = vpop.xlane.xlu0 %2181
    %v2183 = vsel %vm2106, %v2159, 0.0
    %2184 = vadd.xlane.f32.xlu0 %v2183
    %v2185 = vpop.xlane.xlu0 %2184
    %v2186 = vsel %vm2106, %v2160, 0.0
    %2187 = vadd.xlane.f32.xlu0 %v2186
    %v2188 = vpop.xlane.xlu0 %2187
    %v2189 = vsel %vm2106, %v2161, 0.0
    %2190 = vadd.xlane.f32.xlu0 %v2189
    %v2191 = vpop.xlane.xlu0 %2190
    %v2192 = vsel %vm2106, %v2162, 0.0
    %2193 = vadd.xlane.f32.xlu0 %v2192
    %v2194 = vpop.xlane.xlu0 %2193
    %v2195 = vsel %vm2106, %v2163, 0.0
    %2196 = vadd.xlane.f32.xlu0 %v2195
    %v2197 = vpop.xlane.xlu0 %2196
    %v2198 = vsel %vm2106, %v2164, 0.0
    %2199 = vadd.xlane.f32.xlu0 %v2198
    %v2200 = vpop.xlane.xlu0 %2199
    %v2201 = vsel %vm2106, %v2165, 0.0
    %2202 = vadd.xlane.f32.xlu0 %v2201
    %v2203 = vpop.xlane.xlu0 %2202
    %v2204 = vsel %vm2106, %v2166, 0.0
    %2205 = vadd.xlane.f32.xlu0 %v2204
    %v2206 = vpop.xlane.xlu0 %2205
    %v2207 = vsel %vm2106, %v2167, 0.0
    %2208 = vadd.xlane.f32.xlu0 %v2207
    %v2209 = vpop.xlane.xlu0 %2208
    %v2210 = vsel %vm2106, %v2168, 0.0
    %2211 = vadd.xlane.f32.xlu0 %v2210
    %v2212 = vpop.xlane.xlu0 %2211
    %v2213 = vsel %vm2106, %v2169, 0.0
    %2214 = vadd.xlane.f32.xlu0 %v2213
    %v2215 = vpop.xlane.xlu0 %2214
    %v2216 = vsel %vm2106, %v2170, 0.0
    %2217 = vadd.xlane.f32.xlu0 %v2216
    %v2218 = vpop.xlane.xlu0 %2217
    %v2219 = vadd.f32 %v2109, %v2133
    %v2220 = vadd.f32 %v2112, %v2136
    %v2221 = vadd.f32 %v2115, %v2139
    %v2222 = vadd.f32 %v2118, %v2142
    %v2223 = vadd.f32 %v2121, %v2145
    %v2224 = vadd.f32 %v2124, %v2148
    %v2225 = vadd.f32 %v2127, %v2151
    %v2226 = vadd.f32 %v2130, %v2154
    %v2227 = vadd.f32 %v2173, %v2197
    %v2228 = vadd.f32 %v2176, %v2200
    %v2229 = vadd.f32 %v2179, %v2203
    %v2230 = vadd.f32 %v2182, %v2206
    %v2231 = vadd.f32 %v2185, %v2209
    %v2232 = vadd.f32 %v2188, %v2212
    %v2233 = vadd.f32 %v2191, %v2215
    %v2234 = vadd.f32 %v2194, %v2218
    %v2235 = vmul.f32 %v2219, 0.03125
    %v2236 = vmul.f32 %v2220, 0.03125
    %v2237 = vmul.f32 %v2221, 0.03125
    %v2238 = vmul.f32 %v2222, 0.03125
    %v2239 = vmul.f32 %v2223, 0.03125
    %v2240 = vmul.f32 %v2224, 0.03125
    %v2241 = vmul.f32 %v2225, 0.03125
    %v2242 = vmul.f32 %v2226, 0.03125
    %v2243 = vmul.f32 %v2227, 0.03125
    %v2244 = vmul.f32 %v2228, 0.03125
    %v2245 = vmul.f32 %v2229, 0.03125
    %v2246 = vmul.f32 %v2230, 0.03125
    %v2247 = vmul.f32 %v2231, 0.03125
    %v2248 = vmul.f32 %v2232, 0.03125
    %v2249 = vmul.f32 %v2233, 0.03125
    %v2250 = vmul.f32 %v2234, 0.03125
    %v2251 = vmul.f32 %v2235, %v2235
    %v2252 = vmul.f32 %v2236, %v2236
    %v2253 = vmul.f32 %v2237, %v2237
    %v2254 = vmul.f32 %v2238, %v2238
    %v2255 = vmul.f32 %v2239, %v2239
    %v2256 = vmul.f32 %v2240, %v2240
    %v2257 = vmul.f32 %v2241, %v2241
    %v2258 = vmul.f32 %v2242, %v2242
    %v2259 = vsub.f32 %v2243, %v2251
    %v2260 = vsub.f32 %v2244, %v2252
    %v2261 = vsub.f32 %v2245, %v2253
    %v2262 = vsub.f32 %v2246, %v2254
    %v2263 = vsub.f32 %v2247, %v2255
    %v2264 = vsub.f32 %v2248, %v2256
    %v2265 = vsub.f32 %v2249, %v2257
    %v2266 = vsub.f32 %v2250, %v2258
    %v2267 = vmax.f32 %v2259, 0.0
    %v2268 = vmax.f32 %v2260, 0.0
    %v2269 = vmax.f32 %v2261, 0.0
    %v2270 = vmax.f32 %v2262, 0.0
    %v2271 = vmax.f32 %v2263, 0.0
    %v2272 = vmax.f32 %v2264, 0.0
    %v2273 = vmax.f32 %v2265, 0.0
    %v2274 = vmax.f32 %v2266, 0.0
    %v2275 = vadd.f32 %v2267, 1e-05
    %v2276 = vadd.f32 %v2268, 1e-05
    %v2277 = vadd.f32 %v2269, 1e-05
    %v2278 = vadd.f32 %v2270, 1e-05
    %v2279 = vadd.f32 %v2271, 1e-05
    %v2280 = vadd.f32 %v2272, 1e-05
    %v2281 = vadd.f32 %v2273, 1e-05
    %v2282 = vadd.f32 %v2274, 1e-05
    %v2283 = vrsqrt.pop %v2275
    %v2284 = vrsqrt.pop %v2276
    %v2285 = vrsqrt.pop %v2277
    %v2286 = vrsqrt.pop %v2278
    %v2287 = vrsqrt.pop %v2279
    %v2288 = vrsqrt.pop %v2280
    %v2289 = vrsqrt.pop %v2281
    %v2290 = vrsqrt.pop %v2282
    %v2291 = vmul.f32 %v2098, %v2283
    %v2292 = vmul.f32 %v2099, %v2284
    %v2293 = vmul.f32 %v2100, %v2285
    %v2294 = vmul.f32 %v2101, %v2286
    %v2295 = vmul.f32 %v2102, %v2287
    %v2296 = vmul.f32 %v2103, %v2288
    %v2297 = vmul.f32 %v2104, %v2289
    %v2298 = vmul.f32 %v2105, %v2290
    %v2299 = vmul.f32 %v2235, %v2291
    %v2300 = vmul.f32 %v2236, %v2292
    %v2301 = vmul.f32 %v2237, %v2293
    %v2302 = vmul.f32 %v2238, %v2294
    %v2303 = vmul.f32 %v2239, %v2295
    %v2304 = vmul.f32 %v2240, %v2296
    %v2305 = vmul.f32 %v2241, %v2297
    %v2306 = vmul.f32 %v2242, %v2298
    %2315 = vrot.lane.b32.xlu0 %v2299, 1
    %v2316 = vpop.permute.xlu0 %2315
    %2317 = vrot.lane.b32.xlu0 %v2300, 1
    %v2318 = vpop.permute.xlu0 %2317
    %2319 = vrot.lane.b32.xlu0 %v2301, 1
    %v2320 = vpop.permute.xlu0 %2319
    %2321 = vrot.lane.b32.xlu0 %v2302, 1
    %v2322 = vpop.permute.xlu0 %2321
    %2323 = vrot.lane.b32.xlu0 %v2303, 1
    %v2324 = vpop.permute.xlu0 %2323
    %2325 = vrot.lane.b32.xlu0 %v2304, 1
    %v2326 = vpop.permute.xlu0 %2325
    %2327 = vrot.lane.b32.xlu0 %v2305, 1
    %v2328 = vpop.permute.xlu0 %2327
    %2329 = vrot.lane.b32.xlu0 %v2306, 1
    %v2330 = vpop.permute.xlu0 %2329
    %v2339 = vsub.f32 %v2098, %v2316
    %v2340 = vsub.f32 %v2099, %v2318
    %v2341 = vsub.f32 %v2100, %v2320
    %v2342 = vsub.f32 %v2101, %v2322
    %v2343 = vsub.f32 %v2102, %v2324
    %v2344 = vsub.f32 %v2103, %v2326
    %v2345 = vsub.f32 %v2104, %v2328
    %v2346 = vsub.f32 %v2105, %v2330
    %2348 = vset.pattern.permute.xlu0 0
    %2349 = vperm.xlu0 %2348, %v2291
    %v2350 = vpop.permute.xlu0 %2349
    %2353 = vset.pattern.permute.xlu0 0
    %2354 = vperm.xlu0 %2353, %v2292
    %v2355 = vpop.permute.xlu0 %2354
    %2358 = vset.pattern.permute.xlu0 0
    %2359 = vperm.xlu0 %2358, %v2293
    %v2360 = vpop.permute.xlu0 %2359
    %2363 = vset.pattern.permute.xlu0 0
    %2364 = vperm.xlu0 %2363, %v2294
    %v2365 = vpop.permute.xlu0 %2364
    %2368 = vset.pattern.permute.xlu0 0
    %2369 = vperm.xlu0 %2368, %v2295
    %v2370 = vpop.permute.xlu0 %2369
    %2373 = vset.pattern.permute.xlu0 0
    %2374 = vperm.xlu0 %2373, %v2296
    %v2375 = vpop.permute.xlu0 %2374
    %2378 = vset.pattern.permute.xlu0 0
    %2379 = vperm.xlu0 %2378, %v2297
    %v2380 = vpop.permute.xlu0 %2379
    %2383 = vset.pattern.permute.xlu0 0
    %2384 = vperm.xlu0 %2383, %v2298
    %v2385 = vpop.permute.xlu0 %2384
    %v2387 = vmul.f32 %v2036, %v2350
    %v2388 = vmul.f32 %v2039, %v2355
    %v2389 = vmul.f32 %v2044, %v2360
    %v2390 = vmul.f32 %v2047, %v2365
    %v2391 = vmul.f32 %v2052, %v2370
    %v2392 = vmul.f32 %v2055, %v2375
    %v2393 = vmul.f32 %v2060, %v2380
    %v2394 = vmul.f32 %v2063, %v2385
    %v2395 = vmul.f32 %v2068, %v2350
    %v2396 = vmul.f32 %v2071, %v2355
    %v2397 = vmul.f32 %v2076, %v2360
    %v2398 = vmul.f32 %v2079, %v2365
    %v2399 = vmul.f32 %v2084, %v2370
    %v2400 = vmul.f32 %v2087, %v2375
    %v2401 = vmul.f32 %v2092, %v2380
    %v2402 = vmul.f32 %v2095, %v2385
    %2404 = vset.pattern.permute.xlu0 1
    %2405 = vperm.xlu0 %2404, %v2339
    %v2406 = vpop.permute.xlu0 %2405
    %2409 = vset.pattern.permute.xlu0 1
    %2410 = vperm.xlu0 %2409, %v2340
    %v2411 = vpop.permute.xlu0 %2410
    %2414 = vset.pattern.permute.xlu0 1
    %2415 = vperm.xlu0 %2414, %v2341
    %v2416 = vpop.permute.xlu0 %2415
    %2419 = vset.pattern.permute.xlu0 1
    %2420 = vperm.xlu0 %2419, %v2342
    %v2421 = vpop.permute.xlu0 %2420
    %2424 = vset.pattern.permute.xlu0 1
    %2425 = vperm.xlu0 %2424, %v2343
    %v2426 = vpop.permute.xlu0 %2425
    %2429 = vset.pattern.permute.xlu0 1
    %2430 = vperm.xlu0 %2429, %v2344
    %v2431 = vpop.permute.xlu0 %2430
    %2434 = vset.pattern.permute.xlu0 1
    %2435 = vperm.xlu0 %2434, %v2345
    %v2436 = vpop.permute.xlu0 %2435
    %2439 = vset.pattern.permute.xlu0 1
    %2440 = vperm.xlu0 %2439, %v2346
    %v2441 = vpop.permute.xlu0 %2440
    %v2443 = vadd.f32 %v2387, %v2406
    %v2444 = vadd.f32 %v2388, %v2411
    %v2445 = vadd.f32 %v2389, %v2416
    %v2446 = vadd.f32 %v2390, %v2421
    %v2447 = vadd.f32 %v2391, %v2426
    %v2448 = vadd.f32 %v2392, %v2431
    %v2449 = vadd.f32 %v2393, %v2436
    %v2450 = vadd.f32 %v2394, %v2441
    %v2451 = vadd.f32 %v2395, %v2406
    %v2452 = vadd.f32 %v2396, %v2411
    %v2453 = vadd.f32 %v2397, %v2416
    %v2454 = vadd.f32 %v2398, %v2421
    %v2455 = vadd.f32 %v2399, %v2426
    %v2456 = vadd.f32 %v2400, %v2431
    %v2457 = vadd.f32 %v2401, %v2436
    %v2458 = vadd.f32 %v2402, %v2441
    %vm2459 = vcmp.ge.f32.partialorder %v2443, 0.0
    %vm2460 = vcmp.ge.f32.partialorder %v2444, 0.0
    %vm2461 = vcmp.ge.f32.partialorder %v2445, 0.0
    %vm2462 = vcmp.ge.f32.partialorder %v2446, 0.0
    %vm2463 = vcmp.ge.f32.partialorder %v2447, 0.0
    %vm2464 = vcmp.ge.f32.partialorder %v2448, 0.0
    %vm2465 = vcmp.ge.f32.partialorder %v2449, 0.0
    %vm2466 = vcmp.ge.f32.partialorder %v2450, 0.0
    %vm2467 = vcmp.ge.f32.partialorder %v2451, 0.0
    %vm2468 = vcmp.ge.f32.partialorder %v2452, 0.0
    %vm2469 = vcmp.ge.f32.partialorder %v2453, 0.0
    %vm2470 = vcmp.ge.f32.partialorder %v2454, 0.0
    %vm2471 = vcmp.ge.f32.partialorder %v2455, 0.0
    %vm2472 = vcmp.ge.f32.partialorder %v2456, 0.0
    %vm2473 = vcmp.ge.f32.partialorder %v2457, 0.0
    %vm2474 = vcmp.ge.f32.partialorder %v2458, 0.0
    %v2475 = vmul.f32 %v2443, 0.01
    %v2476 = vmul.f32 %v2444, 0.01
    %v2477 = vmul.f32 %v2445, 0.01
    %v2478 = vmul.f32 %v2446, 0.01
    %v2479 = vmul.f32 %v2447, 0.01
    %v2480 = vmul.f32 %v2448, 0.01
    %v2481 = vmul.f32 %v2449, 0.01
    %v2482 = vmul.f32 %v2450, 0.01
    %v2483 = vmul.f32 %v2451, 0.01
    %v2484 = vmul.f32 %v2452, 0.01
    %v2485 = vmul.f32 %v2453, 0.01
    %v2486 = vmul.f32 %v2454, 0.01
    %v2487 = vmul.f32 %v2455, 0.01
    %v2488 = vmul.f32 %v2456, 0.01
    %v2489 = vmul.f32 %v2457, 0.01
    %v2490 = vmul.f32 %v2458, 0.01
    %v2491 = vsel %vm2459, %v2443, %v2475
    %v2492 = vsel %vm2460, %v2444, %v2476
    %v2493 = vsel %vm2461, %v2445, %v2477
    %v2494 = vsel %vm2462, %v2446, %v2478
    %v2495 = vsel %vm2463, %v2447, %v2479
    %v2496 = vsel %vm2464, %v2448, %v2480
    %v2497 = vsel %vm2465, %v2449, %v2481
    %v2498 = vsel %vm2466, %v2450, %v2482
    %v2499 = vsel %vm2467, %v2451, %v2483
    %v2500 = vsel %vm2468, %v2452, %v2484
    %v2501 = vsel %vm2469, %v2453, %v2485
    %v2502 = vsel %vm2470, %v2454, %v2486
    %v2503 = vsel %vm2471, %v2455, %v2487
    %v2504 = vsel %vm2472, %v2456, %v2488
    %v2505 = vsel %vm2473, %v2457, %v2489
    %v2506 = vsel %vm2474, %v2458, %v2490
    %v2507 = vpack.c.bf16 %v2492, %v2491
    %v2508 = vpack.c.bf16 %v2494, %v2493
    %v2509 = vpack.c.bf16 %v2496, %v2495
    %v2510 = vpack.c.bf16 %v2498, %v2497
    %v2511 = vpack.c.bf16 %v2500, %v2499
    %v2512 = vpack.c.bf16 %v2502, %v2501
    %v2513 = vpack.c.bf16 %v2504, %v2503
    %v2514 = vpack.c.bf16 %v2506, %v2505
    %v2515 = vld [vmem:[#allocation6] sm:$0xf]
    %v2516 = vld [vmem:[#allocation6 + $0x4] sm:$0xf]
    %v2519 = vunpack.c.l.b16 %v2515
    %v2520 = vunpack.c.l.b16 %v2516
    %v2521 = vpack.c.b16 %v2520, %v2519
    %v2524 = vsel %vm2106, %v2507, 0
    %v2527 = vsel %vm2106, %v2508, 0
    %v2530 = vsel %vm2106, %v2509, 0
    %v2533 = vsel %vm2106, %v2510, 0
    %v2536 = vsel %vm2106, %v2511, 0
    %v2539 = vsel %vm2106, %v2512, 0
    %v2542 = vsel %vm2106, %v2513, 0
    %v2545 = vsel %vm2106, %v2514, 0
    %2547 = vmatprep.subr.bf16.mxu0 0
    %2548 = vmatpush1.bf16.msra.mxu0 0
    %2549 = vmatprep.subr.bf16.mxu0 0
    %2550 = vmatpush1.bf16.msra.mxu0 0
    %2551 = vmatprep.subr.bf16.mxu0 0
    %2552 = vmatpush1.bf16.msra.mxu0 0
    %2553 = vmatprep.subr.bf16.mxu0 0
    %2554 = vmatpush1.bf16.msra.mxu0 0
    %2555 = vmatprep.subr.bf16.mxu0 0
    %2556 = vmatpush1.bf16.msra.mxu0 0
    %2557 = vmatprep.subr.bf16.mxu0 0
    %2558 = vmatpush1.bf16.msra.mxu0 0
    %2559 = vmatprep.subr.bf16.mxu0 0
    %2560 = vmatpush1.bf16.msra.mxu0 0
    %2561 = vmatprep.subr.bf16.mxu0 0
    %2562 = vmatpush1.bf16.msra.mxu0 %v2521
    %2563 = vmatprep.subr.bf16.mxu0 0
    %2564 = vmatpush2.bf16.msra.mxu0 0
    %2565 = vmatprep.subr.bf16.mxu0 0
    %2566 = vmatpush2.bf16.msra.mxu0 0
    %2567 = vmatprep.subr.bf16.mxu0 0
    %2568 = vmatpush2.bf16.msra.mxu0 0
    %2569 = vmatprep.subr.bf16.mxu0 0
    %2570 = vmatpush2.bf16.msra.mxu0 0
    %2571 = vmatprep.subr.bf16.mxu0 0
    %2572 = vmatpush2.bf16.msra.mxu0 0
    %2573 = vmatprep.subr.bf16.mxu0 0
    %2574 = vmatpush2.bf16.msra.mxu0 0
    %2575 = vmatprep.subr.bf16.mxu0 0
    %2576 = vmatpush2.bf16.msra.mxu0 0
    %2577 = vmatprep.subr.bf16.mxu0 0
    %2578 = vmatpush2.bf16.msra.mxu0 0
    %2579 = vmatprep.mubr.bf16.mxu0 0
    %2580 = vmatmul.mubr.bf16.gmra.mxu0 %v2524
    %v2581 = vpop.f32.mrf.mxu0
    %v2582 = vadd.f32 0.0, %v2581
    %v2583 = vpop.f32.mrf.mxu0
    %v2584 = vpop.f32.mrf.mxu0
    %v2585 = vadd.f32 0.0, %v2584
    %v2586 = vpop.f32.mrf.mxu0
    %2587 = vmatprep.mubr.bf16.mxu0 0
    %2588 = vmatmul.mubr.bf16.gmra.mxu0 %v2527
    %v2589 = vpop.f32.mrf.mxu0
    %v2590 = vadd.f32 0.0, %v2589
    %v2591 = vpop.f32.mrf.mxu0
    %v2592 = vpop.f32.mrf.mxu0
    %v2593 = vadd.f32 0.0, %v2592
    %v2594 = vpop.f32.mrf.mxu0
    %2595 = vmatprep.mubr.bf16.mxu0 0
    %2596 = vmatmul.mubr.bf16.gmra.mxu0 %v2530
    %v2597 = vpop.f32.mrf.mxu0
    %v2598 = vadd.f32 0.0, %v2597
    %v2599 = vpop.f32.mrf.mxu0
    %v2600 = vpop.f32.mrf.mxu0
    %v2601 = vadd.f32 0.0, %v2600
    %v2602 = vpop.f32.mrf.mxu0
    %2603 = vmatprep.mubr.bf16.mxu0 0
    %2604 = vmatmul.mubr.bf16.gmra.mxu0 %v2533
    %v2605 = vpop.f32.mrf.mxu0
    %v2606 = vadd.f32 0.0, %v2605
    %v2607 = vpop.f32.mrf.mxu0
    %v2608 = vpop.f32.mrf.mxu0
    %v2609 = vadd.f32 0.0, %v2608
    %v2610 = vpop.f32.mrf.mxu0
    %2611 = vmatprep.mubr.bf16.mxu0 0
    %2612 = vmatmul.mubr.bf16.gmra.mxu0 %v2536
    %v2613 = vpop.f32.mrf.mxu0
    %v2614 = vadd.f32 0.0, %v2613
    %v2615 = vpop.f32.mrf.mxu0
    %v2616 = vpop.f32.mrf.mxu0
    %v2617 = vadd.f32 0.0, %v2616
    %v2618 = vpop.f32.mrf.mxu0
    %2619 = vmatprep.mubr.bf16.mxu0 0
    %2620 = vmatmul.mubr.bf16.gmra.mxu0 %v2539
    %v2621 = vpop.f32.mrf.mxu0
    %v2622 = vadd.f32 0.0, %v2621
    %v2623 = vpop.f32.mrf.mxu0
    %v2624 = vpop.f32.mrf.mxu0
    %v2625 = vadd.f32 0.0, %v2624
    %v2626 = vpop.f32.mrf.mxu0
    %2627 = vmatprep.mubr.bf16.mxu0 0
    %2628 = vmatmul.mubr.bf16.gmra.mxu0 %v2542
    %v2629 = vpop.f32.mrf.mxu0
    %v2630 = vadd.f32 0.0, %v2629
    %v2631 = vpop.f32.mrf.mxu0
    %v2632 = vpop.f32.mrf.mxu0
    %v2633 = vadd.f32 0.0, %v2632
    %v2634 = vpop.f32.mrf.mxu0
    %2635 = vmatprep.mubr.bf16.mxu0 0
    %2636 = vmatmul.mubr.bf16.gmra.mxu0 %v2545
    %v2637 = vpop.f32.mrf.mxu0
    %v2638 = vadd.f32 0.0, %v2637
    %v2639 = vpop.f32.mrf.mxu0
    %v2640 = vpop.f32.mrf.mxu0
    %v2641 = vadd.f32 0.0, %v2640
    %v2642 = vpop.f32.mrf.mxu0
    %2643 = vdwg.mxu0
    %2660 = vrot.lane.b32.xlu0 %v2582, 124
    %v2661 = vpop.permute.xlu0 %2660
    %2662 = vrot.lane.b32.xlu0 %v2585, 124
    %v2663 = vpop.permute.xlu0 %2662
    %2664 = vrot.lane.b32.xlu0 %v2590, 124
    %v2665 = vpop.permute.xlu0 %2664
    %2666 = vrot.lane.b32.xlu0 %v2593, 124
    %v2667 = vpop.permute.xlu0 %2666
    %2668 = vrot.lane.b32.xlu0 %v2598, 124
    %v2669 = vpop.permute.xlu0 %2668
    %2670 = vrot.lane.b32.xlu0 %v2601, 124
    %v2671 = vpop.permute.xlu0 %2670
    %2672 = vrot.lane.b32.xlu0 %v2606, 124
    %v2673 = vpop.permute.xlu0 %2672
    %2674 = vrot.lane.b32.xlu0 %v2609, 124
    %v2675 = vpop.permute.xlu0 %2674
    %2676 = vrot.lane.b32.xlu0 %v2614, 124
    %v2677 = vpop.permute.xlu0 %2676
    %2678 = vrot.lane.b32.xlu0 %v2617, 124
    %v2679 = vpop.permute.xlu0 %2678
    %2680 = vrot.lane.b32.xlu0 %v2622, 124
    %v2681 = vpop.permute.xlu0 %2680
    %2682 = vrot.lane.b32.xlu0 %v2625, 124
    %v2683 = vpop.permute.xlu0 %2682
    %2684 = vrot.lane.b32.xlu0 %v2630, 124
    %v2685 = vpop.permute.xlu0 %2684
    %2686 = vrot.lane.b32.xlu0 %v2633, 124
    %v2687 = vpop.permute.xlu0 %2686
    %2688 = vrot.lane.b32.xlu0 %v2638, 124
    %v2689 = vpop.permute.xlu0 %2688
    %2690 = vrot.lane.b32.xlu0 %v2641, 124
    %v2691 = vpop.permute.xlu0 %2690
    %2708 = vrot.lane.b32.xlu0 %v2582, 120
    %v2709 = vpop.permute.xlu0 %2708
    %2710 = vrot.lane.b32.xlu0 %v2585, 120
    %v2711 = vpop.permute.xlu0 %2710
    %2712 = vrot.lane.b32.xlu0 %v2590, 120
    %v2713 = vpop.permute.xlu0 %2712
    %2714 = vrot.lane.b32.xlu0 %v2593, 120
    %v2715 = vpop.permute.xlu0 %2714
    %2716 = vrot.lane.b32.xlu0 %v2598, 120
    %v2717 = vpop.permute.xlu0 %2716
    %2718 = vrot.lane.b32.xlu0 %v2601, 120
    %v2719 = vpop.permute.xlu0 %2718
    %2720 = vrot.lane.b32.xlu0 %v2606, 120
    %v2721 = vpop.permute.xlu0 %2720
    %2722 = vrot.lane.b32.xlu0 %v2609, 120
    %v2723 = vpop.permute.xlu0 %2722
    %2724 = vrot.lane.b32.xlu0 %v2614, 120
    %v2725 = vpop.permute.xlu0 %2724
    %2726 = vrot.lane.b32.xlu0 %v2617, 120
    %v2727 = vpop.permute.xlu0 %2726
    %2728 = vrot.lane.b32.xlu0 %v2622, 120
    %v2729 = vpop.permute.xlu0 %2728
    %2730 = vrot.lane.b32.xlu0 %v2625, 120
    %v2731 = vpop.permute.xlu0 %2730
    %2732 = vrot.lane.b32.xlu0 %v2630, 120
    %v2733 = vpop.permute.xlu0 %2732
    %2734 = vrot.lane.b32.xlu0 %v2633, 120
    %v2735 = vpop.permute.xlu0 %2734
    %2736 = vrot.lane.b32.xlu0 %v2638, 120
    %v2737 = vpop.permute.xlu0 %2736
    %2738 = vrot.lane.b32.xlu0 %v2641, 120
    %v2739 = vpop.permute.xlu0 %2738
    %2756 = vrot.lane.b32.xlu0 %v2582, 116
    %v2757 = vpop.permute.xlu0 %2756
    %2758 = vrot.lane.b32.xlu0 %v2585, 116
    %v2759 = vpop.permute.xlu0 %2758
    %2760 = vrot.lane.b32.xlu0 %v2590, 116
    %v2761 = vpop.permute.xlu0 %2760
    %2762 = vrot.lane.b32.xlu0 %v2593, 116
    %v2763 = vpop.permute.xlu0 %2762
    %2764 = vrot.lane.b32.xlu0 %v2598, 116
    %v2765 = vpop.permute.xlu0 %2764
    %2766 = vrot.lane.b32.xlu0 %v2601, 116
    %v2767 = vpop.permute.xlu0 %2766
    %2768 = vrot.lane.b32.xlu0 %v2606, 116
    %v2769 = vpop.permute.xlu0 %2768
    %2770 = vrot.lane.b32.xlu0 %v2609, 116
    %v2771 = vpop.permute.xlu0 %2770
    %2772 = vrot.lane.b32.xlu0 %v2614, 116
    %v2773 = vpop.permute.xlu0 %2772
    %2774 = vrot.lane.b32.xlu0 %v2617, 116
    %v2775 = vpop.permute.xlu0 %2774
    %2776 = vrot.lane.b32.xlu0 %v2622, 116
    %v2777 = vpop.permute.xlu0 %2776
    %2778 = vrot.lane.b32.xlu0 %v2625, 116
    %v2779 = vpop.permute.xlu0 %2778
    %2780 = vrot.lane.b32.xlu0 %v2630, 116
    %v2781 = vpop.permute.xlu0 %2780
    %2782 = vrot.lane.b32.xlu0 %v2633, 116
    %v2783 = vpop.permute.xlu0 %2782
    %2784 = vrot.lane.b32.xlu0 %v2638, 116
    %v2785 = vpop.permute.xlu0 %2784
    %2786 = vrot.lane.b32.xlu0 %v2641, 116
    %v2787 = vpop.permute.xlu0 %2786
    %2804 = vrot.lane.b32.xlu0 %v2582, 112
    %v2805 = vpop.permute.xlu0 %2804
    %2806 = vrot.lane.b32.xlu0 %v2585, 112
    %v2807 = vpop.permute.xlu0 %2806
    %2808 = vrot.lane.b32.xlu0 %v2590, 112
    %v2809 = vpop.permute.xlu0 %2808
    %2810 = vrot.lane.b32.xlu0 %v2593, 112
    %v2811 = vpop.permute.xlu0 %2810
    %2812 = vrot.lane.b32.xlu0 %v2598, 112
    %v2813 = vpop.permute.xlu0 %2812
    %2814 = vrot.lane.b32.xlu0 %v2601, 112
    %v2815 = vpop.permute.xlu0 %2814
    %2816 = vrot.lane.b32.xlu0 %v2606, 112
    %v2817 = vpop.permute.xlu0 %2816
    %2818 = vrot.lane.b32.xlu0 %v2609, 112
    %v2819 = vpop.permute.xlu0 %2818
    %2820 = vrot.lane.b32.xlu0 %v2614, 112
    %v2821 = vpop.permute.xlu0 %2820
    %2822 = vrot.lane.b32.xlu0 %v2617, 112
    %v2823 = vpop.permute.xlu0 %2822
    %2824 = vrot.lane.b32.xlu0 %v2622, 112
    %v2825 = vpop.permute.xlu0 %2824
    %2826 = vrot.lane.b32.xlu0 %v2625, 112
    %v2827 = vpop.permute.xlu0 %2826
    %2828 = vrot.lane.b32.xlu0 %v2630, 112
    %v2829 = vpop.permute.xlu0 %2828
    %2830 = vrot.lane.b32.xlu0 %v2633, 112
    %v2831 = vpop.permute.xlu0 %2830
    %2832 = vrot.lane.b32.xlu0 %v2638, 112
    %v2833 = vpop.permute.xlu0 %2832
    %2834 = vrot.lane.b32.xlu0 %v2641, 112
    %v2835 = vpop.permute.xlu0 %2834
    %2852 = vrot.lane.b32.xlu0 %v2582, 108
    %v2853 = vpop.permute.xlu0 %2852
    %2854 = vrot.lane.b32.xlu0 %v2585, 108
    %v2855 = vpop.permute.xlu0 %2854
    %2856 = vrot.lane.b32.xlu0 %v2590, 108
    %v2857 = vpop.permute.xlu0 %2856
    %2858 = vrot.lane.b32.xlu0 %v2593, 108
    %v2859 = vpop.permute.xlu0 %2858
    %2860 = vrot.lane.b32.xlu0 %v2598, 108
    %v2861 = vpop.permute.xlu0 %2860
    %2862 = vrot.lane.b32.xlu0 %v2601, 108
    %v2863 = vpop.permute.xlu0 %2862
    %2864 = vrot.lane.b32.xlu0 %v2606, 108
    %v2865 = vpop.permute.xlu0 %2864
    %2866 = vrot.lane.b32.xlu0 %v2609, 108
    %v2867 = vpop.permute.xlu0 %2866
    %2868 = vrot.lane.b32.xlu0 %v2614, 108
    %v2869 = vpop.permute.xlu0 %2868
    %2870 = vrot.lane.b32.xlu0 %v2617, 108
    %v2871 = vpop.permute.xlu0 %2870
    %2872 = vrot.lane.b32.xlu0 %v2622, 108
    %v2873 = vpop.permute.xlu0 %2872
    %2874 = vrot.lane.b32.xlu0 %v2625, 108
    %v2875 = vpop.permute.xlu0 %2874
    %2876 = vrot.lane.b32.xlu0 %v2630, 108
    %v2877 = vpop.permute.xlu0 %2876
    %2878 = vrot.lane.b32.xlu0 %v2633, 108
    %v2879 = vpop.permute.xlu0 %2878
    %2880 = vrot.lane.b32.xlu0 %v2638, 108
    %v2881 = vpop.permute.xlu0 %2880
    %2882 = vrot.lane.b32.xlu0 %v2641, 108
    %v2883 = vpop.permute.xlu0 %2882
    %2900 = vrot.lane.b32.xlu0 %v2582, 104
    %v2901 = vpop.permute.xlu0 %2900
    %2902 = vrot.lane.b32.xlu0 %v2585, 104
    %v2903 = vpop.permute.xlu0 %2902
    %2904 = vrot.lane.b32.xlu0 %v2590, 104
    %v2905 = vpop.permute.xlu0 %2904
    %2906 = vrot.lane.b32.xlu0 %v2593, 104
    %v2907 = vpop.permute.xlu0 %2906
    %2908 = vrot.lane.b32.xlu0 %v2598, 104
    %v2909 = vpop.permute.xlu0 %2908
    %2910 = vrot.lane.b32.xlu0 %v2601, 104
    %v2911 = vpop.permute.xlu0 %2910
    %2912 = vrot.lane.b32.xlu0 %v2606, 104
    %v2913 = vpop.permute.xlu0 %2912
    %2914 = vrot.lane.b32.xlu0 %v2609, 104
    %v2915 = vpop.permute.xlu0 %2914
    %2916 = vrot.lane.b32.xlu0 %v2614, 104
    %v2917 = vpop.permute.xlu0 %2916
    %2918 = vrot.lane.b32.xlu0 %v2617, 104
    %v2919 = vpop.permute.xlu0 %2918
    %2920 = vrot.lane.b32.xlu0 %v2622, 104
    %v2921 = vpop.permute.xlu0 %2920
    %2922 = vrot.lane.b32.xlu0 %v2625, 104
    %v2923 = vpop.permute.xlu0 %2922
    %2924 = vrot.lane.b32.xlu0 %v2630, 104
    %v2925 = vpop.permute.xlu0 %2924
    %2926 = vrot.lane.b32.xlu0 %v2633, 104
    %v2927 = vpop.permute.xlu0 %2926
    %2928 = vrot.lane.b32.xlu0 %v2638, 104
    %v2929 = vpop.permute.xlu0 %2928
    %2930 = vrot.lane.b32.xlu0 %v2641, 104
    %v2931 = vpop.permute.xlu0 %2930
    %2948 = vrot.lane.b32.xlu0 %v2582, 100
    %v2949 = vpop.permute.xlu0 %2948
    %2950 = vrot.lane.b32.xlu0 %v2585, 100
    %v2951 = vpop.permute.xlu0 %2950
    %2952 = vrot.lane.b32.xlu0 %v2590, 100
    %v2953 = vpop.permute.xlu0 %2952
    %2954 = vrot.lane.b32.xlu0 %v2593, 100
    %v2955 = vpop.permute.xlu0 %2954
    %2956 = vrot.lane.b32.xlu0 %v2598, 100
    %v2957 = vpop.permute.xlu0 %2956
    %2958 = vrot.lane.b32.xlu0 %v2601, 100
    %v2959 = vpop.permute.xlu0 %2958
    %2960 = vrot.lane.b32.xlu0 %v2606, 100
    %v2961 = vpop.permute.xlu0 %2960
    %2962 = vrot.lane.b32.xlu0 %v2609, 100
    %v2963 = vpop.permute.xlu0 %2962
    %2964 = vrot.lane.b32.xlu0 %v2614, 100
    %v2965 = vpop.permute.xlu0 %2964
    %2966 = vrot.lane.b32.xlu0 %v2617, 100
    %v2967 = vpop.permute.xlu0 %2966
    %2968 = vrot.lane.b32.xlu0 %v2622, 100
    %v2969 = vpop.permute.xlu0 %2968
    %2970 = vrot.lane.b32.xlu0 %v2625, 100
    %v2971 = vpop.permute.xlu0 %2970
    %2972 = vrot.lane.b32.xlu0 %v2630, 100
    %v2973 = vpop.permute.xlu0 %2972
    %2974 = vrot.lane.b32.xlu0 %v2633, 100
    %v2975 = vpop.permute.xlu0 %2974
    %2976 = vrot.lane.b32.xlu0 %v2638, 100
    %v2977 = vpop.permute.xlu0 %2976
    %2978 = vrot.lane.b32.xlu0 %v2641, 100
    %v2979 = vpop.permute.xlu0 %2978
    %2996 = vrot.lane.b32.xlu0 %v2582, 96
    %v2997 = vpop.permute.xlu0 %2996
    %2998 = vrot.lane.b32.xlu0 %v2585, 96
    %v2999 = vpop.permute.xlu0 %2998
    %3000 = vrot.lane.b32.xlu0 %v2590, 96
    %v3001 = vpop.permute.xlu0 %3000
    %3002 = vrot.lane.b32.xlu0 %v2593, 96
    %v3003 = vpop.permute.xlu0 %3002
    %3004 = vrot.lane.b32.xlu0 %v2598, 96
    %v3005 = vpop.permute.xlu0 %3004
    %3006 = vrot.lane.b32.xlu0 %v2601, 96
    %v3007 = vpop.permute.xlu0 %3006
    %3008 = vrot.lane.b32.xlu0 %v2606, 96
    %v3009 = vpop.permute.xlu0 %3008
    %3010 = vrot.lane.b32.xlu0 %v2609, 96
    %v3011 = vpop.permute.xlu0 %3010
    %3012 = vrot.lane.b32.xlu0 %v2614, 96
    %v3013 = vpop.permute.xlu0 %3012
    %3014 = vrot.lane.b32.xlu0 %v2617, 96
    %v3015 = vpop.permute.xlu0 %3014
    %3016 = vrot.lane.b32.xlu0 %v2622, 96
    %v3017 = vpop.permute.xlu0 %3016
    %3018 = vrot.lane.b32.xlu0 %v2625, 96
    %v3019 = vpop.permute.xlu0 %3018
    %3020 = vrot.lane.b32.xlu0 %v2630, 96
    %v3021 = vpop.permute.xlu0 %3020
    %3022 = vrot.lane.b32.xlu0 %v2633, 96
    %v3023 = vpop.permute.xlu0 %3022
    %3024 = vrot.lane.b32.xlu0 %v2638, 96
    %v3025 = vpop.permute.xlu0 %3024
    %3026 = vrot.lane.b32.xlu0 %v2641, 96
    %v3027 = vpop.permute.xlu0 %3026
    %v3044 = vpack.c.bf16 %v2585, %v2582
    %v3045 = vpack.c.bf16 %v2593, %v2590
    %v3046 = vpack.c.bf16 %v2601, %v2598
    %v3047 = vpack.c.bf16 %v2609, %v2606
    %v3048 = vpack.c.bf16 %v2617, %v2614
    %v3049 = vpack.c.bf16 %v2625, %v2622
    %v3050 = vpack.c.bf16 %v2633, %v2630
    %v3051 = vpack.c.bf16 %v2641, %v2638
    %v3052 = vpack.c.bf16 %v2663, %v2661
    %v3053 = vpack.c.bf16 %v2667, %v2665
    %v3054 = vpack.c.bf16 %v2671, %v2669
    %v3055 = vpack.c.bf16 %v2675, %v2673
    %v3056 = vpack.c.bf16 %v2679, %v2677
    %v3057 = vpack.c.bf16 %v2683, %v2681
    %v3058 = vpack.c.bf16 %v2687, %v2685
    %v3059 = vpack.c.bf16 %v2691, %v2689
    %v3060 = vpack.c.bf16 %v2711, %v2709
    %v3061 = vpack.c.bf16 %v2715, %v2713
    %v3062 = vpack.c.bf16 %v2719, %v2717
    %v3063 = vpack.c.bf16 %v2723, %v2721
    %v3064 = vpack.c.bf16 %v2727, %v2725
    %v3065 = vpack.c.bf16 %v2731, %v2729
    %v3066 = vpack.c.bf16 %v2735, %v2733
    %v3067 = vpack.c.bf16 %v2739, %v2737
    %v3068 = vpack.c.bf16 %v2759, %v2757
    %v3069 = vpack.c.bf16 %v2763, %v2761
    %v3070 = vpack.c.bf16 %v2767, %v2765
    %v3071 = vpack.c.bf16 %v2771, %v2769
    %v3072 = vpack.c.bf16 %v2775, %v2773
    %v3073 = vpack.c.bf16 %v2779, %v2777
    %v3074 = vpack.c.bf16 %v2783, %v2781
    %v3075 = vpack.c.bf16 %v2787, %v2785
    %v3076 = vpack.c.bf16 %v2807, %v2805
    %v3077 = vpack.c.bf16 %v2811, %v2809
    %v3078 = vpack.c.bf16 %v2815, %v2813
    %v3079 = vpack.c.bf16 %v2819, %v2817
    %v3080 = vpack.c.bf16 %v2823, %v2821
    %v3081 = vpack.c.bf16 %v2827, %v2825
    %v3082 = vpack.c.bf16 %v2831, %v2829
    %v3083 = vpack.c.bf16 %v2835, %v2833
    %v3084 = vpack.c.bf16 %v2855, %v2853
    %v3085 = vpack.c.bf16 %v2859, %v2857
    %v3086 = vpack.c.bf16 %v2863, %v2861
    %v3087 = vpack.c.bf16 %v2867, %v2865
    %v3088 = vpack.c.bf16 %v2871, %v2869
    %v3089 = vpack.c.bf16 %v2875, %v2873
    %v3090 = vpack.c.bf16 %v2879, %v2877
    %v3091 = vpack.c.bf16 %v2883, %v2881
    %v3092 = vpack.c.bf16 %v2903, %v2901
    %v3093 = vpack.c.bf16 %v2907, %v2905
    %v3094 = vpack.c.bf16 %v2911, %v2909
    %v3095 = vpack.c.bf16 %v2915, %v2913
    %v3096 = vpack.c.bf16 %v2919, %v2917
    %v3097 = vpack.c.bf16 %v2923, %v2921
    %v3098 = vpack.c.bf16 %v2927, %v2925
    %v3099 = vpack.c.bf16 %v2931, %v2929
    %v3100 = vpack.c.bf16 %v2951, %v2949
    %v3101 = vpack.c.bf16 %v2955, %v2953
    %v3102 = vpack.c.bf16 %v2959, %v2957
    %v3103 = vpack.c.bf16 %v2963, %v2961
    %v3104 = vpack.c.bf16 %v2967, %v2965
    %v3105 = vpack.c.bf16 %v2971, %v2969
    %v3106 = vpack.c.bf16 %v2975, %v2973
    %v3107 = vpack.c.bf16 %v2979, %v2977
    %v3108 = vpack.c.bf16 %v2999, %v2997
    %v3109 = vpack.c.bf16 %v3003, %v3001
    %v3110 = vpack.c.bf16 %v3007, %v3005
    %v3111 = vpack.c.bf16 %v3011, %v3009
    %v3112 = vpack.c.bf16 %v3015, %v3013
    %v3113 = vpack.c.bf16 %v3019, %v3017
    %v3114 = vpack.c.bf16 %v3023, %v3021
    %v3115 = vpack.c.bf16 %v3027, %v3025
    %v3116 = vld [vmem:[%s6] sm:$0xff]
    %v3117 = vld [vmem:[%s6 + $0x8] sm:$0xff]
    %v3118 = vld [vmem:[%s6 + $0x10] sm:$0xff]
    %v3119 = vld [vmem:[%s6 + $0x18] sm:$0xff]
    %v3120 = vld [vmem:[%s6 + $0x20] sm:$0xf]
    %v3121 = vld [vmem:[%s6 + $0x24] sm:$0xff]
    %v3122 = vld [vmem:[%s6 + $0x2c] sm:$0xff]
    %v3123 = vld [vmem:[%s6 + $0x34] sm:$0xff]
    %v3124 = vld [vmem:[%s6 + $0x3c] sm:$0xff]
    %v3125 = vld [vmem:[%s6 + $0x44] sm:$0xf]
    %v3126 = vld [vmem:[%s6 + $0x48] sm:$0xff]
    %v3127 = vld [vmem:[%s6 + $0x50] sm:$0xff]
    %v3128 = vld [vmem:[%s6 + $0x58] sm:$0xff]
    %v3129 = vld [vmem:[%s6 + $0x60] sm:$0xff]
    %v3130 = vld [vmem:[%s6 + $0x68] sm:$0xf]
    %v3131 = vld [vmem:[%s6 + $0x6c] sm:$0xff]
    %v3132 = vld [vmem:[%s6 + $0x74] sm:$0xff]
    %v3133 = vld [vmem:[%s6 + $0x7c] sm:$0xff]
    %v3134 = vld [vmem:[%s6 + $0x84] sm:$0xff]
    %v3135 = vld [vmem:[%s6 + $0x8c] sm:$0xf]
    %v3136 = vld [vmem:[%s6 + $0x90] sm:$0xff]
    %v3137 = vld [vmem:[%s6 + $0x98] sm:$0xff]
    %v3138 = vld [vmem:[%s6 + $0xa0] sm:$0xff]
    %v3139 = vld [vmem:[%s6 + $0xa8] sm:$0xff]
    %v3140 = vld [vmem:[%s6 + $0xb0] sm:$0xf]
    %v3141 = vld [vmem:[%s6 + $0xb4] sm:$0xff]
    %v3142 = vld [vmem:[%s6 + $0xbc] sm:$0xff]
    %v3143 = vld [vmem:[%s6 + $0xc4] sm:$0xff]
    %v3144 = vld [vmem:[%s6 + $0xcc] sm:$0xff]
    %v3145 = vld [vmem:[%s6 + $0xd4] sm:$0xf]
    %v3146 = vld [vmem:[%s6 + $0xd8] sm:$0xff]
    %v3147 = vld [vmem:[%s6 + $0xe0] sm:$0xff]
    %v3148 = vld [vmem:[%s6 + $0xe8] sm:$0xff]
    %v3149 = vld [vmem:[%s6 + $0xf0] sm:$0xff]
    %v3150 = vld [vmem:[%s6 + $0xf8] sm:$0xf]
    %v3151 = vld [vmem:[%s6 + $0xfc] sm:$0xff]
    %v3152 = vld [vmem:[%s6 + $0x104] sm:$0xff]
    %v3153 = vld [vmem:[%s6 + $0x10c] sm:$0xff]
    %v3154 = vld [vmem:[%s6 + $0x114] sm:$0xff]
    %v3155 = vld [vmem:[%s6 + $0x11c] sm:$0xf]
    %v3196 = vunpack.c.l.b16 %v3116
    %v3197 = vunpack.c.h.b16 %v3116
    %v3198 = vunpack.c.l.b16 %v3117
    %v3199 = vunpack.c.h.b16 %v3117
    %v3200 = vunpack.c.l.b16 %v3118
    %v3201 = vunpack.c.h.b16 %v3118
    %v3202 = vunpack.c.l.b16 %v3119
    %v3203 = vunpack.c.h.b16 %v3119
    %v3204 = vunpack.c.l.b16 %v3120
    %v3205 = vunpack.c.l.b16 %v3121
    %v3206 = vunpack.c.h.b16 %v3121
    %v3207 = vunpack.c.l.b16 %v3122
    %v3208 = vunpack.c.h.b16 %v3122
    %v3209 = vunpack.c.l.b16 %v3123
    %v3210 = vunpack.c.h.b16 %v3123
    %v3211 = vunpack.c.l.b16 %v3124
    %v3212 = vunpack.c.h.b16 %v3124
    %v3213 = vunpack.c.l.b16 %v3125
    %v3214 = vunpack.c.l.b16 %v3126
    %v3215 = vunpack.c.h.b16 %v3126
    %v3216 = vunpack.c.l.b16 %v3127
    %v3217 = vunpack.c.h.b16 %v3127
    %v3218 = vunpack.c.l.b16 %v3128
    %v3219 = vunpack.c.h.b16 %v3128
    %v3220 = vunpack.c.l.b16 %v3129
    %v3221 = vunpack.c.h.b16 %v3129
    %v3222 = vunpack.c.l.b16 %v3130
    %v3223 = vunpack.c.l.b16 %v3131
    %v3224 = vunpack.c.h.b16 %v3131
    %v3225 = vunpack.c.l.b16 %v3132
    %v3226 = vunpack.c.h.b16 %v3132
    %v3227 = vunpack.c.l.b16 %v3133
    %v3228 = vunpack.c.h.b16 %v3133
    %v3229 = vunpack.c.l.b16 %v3134
    %v3230 = vunpack.c.h.b16 %v3134
    %v3231 = vunpack.c.l.b16 %v3135
    %v3232 = vunpack.c.l.b16 %v3136
    %v3233 = vunpack.c.h.b16 %v3136
    %v3234 = vunpack.c.l.b16 %v3137
    %v3235 = vunpack.c.h.b16 %v3137
    %v3236 = vunpack.c.l.b16 %v3138
    %v3237 = vunpack.c.h.b16 %v3138
    %v3238 = vunpack.c.l.b16 %v3139
    %v3239 = vunpack.c.h.b16 %v3139
    %v3240 = vunpack.c.l.b16 %v3140
    %v3241 = vunpack.c.l.b16 %v3141
    %v3242 = vunpack.c.h.b16 %v3141
    %v3243 = vunpack.c.l.b16 %v3142
    %v3244 = vunpack.c.h.b16 %v3142
    %v3245 = vunpack.c.l.b16 %v3143
    %v3246 = vunpack.c.h.b16 %v3143
    %v3247 = vunpack.c.l.b16 %v3144
    %v3248 = vunpack.c.h.b16 %v3144
    %v3249 = vunpack.c.l.b16 %v3145
    %v3250 = vunpack.c.l.b16 %v3146
    %v3251 = vunpack.c.h.b16 %v3146
    %v3252 = vunpack.c.l.b16 %v3147
    %v3253 = vunpack.c.h.b16 %v3147
    %v3254 = vunpack.c.l.b16 %v3148
    %v3255 = vunpack.c.h.b16 %v3148
    %v3256 = vunpack.c.l.b16 %v3149
    %v3257 = vunpack.c.h.b16 %v3149
    %v3258 = vunpack.c.l.b16 %v3150
    %v3259 = vunpack.c.l.b16 %v3151
    %v3260 = vunpack.c.h.b16 %v3151
    %v3261 = vunpack.c.l.b16 %v3152
    %v3262 = vunpack.c.h.b16 %v3152
    %v3263 = vunpack.c.l.b16 %v3153
    %v3264 = vunpack.c.h.b16 %v3153
    %v3265 = vunpack.c.l.b16 %v3154
    %v3266 = vunpack.c.h.b16 %v3154
    %v3267 = vunpack.c.l.b16 %v3155
    %v3268 = vpack.c.b16 %v3205, %v3196
    %v3269 = vpack.c.b16 %v3206, %v3197
    %v3270 = vpack.c.b16 %v3207, %v3198
    %v3271 = vpack.c.b16 %v3208, %v3199
    %v3272 = vpack.c.b16 %v3209, %v3200
    %v3273 = vpack.c.b16 %v3210, %v3201
    %v3274 = vpack.c.b16 %v3211, %v3202
    %v3275 = vpack.c.b16 %v3212, %v3203
    %v3276 = vpack.c.b16 %v3213, %v3204
    %v3277 = vpack.c.b16 %v3223, %v3214
    %v3278 = vpack.c.b16 %v3224, %v3215
    %v3279 = vpack.c.b16 %v3225, %v3216
    %v3280 = vpack.c.b16 %v3226, %v3217
    %v3281 = vpack.c.b16 %v3227, %v3218
    %v3282 = vpack.c.b16 %v3228, %v3219
    %v3283 = vpack.c.b16 %v3229, %v3220
    %v3284 = vpack.c.b16 %v3230, %v3221
    %v3285 = vpack.c.b16 %v3231, %v3222
    %v3286 = vpack.c.b16 %v3241, %v3232
    %v3287 = vpack.c.b16 %v3242, %v3233
    %v3288 = vpack.c.b16 %v3243, %v3234
    %v3289 = vpack.c.b16 %v3244, %v3235
    %v3290 = vpack.c.b16 %v3245, %v3236
    %v3291 = vpack.c.b16 %v3246, %v3237
    %v3292 = vpack.c.b16 %v3247, %v3238
    %v3293 = vpack.c.b16 %v3248, %v3239
    %v3294 = vpack.c.b16 %v3249, %v3240
    %v3295 = vpack.c.b16 %v3259, %v3250
    %v3296 = vpack.c.b16 %v3260, %v3251
    %v3297 = vpack.c.b16 %v3261, %v3252
    %v3298 = vpack.c.b16 %v3262, %v3253
    %v3299 = vpack.c.b16 %v3263, %v3254
    %v3300 = vpack.c.b16 %v3264, %v3255
    %v3301 = vpack.c.b16 %v3265, %v3256
    %v3302 = vpack.c.b16 %v3266, %v3257
    %v3303 = vpack.c.b16 %v3267, %v3258
    %3340 = vmatprep.subr.bf16.mxu0 0
    %3341 = vmatpush1.bf16.msra.mxu0 %v3051
    %3342 = vmatprep.subr.bf16.mxu0 0
    %3343 = vmatpush1.bf16.msra.mxu0 %v3050
    %3344 = vmatprep.subr.bf16.mxu0 0
    %3345 = vmatpush1.bf16.msra.mxu0 %v3049
    %3346 = vmatprep.subr.bf16.mxu0 0
    %3347 = vmatpush1.bf16.msra.mxu0 %v3048
    %3348 = vmatprep.subr.bf16.mxu0 0
    %3349 = vmatpush1.bf16.msra.mxu0 %v3047
    %3350 = vmatprep.subr.bf16.mxu0 0
    %3351 = vmatpush1.bf16.msra.mxu0 %v3046
    %3352 = vmatprep.subr.bf16.mxu0 0
    %3353 = vmatpush1.bf16.msra.mxu0 %v3045
    %3354 = vmatprep.subr.bf16.mxu0 0
    %3355 = vmatpush1.bf16.msra.mxu0 %v3044
    %3356 = vmatprep.subr.bf16.mxu0 0
    %3357 = vmatpush2.bf16.msra.mxu0 %v3059
    %3358 = vmatprep.subr.bf16.mxu0 0
    %3359 = vmatpush2.bf16.msra.mxu0 %v3058
    %3360 = vmatprep.subr.bf16.mxu0 0
    %3361 = vmatpush2.bf16.msra.mxu0 %v3057
    %3362 = vmatprep.subr.bf16.mxu0 0
    %3363 = vmatpush2.bf16.msra.mxu0 %v3056
    %3364 = vmatprep.subr.bf16.mxu0 0
    %3365 = vmatpush2.bf16.msra.mxu0 %v3055
    %3366 = vmatprep.subr.bf16.mxu0 0
    %3367 = vmatpush2.bf16.msra.mxu0 %v3054
    %3368 = vmatprep.subr.bf16.mxu0 0
    %3369 = vmatpush2.bf16.msra.mxu0 %v3053
    %3370 = vmatprep.subr.bf16.mxu0 0
    %3371 = vmatpush2.bf16.msra.mxu0 %v3052
    %3372 = vmatprep.mubr.bf16.mxu0 %v3269
    %3373 = vmatmul.mubr.bf16.gmra.mxu0 %v3268
    %v3374 = vpop.f32.mrf.mxu0
    %v3375 = vadd.f32 0.0, %v3374
    %v3376 = vpop.f32.mrf.mxu0
    %v3377 = vpop.f32.mrf.mxu0
    %v3378 = vadd.f32 0.0, %v3377
    %v3379 = vpop.f32.mrf.mxu0
    %3380 = vmatprep.mubr.bf16.mxu0 %v3278
    %3381 = vmatmul.mubr.bf16.gmra.mxu0 %v3277
    %v3382 = vpop.f32.mrf.mxu0
    %v3383 = vadd.f32 0.0, %v3382
    %v3384 = vpop.f32.mrf.mxu0
    %v3385 = vpop.f32.mrf.mxu0
    %v3386 = vadd.f32 0.0, %v3385
    %v3387 = vpop.f32.mrf.mxu0
    %3388 = vmatprep.mubr.bf16.mxu0 %v3287
    %3389 = vmatmul.mubr.bf16.gmra.mxu0 %v3286
    %v3390 = vpop.f32.mrf.mxu0
    %v3391 = vadd.f32 0.0, %v3390
    %v3392 = vpop.f32.mrf.mxu0
    %v3393 = vpop.f32.mrf.mxu0
    %v3394 = vadd.f32 0.0, %v3393
    %v3395 = vpop.f32.mrf.mxu0
    %3396 = vmatprep.mubr.bf16.mxu0 %v3296
    %3397 = vmatmul.mubr.bf16.gmra.mxu0 %v3295
    %v3398 = vpop.f32.mrf.mxu0
    %v3399 = vadd.f32 0.0, %v3398
    %v3400 = vpop.f32.mrf.mxu0
    %v3401 = vpop.f32.mrf.mxu0
    %v3402 = vadd.f32 0.0, %v3401
    %v3403 = vpop.f32.mrf.mxu0
    %3404 = vdwg.mxu0
    %3405 = vmatprep.subr.bf16.mxu0 0
    %3406 = vmatpush1.bf16.msra.mxu0 %v3067
    %3407 = vmatprep.subr.bf16.mxu0 0
    %3408 = vmatpush1.bf16.msra.mxu0 %v3066
    %3409 = vmatprep.subr.bf16.mxu0 0
    %3410 = vmatpush1.bf16.msra.mxu0 %v3065
    %3411 = vmatprep.subr.bf16.mxu0 0
    %3412 = vmatpush1.bf16.msra.mxu0 %v3064
    %3413 = vmatprep.subr.bf16.mxu0 0
    %3414 = vmatpush1.bf16.msra.mxu0 %v3063
    %3415 = vmatprep.subr.bf16.mxu0 0
    %3416 = vmatpush1.bf16.msra.mxu0 %v3062
    %3417 = vmatprep.subr.bf16.mxu0 0
    %3418 = vmatpush1.bf16.msra.mxu0 %v3061
    %3419 = vmatprep.subr.bf16.mxu0 0
    %3420 = vmatpush1.bf16.msra.mxu0 %v3060
    %3421 = vmatprep.subr.bf16.mxu0 0
    %3422 = vmatpush2.bf16.msra.mxu0 %v3075
    %3423 = vmatprep.subr.bf16.mxu0 0
    %3424 = vmatpush2.bf16.msra.mxu0 %v3074
    %3425 = vmatprep.subr.bf16.mxu0 0
    %3426 = vmatpush2.bf16.msra.mxu0 %v3073
    %3427 = vmatprep.subr.bf16.mxu0 0
    %3428 = vmatpush2.bf16.msra.mxu0 %v3072
    %3429 = vmatprep.subr.bf16.mxu0 0
    %3430 = vmatpush2.bf16.msra.mxu0 %v3071
    %3431 = vmatprep.subr.bf16.mxu0 0
    %3432 = vmatpush2.bf16.msra.mxu0 %v3070
    %3433 = vmatprep.subr.bf16.mxu0 0
    %3434 = vmatpush2.bf16.msra.mxu0 %v3069
    %3435 = vmatprep.subr.bf16.mxu0 0
    %3436 = vmatpush2.bf16.msra.mxu0 %v3068
    %3437 = vmatprep.mubr.bf16.mxu0 %v3271
    %3438 = vmatmul.mubr.bf16.gmra.mxu0 %v3270
    %v3439 = vpop.f32.mrf.mxu0
    %v3440 = vadd.f32 %v3375, %v3439
    %v3441 = vpop.f32.mrf.mxu0
    %v3442 = vpop.f32.mrf.mxu0
    %v3443 = vadd.f32 %v3378, %v3442
    %v3444 = vpop.f32.mrf.mxu0
    %3445 = vmatprep.mubr.bf16.mxu0 %v3280
    %3446 = vmatmul.mubr.bf16.gmra.mxu0 %v3279
    %v3447 = vpop.f32.mrf.mxu0
    %v3448 = vadd.f32 %v3383, %v3447
    %v3449 = vpop.f32.mrf.mxu0
    %v3450 = vpop.f32.mrf.mxu0
    %v3451 = vadd.f32 %v3386, %v3450
    %v3452 = vpop.f32.mrf.mxu0
    %3453 = vmatprep.mubr.bf16.mxu0 %v3289
    %3454 = vmatmul.mubr.bf16.gmra.mxu0 %v3288
    %v3455 = vpop.f32.mrf.mxu0
    %v3456 = vadd.f32 %v3391, %v3455
    %v3457 = vpop.f32.mrf.mxu0
    %v3458 = vpop.f32.mrf.mxu0
    %v3459 = vadd.f32 %v3394, %v3458
    %v3460 = vpop.f32.mrf.mxu0
    %3461 = vmatprep.mubr.bf16.mxu0 %v3298
    %3462 = vmatmul.mubr.bf16.gmra.mxu0 %v3297
    %v3463 = vpop.f32.mrf.mxu0
    %v3464 = vadd.f32 %v3399, %v3463
    %v3465 = vpop.f32.mrf.mxu0
    %v3466 = vpop.f32.mrf.mxu0
    %v3467 = vadd.f32 %v3402, %v3466
    %v3468 = vpop.f32.mrf.mxu0
    %3469 = vdwg.mxu0
    %3470 = vmatprep.subr.bf16.mxu0 0
    %3471 = vmatpush1.bf16.msra.mxu0 %v3083
    %3472 = vmatprep.subr.bf16.mxu0 0
    %3473 = vmatpush1.bf16.msra.mxu0 %v3082
    %3474 = vmatprep.subr.bf16.mxu0 0
    %3475 = vmatpush1.bf16.msra.mxu0 %v3081
    %3476 = vmatprep.subr.bf16.mxu0 0
    %3477 = vmatpush1.bf16.msra.mxu0 %v3080
    %3478 = vmatprep.subr.bf16.mxu0 0
    %3479 = vmatpush1.bf16.msra.mxu0 %v3079
    %3480 = vmatprep.subr.bf16.mxu0 0
    %3481 = vmatpush1.bf16.msra.mxu0 %v3078
    %3482 = vmatprep.subr.bf16.mxu0 0
    %3483 = vmatpush1.bf16.msra.mxu0 %v3077
    %3484 = vmatprep.subr.bf16.mxu0 0
    %3485 = vmatpush1.bf16.msra.mxu0 %v3076
    %3486 = vmatprep.subr.bf16.mxu0 0
    %3487 = vmatpush2.bf16.msra.mxu0 %v3091
    %3488 = vmatprep.subr.bf16.mxu0 0
    %3489 = vmatpush2.bf16.msra.mxu0 %v3090
    %3490 = vmatprep.subr.bf16.mxu0 0
    %3491 = vmatpush2.bf16.msra.mxu0 %v3089
    %3492 = vmatprep.subr.bf16.mxu0 0
    %3493 = vmatpush2.bf16.msra.mxu0 %v3088
    %3494 = vmatprep.subr.bf16.mxu0 0
    %3495 = vmatpush2.bf16.msra.mxu0 %v3087
    %3496 = vmatprep.subr.bf16.mxu0 0
    %3497 = vmatpush2.bf16.msra.mxu0 %v3086
    %3498 = vmatprep.subr.bf16.mxu0 0
    %3499 = vmatpush2.bf16.msra.mxu0 %v3085
    %3500 = vmatprep.subr.bf16.mxu0 0
    %3501 = vmatpush2.bf16.msra.mxu0 %v3084
    %3502 = vmatprep.mubr.bf16.mxu0 %v3273
    %3503 = vmatmul.mubr.bf16.gmra.mxu0 %v3272
    %v3504 = vpop.f32.mrf.mxu0
    %v3505 = vadd.f32 %v3440, %v3504
    %v3506 = vpop.f32.mrf.mxu0
    %v3507 = vpop.f32.mrf.mxu0
    %v3508 = vadd.f32 %v3443, %v3507
    %v3509 = vpop.f32.mrf.mxu0
    %3510 = vmatprep.mubr.bf16.mxu0 %v3282
    %3511 = vmatmul.mubr.bf16.gmra.mxu0 %v3281
    %v3512 = vpop.f32.mrf.mxu0
    %v3513 = vadd.f32 %v3448, %v3512
    %v3514 = vpop.f32.mrf.mxu0
    %v3515 = vpop.f32.mrf.mxu0
    %v3516 = vadd.f32 %v3451, %v3515
    %v3517 = vpop.f32.mrf.mxu0
    %3518 = vmatprep.mubr.bf16.mxu0 %v3291
    %3519 = vmatmul.mubr.bf16.gmra.mxu0 %v3290
    %v3520 = vpop.f32.mrf.mxu0
    %v3521 = vadd.f32 %v3456, %v3520
    %v3522 = vpop.f32.mrf.mxu0
    %v3523 = vpop.f32.mrf.mxu0
    %v3524 = vadd.f32 %v3459, %v3523
    %v3525 = vpop.f32.mrf.mxu0
    %3526 = vmatprep.mubr.bf16.mxu0 %v3300
    %3527 = vmatmul.mubr.bf16.gmra.mxu0 %v3299
    %v3528 = vpop.f32.mrf.mxu0
    %v3529 = vadd.f32 %v3464, %v3528
    %v3530 = vpop.f32.mrf.mxu0
    %v3531 = vpop.f32.mrf.mxu0
    %v3532 = vadd.f32 %v3467, %v3531
    %v3533 = vpop.f32.mrf.mxu0
    %3534 = vdwg.mxu0
    %3535 = vmatprep.subr.bf16.mxu0 0
    %3536 = vmatpush1.bf16.msra.mxu0 %v3099
    %3537 = vmatprep.subr.bf16.mxu0 0
    %3538 = vmatpush1.bf16.msra.mxu0 %v3098
    %3539 = vmatprep.subr.bf16.mxu0 0
    %3540 = vmatpush1.bf16.msra.mxu0 %v3097
    %3541 = vmatprep.subr.bf16.mxu0 0
    %3542 = vmatpush1.bf16.msra.mxu0 %v3096
    %3543 = vmatprep.subr.bf16.mxu0 0
    %3544 = vmatpush1.bf16.msra.mxu0 %v3095
    %3545 = vmatprep.subr.bf16.mxu0 0
    %3546 = vmatpush1.bf16.msra.mxu0 %v3094
    %3547 = vmatprep.subr.bf16.mxu0 0
    %3548 = vmatpush1.bf16.msra.mxu0 %v3093
    %3549 = vmatprep.subr.bf16.mxu0 0
    %3550 = vmatpush1.bf16.msra.mxu0 %v3092
    %3551 = vmatprep.subr.bf16.mxu0 0
    %3552 = vmatpush2.bf16.msra.mxu0 %v3107
    %3553 = vmatprep.subr.bf16.mxu0 0
    %3554 = vmatpush2.bf16.msra.mxu0 %v3106
    %3555 = vmatprep.subr.bf16.mxu0 0
    %3556 = vmatpush2.bf16.msra.mxu0 %v3105
    %3557 = vmatprep.subr.bf16.mxu0 0
    %3558 = vmatpush2.bf16.msra.mxu0 %v3104
    %3559 = vmatprep.subr.bf16.mxu0 0
    %3560 = vmatpush2.bf16.msra.mxu0 %v3103
    %3561 = vmatprep.subr.bf16.mxu0 0
    %3562 = vmatpush2.bf16.msra.mxu0 %v3102
    %3563 = vmatprep.subr.bf16.mxu0 0
    %3564 = vmatpush2.bf16.msra.mxu0 %v3101
    %3565 = vmatprep.subr.bf16.mxu0 0
    %3566 = vmatpush2.bf16.msra.mxu0 %v3100
    %3567 = vmatprep.mubr.bf16.mxu0 %v3275
    %3568 = vmatmul.mubr.bf16.gmra.mxu0 %v3274
    %v3569 = vpop.f32.mrf.mxu0
    %v3570 = vadd.f32 %v3505, %v3569
    %v3571 = vpop.f32.mrf.mxu0
    %v3572 = vpop.f32.mrf.mxu0
    %v3573 = vadd.f32 %v3508, %v3572
    %v3574 = vpop.f32.mrf.mxu0
    %3575 = vmatprep.mubr.bf16.mxu0 %v3284
    %3576 = vmatmul.mubr.bf16.gmra.mxu0 %v3283
    %v3577 = vpop.f32.mrf.mxu0
    %v3578 = vadd.f32 %v3513, %v3577
    %v3579 = vpop.f32.mrf.mxu0
    %v3580 = vpop.f32.mrf.mxu0
    %v3581 = vadd.f32 %v3516, %v3580
    %v3582 = vpop.f32.mrf.mxu0
    %3583 = vmatprep.mubr.bf16.mxu0 %v3293
    %3584 = vmatmul.mubr.bf16.gmra.mxu0 %v3292
    %v3585 = vpop.f32.mrf.mxu0
    %v3586 = vadd.f32 %v3521, %v3585
    %v3587 = vpop.f32.mrf.mxu0
    %v3588 = vpop.f32.mrf.mxu0
    %v3589 = vadd.f32 %v3524, %v3588
    %v3590 = vpop.f32.mrf.mxu0
    %3591 = vmatprep.mubr.bf16.mxu0 %v3302
    %3592 = vmatmul.mubr.bf16.gmra.mxu0 %v3301
    %v3593 = vpop.f32.mrf.mxu0
    %v3594 = vadd.f32 %v3529, %v3593
    %v3595 = vpop.f32.mrf.mxu0
    %v3596 = vpop.f32.mrf.mxu0
    %v3597 = vadd.f32 %v3532, %v3596
    %v3598 = vpop.f32.mrf.mxu0
    %3599 = vdwg.mxu0
    %3600 = vmatprep.subr.bf16.mxu0 0
    %3601 = vmatpush1.bf16.msra.mxu0 %v3115
    %3602 = vmatprep.subr.bf16.mxu0 0
    %3603 = vmatpush1.bf16.msra.mxu0 %v3114
    %3604 = vmatprep.subr.bf16.mxu0 0
    %3605 = vmatpush1.bf16.msra.mxu0 %v3113
    %3606 = vmatprep.subr.bf16.mxu0 0
    %3607 = vmatpush1.bf16.msra.mxu0 %v3112
    %3608 = vmatprep.subr.bf16.mxu0 0
    %3609 = vmatpush1.bf16.msra.mxu0 %v3111
    %3610 = vmatprep.subr.bf16.mxu0 0
    %3611 = vmatpush1.bf16.msra.mxu0 %v3110
    %3612 = vmatprep.subr.bf16.mxu0 0
    %3613 = vmatpush1.bf16.msra.mxu0 %v3109
    %3614 = vmatprep.subr.bf16.mxu0 0
    %3615 = vmatpush1.bf16.msra.mxu0 %v3108
    %3616 = vmatprep.subr.bf16.mxu0 0
    %3617 = vmatpush2.bf16.msra.mxu0 0
    %3618 = vmatprep.subr.bf16.mxu0 0
    %3619 = vmatpush2.bf16.msra.mxu0 0
    %3620 = vmatprep.subr.bf16.mxu0 0
    %3621 = vmatpush2.bf16.msra.mxu0 0
    %3622 = vmatprep.subr.bf16.mxu0 0
    %3623 = vmatpush2.bf16.msra.mxu0 0
    %3624 = vmatprep.subr.bf16.mxu0 0
    %3625 = vmatpush2.bf16.msra.mxu0 0
    %3626 = vmatprep.subr.bf16.mxu0 0
    %3627 = vmatpush2.bf16.msra.mxu0 0
    %3628 = vmatprep.subr.bf16.mxu0 0
    %3629 = vmatpush2.bf16.msra.mxu0 0
    %3630 = vmatprep.subr.bf16.mxu0 0
    %3631 = vmatpush2.bf16.msra.mxu0 0
    %3632 = vmatprep.mubr.bf16.mxu0 0
    %3633 = vmatmul.mubr.bf16.gmra.mxu0 %v3276
    %v3634 = vpop.f32.mrf.mxu0
    %v3635 = vadd.f32 %v3570, %v3634
    %v3636 = vpop.f32.mrf.mxu0
    %v3637 = vpop.f32.mrf.mxu0
    %v3638 = vadd.f32 %v3573, %v3637
    %v3639 = vpop.f32.mrf.mxu0
    %3640 = vmatprep.mubr.bf16.mxu0 0
    %3641 = vmatmul.mubr.bf16.gmra.mxu0 %v3285
    %v3642 = vpop.f32.mrf.mxu0
    %v3643 = vadd.f32 %v3578, %v3642
    %v3644 = vpop.f32.mrf.mxu0
    %v3645 = vpop.f32.mrf.mxu0
    %v3646 = vadd.f32 %v3581, %v3645
    %v3647 = vpop.f32.mrf.mxu0
    %3648 = vmatprep.mubr.bf16.mxu0 0
    %3649 = vmatmul.mubr.bf16.gmra.mxu0 %v3294
    %v3650 = vpop.f32.mrf.mxu0
    %v3651 = vadd.f32 %v3586, %v3650
    %v3652 = vpop.f32.mrf.mxu0
    %v3653 = vpop.f32.mrf.mxu0
    %v3654 = vadd.f32 %v3589, %v3653
    %v3655 = vpop.f32.mrf.mxu0
    %3656 = vmatprep.mubr.bf16.mxu0 0
    %3657 = vmatmul.mubr.bf16.gmra.mxu0 %v3303
    %v3658 = vpop.f32.mrf.mxu0
    %v3659 = vadd.f32 %v3594, %v3658
    %v3660 = vpop.f32.mrf.mxu0
    %v3661 = vpop.f32.mrf.mxu0
    %v3662 = vadd.f32 %v3597, %v3661
    %v3663 = vpop.f32.mrf.mxu0
    %3664 = vdwg.mxu0
    %v3665 = vld [vmem:[%s20 + $0x60] sm:$0xff]
    %v3666 = vld [vmem:[%s20 + $0x68] sm:$0xff]
    %v3667 = vld [vmem:[%s20 + $0x70] sm:$0xff]
    %v3668 = vld [vmem:[%s20 + $0x78] sm:$0xff]
    %vm3669 = vcmask 31744
    %v3670 = vsel %vm3669, %v3635, 0.0
    %3671 = vadd.xlane.f32.xlu0 %v3670
    %v3672 = vpop.xlane.xlu0 %3671
    %v3673 = vsel %vm3669, %v3638, 0.0
    %3674 = vadd.xlane.f32.xlu0 %v3673
    %v3675 = vpop.xlane.xlu0 %3674
    %v3676 = vsel %vm3669, %v3643, 0.0
    %3677 = vadd.xlane.f32.xlu0 %v3676
    %v3678 = vpop.xlane.xlu0 %3677
    %v3679 = vsel %vm3669, %v3646, 0.0
    %3680 = vadd.xlane.f32.xlu0 %v3679
    %v3681 = vpop.xlane.xlu0 %3680
    %v3682 = vsel %vm3669, %v3651, 0.0
    %3683 = vadd.xlane.f32.xlu0 %v3682
    %v3684 = vpop.xlane.xlu0 %3683
    %v3685 = vsel %vm3669, %v3654, 0.0
    %3686 = vadd.xlane.f32.xlu0 %v3685
    %v3687 = vpop.xlane.xlu0 %3686
    %v3688 = vsel %vm3669, %v3659, 0.0
    %3689 = vadd.xlane.f32.xlu0 %v3688
    %v3690 = vpop.xlane.xlu0 %3689
    %v3691 = vsel %vm3669, %v3662, 0.0
    %3692 = vadd.xlane.f32.xlu0 %v3691
    %v3693 = vpop.xlane.xlu0 %3692
    %v3694 = vmul.f32 %v3635, %v3635
    %v3695 = vmul.f32 %v3638, %v3638
    %v3696 = vmul.f32 %v3643, %v3643
    %v3697 = vmul.f32 %v3646, %v3646
    %v3698 = vmul.f32 %v3651, %v3651
    %v3699 = vmul.f32 %v3654, %v3654
    %v3700 = vmul.f32 %v3659, %v3659
    %v3701 = vmul.f32 %v3662, %v3662
    %v3702 = vsel %vm3669, %v3694, 0.0
    %3703 = vadd.xlane.f32.xlu0 %v3702
    %v3704 = vpop.xlane.xlu0 %3703
    %v3705 = vsel %vm3669, %v3695, 0.0
    %3706 = vadd.xlane.f32.xlu0 %v3705
    %v3707 = vpop.xlane.xlu0 %3706
    %v3708 = vsel %vm3669, %v3696, 0.0
    %3709 = vadd.xlane.f32.xlu0 %v3708
    %v3710 = vpop.xlane.xlu0 %3709
    %v3711 = vsel %vm3669, %v3697, 0.0
    %3712 = vadd.xlane.f32.xlu0 %v3711
    %v3713 = vpop.xlane.xlu0 %3712
    %v3714 = vsel %vm3669, %v3698, 0.0
    %3715 = vadd.xlane.f32.xlu0 %v3714
    %v3716 = vpop.xlane.xlu0 %3715
    %v3717 = vsel %vm3669, %v3699, 0.0
    %3718 = vadd.xlane.f32.xlu0 %v3717
    %v3719 = vpop.xlane.xlu0 %3718
    %v3720 = vsel %vm3669, %v3700, 0.0
    %3721 = vadd.xlane.f32.xlu0 %v3720
    %v3722 = vpop.xlane.xlu0 %3721
    %v3723 = vsel %vm3669, %v3701, 0.0
    %3724 = vadd.xlane.f32.xlu0 %v3723
    %v3725 = vpop.xlane.xlu0 %3724
    %v3726 = vadd.f32 %v3672, %v3684
    %v3727 = vadd.f32 %v3675, %v3687
    %v3728 = vadd.f32 %v3678, %v3690
    %v3729 = vadd.f32 %v3681, %v3693
    %v3730 = vadd.f32 %v3704, %v3716
    %v3731 = vadd.f32 %v3707, %v3719
    %v3732 = vadd.f32 %v3710, %v3722
    %v3733 = vadd.f32 %v3713, %v3725
    %v3734 = vmul.f32 %v3726, 0.125
    %v3735 = vmul.f32 %v3727, 0.125
    %v3736 = vmul.f32 %v3728, 0.125
    %v3737 = vmul.f32 %v3729, 0.125
    %v3738 = vmul.f32 %v3730, 0.125
    %v3739 = vmul.f32 %v3731, 0.125
    %v3740 = vmul.f32 %v3732, 0.125
    %v3741 = vmul.f32 %v3733, 0.125
    %v3742 = vmul.f32 %v3734, %v3734
    %v3743 = vmul.f32 %v3735, %v3735
    %v3744 = vmul.f32 %v3736, %v3736
    %v3745 = vmul.f32 %v3737, %v3737
    %v3746 = vsub.f32 %v3738, %v3742
    %v3747 = vsub.f32 %v3739, %v3743
    %v3748 = vsub.f32 %v3740, %v3744
    %v3749 = vsub.f32 %v3741, %v3745
    %v3750 = vmax.f32 %v3746, 0.0
    %v3751 = vmax.f32 %v3747, 0.0
    %v3752 = vmax.f32 %v3748, 0.0
    %v3753 = vmax.f32 %v3749, 0.0
    %v3754 = vadd.f32 %v3750, 1e-05
    %v3755 = vadd.f32 %v3751, 1e-05
    %v3756 = vadd.f32 %v3752, 1e-05
    %v3757 = vadd.f32 %v3753, 1e-05
    %v3758 = vrsqrt.pop %v3754
    %v3759 = vrsqrt.pop %v3755
    %v3760 = vrsqrt.pop %v3756
    %v3761 = vrsqrt.pop %v3757
    %v3762 = vmul.f32 %v3665, %v3758
    %v3763 = vmul.f32 %v3666, %v3759
    %v3764 = vmul.f32 %v3667, %v3760
    %v3765 = vmul.f32 %v3668, %v3761
    %v3766 = vmul.f32 %v3734, %v3762
    %v3767 = vmul.f32 %v3735, %v3763
    %v3768 = vmul.f32 %v3736, %v3764
    %v3769 = vmul.f32 %v3737, %v3765
    %3774 = vrot.lane.b32.xlu0 %v3766, 1
    %v3775 = vpop.permute.xlu0 %3774
    %3776 = vrot.lane.b32.xlu0 %v3767, 1
    %v3777 = vpop.permute.xlu0 %3776
    %3778 = vrot.lane.b32.xlu0 %v3768, 1
    %v3779 = vpop.permute.xlu0 %3778
    %3780 = vrot.lane.b32.xlu0 %v3769, 1
    %v3781 = vpop.permute.xlu0 %3780
    %v3786 = vsub.f32 %v3665, %v3775
    %v3787 = vsub.f32 %v3666, %v3777
    %v3788 = vsub.f32 %v3667, %v3779
    %v3789 = vsub.f32 %v3668, %v3781
    %3791 = vset.pattern.permute.xlu0 0
    %3792 = vperm.xlu0 %3791, %v3762
    %v3793 = vpop.permute.xlu0 %3792
    %3796 = vset.pattern.permute.xlu0 0
    %3797 = vperm.xlu0 %3796, %v3763
    %v3798 = vpop.permute.xlu0 %3797
    %3801 = vset.pattern.permute.xlu0 0
    %3802 = vperm.xlu0 %3801, %v3764
    %v3803 = vpop.permute.xlu0 %3802
    %3806 = vset.pattern.permute.xlu0 0
    %3807 = vperm.xlu0 %3806, %v3765
    %v3808 = vpop.permute.xlu0 %3807
    %v3810 = vmul.f32 %v3635, %v3793
    %v3811 = vmul.f32 %v3638, %v3798
    %v3812 = vmul.f32 %v3643, %v3803
    %v3813 = vmul.f32 %v3646, %v3808
    %v3814 = vmul.f32 %v3651, %v3793
    %v3815 = vmul.f32 %v3654, %v3798
    %v3816 = vmul.f32 %v3659, %v3803
    %v3817 = vmul.f32 %v3662, %v3808
    %3819 = vset.pattern.permute.xlu0 1
    %3820 = vperm.xlu0 %3819, %v3786
    %v3821 = vpop.permute.xlu0 %3820
    %3824 = vset.pattern.permute.xlu0 1
    %3825 = vperm.xlu0 %3824, %v3787
    %v3826 = vpop.permute.xlu0 %3825
    %3829 = vset.pattern.permute.xlu0 1
    %3830 = vperm.xlu0 %3829, %v3788
    %v3831 = vpop.permute.xlu0 %3830
    %3834 = vset.pattern.permute.xlu0 1
    %3835 = vperm.xlu0 %3834, %v3789
    %v3836 = vpop.permute.xlu0 %3835
    %v3838 = vadd.f32 %v3810, %v3821
    %v3839 = vadd.f32 %v3811, %v3826
    %v3840 = vadd.f32 %v3812, %v3831
    %v3841 = vadd.f32 %v3813, %v3836
    %v3842 = vadd.f32 %v3814, %v3821
    %v3843 = vadd.f32 %v3815, %v3826
    %v3844 = vadd.f32 %v3816, %v3831
    %v3845 = vadd.f32 %v3817, %v3836
    %vm3846 = vcmp.ge.f32.partialorder %v3838, 0.0
    %vm3847 = vcmp.ge.f32.partialorder %v3839, 0.0
    %vm3848 = vcmp.ge.f32.partialorder %v3840, 0.0
    %vm3849 = vcmp.ge.f32.partialorder %v3841, 0.0
    %vm3850 = vcmp.ge.f32.partialorder %v3842, 0.0
    %vm3851 = vcmp.ge.f32.partialorder %v3843, 0.0
    %vm3852 = vcmp.ge.f32.partialorder %v3844, 0.0
    %vm3853 = vcmp.ge.f32.partialorder %v3845, 0.0
    %v3854 = vmul.f32 %v3838, 0.01
    %v3855 = vmul.f32 %v3839, 0.01
    %v3856 = vmul.f32 %v3840, 0.01
    %v3857 = vmul.f32 %v3841, 0.01
    %v3858 = vmul.f32 %v3842, 0.01
    %v3859 = vmul.f32 %v3843, 0.01
    %v3860 = vmul.f32 %v3844, 0.01
    %v3861 = vmul.f32 %v3845, 0.01
    %v3862 = vsel %vm3846, %v3838, %v3854
    %v3863 = vsel %vm3847, %v3839, %v3855
    %v3864 = vsel %vm3848, %v3840, %v3856
    %v3865 = vsel %vm3849, %v3841, %v3857
    %v3866 = vsel %vm3850, %v3842, %v3858
    %v3867 = vsel %vm3851, %v3843, %v3859
    %v3868 = vsel %vm3852, %v3844, %v3860
    %v3869 = vsel %vm3853, %v3845, %v3861
    %v3870 = vpack.c.bf16 %v3863, %v3862
    %v3871 = vpack.c.bf16 %v3865, %v3864
    %v3872 = vpack.c.bf16 %v3867, %v3866
    %v3873 = vpack.c.bf16 %v3869, %v3868
    %v3874 = vld [vmem:[#allocation7] sm:$0x3]
    %v3876 = vsel %vm3669, %v3870, 0
    %v3879 = vsel %vm3669, %v3871, 0
    %v3882 = vsel %vm3669, %v3872, 0
    %v3885 = vsel %vm3669, %v3873, 0
    %vm3887 = vcmask 1041408
    %v3889 = vsel %vm3887, %v3874, 0
    %3891 = vmatprep.subr.bf16.mxu0 0
    %3892 = vmatpush1.bf16.msra.mxu0 0
    %3893 = vmatprep.subr.bf16.mxu0 0
    %3894 = vmatpush1.bf16.msra.mxu0 0
    %3895 = vmatprep.subr.bf16.mxu0 0
    %3896 = vmatpush1.bf16.msra.mxu0 0
    %3897 = vmatprep.subr.bf16.mxu0 0
    %3898 = vmatpush1.bf16.msra.mxu0 0
    %3899 = vmatprep.subr.bf16.mxu0 0
    %3900 = vmatpush1.bf16.msra.mxu0 0
    %3901 = vmatprep.subr.bf16.mxu0 0
    %3902 = vmatpush1.bf16.msra.mxu0 0
    %3903 = vmatprep.subr.bf16.mxu0 0
    %3904 = vmatpush1.bf16.msra.mxu0 0
    %3905 = vmatprep.subr.bf16.mxu0 0
    %3906 = vmatpush1.bf16.msra.mxu0 %v3889
    %3907 = vmatprep.subr.bf16.mxu0 0
    %3908 = vmatpush2.bf16.msra.mxu0 0
    %3909 = vmatprep.subr.bf16.mxu0 0
    %3910 = vmatpush2.bf16.msra.mxu0 0
    %3911 = vmatprep.subr.bf16.mxu0 0
    %3912 = vmatpush2.bf16.msra.mxu0 0
    %3913 = vmatprep.subr.bf16.mxu0 0
    %3914 = vmatpush2.bf16.msra.mxu0 0
    %3915 = vmatprep.subr.bf16.mxu0 0
    %3916 = vmatpush2.bf16.msra.mxu0 0
    %3917 = vmatprep.subr.bf16.mxu0 0
    %3918 = vmatpush2.bf16.msra.mxu0 0
    %3919 = vmatprep.subr.bf16.mxu0 0
    %3920 = vmatpush2.bf16.msra.mxu0 0
    %3921 = vmatprep.subr.bf16.mxu0 0
    %3922 = vmatpush2.bf16.msra.mxu0 0
    %3923 = vmatprep.mubr.bf16.mxu0 0
    %3924 = vmatmul.mubr.bf16.gmra.mxu0 %v3876
    %v3925 = vpop.f32.mrf.mxu0
    %v3926 = vadd.f32 0.0, %v3925
    %v3927 = vpop.f32.mrf.mxu0
    %v3928 = vpop.f32.mrf.mxu0
    %v3929 = vadd.f32 0.0, %v3928
    %v3930 = vpop.f32.mrf.mxu0
    %3931 = vmatprep.mubr.bf16.mxu0 0
    %3932 = vmatmul.mubr.bf16.gmra.mxu0 %v3879
    %v3933 = vpop.f32.mrf.mxu0
    %v3934 = vadd.f32 0.0, %v3933
    %v3935 = vpop.f32.mrf.mxu0
    %v3936 = vpop.f32.mrf.mxu0
    %v3937 = vadd.f32 0.0, %v3936
    %v3938 = vpop.f32.mrf.mxu0
    %3939 = vmatprep.mubr.bf16.mxu0 0
    %3940 = vmatmul.mubr.bf16.gmra.mxu0 %v3882
    %v3941 = vpop.f32.mrf.mxu0
    %v3942 = vadd.f32 0.0, %v3941
    %v3943 = vpop.f32.mrf.mxu0
    %v3944 = vpop.f32.mrf.mxu0
    %v3945 = vadd.f32 0.0, %v3944
    %v3946 = vpop.f32.mrf.mxu0
    %3947 = vmatprep.mubr.bf16.mxu0 0
    %3948 = vmatmul.mubr.bf16.gmra.mxu0 %v3885
    %v3949 = vpop.f32.mrf.mxu0
    %v3950 = vadd.f32 0.0, %v3949
    %v3951 = vpop.f32.mrf.mxu0
    %v3952 = vpop.f32.mrf.mxu0
    %v3953 = vadd.f32 0.0, %v3952
    %v3954 = vpop.f32.mrf.mxu0
    %3955 = vdwg.mxu0
    %3964 = vrot.lane.b32.xlu0 %v3926, 127
    %v3965 = vpop.permute.xlu0 %3964
    %3966 = vrot.lane.b32.xlu0 %v3929, 127
    %v3967 = vpop.permute.xlu0 %3966
    %3968 = vrot.lane.b32.xlu0 %v3934, 127
    %v3969 = vpop.permute.xlu0 %3968
    %3970 = vrot.lane.b32.xlu0 %v3937, 127
    %v3971 = vpop.permute.xlu0 %3970
    %3972 = vrot.lane.b32.xlu0 %v3942, 127
    %v3973 = vpop.permute.xlu0 %3972
    %3974 = vrot.lane.b32.xlu0 %v3945, 127
    %v3975 = vpop.permute.xlu0 %3974
    %3976 = vrot.lane.b32.xlu0 %v3950, 127
    %v3977 = vpop.permute.xlu0 %3976
    %3978 = vrot.lane.b32.xlu0 %v3953, 127
    %v3979 = vpop.permute.xlu0 %3978
    %3988 = vrot.lane.b32.xlu0 %v3926, 126
    %v3989 = vpop.permute.xlu0 %3988
    %3990 = vrot.lane.b32.xlu0 %v3929, 126
    %v3991 = vpop.permute.xlu0 %3990
    %3992 = vrot.lane.b32.xlu0 %v3934, 126
    %v3993 = vpop.permute.xlu0 %3992
    %3994 = vrot.lane.b32.xlu0 %v3937, 126
    %v3995 = vpop.permute.xlu0 %3994
    %3996 = vrot.lane.b32.xlu0 %v3942, 126
    %v3997 = vpop.permute.xlu0 %3996
    %3998 = vrot.lane.b32.xlu0 %v3945, 126
    %v3999 = vpop.permute.xlu0 %3998
    %4000 = vrot.lane.b32.xlu0 %v3950, 126
    %v4001 = vpop.permute.xlu0 %4000
    %4002 = vrot.lane.b32.xlu0 %v3953, 126
    %v4003 = vpop.permute.xlu0 %4002
    %4012 = vrot.lane.b32.xlu0 %v3926, 125
    %v4013 = vpop.permute.xlu0 %4012
    %4014 = vrot.lane.b32.xlu0 %v3929, 125
    %v4015 = vpop.permute.xlu0 %4014
    %4016 = vrot.lane.b32.xlu0 %v3934, 125
    %v4017 = vpop.permute.xlu0 %4016
    %4018 = vrot.lane.b32.xlu0 %v3937, 125
    %v4019 = vpop.permute.xlu0 %4018
    %4020 = vrot.lane.b32.xlu0 %v3942, 125
    %v4021 = vpop.permute.xlu0 %4020
    %4022 = vrot.lane.b32.xlu0 %v3945, 125
    %v4023 = vpop.permute.xlu0 %4022
    %4024 = vrot.lane.b32.xlu0 %v3950, 125
    %v4025 = vpop.permute.xlu0 %4024
    %4026 = vrot.lane.b32.xlu0 %v3953, 125
    %v4027 = vpop.permute.xlu0 %4026
    %4036 = vrot.lane.b32.xlu0 %v3926, 124
    %v4037 = vpop.permute.xlu0 %4036
    %4038 = vrot.lane.b32.xlu0 %v3929, 124
    %v4039 = vpop.permute.xlu0 %4038
    %4040 = vrot.lane.b32.xlu0 %v3934, 124
    %v4041 = vpop.permute.xlu0 %4040
    %4042 = vrot.lane.b32.xlu0 %v3937, 124
    %v4043 = vpop.permute.xlu0 %4042
    %4044 = vrot.lane.b32.xlu0 %v3942, 124
    %v4045 = vpop.permute.xlu0 %4044
    %4046 = vrot.lane.b32.xlu0 %v3945, 124
    %v4047 = vpop.permute.xlu0 %4046
    %4048 = vrot.lane.b32.xlu0 %v3950, 124
    %v4049 = vpop.permute.xlu0 %4048
    %4050 = vrot.lane.b32.xlu0 %v3953, 124
    %v4051 = vpop.permute.xlu0 %4050
    %4060 = vrot.lane.b32.xlu0 %v3926, 123
    %v4061 = vpop.permute.xlu0 %4060
    %4062 = vrot.lane.b32.xlu0 %v3929, 123
    %v4063 = vpop.permute.xlu0 %4062
    %4064 = vrot.lane.b32.xlu0 %v3934, 123
    %v4065 = vpop.permute.xlu0 %4064
    %4066 = vrot.lane.b32.xlu0 %v3937, 123
    %v4067 = vpop.permute.xlu0 %4066
    %4068 = vrot.lane.b32.xlu0 %v3942, 123
    %v4069 = vpop.permute.xlu0 %4068
    %4070 = vrot.lane.b32.xlu0 %v3945, 123
    %v4071 = vpop.permute.xlu0 %4070
    %4072 = vrot.lane.b32.xlu0 %v3950, 123
    %v4073 = vpop.permute.xlu0 %4072
    %4074 = vrot.lane.b32.xlu0 %v3953, 123
    %v4075 = vpop.permute.xlu0 %4074
    %4084 = vrot.lane.b32.xlu0 %v3926, 122
    %v4085 = vpop.permute.xlu0 %4084
    %4086 = vrot.lane.b32.xlu0 %v3929, 122
    %v4087 = vpop.permute.xlu0 %4086
    %4088 = vrot.lane.b32.xlu0 %v3934, 122
    %v4089 = vpop.permute.xlu0 %4088
    %4090 = vrot.lane.b32.xlu0 %v3937, 122
    %v4091 = vpop.permute.xlu0 %4090
    %4092 = vrot.lane.b32.xlu0 %v3942, 122
    %v4093 = vpop.permute.xlu0 %4092
    %4094 = vrot.lane.b32.xlu0 %v3945, 122
    %v4095 = vpop.permute.xlu0 %4094
    %4096 = vrot.lane.b32.xlu0 %v3950, 122
    %v4097 = vpop.permute.xlu0 %4096
    %4098 = vrot.lane.b32.xlu0 %v3953, 122
    %v4099 = vpop.permute.xlu0 %4098
    %4108 = vrot.lane.b32.xlu0 %v3926, 121
    %v4109 = vpop.permute.xlu0 %4108
    %4110 = vrot.lane.b32.xlu0 %v3929, 121
    %v4111 = vpop.permute.xlu0 %4110
    %4112 = vrot.lane.b32.xlu0 %v3934, 121
    %v4113 = vpop.permute.xlu0 %4112
    %4114 = vrot.lane.b32.xlu0 %v3937, 121
    %v4115 = vpop.permute.xlu0 %4114
    %4116 = vrot.lane.b32.xlu0 %v3942, 121
    %v4117 = vpop.permute.xlu0 %4116
    %4118 = vrot.lane.b32.xlu0 %v3945, 121
    %v4119 = vpop.permute.xlu0 %4118
    %4120 = vrot.lane.b32.xlu0 %v3950, 121
    %v4121 = vpop.permute.xlu0 %4120
    %4122 = vrot.lane.b32.xlu0 %v3953, 121
    %v4123 = vpop.permute.xlu0 %4122
    %4132 = vrot.lane.b32.xlu0 %v3926, 120
    %v4133 = vpop.permute.xlu0 %4132
    %4134 = vrot.lane.b32.xlu0 %v3929, 120
    %v4135 = vpop.permute.xlu0 %4134
    %4136 = vrot.lane.b32.xlu0 %v3934, 120
    %v4137 = vpop.permute.xlu0 %4136
    %4138 = vrot.lane.b32.xlu0 %v3937, 120
    %v4139 = vpop.permute.xlu0 %4138
    %4140 = vrot.lane.b32.xlu0 %v3942, 120
    %v4141 = vpop.permute.xlu0 %4140
    %4142 = vrot.lane.b32.xlu0 %v3945, 120
    %v4143 = vpop.permute.xlu0 %4142
    %4144 = vrot.lane.b32.xlu0 %v3950, 120
    %v4145 = vpop.permute.xlu0 %4144
    %4146 = vrot.lane.b32.xlu0 %v3953, 120
    %v4147 = vpop.permute.xlu0 %4146
    %v4156 = vpack.c.bf16 %v3929, %v3926
    %v4157 = vpack.c.bf16 %v3937, %v3934
    %v4158 = vpack.c.bf16 %v3945, %v3942
    %v4159 = vpack.c.bf16 %v3953, %v3950
    %v4160 = vpack.c.bf16 %v3967, %v3965
    %v4161 = vpack.c.bf16 %v3971, %v3969
    %v4162 = vpack.c.bf16 %v3975, %v3973
    %v4163 = vpack.c.bf16 %v3979, %v3977
    %v4164 = vpack.c.bf16 %v3991, %v3989
    %v4165 = vpack.c.bf16 %v3995, %v3993
    %v4166 = vpack.c.bf16 %v3999, %v3997
    %v4167 = vpack.c.bf16 %v4003, %v4001
    %v4168 = vpack.c.bf16 %v4015, %v4013
    %v4169 = vpack.c.bf16 %v4019, %v4017
    %v4170 = vpack.c.bf16 %v4023, %v4021
    %v4171 = vpack.c.bf16 %v4027, %v4025
    %v4172 = vpack.c.bf16 %v4039, %v4037
    %v4173 = vpack.c.bf16 %v4043, %v4041
    %v4174 = vpack.c.bf16 %v4047, %v4045
    %v4175 = vpack.c.bf16 %v4051, %v4049
    %v4176 = vpack.c.bf16 %v4063, %v4061
    %v4177 = vpack.c.bf16 %v4067, %v4065
    %v4178 = vpack.c.bf16 %v4071, %v4069
    %v4179 = vpack.c.bf16 %v4075, %v4073
    %v4180 = vpack.c.bf16 %v4087, %v4085
    %v4181 = vpack.c.bf16 %v4091, %v4089
    %v4182 = vpack.c.bf16 %v4095, %v4093
    %v4183 = vpack.c.bf16 %v4099, %v4097
    %v4184 = vpack.c.bf16 %v4111, %v4109
    %v4185 = vpack.c.bf16 %v4115, %v4113
    %v4186 = vpack.c.bf16 %v4119, %v4117
    %v4187 = vpack.c.bf16 %v4123, %v4121
    %v4188 = vpack.c.bf16 %v4135, %v4133
    %v4189 = vpack.c.bf16 %v4139, %v4137
    %v4190 = vpack.c.bf16 %v4143, %v4141
    %v4191 = vpack.c.bf16 %v4147, %v4145
    %v4192 = vld [vmem:[%s8] sm:$0xff]
    %v4193 = vld [vmem:[%s8 + $0x8] sm:$0xff]
    %v4194 = vld [vmem:[%s8 + $0x10] sm:$0xf]
    %v4195 = vld [vmem:[%s8 + $0x14] sm:$0xff]
    %v4196 = vld [vmem:[%s8 + $0x1c] sm:$0xff]
    %v4197 = vld [vmem:[%s8 + $0x24] sm:$0xf]
    %v4204 = vunpack.c.l.b16 %v4192
    %v4205 = vunpack.c.h.b16 %v4192
    %v4206 = vunpack.c.l.b16 %v4193
    %v4207 = vunpack.c.h.b16 %v4193
    %v4208 = vunpack.c.l.b16 %v4194
    %v4209 = vunpack.c.l.b16 %v4195
    %v4210 = vunpack.c.h.b16 %v4195
    %v4211 = vunpack.c.l.b16 %v4196
    %v4212 = vunpack.c.h.b16 %v4196
    %v4213 = vunpack.c.l.b16 %v4197
    %v4214 = vpack.c.b16 %v4209, %v4204
    %v4215 = vpack.c.b16 %v4210, %v4205
    %v4216 = vpack.c.b16 %v4211, %v4206
    %v4217 = vpack.c.b16 %v4212, %v4207
    %v4218 = vpack.c.b16 %v4213, %v4208
    %v4224 = vsel %vm985, %v4218, 0
    %4226 = vmatprep.subr.bf16.mxu0 0
    %4227 = vmatpush1.bf16.msra.mxu0 %v4163
    %4228 = vmatprep.subr.bf16.mxu0 0
    %4229 = vmatpush1.bf16.msra.mxu0 %v4162
    %4230 = vmatprep.subr.bf16.mxu0 0
    %4231 = vmatpush1.bf16.msra.mxu0 %v4161
    %4232 = vmatprep.subr.bf16.mxu0 0
    %4233 = vmatpush1.bf16.msra.mxu0 %v4160
    %4234 = vmatprep.subr.bf16.mxu0 0
    %4235 = vmatpush1.bf16.msra.mxu0 %v4159
    %4236 = vmatprep.subr.bf16.mxu0 0
    %4237 = vmatpush1.bf16.msra.mxu0 %v4158
    %4238 = vmatprep.subr.bf16.mxu0 0
    %4239 = vmatpush1.bf16.msra.mxu0 %v4157
    %4240 = vmatprep.subr.bf16.mxu0 0
    %4241 = vmatpush1.bf16.msra.mxu0 %v4156
    %4242 = vmatprep.subr.bf16.mxu0 0
    %4243 = vmatpush2.bf16.msra.mxu0 %v4171
    %4244 = vmatprep.subr.bf16.mxu0 0
    %4245 = vmatpush2.bf16.msra.mxu0 %v4170
    %4246 = vmatprep.subr.bf16.mxu0 0
    %4247 = vmatpush2.bf16.msra.mxu0 %v4169
    %4248 = vmatprep.subr.bf16.mxu0 0
    %4249 = vmatpush2.bf16.msra.mxu0 %v4168
    %4250 = vmatprep.subr.bf16.mxu0 0
    %4251 = vmatpush2.bf16.msra.mxu0 %v4167
    %4252 = vmatprep.subr.bf16.mxu0 0
    %4253 = vmatpush2.bf16.msra.mxu0 %v4166
    %4254 = vmatprep.subr.bf16.mxu0 0
    %4255 = vmatpush2.bf16.msra.mxu0 %v4165
    %4256 = vmatprep.subr.bf16.mxu0 0
    %4257 = vmatpush2.bf16.msra.mxu0 %v4164
    %4258 = vmatprep.mubr.bf16.mxu0 %v4215
    %4259 = vmatmul.mubr.bf16.gmra.mxu0 %v4214
    %v4260 = vpop.f32.mrf.mxu0
    %v4261 = vadd.f32 0.0, %v4260
    %v4262 = vpop.f32.mrf.mxu0
    %v4263 = vpop.f32.mrf.mxu0
    %v4264 = vadd.f32 0.0, %v4263
    %v4265 = vpop.f32.mrf.mxu0
    %4266 = vdwg.mxu0
    %4267 = vmatprep.subr.bf16.mxu0 0
    %4268 = vmatpush1.bf16.msra.mxu0 %v4179
    %4269 = vmatprep.subr.bf16.mxu0 0
    %4270 = vmatpush1.bf16.msra.mxu0 %v4178
    %4271 = vmatprep.subr.bf16.mxu0 0
    %4272 = vmatpush1.bf16.msra.mxu0 %v4177
    %4273 = vmatprep.subr.bf16.mxu0 0
    %4274 = vmatpush1.bf16.msra.mxu0 %v4176
    %4275 = vmatprep.subr.bf16.mxu0 0
    %4276 = vmatpush1.bf16.msra.mxu0 %v4175
    %4277 = vmatprep.subr.bf16.mxu0 0
    %4278 = vmatpush1.bf16.msra.mxu0 %v4174
    %4279 = vmatprep.subr.bf16.mxu0 0
    %4280 = vmatpush1.bf16.msra.mxu0 %v4173
    %4281 = vmatprep.subr.bf16.mxu0 0
    %4282 = vmatpush1.bf16.msra.mxu0 %v4172
    %4283 = vmatprep.subr.bf16.mxu0 0
    %4284 = vmatpush2.bf16.msra.mxu0 %v4187
    %4285 = vmatprep.subr.bf16.mxu0 0
    %4286 = vmatpush2.bf16.msra.mxu0 %v4186
    %4287 = vmatprep.subr.bf16.mxu0 0
    %4288 = vmatpush2.bf16.msra.mxu0 %v4185
    %4289 = vmatprep.subr.bf16.mxu0 0
    %4290 = vmatpush2.bf16.msra.mxu0 %v4184
    %4291 = vmatprep.subr.bf16.mxu0 0
    %4292 = vmatpush2.bf16.msra.mxu0 %v4183
    %4293 = vmatprep.subr.bf16.mxu0 0
    %4294 = vmatpush2.bf16.msra.mxu0 %v4182
    %4295 = vmatprep.subr.bf16.mxu0 0
    %4296 = vmatpush2.bf16.msra.mxu0 %v4181
    %4297 = vmatprep.subr.bf16.mxu0 0
    %4298 = vmatpush2.bf16.msra.mxu0 %v4180
    %4299 = vmatprep.mubr.bf16.mxu0 %v4217
    %4300 = vmatmul.mubr.bf16.gmra.mxu0 %v4216
    %v4301 = vpop.f32.mrf.mxu0
    %v4302 = vadd.f32 %v4261, %v4301
    %v4303 = vpop.f32.mrf.mxu0
    %v4304 = vpop.f32.mrf.mxu0
    %v4305 = vadd.f32 %v4264, %v4304
    %v4306 = vpop.f32.mrf.mxu0
    %4307 = vdwg.mxu0
    %4308 = vmatprep.subr.bf16.mxu0 0
    %4309 = vmatpush1.bf16.msra.mxu0 0
    %4310 = vmatprep.subr.bf16.mxu0 0
    %4311 = vmatpush1.bf16.msra.mxu0 0
    %4312 = vmatprep.subr.bf16.mxu0 0
    %4313 = vmatpush1.bf16.msra.mxu0 0
    %4314 = vmatprep.subr.bf16.mxu0 0
    %4315 = vmatpush1.bf16.msra.mxu0 0
    %4316 = vmatprep.subr.bf16.mxu0 0
    %4317 = vmatpush1.bf16.msra.mxu0 %v4191
    %4318 = vmatprep.subr.bf16.mxu0 0
    %4319 = vmatpush1.bf16.msra.mxu0 %v4190
    %4320 = vmatprep.subr.bf16.mxu0 0
    %4321 = vmatpush1.bf16.msra.mxu0 %v4189
    %4322 = vmatprep.subr.bf16.mxu0 0
    %4323 = vmatpush1.bf16.msra.mxu0 %v4188
    %4324 = vmatprep.subr.bf16.mxu0 0
    %4325 = vmatpush2.bf16.msra.mxu0 0
    %4326 = vmatprep.subr.bf16.mxu0 0
    %4327 = vmatpush2.bf16.msra.mxu0 0
    %4328 = vmatprep.subr.bf16.mxu0 0
    %4329 = vmatpush2.bf16.msra.mxu0 0
    %4330 = vmatprep.subr.bf16.mxu0 0
    %4331 = vmatpush2.bf16.msra.mxu0 0
    %4332 = vmatprep.subr.bf16.mxu0 0
    %4333 = vmatpush2.bf16.msra.mxu0 0
    %4334 = vmatprep.subr.bf16.mxu0 0
    %4335 = vmatpush2.bf16.msra.mxu0 0
    %4336 = vmatprep.subr.bf16.mxu0 0
    %4337 = vmatpush2.bf16.msra.mxu0 0
    %4338 = vmatprep.subr.bf16.mxu0 0
    %4339 = vmatpush2.bf16.msra.mxu0 0
    %4340 = vmatprep.mubr.bf16.mxu0 0
    %4341 = vmatmul.mubr.bf16.gmra.mxu0 %v4224
    %v4342 = vpop.f32.mrf.mxu0
    %v4343 = vadd.f32 %v4302, %v4342
    %v4344 = vpop.f32.mrf.mxu0
    %v4345 = vpop.f32.mrf.mxu0
    %v4346 = vadd.f32 %v4305, %v4345
    %v4347 = vpop.f32.mrf.mxu0
    %4348 = vdwg.mxu0
    %v4349 = vld [vmem:[%s20 + $0x80] sm:$0xff]
    %v4350 = vadd.f32 %v4343, 0.0
    %v4351 = vadd.f32 %v4346, 0.0
    %v4352 = vmul.f32 %v4343, %v4343
    %v4353 = vmul.f32 %v4346, %v4346
    %v4354 = vadd.f32 %v4352, 0.0
    %v4355 = vadd.f32 %v4353, 0.0
    %v4356 = vadd.f32 %v4350, %v4351
    %v4357 = vadd.f32 %v4354, %v4355
    %v4358 = vmul.f32 %v4356, 0.5
    %v4359 = vmul.f32 %v4357, 0.5
    %v4360 = vmul.f32 %v4358, %v4358
    %v4361 = vsub.f32 %v4359, %v4360
    %v4362 = vmax.f32 %v4361, 0.0
    %v4363 = vadd.f32 %v4362, 1e-05
    %v4364 = vrsqrt.pop %v4363
    %v4365 = vmul.f32 %v4349, %v4364
    %v4366 = vmul.f32 %v4358, %v4365
    %4368 = vrot.lane.b32.xlu0 %v4366, 1
    %v4369 = vpop.permute.xlu0 %4368
    %v4371 = vsub.f32 %v4349, %v4369
    %v4372 = vmul.f32 %v4343, %v4365
    %v4373 = vmul.f32 %v4346, %v4365
    %4375 = vrot.lane.b32.xlu0 %v4371, 127
    %v4376 = vpop.permute.xlu0 %4375
    %v4378 = vadd.f32 %v4372, %v4376
    %v4379 = vadd.f32 %v4373, %v4376
    %vm4380 = vcmp.ge.f32.partialorder %v4378, 0.0
    %vm4381 = vcmp.ge.f32.partialorder %v4379, 0.0
    %v4382 = vmul.f32 %v4378, 0.01
    %v4383 = vmul.f32 %v4379, 0.01
    %v4384 = vsel %vm4380, %v4378, %v4382
    %v4385 = vsel %vm4381, %v4379, %v4383
    %v4386 = vld [vmem:[%s21] sm:$0xff]
    %v4387 = vld [vmem:[%s21 + $0x8] sm:$0xff]
    %v4388 = vld [vmem:[%s21 + $0x10] sm:$0xff]
    %v4389 = vld [vmem:[%s21 + $0x18] sm:$0xff]
    %v4390 = vld [vmem:[%s21 + $0x20] sm:$0xff]
    %v4391 = vld [vmem:[%s21 + $0x28] sm:$0xff]
    %v4392 = vld [vmem:[%s21 + $0x30] sm:$0xff]
    %v4393 = vld [vmem:[%s21 + $0x38] sm:$0xff]
    %v4394 = vld [vmem:[%s22] sm:$0xff]
    %v4395 = vld [vmem:[%s22 + $0x8] sm:$0xff]
    %v4396 = vld [vmem:[%s22 + $0x10] sm:$0xff]
    %v4397 = vld [vmem:[%s22 + $0x18] sm:$0xff]
    %v4398 = vld [vmem:[%s22 + $0x20] sm:$0xff]
    %v4399 = vld [vmem:[%s22 + $0x28] sm:$0xff]
    %v4400 = vld [vmem:[%s22 + $0x30] sm:$0xff]
    %v4401 = vld [vmem:[%s22 + $0x38] sm:$0xff]
    %v4403 = vsel %vm2106, %v4386, 0
    %v4406 = vsel %vm2106, %v4387, 0
    %v4409 = vsel %vm2106, %v4388, 0
    %v4412 = vsel %vm2106, %v4389, 0
    %v4415 = vsel %vm2106, %v4390, 0
    %v4418 = vsel %vm2106, %v4391, 0
    %v4421 = vsel %vm2106, %v4392, 0
    %v4424 = vsel %vm2106, %v4393, 0
    %4426 = vmatprep.subr.mxu0 0.0
    %4427 = vmatpush1.msra.mxu0 0.0
    %4428 = vmatprep.subr.mxu0 0.0
    %4429 = vmatpush1.msra.mxu0 0.0
    %4430 = vmatprep.subr.mxu0 0.0
    %4431 = vmatpush1.msra.mxu0 0.0
    %4432 = vmatprep.subr.mxu0 0.0
    %4433 = vmatpush1.msra.mxu0 0.0
    %4434 = vmatprep.subr.mxu0 0.0
    %4435 = vmatpush1.msra.mxu0 0.0
    %4436 = vmatprep.subr.mxu0 0.0
    %4437 = vmatpush1.msra.mxu0 0.0
    %4438 = vmatprep.subr.mxu0 0.0
    %4439 = vmatpush1.msra.mxu0 0.0
    %4440 = vmatprep.subr.mxu0 0.0
    %4441 = vmatpush1.msra.mxu0 0.0
    %4442 = vmatprep.subr.mxu0 0.0
    %4443 = vmatpush1.msra.mxu0 0.0
    %4444 = vmatprep.subr.mxu0 0.0
    %4445 = vmatpush1.msra.mxu0 0.0
    %4446 = vmatprep.subr.mxu0 0.0
    %4447 = vmatpush1.msra.mxu0 0.0
    %4448 = vmatprep.subr.mxu0 0.0
    %4449 = vmatpush1.msra.mxu0 0.0
    %4450 = vmatprep.subr.mxu0 0.0
    %4451 = vmatpush1.msra.mxu0 0.0
    %4452 = vmatprep.subr.mxu0 0.0
    %4453 = vmatpush1.msra.mxu0 0.0
    %4454 = vmatprep.subr.mxu0 0.0
    %4455 = vmatpush1.msra.mxu0 %v4385
    %4456 = vmatprep.subr.mxu0 0.0
    %4457 = vmatpush1.msra.mxu0 %v4384
    %4458 = vmatprep.subr.mxu0 0.0
    %4459 = vmatpush2.msra.mxu0 0.0
    %4460 = vmatprep.subr.mxu0 0.0
    %4461 = vmatpush2.msra.mxu0 0.0
    %4462 = vmatprep.subr.mxu0 0.0
    %4463 = vmatpush2.msra.mxu0 0.0
    %4464 = vmatprep.subr.mxu0 0.0
    %4465 = vmatpush2.msra.mxu0 0.0
    %4466 = vmatprep.subr.mxu0 0.0
    %4467 = vmatpush2.msra.mxu0 0.0
    %4468 = vmatprep.subr.mxu0 0.0
    %4469 = vmatpush2.msra.mxu0 0.0
    %4470 = vmatprep.subr.mxu0 0.0
    %4471 = vmatpush2.msra.mxu0 0.0
    %4472 = vmatprep.subr.mxu0 0.0
    %4473 = vmatpush2.msra.mxu0 0.0
    %4474 = vmatprep.subr.mxu0 0.0
    %4475 = vmatpush2.msra.mxu0 0.0
    %4476 = vmatprep.subr.mxu0 0.0
    %4477 = vmatpush2.msra.mxu0 0.0
    %4478 = vmatprep.subr.mxu0 0.0
    %4479 = vmatpush2.msra.mxu0 0.0
    %4480 = vmatprep.subr.mxu0 0.0
    %4481 = vmatpush2.msra.mxu0 0.0
    %4482 = vmatprep.subr.mxu0 0.0
    %4483 = vmatpush2.msra.mxu0 0.0
    %4484 = vmatprep.subr.mxu0 0.0
    %4485 = vmatpush2.msra.mxu0 0.0
    %4486 = vmatprep.subr.mxu0 0.0
    %4487 = vmatpush2.msra.mxu0 0.0
    %4488 = vmatprep.subr.mxu0 0.0
    %4489 = vmatpush2.msra.mxu0 0.0
    %4490 = vmatprep.mubr.f32.mxu0 0.0
    %4491 = vmatmul.mubr.f32.gmra.mxu0 %v4403
    %v4492 = vpop.f32.mrf.mxu0
    %v4493 = vadd.f32 %v4394, %v4492
    %v4494 = vpop.f32.mrf.mxu0
    %4495 = vmatprep.mubr.f32.mxu0 0.0
    %4496 = vmatmul.mubr.f32.gmra.mxu0 %v4406
    %v4497 = vpop.f32.mrf.mxu0
    %v4498 = vadd.f32 %v4395, %v4497
    %v4499 = vpop.f32.mrf.mxu0
    %4500 = vmatprep.mubr.f32.mxu0 0.0
    %4501 = vmatmul.mubr.f32.gmra.mxu0 %v4409
    %v4502 = vpop.f32.mrf.mxu0
    %v4503 = vadd.f32 %v4396, %v4502
    %v4504 = vpop.f32.mrf.mxu0
    %4505 = vmatprep.mubr.f32.mxu0 0.0
    %4506 = vmatmul.mubr.f32.gmra.mxu0 %v4412
    %v4507 = vpop.f32.mrf.mxu0
    %v4508 = vadd.f32 %v4397, %v4507
    %v4509 = vpop.f32.mrf.mxu0
    %4510 = vmatprep.mubr.f32.mxu0 0.0
    %4511 = vmatmul.mubr.f32.gmra.mxu0 %v4415
    %v4512 = vpop.f32.mrf.mxu0
    %v4513 = vadd.f32 %v4398, %v4512
    %v4514 = vpop.f32.mrf.mxu0
    %4515 = vmatprep.mubr.f32.mxu0 0.0
    %4516 = vmatmul.mubr.f32.gmra.mxu0 %v4418
    %v4517 = vpop.f32.mrf.mxu0
    %v4518 = vadd.f32 %v4399, %v4517
    %v4519 = vpop.f32.mrf.mxu0
    %4520 = vmatprep.mubr.f32.mxu0 0.0
    %4521 = vmatmul.mubr.f32.gmra.mxu0 %v4421
    %v4522 = vpop.f32.mrf.mxu0
    %v4523 = vadd.f32 %v4400, %v4522
    %v4524 = vpop.f32.mrf.mxu0
    %4525 = vmatprep.mubr.f32.mxu0 0.0
    %4526 = vmatmul.mubr.f32.gmra.mxu0 %v4424
    %v4527 = vpop.f32.mrf.mxu0
    %v4528 = vadd.f32 %v4401, %v4527
    %v4529 = vpop.f32.mrf.mxu0
    %4530 = vdwg.mxu0
    %v4531 = vld [vmem:[%s1] sm:$0xff]
    %v4532 = vld [vmem:[%s1 + $0x8] sm:$0xff]
    %v4533 = vld [vmem:[%s1 + $0x10] sm:$0xff]
    %v4534 = vld [vmem:[%s1 + $0x18] sm:$0xff]
    %v4535 = vmul.f32 %v4513, 0.5
    %v4536 = vmul.f32 %v4518, 0.5
    %v4537 = vmul.f32 %v4523, 0.5
    %v4538 = vmul.f32 %v4528, 0.5
    %v4539 = vmul.f32 %v4535, 1.442695
    %v4540 = vpow.pop %v4539
    %v4541 = vmul.f32 %v4536, 1.442695
    %v4542 = vpow.pop %v4541
    %v4543 = vmul.f32 %v4537, 1.442695
    %v4544 = vpow.pop %v4543
    %v4545 = vmul.f32 %v4538, 1.442695
    %v4546 = vpow.pop %v4545
    %v4547 = vmul.f32 %v4531, %v4540
    %v4548 = vmul.f32 %v4532, %v4542
    %v4549 = vmul.f32 %v4533, %v4544
    %v4550 = vmul.f32 %v4534, %v4546
    %v4551 = vadd.f32 %v4493, %v4547
    %v4552 = vadd.f32 %v4498, %v4548
    %v4553 = vadd.f32 %v4503, %v4549
    %v4554 = vadd.f32 %v4508, %v4550
    %v4555 = vld [vmem:[%s23] sm:$0xff]
    %v4556 = vld [vmem:[%s23 + $0x8] sm:$0xff]
    %v4557 = vld [vmem:[%s24] sm:$0xff]
    %v4558 = vld [vmem:[%s24 + $0x8] sm:$0xff]
    %vm4559 = vcmask 261120
    %v4561 = vsel %vm4559, %v4555, 0
    %v4564 = vsel %vm4559, %v4556, 0
    %4566 = vmatprep.subr.mxu0 0.0
    %4567 = vmatpush1.msra.mxu0 0.0
    %4568 = vmatprep.subr.mxu0 0.0
    %4569 = vmatpush1.msra.mxu0 0.0
    %4570 = vmatprep.subr.mxu0 0.0
    %4571 = vmatpush1.msra.mxu0 0.0
    %4572 = vmatprep.subr.mxu0 0.0
    %4573 = vmatpush1.msra.mxu0 0.0
    %4574 = vmatprep.subr.mxu0 0.0
    %4575 = vmatpush1.msra.mxu0 0.0
    %4576 = vmatprep.subr.mxu0 0.0
    %4577 = vmatpush1.msra.mxu0 0.0
    %4578 = vmatprep.subr.mxu0 0.0
    %4579 = vmatpush1.msra.mxu0 0.0
    %4580 = vmatprep.subr.mxu0 0.0
    %4581 = vmatpush1.msra.mxu0 0.0
    %4582 = vmatprep.subr.mxu0 0.0
    %4583 = vmatpush1.msra.mxu0 0.0
    %4584 = vmatprep.subr.mxu0 0.0
    %4585 = vmatpush1.msra.mxu0 0.0
    %4586 = vmatprep.subr.mxu0 0.0
    %4587 = vmatpush1.msra.mxu0 0.0
    %4588 = vmatprep.subr.mxu0 0.0
    %4589 = vmatpush1.msra.mxu0 0.0
    %4590 = vmatprep.subr.mxu0 0.0
    %4591 = vmatpush1.msra.mxu0 %v4554
    %4592 = vmatprep.subr.mxu0 0.0
    %4593 = vmatpush1.msra.mxu0 %v4553
    %4594 = vmatprep.subr.mxu0 0.0
    %4595 = vmatpush1.msra.mxu0 %v4552
    %4596 = vmatprep.subr.mxu0 0.0
    %4597 = vmatpush1.msra.mxu0 %v4551
    %4598 = vmatprep.subr.mxu0 0.0
    %4599 = vmatpush2.msra.mxu0 0.0
    %4600 = vmatprep.subr.mxu0 0.0
    %4601 = vmatpush2.msra.mxu0 0.0
    %4602 = vmatprep.subr.mxu0 0.0
    %4603 = vmatpush2.msra.mxu0 0.0
    %4604 = vmatprep.subr.mxu0 0.0
    %4605 = vmatpush2.msra.mxu0 0.0
    %4606 = vmatprep.subr.mxu0 0.0
    %4607 = vmatpush2.msra.mxu0 0.0
    %4608 = vmatprep.subr.mxu0 0.0
    %4609 = vmatpush2.msra.mxu0 0.0
    %4610 = vmatprep.subr.mxu0 0.0
    %4611 = vmatpush2.msra.mxu0 0.0
    %4612 = vmatprep.subr.mxu0 0.0
    %4613 = vmatpush2.msra.mxu0 0.0
    %4614 = vmatprep.subr.mxu0 0.0
    %4615 = vmatpush2.msra.mxu0 0.0
    %4616 = vmatprep.subr.mxu0 0.0
    %4617 = vmatpush2.msra.mxu0 0.0
    %4618 = vmatprep.subr.mxu0 0.0
    %4619 = vmatpush2.msra.mxu0 0.0
    %4620 = vmatprep.subr.mxu0 0.0
    %4621 = vmatpush2.msra.mxu0 0.0
    %4622 = vmatprep.subr.mxu0 0.0
    %4623 = vmatpush2.msra.mxu0 0.0
    %4624 = vmatprep.subr.mxu0 0.0
    %4625 = vmatpush2.msra.mxu0 0.0
    %4626 = vmatprep.subr.mxu0 0.0
    %4627 = vmatpush2.msra.mxu0 0.0
    %4628 = vmatprep.subr.mxu0 0.0
    %4629 = vmatpush2.msra.mxu0 0.0
    %4630 = vmatprep.mubr.f32.mxu0 0.0
    %4631 = vmatmul.mubr.f32.gmra.mxu0 %v4561
    %v4632 = vpop.f32.mrf.mxu0
    %v4633 = vadd.f32 %v4557, %v4632
    %v4634 = vpop.f32.mrf.mxu0
    %4635 = vmatprep.mubr.f32.mxu0 0.0
    %4636 = vmatmul.mubr.f32.gmra.mxu0 %v4564
    %v4637 = vpop.f32.mrf.mxu0
    %v4638 = vadd.f32 %v4558, %v4637
    %v4639 = vpop.f32.mrf.mxu0
    %4640 = vdwg.mxu0
    %v4641 = vld [vmem:[#allocation10] sm:$0x1]
    %v4642 = vunpack.c.l.bf16 %v4641
    %4644 = vset.pattern.permute.xlu0 0
    %4645 = vperm.xlu0 %4644, %v4633
    %v4646 = vpop.permute.xlu0 %4645
    %4649 = vset.pattern.permute.xlu0 0
    %4650 = vperm.xlu0 %4649, %v4638
    %v4651 = vpop.permute.xlu0 %4650
    %v4653 = vlaneseq
    %v4654 = vshrl.u32 %v4653, 7
    %v4655 = vsub.s32 0, %v4654
    %v4656 = vrot.slane %v4642, %v4655
    %v4657 = vmul.f32 %v4646, %v4656
    %v4658 = vmul.f32 %v4651, %v4656
    %4661 = vrot.lane.b32.xlu0 %v4657, 124
    %v4662 = vpop.permute.xlu0 %4661
    %4663 = vrot.lane.b32.xlu0 %v4658, 124
    %v4664 = vpop.permute.xlu0 %4663
    %4667 = vrot.lane.b32.xlu0 %v4657, 120
    %v4668 = vpop.permute.xlu0 %4667
    %4669 = vrot.lane.b32.xlu0 %v4658, 120
    %v4670 = vpop.permute.xlu0 %4669
    %4673 = vrot.lane.b32.xlu0 %v4657, 116
    %v4674 = vpop.permute.xlu0 %4673
    %4675 = vrot.lane.b32.xlu0 %v4658, 116
    %v4676 = vpop.permute.xlu0 %4675
    %4679 = vrot.lane.b32.xlu0 %v4657, 112
    %v4680 = vpop.permute.xlu0 %4679
    %4681 = vrot.lane.b32.xlu0 %v4658, 112
    %v4682 = vpop.permute.xlu0 %4681
    %4685 = vrot.lane.b32.xlu0 %v4657, 108
    %v4686 = vpop.permute.xlu0 %4685
    %4687 = vrot.lane.b32.xlu0 %v4658, 108
    %v4688 = vpop.permute.xlu0 %4687
    %4691 = vrot.lane.b32.xlu0 %v4657, 104
    %v4692 = vpop.permute.xlu0 %4691
    %4693 = vrot.lane.b32.xlu0 %v4658, 104
    %v4694 = vpop.permute.xlu0 %4693
    %4697 = vrot.lane.b32.xlu0 %v4657, 100
    %v4698 = vpop.permute.xlu0 %4697
    %4699 = vrot.lane.b32.xlu0 %v4658, 100
    %v4700 = vpop.permute.xlu0 %4699
    %4703 = vrot.lane.b32.xlu0 %v4657, 96
    %v4704 = vpop.permute.xlu0 %4703
    %4705 = vrot.lane.b32.xlu0 %v4658, 96
    %v4706 = vpop.permute.xlu0 %4705
    %v4709 = vpack.c.bf16 %v4658, %v4657
    %v4710 = vpack.c.bf16 %v4664, %v4662
    %v4711 = vpack.c.bf16 %v4670, %v4668
    %v4712 = vpack.c.bf16 %v4676, %v4674
    %v4713 = vpack.c.bf16 %v4682, %v4680
    %v4714 = vpack.c.bf16 %v4688, %v4686
    %v4715 = vpack.c.bf16 %v4694, %v4692
    %v4716 = vpack.c.bf16 %v4700, %v4698
    %v4717 = vpack.c.bf16 %v4706, %v4704
    %v4718 = vld [vmem:[#allocation9] sm:$0xff]
    %v4719 = vld [vmem:[#allocation9 + $0x8] sm:$0xff]
    %v4720 = vld [vmem:[#allocation9 + $0x10] sm:$0xff]
    %v4721 = vld [vmem:[#allocation9 + $0x18] sm:$0xff]
    %v4722 = vld [vmem:[#allocation9 + $0x20] sm:$0xff]
    %v4723 = vld [vmem:[#allocation9 + $0x28] sm:$0xff]
    %v4724 = vld [vmem:[#allocation9 + $0x30] sm:$0xff]
    %v4725 = vld [vmem:[#allocation9 + $0x38] sm:$0xff]
    %v4734 = vunpack.c.l.b16 %v4718
    %v4735 = vunpack.c.h.b16 %v4718
    %v4736 = vunpack.c.l.b16 %v4719
    %v4737 = vunpack.c.h.b16 %v4719
    %v4738 = vunpack.c.l.b16 %v4720
    %v4739 = vunpack.c.h.b16 %v4720
    %v4740 = vunpack.c.l.b16 %v4721
    %v4741 = vunpack.c.h.b16 %v4721
    %v4742 = vunpack.c.l.b16 %v4722
    %v4743 = vunpack.c.h.b16 %v4722
    %v4744 = vunpack.c.l.b16 %v4723
    %v4745 = vunpack.c.h.b16 %v4723
    %v4746 = vunpack.c.l.b16 %v4724
    %v4747 = vunpack.c.h.b16 %v4724
    %v4748 = vunpack.c.l.b16 %v4725
    %v4749 = vunpack.c.h.b16 %v4725
    %v4750 = vpack.c.b16 %v4736, %v4734
    %v4751 = vpack.c.b16 %v4737, %v4735
    %v4752 = vpack.c.b16 %v4740, %v4738
    %v4753 = vpack.c.b16 %v4741, %v4739
    %v4754 = vpack.c.b16 %v4744, %v4742
    %v4755 = vpack.c.b16 %v4745, %v4743
    %v4756 = vpack.c.b16 %v4748, %v4746
    %v4757 = vpack.c.b16 %v4749, %v4747
    %v4763 = vsel %vm2106, %v4751, 0
    %v4766 = vsel %vm2106, %v4753, 0
    %v4769 = vsel %vm2106, %v4755, 0
    %v4772 = vsel %vm2106, %v4757, 0
    %4774 = vmatprep.subr.bf16.mxu0 0
    %4775 = vmatpush1.bf16.msra.mxu0 %v4716
    %4776 = vmatprep.subr.bf16.mxu0 0
    %4777 = vmatpush1.bf16.msra.mxu0 %v4715
    %4778 = vmatprep.subr.bf16.mxu0 0
    %4779 = vmatpush1.bf16.msra.mxu0 %v4714
    %4780 = vmatprep.subr.bf16.mxu0 0
    %4781 = vmatpush1.bf16.msra.mxu0 %v4713
    %4782 = vmatprep.subr.bf16.mxu0 0
    %4783 = vmatpush1.bf16.msra.mxu0 %v4712
    %4784 = vmatprep.subr.bf16.mxu0 0
    %4785 = vmatpush1.bf16.msra.mxu0 %v4711
    %4786 = vmatprep.subr.bf16.mxu0 0
    %4787 = vmatpush1.bf16.msra.mxu0 %v4710
    %4788 = vmatprep.subr.bf16.mxu0 0
    %4789 = vmatpush1.bf16.msra.mxu0 %v4709
    %4790 = vmatprep.subr.bf16.mxu0 0
    %4791 = vmatpush2.bf16.msra.mxu0 0
    %4792 = vmatprep.subr.bf16.mxu0 0
    %4793 = vmatpush2.bf16.msra.mxu0 0
    %4794 = vmatprep.subr.bf16.mxu0 0
    %4795 = vmatpush2.bf16.msra.mxu0 0
    %4796 = vmatprep.subr.bf16.mxu0 0
    %4797 = vmatpush2.bf16.msra.mxu0 0
    %4798 = vmatprep.subr.bf16.mxu0 0
    %4799 = vmatpush2.bf16.msra.mxu0 0
    %4800 = vmatprep.subr.bf16.mxu0 0
    %4801 = vmatpush2.bf16.msra.mxu0 0
    %4802 = vmatprep.subr.bf16.mxu0 0
    %4803 = vmatpush2.bf16.msra.mxu0 0
    %4804 = vmatprep.subr.bf16.mxu0 0
    %4805 = vmatpush2.bf16.msra.mxu0 %v4717
    %4806 = vmatprep.mubr.bf16.mxu0 %v4763
    %4807 = vmatmul.mubr.bf16.gmra.mxu0 %v4750
    %v4808 = vpop.f32.mrf.mxu0
    %v4809 = vadd.f32 0.0, %v4808
    %v4810 = vpop.f32.mrf.mxu0
    %v4811 = vpop.f32.mrf.mxu0
    %v4812 = vadd.f32 0.0, %v4811
    %v4813 = vpop.f32.mrf.mxu0
    %4814 = vmatprep.mubr.bf16.mxu0 %v4766
    %4815 = vmatmul.mubr.bf16.gmra.mxu0 %v4752
    %v4816 = vpop.f32.mrf.mxu0
    %v4817 = vadd.f32 0.0, %v4816
    %v4818 = vpop.f32.mrf.mxu0
    %v4819 = vpop.f32.mrf.mxu0
    %v4820 = vadd.f32 0.0, %v4819
    %v4821 = vpop.f32.mrf.mxu0
    %4822 = vmatprep.mubr.bf16.mxu0 %v4769
    %4823 = vmatmul.mubr.bf16.gmra.mxu0 %v4754
    %v4824 = vpop.f32.mrf.mxu0
    %v4825 = vadd.f32 0.0, %v4824
    %v4826 = vpop.f32.mrf.mxu0
    %v4827 = vpop.f32.mrf.mxu0
    %v4828 = vadd.f32 0.0, %v4827
    %v4829 = vpop.f32.mrf.mxu0
    %4830 = vmatprep.mubr.bf16.mxu0 %v4772
    %4831 = vmatmul.mubr.bf16.gmra.mxu0 %v4756
    %v4832 = vpop.f32.mrf.mxu0
    %v4833 = vadd.f32 0.0, %v4832
    %v4834 = vpop.f32.mrf.mxu0
    %v4835 = vpop.f32.mrf.mxu0
    %v4836 = vadd.f32 0.0, %v4835
    %v4837 = vpop.f32.mrf.mxu0
    %4838 = vdwg.mxu0
    %v4839 = vld [vmem:[%s20 + $0x88] sm:$0xff]
    %v4840 = vld [vmem:[%s20 + $0x90] sm:$0xff]
    %v4841 = vld [vmem:[%s20 + $0x98] sm:$0xff]
    %v4842 = vld [vmem:[%s20 + $0xa0] sm:$0xff]
    %v4843 = vsel %vm3669, %v4809, 0.0
    %4844 = vadd.xlane.f32.xlu0 %v4843
    %v4845 = vpop.xlane.xlu0 %4844
    %v4846 = vsel %vm3669, %v4812, 0.0
    %4847 = vadd.xlane.f32.xlu0 %v4846
    %v4848 = vpop.xlane.xlu0 %4847
    %v4849 = vsel %vm3669, %v4817, 0.0
    %4850 = vadd.xlane.f32.xlu0 %v4849
    %v4851 = vpop.xlane.xlu0 %4850
    %v4852 = vsel %vm3669, %v4820, 0.0
    %4853 = vadd.xlane.f32.xlu0 %v4852
    %v4854 = vpop.xlane.xlu0 %4853
    %v4855 = vsel %vm3669, %v4825, 0.0
    %4856 = vadd.xlane.f32.xlu0 %v4855
    %v4857 = vpop.xlane.xlu0 %4856
    %v4858 = vsel %vm3669, %v4828, 0.0
    %4859 = vadd.xlane.f32.xlu0 %v4858
    %v4860 = vpop.xlane.xlu0 %4859
    %v4861 = vsel %vm3669, %v4833, 0.0
    %4862 = vadd.xlane.f32.xlu0 %v4861
    %v4863 = vpop.xlane.xlu0 %4862
    %v4864 = vsel %vm3669, %v4836, 0.0
    %4865 = vadd.xlane.f32.xlu0 %v4864
    %v4866 = vpop.xlane.xlu0 %4865
    %v4867 = vmul.f32 %v4809, %v4809
    %v4868 = vmul.f32 %v4812, %v4812
    %v4869 = vmul.f32 %v4817, %v4817
    %v4870 = vmul.f32 %v4820, %v4820
    %v4871 = vmul.f32 %v4825, %v4825
    %v4872 = vmul.f32 %v4828, %v4828
    %v4873 = vmul.f32 %v4833, %v4833
    %v4874 = vmul.f32 %v4836, %v4836
    %v4875 = vsel %vm3669, %v4867, 0.0
    %4876 = vadd.xlane.f32.xlu0 %v4875
    %v4877 = vpop.xlane.xlu0 %4876
    %v4878 = vsel %vm3669, %v4868, 0.0
    %4879 = vadd.xlane.f32.xlu0 %v4878
    %v4880 = vpop.xlane.xlu0 %4879
    %v4881 = vsel %vm3669, %v4869, 0.0
    %4882 = vadd.xlane.f32.xlu0 %v4881
    %v4883 = vpop.xlane.xlu0 %4882
    %v4884 = vsel %vm3669, %v4870, 0.0
    %4885 = vadd.xlane.f32.xlu0 %v4884
    %v4886 = vpop.xlane.xlu0 %4885
    %v4887 = vsel %vm3669, %v4871, 0.0
    %4888 = vadd.xlane.f32.xlu0 %v4887
    %v4889 = vpop.xlane.xlu0 %4888
    %v4890 = vsel %vm3669, %v4872, 0.0
    %4891 = vadd.xlane.f32.xlu0 %v4890
    %v4892 = vpop.xlane.xlu0 %4891
    %v4893 = vsel %vm3669, %v4873, 0.0
    %4894 = vadd.xlane.f32.xlu0 %v4893
    %v4895 = vpop.xlane.xlu0 %4894
    %v4896 = vsel %vm3669, %v4874, 0.0
    %4897 = vadd.xlane.f32.xlu0 %v4896
    %v4898 = vpop.xlane.xlu0 %4897
    %v4899 = vadd.f32 %v4845, %v4857
    %v4900 = vadd.f32 %v4848, %v4860
    %v4901 = vadd.f32 %v4851, %v4863
    %v4902 = vadd.f32 %v4854, %v4866
    %v4903 = vadd.f32 %v4877, %v4889
    %v4904 = vadd.f32 %v4880, %v4892
    %v4905 = vadd.f32 %v4883, %v4895
    %v4906 = vadd.f32 %v4886, %v4898
    %v4907 = vmul.f32 %v4899, 0.125
    %v4908 = vmul.f32 %v4900, 0.125
    %v4909 = vmul.f32 %v4901, 0.125
    %v4910 = vmul.f32 %v4902, 0.125
    %v4911 = vmul.f32 %v4903, 0.125
    %v4912 = vmul.f32 %v4904, 0.125
    %v4913 = vmul.f32 %v4905, 0.125
    %v4914 = vmul.f32 %v4906, 0.125
    %v4915 = vmul.f32 %v4907, %v4907
    %v4916 = vmul.f32 %v4908, %v4908
    %v4917 = vmul.f32 %v4909, %v4909
    %v4918 = vmul.f32 %v4910, %v4910
    %v4919 = vsub.f32 %v4911, %v4915
    %v4920 = vsub.f32 %v4912, %v4916
    %v4921 = vsub.f32 %v4913, %v4917
    %v4922 = vsub.f32 %v4914, %v4918
    %v4923 = vmax.f32 %v4919, 0.0
    %v4924 = vmax.f32 %v4920, 0.0
    %v4925 = vmax.f32 %v4921, 0.0
    %v4926 = vmax.f32 %v4922, 0.0
    %v4927 = vadd.f32 %v4923, 1e-05
    %v4928 = vadd.f32 %v4924, 1e-05
    %v4929 = vadd.f32 %v4925, 1e-05
    %v4930 = vadd.f32 %v4926, 1e-05
    %v4931 = vrsqrt.pop %v4927
    %v4932 = vrsqrt.pop %v4928
    %v4933 = vrsqrt.pop %v4929
    %v4934 = vrsqrt.pop %v4930
    %v4935 = vmul.f32 %v4839, %v4931
    %v4936 = vmul.f32 %v4840, %v4932
    %v4937 = vmul.f32 %v4841, %v4933
    %v4938 = vmul.f32 %v4842, %v4934
    %v4939 = vmul.f32 %v4907, %v4935
    %v4940 = vmul.f32 %v4908, %v4936
    %v4941 = vmul.f32 %v4909, %v4937
    %v4942 = vmul.f32 %v4910, %v4938
    %4947 = vrot.lane.b32.xlu0 %v4939, 1
    %v4948 = vpop.permute.xlu0 %4947
    %4949 = vrot.lane.b32.xlu0 %v4940, 1
    %v4950 = vpop.permute.xlu0 %4949
    %4951 = vrot.lane.b32.xlu0 %v4941, 1
    %v4952 = vpop.permute.xlu0 %4951
    %4953 = vrot.lane.b32.xlu0 %v4942, 1
    %v4954 = vpop.permute.xlu0 %4953
    %v4959 = vsub.f32 %v4839, %v4948
    %v4960 = vsub.f32 %v4840, %v4950
    %v4961 = vsub.f32 %v4841, %v4952
    %v4962 = vsub.f32 %v4842, %v4954
    %4964 = vset.pattern.permute.xlu0 0
    %4965 = vperm.xlu0 %4964, %v4935
    %v4966 = vpop.permute.xlu0 %4965
    %4969 = vset.pattern.permute.xlu0 0
    %4970 = vperm.xlu0 %4969, %v4936
    %v4971 = vpop.permute.xlu0 %4970
    %4974 = vset.pattern.permute.xlu0 0
    %4975 = vperm.xlu0 %4974, %v4937
    %v4976 = vpop.permute.xlu0 %4975
    %4979 = vset.pattern.permute.xlu0 0
    %4980 = vperm.xlu0 %4979, %v4938
    %v4981 = vpop.permute.xlu0 %4980
    %v4983 = vmul.f32 %v4809, %v4966
    %v4984 = vmul.f32 %v4812, %v4971
    %v4985 = vmul.f32 %v4817, %v4976
    %v4986 = vmul.f32 %v4820, %v4981
    %v4987 = vmul.f32 %v4825, %v4966
    %v4988 = vmul.f32 %v4828, %v4971
    %v4989 = vmul.f32 %v4833, %v4976
    %v4990 = vmul.f32 %v4836, %v4981
    %4992 = vset.pattern.permute.xlu0 1
    %4993 = vperm.xlu0 %4992, %v4959
    %v4994 = vpop.permute.xlu0 %4993
    %4997 = vset.pattern.permute.xlu0 1
    %4998 = vperm.xlu0 %4997, %v4960
    %v4999 = vpop.permute.xlu0 %4998
    %5002 = vset.pattern.permute.xlu0 1
    %5003 = vperm.xlu0 %5002, %v4961
    %v5004 = vpop.permute.xlu0 %5003
    %5007 = vset.pattern.permute.xlu0 1
    %5008 = vperm.xlu0 %5007, %v4962
    %v5009 = vpop.permute.xlu0 %5008
    %v5011 = vadd.f32 %v4983, %v4994
    %v5012 = vadd.f32 %v4984, %v4999
    %v5013 = vadd.f32 %v4985, %v5004
    %v5014 = vadd.f32 %v4986, %v5009
    %v5015 = vadd.f32 %v4987, %v4994
    %v5016 = vadd.f32 %v4988, %v4999
    %v5017 = vadd.f32 %v4989, %v5004
    %v5018 = vadd.f32 %v4990, %v5009
    %vm5019 = vcmp.ge.f32.partialorder %v5011, 0.0
    %vm5020 = vcmp.ge.f32.partialorder %v5012, 0.0
    %vm5021 = vcmp.ge.f32.partialorder %v5013, 0.0
    %vm5022 = vcmp.ge.f32.partialorder %v5014, 0.0
    %vm5023 = vcmp.ge.f32.partialorder %v5015, 0.0
    %vm5024 = vcmp.ge.f32.partialorder %v5016, 0.0
    %vm5025 = vcmp.ge.f32.partialorder %v5017, 0.0
    %vm5026 = vcmp.ge.f32.partialorder %v5018, 0.0
    %v5027 = vmul.f32 %v5011, 0.01
    %v5028 = vmul.f32 %v5012, 0.01
    %v5029 = vmul.f32 %v5013, 0.01
    %v5030 = vmul.f32 %v5014, 0.01
    %v5031 = vmul.f32 %v5015, 0.01
    %v5032 = vmul.f32 %v5016, 0.01
    %v5033 = vmul.f32 %v5017, 0.01
    %v5034 = vmul.f32 %v5018, 0.01
    %v5035 = vsel %vm5019, %v5011, %v5027
    %v5036 = vsel %vm5020, %v5012, %v5028
    %v5037 = vsel %vm5021, %v5013, %v5029
    %v5038 = vsel %vm5022, %v5014, %v5030
    %v5039 = vsel %vm5023, %v5015, %v5031
    %v5040 = vsel %vm5024, %v5016, %v5032
    %v5041 = vsel %vm5025, %v5017, %v5033
    %v5042 = vsel %vm5026, %v5018, %v5034
    %v5043 = vpack.c.bf16 %v5036, %v5035
    %v5044 = vpack.c.bf16 %v5038, %v5037
    %v5045 = vpack.c.bf16 %v5040, %v5039
    %v5046 = vpack.c.bf16 %v5042, %v5041
    %v5047 = vld [vmem:[#allocation12] sm:$0xf]
    %v5050 = vunpack.c.l.s4 1983009808
    %v5051 = vunpack.c.0.s8 %v5050
    %v5052 = vlaneseq
    %v5053 = vshrl.u32 %v5052, 7
    %v5054 = vsub.s32 %v5051, %v5053
    %v5055 = vrot.slane %v5047, %v5054
    %v5056 = vcombine.high %v5055, %v5055
    %v5058 = vsel %vm3669, %v5043, 0
    %v5061 = vsel %vm3669, %v5044, 0
    %v5064 = vsel %vm3669, %v5045, 0
    %v5067 = vsel %vm3669, %v5046, 0
    %v5070 = vsel %vm3887, %v5055, 0
    %v5073 = vsel %vm3887, %v5056, 0
    %5075 = vmatprep.subr.bf16.mxu0 0
    %5076 = vmatpush1.bf16.msra.mxu0 0
    %5077 = vmatprep.subr.bf16.mxu0 0
    %5078 = vmatpush1.bf16.msra.mxu0 0
    %5079 = vmatprep.subr.bf16.mxu0 0
    %5080 = vmatpush1.bf16.msra.mxu0 0
    %5081 = vmatprep.subr.bf16.mxu0 0
    %5082 = vmatpush1.bf16.msra.mxu0 0
    %5083 = vmatprep.subr.bf16.mxu0 0
    %5084 = vmatpush1.bf16.msra.mxu0 0
    %5085 = vmatprep.subr.bf16.mxu0 0
    %5086 = vmatpush1.bf16.msra.mxu0 0
    %5087 = vmatprep.subr.bf16.mxu0 0
    %5088 = vmatpush1.bf16.msra.mxu0 0
    %5089 = vmatprep.subr.bf16.mxu0 %v5073
    %5090 = vmatpush1.bf16.msra.mxu0 %v5070
    %5091 = vmatprep.subr.bf16.mxu0 0
    %5092 = vmatpush2.bf16.msra.mxu0 0
    %5093 = vmatprep.subr.bf16.mxu0 0
    %5094 = vmatpush2.bf16.msra.mxu0 0
    %5095 = vmatprep.subr.bf16.mxu0 0
    %5096 = vmatpush2.bf16.msra.mxu0 0
    %5097 = vmatprep.subr.bf16.mxu0 0
    %5098 = vmatpush2.bf16.msra.mxu0 0
    %5099 = vmatprep.subr.bf16.mxu0 0
    %5100 = vmatpush2.bf16.msra.mxu0 0
    %5101 = vmatprep.subr.bf16.mxu0 0
    %5102 = vmatpush2.bf16.msra.mxu0 0
    %5103 = vmatprep.subr.bf16.mxu0 0
    %5104 = vmatpush2.bf16.msra.mxu0 0
    %5105 = vmatprep.subr.bf16.mxu0 0
    %5106 = vmatpush2.bf16.msra.mxu0 0
    %5107 = vmatprep.mubr.bf16.mxu0 0
    %5108 = vmatmul.mubr.bf16.gmra.mxu0 %v5058
    %v5109 = vpop.f32.mrf.mxu0
    %v5110 = vadd.f32 0.0, %v5109
    %v5111 = vpop.f32.mrf.mxu0
    %v5112 = vadd.f32 0.0, %v5111
    %v5113 = vpop.f32.mrf.mxu0
    %v5114 = vadd.f32 0.0, %v5113
    %v5115 = vpop.f32.mrf.mxu0
    %v5116 = vadd.f32 0.0, %v5115
    %5117 = vmatprep.mubr.bf16.mxu0 0
    %5118 = vmatmul.mubr.bf16.gmra.mxu0 %v5061
    %v5119 = vpop.f32.mrf.mxu0
    %v5120 = vadd.f32 0.0, %v5119
    %v5121 = vpop.f32.mrf.mxu0
    %v5122 = vadd.f32 0.0, %v5121
    %v5123 = vpop.f32.mrf.mxu0
    %v5124 = vadd.f32 0.0, %v5123
    %v5125 = vpop.f32.mrf.mxu0
    %v5126 = vadd.f32 0.0, %v5125
    %5127 = vmatprep.mubr.bf16.mxu0 0
    %5128 = vmatmul.mubr.bf16.gmra.mxu0 %v5064
    %v5129 = vpop.f32.mrf.mxu0
    %v5130 = vadd.f32 0.0, %v5129
    %v5131 = vpop.f32.mrf.mxu0
    %v5132 = vadd.f32 0.0, %v5131
    %v5133 = vpop.f32.mrf.mxu0
    %v5134 = vadd.f32 0.0, %v5133
    %v5135 = vpop.f32.mrf.mxu0
    %v5136 = vadd.f32 0.0, %v5135
    %5137 = vmatprep.mubr.bf16.mxu0 0
    %5138 = vmatmul.mubr.bf16.gmra.mxu0 %v5067
    %v5139 = vpop.f32.mrf.mxu0
    %v5140 = vadd.f32 0.0, %v5139
    %v5141 = vpop.f32.mrf.mxu0
    %v5142 = vadd.f32 0.0, %v5141
    %v5143 = vpop.f32.mrf.mxu0
    %v5144 = vadd.f32 0.0, %v5143
    %v5145 = vpop.f32.mrf.mxu0
    %v5146 = vadd.f32 0.0, %v5145
    %5147 = vdwg.mxu0
    %5156 = vrot.lane.b32.xlu0 %v5110, 112
    %v5157 = vpop.permute.xlu0 %5156
    %5158 = vrot.lane.b32.xlu0 %v5114, 112
    %v5159 = vpop.permute.xlu0 %5158
    %5160 = vrot.lane.b32.xlu0 %v5120, 112
    %v5161 = vpop.permute.xlu0 %5160
    %5162 = vrot.lane.b32.xlu0 %v5124, 112
    %v5163 = vpop.permute.xlu0 %5162
    %5164 = vrot.lane.b32.xlu0 %v5130, 112
    %v5165 = vpop.permute.xlu0 %5164
    %5166 = vrot.lane.b32.xlu0 %v5134, 112
    %v5167 = vpop.permute.xlu0 %5166
    %5168 = vrot.lane.b32.xlu0 %v5140, 112
    %v5169 = vpop.permute.xlu0 %5168
    %5170 = vrot.lane.b32.xlu0 %v5144, 112
    %v5171 = vpop.permute.xlu0 %5170
    %5180 = vrot.lane.b32.xlu0 %v5110, 96
    %v5181 = vpop.permute.xlu0 %5180
    %5182 = vrot.lane.b32.xlu0 %v5114, 96
    %v5183 = vpop.permute.xlu0 %5182
    %5184 = vrot.lane.b32.xlu0 %v5120, 96
    %v5185 = vpop.permute.xlu0 %5184
    %5186 = vrot.lane.b32.xlu0 %v5124, 96
    %v5187 = vpop.permute.xlu0 %5186
    %5188 = vrot.lane.b32.xlu0 %v5130, 96
    %v5189 = vpop.permute.xlu0 %5188
    %5190 = vrot.lane.b32.xlu0 %v5134, 96
    %v5191 = vpop.permute.xlu0 %5190
    %5192 = vrot.lane.b32.xlu0 %v5140, 96
    %v5193 = vpop.permute.xlu0 %5192
    %5194 = vrot.lane.b32.xlu0 %v5144, 96
    %v5195 = vpop.permute.xlu0 %5194
    %5204 = vrot.lane.b32.xlu0 %v5110, 80
    %v5205 = vpop.permute.xlu0 %5204
    %5206 = vrot.lane.b32.xlu0 %v5114, 80
    %v5207 = vpop.permute.xlu0 %5206
    %5208 = vrot.lane.b32.xlu0 %v5120, 80
    %v5209 = vpop.permute.xlu0 %5208
    %5210 = vrot.lane.b32.xlu0 %v5124, 80
    %v5211 = vpop.permute.xlu0 %5210
    %5212 = vrot.lane.b32.xlu0 %v5130, 80
    %v5213 = vpop.permute.xlu0 %5212
    %5214 = vrot.lane.b32.xlu0 %v5134, 80
    %v5215 = vpop.permute.xlu0 %5214
    %5216 = vrot.lane.b32.xlu0 %v5140, 80
    %v5217 = vpop.permute.xlu0 %5216
    %5218 = vrot.lane.b32.xlu0 %v5144, 80
    %v5219 = vpop.permute.xlu0 %5218
    %5228 = vrot.lane.b32.xlu0 %v5110, 64
    %v5229 = vpop.permute.xlu0 %5228
    %5230 = vrot.lane.b32.xlu0 %v5114, 64
    %v5231 = vpop.permute.xlu0 %5230
    %5232 = vrot.lane.b32.xlu0 %v5120, 64
    %v5233 = vpop.permute.xlu0 %5232
    %5234 = vrot.lane.b32.xlu0 %v5124, 64
    %v5235 = vpop.permute.xlu0 %5234
    %5236 = vrot.lane.b32.xlu0 %v5130, 64
    %v5237 = vpop.permute.xlu0 %5236
    %5238 = vrot.lane.b32.xlu0 %v5134, 64
    %v5239 = vpop.permute.xlu0 %5238
    %5240 = vrot.lane.b32.xlu0 %v5140, 64
    %v5241 = vpop.permute.xlu0 %5240
    %5242 = vrot.lane.b32.xlu0 %v5144, 64
    %v5243 = vpop.permute.xlu0 %5242
    %5252 = vrot.lane.b32.xlu0 %v5110, 48
    %v5253 = vpop.permute.xlu0 %5252
    %5254 = vrot.lane.b32.xlu0 %v5114, 48
    %v5255 = vpop.permute.xlu0 %5254
    %5256 = vrot.lane.b32.xlu0 %v5120, 48
    %v5257 = vpop.permute.xlu0 %5256
    %5258 = vrot.lane.b32.xlu0 %v5124, 48
    %v5259 = vpop.permute.xlu0 %5258
    %5260 = vrot.lane.b32.xlu0 %v5130, 48
    %v5261 = vpop.permute.xlu0 %5260
    %5262 = vrot.lane.b32.xlu0 %v5134, 48
    %v5263 = vpop.permute.xlu0 %5262
    %5264 = vrot.lane.b32.xlu0 %v5140, 48
    %v5265 = vpop.permute.xlu0 %5264
    %5266 = vrot.lane.b32.xlu0 %v5144, 48
    %v5267 = vpop.permute.xlu0 %5266
    %5276 = vrot.lane.b32.xlu0 %v5110, 32
    %v5277 = vpop.permute.xlu0 %5276
    %5278 = vrot.lane.b32.xlu0 %v5114, 32
    %v5279 = vpop.permute.xlu0 %5278
    %5280 = vrot.lane.b32.xlu0 %v5120, 32
    %v5281 = vpop.permute.xlu0 %5280
    %5282 = vrot.lane.b32.xlu0 %v5124, 32
    %v5283 = vpop.permute.xlu0 %5282
    %5284 = vrot.lane.b32.xlu0 %v5130, 32
    %v5285 = vpop.permute.xlu0 %5284
    %5286 = vrot.lane.b32.xlu0 %v5134, 32
    %v5287 = vpop.permute.xlu0 %5286
    %5288 = vrot.lane.b32.xlu0 %v5140, 32
    %v5289 = vpop.permute.xlu0 %5288
    %5290 = vrot.lane.b32.xlu0 %v5144, 32
    %v5291 = vpop.permute.xlu0 %5290
    %5300 = vrot.lane.b32.xlu0 %v5110, 16
    %v5301 = vpop.permute.xlu0 %5300
    %5302 = vrot.lane.b32.xlu0 %v5114, 16
    %v5303 = vpop.permute.xlu0 %5302
    %5304 = vrot.lane.b32.xlu0 %v5120, 16
    %v5305 = vpop.permute.xlu0 %5304
    %5306 = vrot.lane.b32.xlu0 %v5124, 16
    %v5307 = vpop.permute.xlu0 %5306
    %5308 = vrot.lane.b32.xlu0 %v5130, 16
    %v5309 = vpop.permute.xlu0 %5308
    %5310 = vrot.lane.b32.xlu0 %v5134, 16
    %v5311 = vpop.permute.xlu0 %5310
    %5312 = vrot.lane.b32.xlu0 %v5140, 16
    %v5313 = vpop.permute.xlu0 %5312
    %5314 = vrot.lane.b32.xlu0 %v5144, 16
    %v5315 = vpop.permute.xlu0 %5314
    %v5324 = vpack.c.bf16 %v5114, %v5110
    %v5325 = vpack.c.bf16 %v5124, %v5120
    %v5326 = vpack.c.bf16 %v5134, %v5130
    %v5327 = vpack.c.bf16 %v5144, %v5140
    %v5328 = vpack.c.bf16 %v5159, %v5157
    %v5329 = vpack.c.bf16 %v5163, %v5161
    %v5330 = vpack.c.bf16 %v5167, %v5165
    %v5331 = vpack.c.bf16 %v5171, %v5169
    %v5332 = vpack.c.bf16 %v5183, %v5181
    %v5333 = vpack.c.bf16 %v5187, %v5185
    %v5334 = vpack.c.bf16 %v5191, %v5189
    %v5335 = vpack.c.bf16 %v5195, %v5193
    %v5336 = vpack.c.bf16 %v5207, %v5205
    %v5337 = vpack.c.bf16 %v5211, %v5209
    %v5338 = vpack.c.bf16 %v5215, %v5213
    %v5339 = vpack.c.bf16 %v5219, %v5217
    %v5340 = vpack.c.bf16 %v5231, %v5229
    %v5341 = vpack.c.bf16 %v5235, %v5233
    %v5342 = vpack.c.bf16 %v5239, %v5237
    %v5343 = vpack.c.bf16 %v5243, %v5241
    %v5344 = vpack.c.bf16 %v5255, %v5253
    %v5345 = vpack.c.bf16 %v5259, %v5257
    %v5346 = vpack.c.bf16 %v5263, %v5261
    %v5347 = vpack.c.bf16 %v5267, %v5265
    %v5348 = vpack.c.bf16 %v5279, %v5277
    %v5349 = vpack.c.bf16 %v5283, %v5281
    %v5350 = vpack.c.bf16 %v5287, %v5285
    %v5351 = vpack.c.bf16 %v5291, %v5289
    %v5352 = vpack.c.bf16 %v5303, %v5301
    %v5353 = vpack.c.bf16 %v5307, %v5305
    %v5354 = vpack.c.bf16 %v5311, %v5309
    %v5355 = vpack.c.bf16 %v5315, %v5313
    %v5356 = vpack.c.bf16 %v5116, %v5112
    %v5357 = vpack.c.bf16 %v5126, %v5122
    %v5358 = vpack.c.bf16 %v5136, %v5132
    %v5359 = vpack.c.bf16 %v5146, %v5142
    %v5360 = vld [vmem:[%s12] sm:$0xff]
    %v5361 = vld [vmem:[%s12 + $0x8] sm:$0xff]
    %v5362 = vld [vmem:[%s12 + $0x10] sm:$0xf]
    %v5363 = vld [vmem:[%s12 + $0x14] sm:$0xff]
    %v5364 = vld [vmem:[%s12 + $0x1c] sm:$0xff]
    %v5365 = vld [vmem:[%s12 + $0x24] sm:$0xf]
    %v5366 = vld [vmem:[%s12 + $0x28] sm:$0xff]
    %v5367 = vld [vmem:[%s12 + $0x30] sm:$0xff]
    %v5368 = vld [vmem:[%s12 + $0x38] sm:$0xf]
    %v5369 = vld [vmem:[%s12 + $0x3c] sm:$0xff]
    %v5370 = vld [vmem:[%s12 + $0x44] sm:$0xff]
    %v5371 = vld [vmem:[%s12 + $0x4c] sm:$0xf]
    %v5372 = vld [vmem:[%s12 + $0x50] sm:$0xff]
    %v5373 = vld [vmem:[%s12 + $0x58] sm:$0xff]
    %v5374 = vld [vmem:[%s12 + $0x60] sm:$0xf]
    %v5375 = vld [vmem:[%s12 + $0x64] sm:$0xff]
    %v5376 = vld [vmem:[%s12 + $0x6c] sm:$0xff]
    %v5377 = vld [vmem:[%s12 + $0x74] sm:$0xf]
    %v5378 = vld [vmem:[%s12 + $0x78] sm:$0xff]
    %v5379 = vld [vmem:[%s12 + $0x80] sm:$0xff]
    %v5380 = vld [vmem:[%s12 + $0x88] sm:$0xf]
    %v5381 = vld [vmem:[%s12 + $0x8c] sm:$0xff]
    %v5382 = vld [vmem:[%s12 + $0x94] sm:$0xff]
    %v5383 = vld [vmem:[%s12 + $0x9c] sm:$0xf]
    %v5384 = vld [vmem:[%s12 + $0xa0] sm:$0xff]
    %v5385 = vld [vmem:[%s12 + $0xa8] sm:$0xff]
    %v5386 = vld [vmem:[%s12 + $0xb0] sm:$0xf]
    %v5387 = vld [vmem:[%s12 + $0xb4] sm:$0xff]
    %v5388 = vld [vmem:[%s12 + $0xbc] sm:$0xff]
    %v5389 = vld [vmem:[%s12 + $0xc4] sm:$0xf]
    %v5390 = vld [vmem:[%s12 + $0xc8] sm:$0xff]
    %v5391 = vld [vmem:[%s12 + $0xd0] sm:$0xff]
    %v5392 = vld [vmem:[%s12 + $0xd8] sm:$0xf]
    %v5393 = vld [vmem:[%s12 + $0xdc] sm:$0xff]
    %v5394 = vld [vmem:[%s12 + $0xe4] sm:$0xff]
    %v5395 = vld [vmem:[%s12 + $0xec] sm:$0xf]
    %v5396 = vld [vmem:[%s12 + $0xf0] sm:$0xff]
    %v5397 = vld [vmem:[%s12 + $0xf8] sm:$0xff]
    %v5398 = vld [vmem:[%s12 + $0x100] sm:$0xf]
    %v5399 = vld [vmem:[%s12 + $0x104] sm:$0xff]
    %v5400 = vld [vmem:[%s12 + $0x10c] sm:$0xff]
    %v5401 = vld [vmem:[%s12 + $0x114] sm:$0xf]
    %v5402 = vld [vmem:[%s12 + $0x118] sm:$0xff]
    %v5403 = vld [vmem:[%s12 + $0x120] sm:$0xff]
    %v5404 = vld [vmem:[%s12 + $0x128] sm:$0xf]
    %v5405 = vld [vmem:[%s12 + $0x12c] sm:$0xff]
    %v5406 = vld [vmem:[%s12 + $0x134] sm:$0xff]
    %v5407 = vld [vmem:[%s12 + $0x13c] sm:$0xf]
    %v5456 = vunpack.c.l.b16 %v5360
    %v5457 = vunpack.c.h.b16 %v5360
    %v5458 = vunpack.c.l.b16 %v5361
    %v5459 = vunpack.c.h.b16 %v5361
    %v5460 = vunpack.c.l.b16 %v5362
    %v5461 = vunpack.c.l.b16 %v5363
    %v5462 = vunpack.c.h.b16 %v5363
    %v5463 = vunpack.c.l.b16 %v5364
    %v5464 = vunpack.c.h.b16 %v5364
    %v5465 = vunpack.c.l.b16 %v5365
    %v5466 = vunpack.c.l.b16 %v5366
    %v5467 = vunpack.c.h.b16 %v5366
    %v5468 = vunpack.c.l.b16 %v5367
    %v5469 = vunpack.c.h.b16 %v5367
    %v5470 = vunpack.c.l.b16 %v5368
    %v5471 = vunpack.c.l.b16 %v5369
    %v5472 = vunpack.c.h.b16 %v5369
    %v5473 = vunpack.c.l.b16 %v5370
    %v5474 = vunpack.c.h.b16 %v5370
    %v5475 = vunpack.c.l.b16 %v5371
    %v5476 = vunpack.c.l.b16 %v5372
    %v5477 = vunpack.c.h.b16 %v5372
    %v5478 = vunpack.c.l.b16 %v5373
    %v5479 = vunpack.c.h.b16 %v5373
    %v5480 = vunpack.c.l.b16 %v5374
    %v5481 = vunpack.c.l.b16 %v5375
    %v5482 = vunpack.c.h.b16 %v5375
    %v5483 = vunpack.c.l.b16 %v5376
    %v5484 = vunpack.c.h.b16 %v5376
    %v5485 = vunpack.c.l.b16 %v5377
    %v5486 = vunpack.c.l.b16 %v5378
    %v5487 = vunpack.c.h.b16 %v5378
    %v5488 = vunpack.c.l.b16 %v5379
    %v5489 = vunpack.c.h.b16 %v5379
    %v5490 = vunpack.c.l.b16 %v5380
    %v5491 = vunpack.c.l.b16 %v5381
    %v5492 = vunpack.c.h.b16 %v5381
    %v5493 = vunpack.c.l.b16 %v5382
    %v5494 = vunpack.c.h.b16 %v5382
    %v5495 = vunpack.c.l.b16 %v5383
    %v5496 = vunpack.c.l.b16 %v5384
    %v5497 = vunpack.c.h.b16 %v5384
    %v5498 = vunpack.c.l.b16 %v5385
    %v5499 = vunpack.c.h.b16 %v5385
    %v5500 = vunpack.c.l.b16 %v5386
    %v5501 = vunpack.c.l.b16 %v5387
    %v5502 = vunpack.c.h.b16 %v5387
    %v5503 = vunpack.c.l.b16 %v5388
    %v5504 = vunpack.c.h.b16 %v5388
    %v5505 = vunpack.c.l.b16 %v5389
    %v5506 = vunpack.c.l.b16 %v5390
    %v5507 = vunpack.c.h.b16 %v5390
    %v5508 = vunpack.c.l.b16 %v5391
    %v5509 = vunpack.c.h.b16 %v5391
    %v5510 = vunpack.c.l.b16 %v5392
    %v5511 = vunpack.c.l.b16 %v5393
    %v5512 = vunpack.c.h.b16 %v5393
    %v5513 = vunpack.c.l.b16 %v5394
    %v5514 = vunpack.c.h.b16 %v5394
    %v5515 = vunpack.c.l.b16 %v5395
    %v5516 = vunpack.c.l.b16 %v5396
    %v5517 = vunpack.c.h.b16 %v5396
    %v5518 = vunpack.c.l.b16 %v5397
    %v5519 = vunpack.c.h.b16 %v5397
    %v5520 = vunpack.c.l.b16 %v5398
    %v5521 = vunpack.c.l.b16 %v5399
    %v5522 = vunpack.c.h.b16 %v5399
    %v5523 = vunpack.c.l.b16 %v5400
    %v5524 = vunpack.c.h.b16 %v5400
    %v5525 = vunpack.c.l.b16 %v5401
    %v5526 = vunpack.c.l.b16 %v5402
    %v5527 = vunpack.c.h.b16 %v5402
    %v5528 = vunpack.c.l.b16 %v5403
    %v5529 = vunpack.c.h.b16 %v5403
    %v5530 = vunpack.c.l.b16 %v5404
    %v5531 = vunpack.c.l.b16 %v5405
    %v5532 = vunpack.c.h.b16 %v5405
    %v5533 = vunpack.c.l.b16 %v5406
    %v5534 = vunpack.c.h.b16 %v5406
    %v5535 = vunpack.c.l.b16 %v5407
    %v5536 = vpack.c.b16 %v5461, %v5456
    %v5537 = vpack.c.b16 %v5462, %v5457
    %v5538 = vpack.c.b16 %v5463, %v5458
    %v5539 = vpack.c.b16 %v5464, %v5459
    %v5540 = vpack.c.b16 %v5465, %v5460
    %v5541 = vpack.c.b16 %v5471, %v5466
    %v5542 = vpack.c.b16 %v5472, %v5467
    %v5543 = vpack.c.b16 %v5473, %v5468
    %v5544 = vpack.c.b16 %v5474, %v5469
    %v5545 = vpack.c.b16 %v5475, %v5470
    %v5546 = vpack.c.b16 %v5481, %v5476
    %v5547 = vpack.c.b16 %v5482, %v5477
    %v5548 = vpack.c.b16 %v5483, %v5478
    %v5549 = vpack.c.b16 %v5484, %v5479
    %v5550 = vpack.c.b16 %v5485, %v5480
    %v5551 = vpack.c.b16 %v5491, %v5486
    %v5552 = vpack.c.b16 %v5492, %v5487
    %v5553 = vpack.c.b16 %v5493, %v5488
    %v5554 = vpack.c.b16 %v5494, %v5489
    %v5555 = vpack.c.b16 %v5495, %v5490
    %v5556 = vpack.c.b16 %v5501, %v5496
    %v5557 = vpack.c.b16 %v5502, %v5497
    %v5558 = vpack.c.b16 %v5503, %v5498
    %v5559 = vpack.c.b16 %v5504, %v5499
    %v5560 = vpack.c.b16 %v5505, %v5500
    %v5561 = vpack.c.b16 %v5511, %v5506
    %v5562 = vpack.c.b16 %v5512, %v5507
    %v5563 = vpack.c.b16 %v5513, %v5508
    %v5564 = vpack.c.b16 %v5514, %v5509
    %v5565 = vpack.c.b16 %v5515, %v5510
    %v5566 = vpack.c.b16 %v5521, %v5516
    %v5567 = vpack.c.b16 %v5522, %v5517
    %v5568 = vpack.c.b16 %v5523, %v5518
    %v5569 = vpack.c.b16 %v5524, %v5519
    %v5570 = vpack.c.b16 %v5525, %v5520
    %v5571 = vpack.c.b16 %v5531, %v5526
    %v5572 = vpack.c.b16 %v5532, %v5527
    %v5573 = vpack.c.b16 %v5533, %v5528
    %v5574 = vpack.c.b16 %v5534, %v5529
    %v5575 = vpack.c.b16 %v5535, %v5530
    %v5609 = vsel %vm985, %v5540, 0
    %v5612 = vsel %vm985, %v5545, 0
    %v5615 = vsel %vm985, %v5550, 0
    %v5618 = vsel %vm985, %v5555, 0
    %v5621 = vsel %vm985, %v5560, 0
    %v5624 = vsel %vm985, %v5565, 0
    %v5627 = vsel %vm985, %v5570, 0
    %v5630 = vsel %vm985, %v5575, 0
    %5632 = vmatprep.subr.bf16.mxu0 0
    %5633 = vmatpush1.bf16.msra.mxu0 %v5331
    %5634 = vmatprep.subr.bf16.mxu0 0
    %5635 = vmatpush1.bf16.msra.mxu0 %v5330
    %5636 = vmatprep.subr.bf16.mxu0 0
    %5637 = vmatpush1.bf16.msra.mxu0 %v5329
    %5638 = vmatprep.subr.bf16.mxu0 0
    %5639 = vmatpush1.bf16.msra.mxu0 %v5328
    %5640 = vmatprep.subr.bf16.mxu0 0
    %5641 = vmatpush1.bf16.msra.mxu0 %v5327
    %5642 = vmatprep.subr.bf16.mxu0 0
    %5643 = vmatpush1.bf16.msra.mxu0 %v5326
    %5644 = vmatprep.subr.bf16.mxu0 0
    %5645 = vmatpush1.bf16.msra.mxu0 %v5325
    %5646 = vmatprep.subr.bf16.mxu0 0
    %5647 = vmatpush1.bf16.msra.mxu0 %v5324
    %5648 = vmatprep.subr.bf16.mxu0 0
    %5649 = vmatpush2.bf16.msra.mxu0 %v5339
    %5650 = vmatprep.subr.bf16.mxu0 0
    %5651 = vmatpush2.bf16.msra.mxu0 %v5338
    %5652 = vmatprep.subr.bf16.mxu0 0
    %5653 = vmatpush2.bf16.msra.mxu0 %v5337
    %5654 = vmatprep.subr.bf16.mxu0 0
    %5655 = vmatpush2.bf16.msra.mxu0 %v5336
    %5656 = vmatprep.subr.bf16.mxu0 0
    %5657 = vmatpush2.bf16.msra.mxu0 %v5335
    %5658 = vmatprep.subr.bf16.mxu0 0
    %5659 = vmatpush2.bf16.msra.mxu0 %v5334
    %5660 = vmatprep.subr.bf16.mxu0 0
    %5661 = vmatpush2.bf16.msra.mxu0 %v5333
    %5662 = vmatprep.subr.bf16.mxu0 0
    %5663 = vmatpush2.bf16.msra.mxu0 %v5332
    %5664 = vmatprep.mubr.bf16.mxu0 %v5537
    %5665 = vmatmul.mubr.bf16.gmra.mxu0 %v5536
    %v5666 = vpop.f32.mrf.mxu0
    %v5667 = vadd.f32 0.0, %v5666
    %v5668 = vpop.f32.mrf.mxu0
    %v5669 = vpop.f32.mrf.mxu0
    %v5670 = vadd.f32 0.0, %v5669
    %v5671 = vpop.f32.mrf.mxu0
    %5672 = vmatprep.mubr.bf16.mxu0 %v5542
    %5673 = vmatmul.mubr.bf16.gmra.mxu0 %v5541
    %v5674 = vpop.f32.mrf.mxu0
    %v5675 = vadd.f32 0.0, %v5674
    %v5676 = vpop.f32.mrf.mxu0
    %v5677 = vpop.f32.mrf.mxu0
    %v5678 = vadd.f32 0.0, %v5677
    %v5679 = vpop.f32.mrf.mxu0
    %5680 = vmatprep.mubr.bf16.mxu0 %v5547
    %5681 = vmatmul.mubr.bf16.gmra.mxu0 %v5546
    %v5682 = vpop.f32.mrf.mxu0
    %v5683 = vadd.f32 0.0, %v5682
    %v5684 = vpop.f32.mrf.mxu0
    %v5685 = vpop.f32.mrf.mxu0
    %v5686 = vadd.f32 0.0, %v5685
    %v5687 = vpop.f32.mrf.mxu0
    %5688 = vmatprep.mubr.bf16.mxu0 %v5552
    %5689 = vmatmul.mubr.bf16.gmra.mxu0 %v5551
    %v5690 = vpop.f32.mrf.mxu0
    %v5691 = vadd.f32 0.0, %v5690
    %v5692 = vpop.f32.mrf.mxu0
    %v5693 = vpop.f32.mrf.mxu0
    %v5694 = vadd.f32 0.0, %v5693
    %v5695 = vpop.f32.mrf.mxu0
    %5696 = vmatprep.mubr.bf16.mxu0 %v5557
    %5697 = vmatmul.mubr.bf16.gmra.mxu0 %v5556
    %v5698 = vpop.f32.mrf.mxu0
    %v5699 = vadd.f32 0.0, %v5698
    %v5700 = vpop.f32.mrf.mxu0
    %v5701 = vpop.f32.mrf.mxu0
    %v5702 = vadd.f32 0.0, %v5701
    %v5703 = vpop.f32.mrf.mxu0
    %5704 = vmatprep.mubr.bf16.mxu0 %v5562
    %5705 = vmatmul.mubr.bf16.gmra.mxu0 %v5561
    %v5706 = vpop.f32.mrf.mxu0
    %v5707 = vadd.f32 0.0, %v5706
    %v5708 = vpop.f32.mrf.mxu0
    %v5709 = vpop.f32.mrf.mxu0
    %v5710 = vadd.f32 0.0, %v5709
    %v5711 = vpop.f32.mrf.mxu0
    %5712 = vmatprep.mubr.bf16.mxu0 %v5567
    %5713 = vmatmul.mubr.bf16.gmra.mxu0 %v5566
    %v5714 = vpop.f32.mrf.mxu0
    %v5715 = vadd.f32 0.0, %v5714
    %v5716 = vpop.f32.mrf.mxu0
    %v5717 = vpop.f32.mrf.mxu0
    %v5718 = vadd.f32 0.0, %v5717
    %v5719 = vpop.f32.mrf.mxu0
    %5720 = vmatprep.mubr.bf16.mxu0 %v5572
    %5721 = vmatmul.mubr.bf16.gmra.mxu0 %v5571
    %v5722 = vpop.f32.mrf.mxu0
    %v5723 = vadd.f32 0.0, %v5722
    %v5724 = vpop.f32.mrf.mxu0
    %v5725 = vpop.f32.mrf.mxu0
    %v5726 = vadd.f32 0.0, %v5725
    %v5727 = vpop.f32.mrf.mxu0
    %5728 = vdwg.mxu0
    %5729 = vmatprep.subr.bf16.mxu0 0
    %5730 = vmatpush1.bf16.msra.mxu0 %v5347
    %5731 = vmatprep.subr.bf16.mxu0 0
    %5732 = vmatpush1.bf16.msra.mxu0 %v5346
    %5733 = vmatprep.subr.bf16.mxu0 0
    %5734 = vmatpush1.bf16.msra.mxu0 %v5345
    %5735 = vmatprep.subr.bf16.mxu0 0
    %5736 = vmatpush1.bf16.msra.mxu0 %v5344
    %5737 = vmatprep.subr.bf16.mxu0 0
    %5738 = vmatpush1.bf16.msra.mxu0 %v5343
    %5739 = vmatprep.subr.bf16.mxu0 0
    %5740 = vmatpush1.bf16.msra.mxu0 %v5342
    %5741 = vmatprep.subr.bf16.mxu0 0
    %5742 = vmatpush1.bf16.msra.mxu0 %v5341
    %5743 = vmatprep.subr.bf16.mxu0 0
    %5744 = vmatpush1.bf16.msra.mxu0 %v5340
    %5745 = vmatprep.subr.bf16.mxu0 0
    %5746 = vmatpush2.bf16.msra.mxu0 %v5355
    %5747 = vmatprep.subr.bf16.mxu0 0
    %5748 = vmatpush2.bf16.msra.mxu0 %v5354
    %5749 = vmatprep.subr.bf16.mxu0 0
    %5750 = vmatpush2.bf16.msra.mxu0 %v5353
    %5751 = vmatprep.subr.bf16.mxu0 0
    %5752 = vmatpush2.bf16.msra.mxu0 %v5352
    %5753 = vmatprep.subr.bf16.mxu0 0
    %5754 = vmatpush2.bf16.msra.mxu0 %v5351
    %5755 = vmatprep.subr.bf16.mxu0 0
    %5756 = vmatpush2.bf16.msra.mxu0 %v5350
    %5757 = vmatprep.subr.bf16.mxu0 0
    %5758 = vmatpush2.bf16.msra.mxu0 %v5349
    %5759 = vmatprep.subr.bf16.mxu0 0
    %5760 = vmatpush2.bf16.msra.mxu0 %v5348
    %5761 = vmatprep.mubr.bf16.mxu0 %v5539
    %5762 = vmatmul.mubr.bf16.gmra.mxu0 %v5538
    %v5763 = vpop.f32.mrf.mxu0
    %v5764 = vadd.f32 %v5667, %v5763
    %v5765 = vpop.f32.mrf.mxu0
    %v5766 = vpop.f32.mrf.mxu0
    %v5767 = vadd.f32 %v5670, %v5766
    %v5768 = vpop.f32.mrf.mxu0
    %5769 = vmatprep.mubr.bf16.mxu0 %v5544
    %5770 = vmatmul.mubr.bf16.gmra.mxu0 %v5543
    %v5771 = vpop.f32.mrf.mxu0
    %v5772 = vadd.f32 %v5675, %v5771
    %v5773 = vpop.f32.mrf.mxu0
    %v5774 = vpop.f32.mrf.mxu0
    %v5775 = vadd.f32 %v5678, %v5774
    %v5776 = vpop.f32.mrf.mxu0
    %5777 = vmatprep.mubr.bf16.mxu0 %v5549
    %5778 = vmatmul.mubr.bf16.gmra.mxu0 %v5548
    %v5779 = vpop.f32.mrf.mxu0
    %v5780 = vadd.f32 %v5683, %v5779
    %v5781 = vpop.f32.mrf.mxu0
    %v5782 = vpop.f32.mrf.mxu0
    %v5783 = vadd.f32 %v5686, %v5782
    %v5784 = vpop.f32.mrf.mxu0
    %5785 = vmatprep.mubr.bf16.mxu0 %v5554
    %5786 = vmatmul.mubr.bf16.gmra.mxu0 %v5553
    %v5787 = vpop.f32.mrf.mxu0
    %v5788 = vadd.f32 %v5691, %v5787
    %v5789 = vpop.f32.mrf.mxu0
    %v5790 = vpop.f32.mrf.mxu0
    %v5791 = vadd.f32 %v5694, %v5790
    %v5792 = vpop.f32.mrf.mxu0
    %5793 = vmatprep.mubr.bf16.mxu0 %v5559
    %5794 = vmatmul.mubr.bf16.gmra.mxu0 %v5558
    %v5795 = vpop.f32.mrf.mxu0
    %v5796 = vadd.f32 %v5699, %v5795
    %v5797 = vpop.f32.mrf.mxu0
    %v5798 = vpop.f32.mrf.mxu0
    %v5799 = vadd.f32 %v5702, %v5798
    %v5800 = vpop.f32.mrf.mxu0
    %5801 = vmatprep.mubr.bf16.mxu0 %v5564
    %5802 = vmatmul.mubr.bf16.gmra.mxu0 %v5563
    %v5803 = vpop.f32.mrf.mxu0
    %v5804 = vadd.f32 %v5707, %v5803
    %v5805 = vpop.f32.mrf.mxu0
    %v5806 = vpop.f32.mrf.mxu0
    %v5807 = vadd.f32 %v5710, %v5806
    %v5808 = vpop.f32.mrf.mxu0
    %5809 = vmatprep.mubr.bf16.mxu0 %v5569
    %5810 = vmatmul.mubr.bf16.gmra.mxu0 %v5568
    %v5811 = vpop.f32.mrf.mxu0
    %v5812 = vadd.f32 %v5715, %v5811
    %v5813 = vpop.f32.mrf.mxu0
    %v5814 = vpop.f32.mrf.mxu0
    %v5815 = vadd.f32 %v5718, %v5814
    %v5816 = vpop.f32.mrf.mxu0
    %5817 = vmatprep.mubr.bf16.mxu0 %v5574
    %5818 = vmatmul.mubr.bf16.gmra.mxu0 %v5573
    %v5819 = vpop.f32.mrf.mxu0
    %v5820 = vadd.f32 %v5723, %v5819
    %v5821 = vpop.f32.mrf.mxu0
    %v5822 = vpop.f32.mrf.mxu0
    %v5823 = vadd.f32 %v5726, %v5822
    %v5824 = vpop.f32.mrf.mxu0
    %5825 = vdwg.mxu0
    %5826 = vmatprep.subr.bf16.mxu0 0
    %5827 = vmatpush1.bf16.msra.mxu0 0
    %5828 = vmatprep.subr.bf16.mxu0 0
    %5829 = vmatpush1.bf16.msra.mxu0 0
    %5830 = vmatprep.subr.bf16.mxu0 0
    %5831 = vmatpush1.bf16.msra.mxu0 0
    %5832 = vmatprep.subr.bf16.mxu0 0
    %5833 = vmatpush1.bf16.msra.mxu0 0
    %5834 = vmatprep.subr.bf16.mxu0 0
    %5835 = vmatpush1.bf16.msra.mxu0 %v5359
    %5836 = vmatprep.subr.bf16.mxu0 0
    %5837 = vmatpush1.bf16.msra.mxu0 %v5358
    %5838 = vmatprep.subr.bf16.mxu0 0
    %5839 = vmatpush1.bf16.msra.mxu0 %v5357
    %5840 = vmatprep.subr.bf16.mxu0 0
    %5841 = vmatpush1.bf16.msra.mxu0 %v5356
    %5842 = vmatprep.subr.bf16.mxu0 0
    %5843 = vmatpush2.bf16.msra.mxu0 0
    %5844 = vmatprep.subr.bf16.mxu0 0
    %5845 = vmatpush2.bf16.msra.mxu0 0
    %5846 = vmatprep.subr.bf16.mxu0 0
    %5847 = vmatpush2.bf16.msra.mxu0 0
    %5848 = vmatprep.subr.bf16.mxu0 0
    %5849 = vmatpush2.bf16.msra.mxu0 0
    %5850 = vmatprep.subr.bf16.mxu0 0
    %5851 = vmatpush2.bf16.msra.mxu0 0
    %5852 = vmatprep.subr.bf16.mxu0 0
    %5853 = vmatpush2.bf16.msra.mxu0 0
    %5854 = vmatprep.subr.bf16.mxu0 0
    %5855 = vmatpush2.bf16.msra.mxu0 0
    %5856 = vmatprep.subr.bf16.mxu0 0
    %5857 = vmatpush2.bf16.msra.mxu0 0
    %5858 = vmatprep.mubr.bf16.mxu0 0
    %5859 = vmatmul.mubr.bf16.gmra.mxu0 %v5609
    %v5860 = vpop.f32.mrf.mxu0
    %v5861 = vadd.f32 %v5764, %v5860
    %v5862 = vpop.f32.mrf.mxu0
    %v5863 = vpop.f32.mrf.mxu0
    %v5864 = vadd.f32 %v5767, %v5863
    %v5865 = vpop.f32.mrf.mxu0
    %5866 = vmatprep.mubr.bf16.mxu0 0
    %5867 = vmatmul.mubr.bf16.gmra.mxu0 %v5612
    %v5868 = vpop.f32.mrf.mxu0
    %v5869 = vadd.f32 %v5772, %v5868
    %v5870 = vpop.f32.mrf.mxu0
    %v5871 = vpop.f32.mrf.mxu0
    %v5872 = vadd.f32 %v5775, %v5871
    %v5873 = vpop.f32.mrf.mxu0
    %5874 = vmatprep.mubr.bf16.mxu0 0
    %5875 = vmatmul.mubr.bf16.gmra.mxu0 %v5615
    %v5876 = vpop.f32.mrf.mxu0
    %v5877 = vadd.f32 %v5780, %v5876
    %v5878 = vpop.f32.mrf.mxu0
    %v5879 = vpop.f32.mrf.mxu0
    %v5880 = vadd.f32 %v5783, %v5879
    %v5881 = vpop.f32.mrf.mxu0
    %5882 = vmatprep.mubr.bf16.mxu0 0
    %5883 = vmatmul.mubr.bf16.gmra.mxu0 %v5618
    %v5884 = vpop.f32.mrf.mxu0
    %v5885 = vadd.f32 %v5788, %v5884
    %v5886 = vpop.f32.mrf.mxu0
    %v5887 = vpop.f32.mrf.mxu0
    %v5888 = vadd.f32 %v5791, %v5887
    %v5889 = vpop.f32.mrf.mxu0
    %5890 = vmatprep.mubr.bf16.mxu0 0
    %5891 = vmatmul.mubr.bf16.gmra.mxu0 %v5621
    %v5892 = vpop.f32.mrf.mxu0
    %v5893 = vadd.f32 %v5796, %v5892
    %v5894 = vpop.f32.mrf.mxu0
    %v5895 = vpop.f32.mrf.mxu0
    %v5896 = vadd.f32 %v5799, %v5895
    %v5897 = vpop.f32.mrf.mxu0
    %5898 = vmatprep.mubr.bf16.mxu0 0
    %5899 = vmatmul.mubr.bf16.gmra.mxu0 %v5624
    %v5900 = vpop.f32.mrf.mxu0
    %v5901 = vadd.f32 %v5804, %v5900
    %v5902 = vpop.f32.mrf.mxu0
    %v5903 = vpop.f32.mrf.mxu0
    %v5904 = vadd.f32 %v5807, %v5903
    %v5905 = vpop.f32.mrf.mxu0
    %5906 = vmatprep.mubr.bf16.mxu0 0
    %5907 = vmatmul.mubr.bf16.gmra.mxu0 %v5627
    %v5908 = vpop.f32.mrf.mxu0
    %v5909 = vadd.f32 %v5812, %v5908
    %v5910 = vpop.f32.mrf.mxu0
    %v5911 = vpop.f32.mrf.mxu0
    %v5912 = vadd.f32 %v5815, %v5911
    %v5913 = vpop.f32.mrf.mxu0
    %5914 = vmatprep.mubr.bf16.mxu0 0
    %5915 = vmatmul.mubr.bf16.gmra.mxu0 %v5630
    %v5916 = vpop.f32.mrf.mxu0
    %v5917 = vadd.f32 %v5820, %v5916
    %v5918 = vpop.f32.mrf.mxu0
    %v5919 = vpop.f32.mrf.mxu0
    %v5920 = vadd.f32 %v5823, %v5919
    %v5921 = vpop.f32.mrf.mxu0
    %5922 = vdwg.mxu0
    %v5923 = vld [vmem:[%s20 + $0xa8] sm:$0xff]
    %v5924 = vld [vmem:[%s20 + $0xb0] sm:$0xff]
    %v5925 = vld [vmem:[%s20 + $0xb8] sm:$0xff]
    %v5926 = vld [vmem:[%s20 + $0xc0] sm:$0xff]
    %v5927 = vld [vmem:[%s20 + $0xc8] sm:$0xff]
    %v5928 = vld [vmem:[%s20 + $0xd0] sm:$0xff]
    %v5929 = vld [vmem:[%s20 + $0xd8] sm:$0xff]
    %v5930 = vld [vmem:[%s20 + $0xe0] sm:$0xff]
    %v5931 = vsel %vm2106, %v5861, 0.0
    %5932 = vadd.xlane.f32.xlu0 %v5931
    %v5933 = vpop.xlane.xlu0 %5932
    %v5934 = vsel %vm2106, %v5864, 0.0
    %5935 = vadd.xlane.f32.xlu0 %v5934
    %v5936 = vpop.xlane.xlu0 %5935
    %v5937 = vsel %vm2106, %v5869, 0.0
    %5938 = vadd.xlane.f32.xlu0 %v5937
    %v5939 = vpop.xlane.xlu0 %5938
    %v5940 = vsel %vm2106, %v5872, 0.0
    %5941 = vadd.xlane.f32.xlu0 %v5940
    %v5942 = vpop.xlane.xlu0 %5941
    %v5943 = vsel %vm2106, %v5877, 0.0
    %5944 = vadd.xlane.f32.xlu0 %v5943
    %v5945 = vpop.xlane.xlu0 %5944
    %v5946 = vsel %vm2106, %v5880, 0.0
    %5947 = vadd.xlane.f32.xlu0 %v5946
    %v5948 = vpop.xlane.xlu0 %5947
    %v5949 = vsel %vm2106, %v5885, 0.0
    %5950 = vadd.xlane.f32.xlu0 %v5949
    %v5951 = vpop.xlane.xlu0 %5950
    %v5952 = vsel %vm2106, %v5888, 0.0
    %5953 = vadd.xlane.f32.xlu0 %v5952
    %v5954 = vpop.xlane.xlu0 %5953
    %v5955 = vsel %vm2106, %v5893, 0.0
    %5956 = vadd.xlane.f32.xlu0 %v5955
    %v5957 = vpop.xlane.xlu0 %5956
    %v5958 = vsel %vm2106, %v5896, 0.0
    %5959 = vadd.xlane.f32.xlu0 %v5958
    %v5960 = vpop.xlane.xlu0 %5959
    %v5961 = vsel %vm2106, %v5901, 0.0
    %5962 = vadd.xlane.f32.xlu0 %v5961
    %v5963 = vpop.xlane.xlu0 %5962
    %v5964 = vsel %vm2106, %v5904, 0.0
    %5965 = vadd.xlane.f32.xlu0 %v5964
    %v5966 = vpop.xlane.xlu0 %5965
    %v5967 = vsel %vm2106, %v5909, 0.0
    %5968 = vadd.xlane.f32.xlu0 %v5967
    %v5969 = vpop.xlane.xlu0 %5968
    %v5970 = vsel %vm2106, %v5912, 0.0
    %5971 = vadd.xlane.f32.xlu0 %v5970
    %v5972 = vpop.xlane.xlu0 %5971
    %v5973 = vsel %vm2106, %v5917, 0.0
    %5974 = vadd.xlane.f32.xlu0 %v5973
    %v5975 = vpop.xlane.xlu0 %5974
    %v5976 = vsel %vm2106, %v5920, 0.0
    %5977 = vadd.xlane.f32.xlu0 %v5976
    %v5978 = vpop.xlane.xlu0 %5977
    %v5979 = vmul.f32 %v5861, %v5861
    %v5980 = vmul.f32 %v5864, %v5864
    %v5981 = vmul.f32 %v5869, %v5869
    %v5982 = vmul.f32 %v5872, %v5872
    %v5983 = vmul.f32 %v5877, %v5877
    %v5984 = vmul.f32 %v5880, %v5880
    %v5985 = vmul.f32 %v5885, %v5885
    %v5986 = vmul.f32 %v5888, %v5888
    %v5987 = vmul.f32 %v5893, %v5893
    %v5988 = vmul.f32 %v5896, %v5896
    %v5989 = vmul.f32 %v5901, %v5901
    %v5990 = vmul.f32 %v5904, %v5904
    %v5991 = vmul.f32 %v5909, %v5909
    %v5992 = vmul.f32 %v5912, %v5912
    %v5993 = vmul.f32 %v5917, %v5917
    %v5994 = vmul.f32 %v5920, %v5920
    %v5995 = vsel %vm2106, %v5979, 0.0
    %5996 = vadd.xlane.f32.xlu0 %v5995
    %v5997 = vpop.xlane.xlu0 %5996
    %v5998 = vsel %vm2106, %v5980, 0.0
    %5999 = vadd.xlane.f32.xlu0 %v5998
    %v6000 = vpop.xlane.xlu0 %5999
    %v6001 = vsel %vm2106, %v5981, 0.0
    %6002 = vadd.xlane.f32.xlu0 %v6001
    %v6003 = vpop.xlane.xlu0 %6002
    %v6004 = vsel %vm2106, %v5982, 0.0
    %6005 = vadd.xlane.f32.xlu0 %v6004
    %v6006 = vpop.xlane.xlu0 %6005
    %v6007 = vsel %vm2106, %v5983, 0.0
    %6008 = vadd.xlane.f32.xlu0 %v6007
    %v6009 = vpop.xlane.xlu0 %6008
    %v6010 = vsel %vm2106, %v5984, 0.0
    %6011 = vadd.xlane.f32.xlu0 %v6010
    %v6012 = vpop.xlane.xlu0 %6011
    %v6013 = vsel %vm2106, %v5985, 0.0
    %6014 = vadd.xlane.f32.xlu0 %v6013
    %v6015 = vpop.xlane.xlu0 %6014
    %v6016 = vsel %vm2106, %v5986, 0.0
    %6017 = vadd.xlane.f32.xlu0 %v6016
    %v6018 = vpop.xlane.xlu0 %6017
    %v6019 = vsel %vm2106, %v5987, 0.0
    %6020 = vadd.xlane.f32.xlu0 %v6019
    %v6021 = vpop.xlane.xlu0 %6020
    %v6022 = vsel %vm2106, %v5988, 0.0
    %6023 = vadd.xlane.f32.xlu0 %v6022
    %v6024 = vpop.xlane.xlu0 %6023
    %v6025 = vsel %vm2106, %v5989, 0.0
    %6026 = vadd.xlane.f32.xlu0 %v6025
    %v6027 = vpop.xlane.xlu0 %6026
    %v6028 = vsel %vm2106, %v5990, 0.0
    %6029 = vadd.xlane.f32.xlu0 %v6028
    %v6030 = vpop.xlane.xlu0 %6029
    %v6031 = vsel %vm2106, %v5991, 0.0
    %6032 = vadd.xlane.f32.xlu0 %v6031
    %v6033 = vpop.xlane.xlu0 %6032
    %v6034 = vsel %vm2106, %v5992, 0.0
    %6035 = vadd.xlane.f32.xlu0 %v6034
    %v6036 = vpop.xlane.xlu0 %6035
    %v6037 = vsel %vm2106, %v5993, 0.0
    %6038 = vadd.xlane.f32.xlu0 %v6037
    %v6039 = vpop.xlane.xlu0 %6038
    %v6040 = vsel %vm2106, %v5994, 0.0
    %6041 = vadd.xlane.f32.xlu0 %v6040
    %v6042 = vpop.xlane.xlu0 %6041
    %v6043 = vadd.f32 %v5933, %v5957
    %v6044 = vadd.f32 %v5936, %v5960
    %v6045 = vadd.f32 %v5939, %v5963
    %v6046 = vadd.f32 %v5942, %v5966
    %v6047 = vadd.f32 %v5945, %v5969
    %v6048 = vadd.f32 %v5948, %v5972
    %v6049 = vadd.f32 %v5951, %v5975
    %v6050 = vadd.f32 %v5954, %v5978
    %v6051 = vadd.f32 %v5997, %v6021
    %v6052 = vadd.f32 %v6000, %v6024
    %v6053 = vadd.f32 %v6003, %v6027
    %v6054 = vadd.f32 %v6006, %v6030
    %v6055 = vadd.f32 %v6009, %v6033
    %v6056 = vadd.f32 %v6012, %v6036
    %v6057 = vadd.f32 %v6015, %v6039
    %v6058 = vadd.f32 %v6018, %v6042
    %v6059 = vmul.f32 %v6043, 0.03125
    %v6060 = vmul.f32 %v6044, 0.03125
    %v6061 = vmul.f32 %v6045, 0.03125
    %v6062 = vmul.f32 %v6046, 0.03125
    %v6063 = vmul.f32 %v6047, 0.03125
    %v6064 = vmul.f32 %v6048, 0.03125
    %v6065 = vmul.f32 %v6049, 0.03125
    %v6066 = vmul.f32 %v6050, 0.03125
    %v6067 = vmul.f32 %v6051, 0.03125
    %v6068 = vmul.f32 %v6052, 0.03125
    %v6069 = vmul.f32 %v6053, 0.03125
    %v6070 = vmul.f32 %v6054, 0.03125
    %v6071 = vmul.f32 %v6055, 0.03125
    %v6072 = vmul.f32 %v6056, 0.03125
    %v6073 = vmul.f32 %v6057, 0.03125
    %v6074 = vmul.f32 %v6058, 0.03125
    %v6075 = vmul.f32 %v6059, %v6059
    %v6076 = vmul.f32 %v6060, %v6060
    %v6077 = vmul.f32 %v6061, %v6061
    %v6078 = vmul.f32 %v6062, %v6062
    %v6079 = vmul.f32 %v6063, %v6063
    %v6080 = vmul.f32 %v6064, %v6064
    %v6081 = vmul.f32 %v6065, %v6065
    %v6082 = vmul.f32 %v6066, %v6066
    %v6083 = vsub.f32 %v6067, %v6075
    %v6084 = vsub.f32 %v6068, %v6076
    %v6085 = vsub.f32 %v6069, %v6077
    %v6086 = vsub.f32 %v6070, %v6078
    %v6087 = vsub.f32 %v6071, %v6079
    %v6088 = vsub.f32 %v6072, %v6080
    %v6089 = vsub.f32 %v6073, %v6081
    %v6090 = vsub.f32 %v6074, %v6082
    %v6091 = vmax.f32 %v6083, 0.0
    %v6092 = vmax.f32 %v6084, 0.0
    %v6093 = vmax.f32 %v6085, 0.0
    %v6094 = vmax.f32 %v6086, 0.0
    %v6095 = vmax.f32 %v6087, 0.0
    %v6096 = vmax.f32 %v6088, 0.0
    %v6097 = vmax.f32 %v6089, 0.0
    %v6098 = vmax.f32 %v6090, 0.0
    %v6099 = vadd.f32 %v6091, 1e-05
    %v6100 = vadd.f32 %v6092, 1e-05
    %v6101 = vadd.f32 %v6093, 1e-05
    %v6102 = vadd.f32 %v6094, 1e-05
    %v6103 = vadd.f32 %v6095, 1e-05
    %v6104 = vadd.f32 %v6096, 1e-05
    %v6105 = vadd.f32 %v6097, 1e-05
    %v6106 = vadd.f32 %v6098, 1e-05
    %v6107 = vrsqrt.pop %v6099
    %v6108 = vrsqrt.pop %v6100
    %v6109 = vrsqrt.pop %v6101
    %v6110 = vrsqrt.pop %v6102
    %v6111 = vrsqrt.pop %v6103
    %v6112 = vrsqrt.pop %v6104
    %v6113 = vrsqrt.pop %v6105
    %v6114 = vrsqrt.pop %v6106
    %v6115 = vmul.f32 %v5923, %v6107
    %v6116 = vmul.f32 %v5924, %v6108
    %v6117 = vmul.f32 %v5925, %v6109
    %v6118 = vmul.f32 %v5926, %v6110
    %v6119 = vmul.f32 %v5927, %v6111
    %v6120 = vmul.f32 %v5928, %v6112
    %v6121 = vmul.f32 %v5929, %v6113
    %v6122 = vmul.f32 %v5930, %v6114
    %v6123 = vmul.f32 %v6059, %v6115
    %v6124 = vmul.f32 %v6060, %v6116
    %v6125 = vmul.f32 %v6061, %v6117
    %v6126 = vmul.f32 %v6062, %v6118
    %v6127 = vmul.f32 %v6063, %v6119
    %v6128 = vmul.f32 %v6064, %v6120
    %v6129 = vmul.f32 %v6065, %v6121
    %v6130 = vmul.f32 %v6066, %v6122
    %6139 = vrot.lane.b32.xlu0 %v6123, 1
    %v6140 = vpop.permute.xlu0 %6139
    %6141 = vrot.lane.b32.xlu0 %v6124, 1
    %v6142 = vpop.permute.xlu0 %6141
    %6143 = vrot.lane.b32.xlu0 %v6125, 1
    %v6144 = vpop.permute.xlu0 %6143
    %6145 = vrot.lane.b32.xlu0 %v6126, 1
    %v6146 = vpop.permute.xlu0 %6145
    %6147 = vrot.lane.b32.xlu0 %v6127, 1
    %v6148 = vpop.permute.xlu0 %6147
    %6149 = vrot.lane.b32.xlu0 %v6128, 1
    %v6150 = vpop.permute.xlu0 %6149
    %6151 = vrot.lane.b32.xlu0 %v6129, 1
    %v6152 = vpop.permute.xlu0 %6151
    %6153 = vrot.lane.b32.xlu0 %v6130, 1
    %v6154 = vpop.permute.xlu0 %6153
    %v6163 = vsub.f32 %v5923, %v6140
    %v6164 = vsub.f32 %v5924, %v6142
    %v6165 = vsub.f32 %v5925, %v6144
    %v6166 = vsub.f32 %v5926, %v6146
    %v6167 = vsub.f32 %v5927, %v6148
    %v6168 = vsub.f32 %v5928, %v6150
    %v6169 = vsub.f32 %v5929, %v6152
    %v6170 = vsub.f32 %v5930, %v6154
    %6172 = vset.pattern.permute.xlu0 0
    %6173 = vperm.xlu0 %6172, %v6115
    %v6174 = vpop.permute.xlu0 %6173
    %6177 = vset.pattern.permute.xlu0 0
    %6178 = vperm.xlu0 %6177, %v6116
    %v6179 = vpop.permute.xlu0 %6178
    %6182 = vset.pattern.permute.xlu0 0
    %6183 = vperm.xlu0 %6182, %v6117
    %v6184 = vpop.permute.xlu0 %6183
    %6187 = vset.pattern.permute.xlu0 0
    %6188 = vperm.xlu0 %6187, %v6118
    %v6189 = vpop.permute.xlu0 %6188
    %6192 = vset.pattern.permute.xlu0 0
    %6193 = vperm.xlu0 %6192, %v6119
    %v6194 = vpop.permute.xlu0 %6193
    %6197 = vset.pattern.permute.xlu0 0
    %6198 = vperm.xlu0 %6197, %v6120
    %v6199 = vpop.permute.xlu0 %6198
    %6202 = vset.pattern.permute.xlu0 0
    %6203 = vperm.xlu0 %6202, %v6121
    %v6204 = vpop.permute.xlu0 %6203
    %6207 = vset.pattern.permute.xlu0 0
    %6208 = vperm.xlu0 %6207, %v6122
    %v6209 = vpop.permute.xlu0 %6208
    %v6211 = vmul.f32 %v5861, %v6174
    %v6212 = vmul.f32 %v5864, %v6179
    %v6213 = vmul.f32 %v5869, %v6184
    %v6214 = vmul.f32 %v5872, %v6189
    %v6215 = vmul.f32 %v5877, %v6194
    %v6216 = vmul.f32 %v5880, %v6199
    %v6217 = vmul.f32 %v5885, %v6204
    %v6218 = vmul.f32 %v5888, %v6209
    %v6219 = vmul.f32 %v5893, %v6174
    %v6220 = vmul.f32 %v5896, %v6179
    %v6221 = vmul.f32 %v5901, %v6184
    %v6222 = vmul.f32 %v5904, %v6189
    %v6223 = vmul.f32 %v5909, %v6194
    %v6224 = vmul.f32 %v5912, %v6199
    %v6225 = vmul.f32 %v5917, %v6204
    %v6226 = vmul.f32 %v5920, %v6209
    %6228 = vset.pattern.permute.xlu0 1
    %6229 = vperm.xlu0 %6228, %v6163
    %v6230 = vpop.permute.xlu0 %6229
    %6233 = vset.pattern.permute.xlu0 1
    %6234 = vperm.xlu0 %6233, %v6164
    %v6235 = vpop.permute.xlu0 %6234
    %6238 = vset.pattern.permute.xlu0 1
    %6239 = vperm.xlu0 %6238, %v6165
    %v6240 = vpop.permute.xlu0 %6239
    %6243 = vset.pattern.permute.xlu0 1
    %6244 = vperm.xlu0 %6243, %v6166
    %v6245 = vpop.permute.xlu0 %6244
    %6248 = vset.pattern.permute.xlu0 1
    %6249 = vperm.xlu0 %6248, %v6167
    %v6250 = vpop.permute.xlu0 %6249
    %6253 = vset.pattern.permute.xlu0 1
    %6254 = vperm.xlu0 %6253, %v6168
    %v6255 = vpop.permute.xlu0 %6254
    %6258 = vset.pattern.permute.xlu0 1
    %6259 = vperm.xlu0 %6258, %v6169
    %v6260 = vpop.permute.xlu0 %6259
    %6263 = vset.pattern.permute.xlu0 1
    %6264 = vperm.xlu0 %6263, %v6170
    %v6265 = vpop.permute.xlu0 %6264
    %v6267 = vadd.f32 %v6211, %v6230
    %v6268 = vadd.f32 %v6212, %v6235
    %v6269 = vadd.f32 %v6213, %v6240
    %v6270 = vadd.f32 %v6214, %v6245
    %v6271 = vadd.f32 %v6215, %v6250
    %v6272 = vadd.f32 %v6216, %v6255
    %v6273 = vadd.f32 %v6217, %v6260
    %v6274 = vadd.f32 %v6218, %v6265
    %v6275 = vadd.f32 %v6219, %v6230
    %v6276 = vadd.f32 %v6220, %v6235
    %v6277 = vadd.f32 %v6221, %v6240
    %v6278 = vadd.f32 %v6222, %v6245
    %v6279 = vadd.f32 %v6223, %v6250
    %v6280 = vadd.f32 %v6224, %v6255
    %v6281 = vadd.f32 %v6225, %v6260
    %v6282 = vadd.f32 %v6226, %v6265
    %vm6283 = vcmp.ge.f32.partialorder %v6267, 0.0
    %vm6284 = vcmp.ge.f32.partialorder %v6268, 0.0
    %vm6285 = vcmp.ge.f32.partialorder %v6269, 0.0
    %vm6286 = vcmp.ge.f32.partialorder %v6270, 0.0
    %vm6287 = vcmp.ge.f32.partialorder %v6271, 0.0
    %vm6288 = vcmp.ge.f32.partialorder %v6272, 0.0
    %vm6289 = vcmp.ge.f32.partialorder %v6273, 0.0
    %vm6290 = vcmp.ge.f32.partialorder %v6274, 0.0
    %vm6291 = vcmp.ge.f32.partialorder %v6275, 0.0
    %vm6292 = vcmp.ge.f32.partialorder %v6276, 0.0
    %vm6293 = vcmp.ge.f32.partialorder %v6277, 0.0
    %vm6294 = vcmp.ge.f32.partialorder %v6278, 0.0
    %vm6295 = vcmp.ge.f32.partialorder %v6279, 0.0
    %vm6296 = vcmp.ge.f32.partialorder %v6280, 0.0
    %vm6297 = vcmp.ge.f32.partialorder %v6281, 0.0
    %vm6298 = vcmp.ge.f32.partialorder %v6282, 0.0
    %v6299 = vmul.f32 %v6267, 0.01
    %v6300 = vmul.f32 %v6268, 0.01
    %v6301 = vmul.f32 %v6269, 0.01
    %v6302 = vmul.f32 %v6270, 0.01
    %v6303 = vmul.f32 %v6271, 0.01
    %v6304 = vmul.f32 %v6272, 0.01
    %v6305 = vmul.f32 %v6273, 0.01
    %v6306 = vmul.f32 %v6274, 0.01
    %v6307 = vmul.f32 %v6275, 0.01
    %v6308 = vmul.f32 %v6276, 0.01
    %v6309 = vmul.f32 %v6277, 0.01
    %v6310 = vmul.f32 %v6278, 0.01
    %v6311 = vmul.f32 %v6279, 0.01
    %v6312 = vmul.f32 %v6280, 0.01
    %v6313 = vmul.f32 %v6281, 0.01
    %v6314 = vmul.f32 %v6282, 0.01
    %v6315 = vsel %vm6283, %v6267, %v6299
    %v6316 = vsel %vm6284, %v6268, %v6300
    %v6317 = vsel %vm6285, %v6269, %v6301
    %v6318 = vsel %vm6286, %v6270, %v6302
    %v6319 = vsel %vm6287, %v6271, %v6303
    %v6320 = vsel %vm6288, %v6272, %v6304
    %v6321 = vsel %vm6289, %v6273, %v6305
    %v6322 = vsel %vm6290, %v6274, %v6306
    %v6323 = vsel %vm6291, %v6275, %v6307
    %v6324 = vsel %vm6292, %v6276, %v6308
    %v6325 = vsel %vm6293, %v6277, %v6309
    %v6326 = vsel %vm6294, %v6278, %v6310
    %v6327 = vsel %vm6295, %v6279, %v6311
    %v6328 = vsel %vm6296, %v6280, %v6312
    %v6329 = vsel %vm6297, %v6281, %v6313
    %v6330 = vsel %vm6298, %v6282, %v6314
    %v6331 = vpack.c.bf16 %v6316, %v6315
    %v6332 = vpack.c.bf16 %v6318, %v6317
    %v6333 = vpack.c.bf16 %v6320, %v6319
    %v6334 = vpack.c.bf16 %v6322, %v6321
    %v6335 = vpack.c.bf16 %v6324, %v6323
    %v6336 = vpack.c.bf16 %v6326, %v6325
    %v6337 = vpack.c.bf16 %v6328, %v6327
    %v6338 = vpack.c.bf16 %v6330, %v6329
    %v6339 = vld [vmem:[#allocation13] sm:$0xff]
    %v6340 = vld [vmem:[#allocation13 + $0x8] sm:$0xff]
    %v6341 = vld [vmem:[#allocation13 + $0x10] sm:$0xf]
    %v6342 = vld [vmem:[#allocation13 + $0x14] sm:$0xff]
    %v6343 = vld [vmem:[#allocation13 + $0x1c] sm:$0xff]
    %v6344 = vld [vmem:[#allocation13 + $0x24] sm:$0xf]
    %v6351 = vunpack.c.l.b16 %v6339
    %v6352 = vunpack.c.h.b16 %v6339
    %v6353 = vunpack.c.l.b16 %v6340
    %v6354 = vunpack.c.h.b16 %v6340
    %v6355 = vunpack.c.l.b16 %v6341
    %v6356 = vunpack.c.l.b16 %v6342
    %v6357 = vunpack.c.h.b16 %v6342
    %v6358 = vunpack.c.l.b16 %v6343
    %v6359 = vunpack.c.h.b16 %v6343
    %v6360 = vunpack.c.l.b16 %v6344
    %v6361 = vpack.c.b16 %v6356, %v6351
    %v6362 = vpack.c.b16 %v6357, %v6352
    %v6363 = vpack.c.b16 %v6358, %v6353
    %v6364 = vpack.c.b16 %v6359, %v6354
    %v6365 = vpack.c.b16 %v6360, %v6355
    %v6372 = vsel %vm2106, %v6331, 0
    %v6375 = vsel %vm2106, %v6332, 0
    %v6378 = vsel %vm2106, %v6333, 0
    %v6381 = vsel %vm2106, %v6334, 0
    %v6384 = vsel %vm2106, %v6335, 0
    %v6387 = vsel %vm2106, %v6336, 0
    %v6390 = vsel %vm2106, %v6337, 0
    %v6393 = vsel %vm2106, %v6338, 0
    %6395 = vmatprep.subr.bf16.mxu0 0
    %6396 = vmatpush1.bf16.msra.mxu0 0
    %6397 = vmatprep.subr.bf16.mxu0 0
    %6398 = vmatpush1.bf16.msra.mxu0 0
    %6399 = vmatprep.subr.bf16.mxu0 0
    %6400 = vmatpush1.bf16.msra.mxu0 0
    %6401 = vmatprep.subr.bf16.mxu0 0
    %6402 = vmatpush1.bf16.msra.mxu0 0
    %6403 = vmatprep.subr.bf16.mxu0 0
    %6404 = vmatpush1.bf16.msra.mxu0 0
    %6405 = vmatprep.subr.bf16.mxu0 0
    %6406 = vmatpush1.bf16.msra.mxu0 0
    %6407 = vmatprep.subr.bf16.mxu0 0
    %6408 = vmatpush1.bf16.msra.mxu0 0
    %6409 = vmatprep.subr.bf16.mxu0 %v6362
    %6410 = vmatpush1.bf16.msra.mxu0 %v6361
    %6411 = vmatprep.subr.bf16.mxu0 0
    %6412 = vmatpush2.bf16.msra.mxu0 0
    %6413 = vmatprep.subr.bf16.mxu0 0
    %6414 = vmatpush2.bf16.msra.mxu0 0
    %6415 = vmatprep.subr.bf16.mxu0 0
    %6416 = vmatpush2.bf16.msra.mxu0 0
    %6417 = vmatprep.subr.bf16.mxu0 0
    %6418 = vmatpush2.bf16.msra.mxu0 0
    %6419 = vmatprep.subr.bf16.mxu0 0
    %6420 = vmatpush2.bf16.msra.mxu0 0
    %6421 = vmatprep.subr.bf16.mxu0 0
    %6422 = vmatpush2.bf16.msra.mxu0 0
    %6423 = vmatprep.subr.bf16.mxu0 0
    %6424 = vmatpush2.bf16.msra.mxu0 0
    %6425 = vmatprep.subr.bf16.mxu0 0
    %6426 = vmatpush2.bf16.msra.mxu0 0
    %6427 = vmatprep.mubr.bf16.mxu0 0
    %6428 = vmatmul.mubr.bf16.gmra.mxu0 %v6372
    %v6429 = vpop.f32.mrf.mxu0
    %v6430 = vadd.f32 0.0, %v6429
    %v6431 = vpop.f32.mrf.mxu0
    %v6432 = vadd.f32 0.0, %v6431
    %v6433 = vpop.f32.mrf.mxu0
    %v6434 = vadd.f32 0.0, %v6433
    %v6435 = vpop.f32.mrf.mxu0
    %v6436 = vadd.f32 0.0, %v6435
    %6437 = vmatprep.mubr.bf16.mxu0 0
    %6438 = vmatmul.mubr.bf16.gmra.mxu0 %v6375
    %v6439 = vpop.f32.mrf.mxu0
    %v6440 = vadd.f32 0.0, %v6439
    %v6441 = vpop.f32.mrf.mxu0
    %v6442 = vadd.f32 0.0, %v6441
    %v6443 = vpop.f32.mrf.mxu0
    %v6444 = vadd.f32 0.0, %v6443
    %v6445 = vpop.f32.mrf.mxu0
    %v6446 = vadd.f32 0.0, %v6445
    %6447 = vmatprep.mubr.bf16.mxu0 0
    %6448 = vmatmul.mubr.bf16.gmra.mxu0 %v6378
    %v6449 = vpop.f32.mrf.mxu0
    %v6450 = vadd.f32 0.0, %v6449
    %v6451 = vpop.f32.mrf.mxu0
    %v6452 = vadd.f32 0.0, %v6451
    %v6453 = vpop.f32.mrf.mxu0
    %v6454 = vadd.f32 0.0, %v6453
    %v6455 = vpop.f32.mrf.mxu0
    %v6456 = vadd.f32 0.0, %v6455
    %6457 = vmatprep.mubr.bf16.mxu0 0
    %6458 = vmatmul.mubr.bf16.gmra.mxu0 %v6381
    %v6459 = vpop.f32.mrf.mxu0
    %v6460 = vadd.f32 0.0, %v6459
    %v6461 = vpop.f32.mrf.mxu0
    %v6462 = vadd.f32 0.0, %v6461
    %v6463 = vpop.f32.mrf.mxu0
    %v6464 = vadd.f32 0.0, %v6463
    %v6465 = vpop.f32.mrf.mxu0
    %v6466 = vadd.f32 0.0, %v6465
    %6467 = vmatprep.mubr.bf16.mxu0 0
    %6468 = vmatmul.mubr.bf16.gmra.mxu0 %v6384
    %v6469 = vpop.f32.mrf.mxu0
    %v6470 = vadd.f32 0.0, %v6469
    %v6471 = vpop.f32.mrf.mxu0
    %v6472 = vadd.f32 0.0, %v6471
    %v6473 = vpop.f32.mrf.mxu0
    %v6474 = vadd.f32 0.0, %v6473
    %v6475 = vpop.f32.mrf.mxu0
    %v6476 = vadd.f32 0.0, %v6475
    %6477 = vmatprep.mubr.bf16.mxu0 0
    %6478 = vmatmul.mubr.bf16.gmra.mxu0 %v6387
    %v6479 = vpop.f32.mrf.mxu0
    %v6480 = vadd.f32 0.0, %v6479
    %v6481 = vpop.f32.mrf.mxu0
    %v6482 = vadd.f32 0.0, %v6481
    %v6483 = vpop.f32.mrf.mxu0
    %v6484 = vadd.f32 0.0, %v6483
    %v6485 = vpop.f32.mrf.mxu0
    %v6486 = vadd.f32 0.0, %v6485
    %6487 = vmatprep.mubr.bf16.mxu0 0
    %6488 = vmatmul.mubr.bf16.gmra.mxu0 %v6390
    %v6489 = vpop.f32.mrf.mxu0
    %v6490 = vadd.f32 0.0, %v6489
    %v6491 = vpop.f32.mrf.mxu0
    %v6492 = vadd.f32 0.0, %v6491
    %v6493 = vpop.f32.mrf.mxu0
    %v6494 = vadd.f32 0.0, %v6493
    %v6495 = vpop.f32.mrf.mxu0
    %v6496 = vadd.f32 0.0, %v6495
    %6497 = vmatprep.mubr.bf16.mxu0 0
    %6498 = vmatmul.mubr.bf16.gmra.mxu0 %v6393
    %v6499 = vpop.f32.mrf.mxu0
    %v6500 = vadd.f32 0.0, %v6499
    %v6501 = vpop.f32.mrf.mxu0
    %v6502 = vadd.f32 0.0, %v6501
    %v6503 = vpop.f32.mrf.mxu0
    %v6504 = vadd.f32 0.0, %v6503
    %v6505 = vpop.f32.mrf.mxu0
    %v6506 = vadd.f32 0.0, %v6505
    %6507 = vdwg.mxu0
    %6508 = vmatprep.subr.bf16.mxu0 0
    %6509 = vmatpush1.bf16.msra.mxu0 0
    %6510 = vmatprep.subr.bf16.mxu0 0
    %6511 = vmatpush1.bf16.msra.mxu0 0
    %6512 = vmatprep.subr.bf16.mxu0 0
    %6513 = vmatpush1.bf16.msra.mxu0 0
    %6514 = vmatprep.subr.bf16.mxu0 0
    %6515 = vmatpush1.bf16.msra.mxu0 0
    %6516 = vmatprep.subr.bf16.mxu0 0
    %6517 = vmatpush1.bf16.msra.mxu0 0
    %6518 = vmatprep.subr.bf16.mxu0 0
    %6519 = vmatpush1.bf16.msra.mxu0 0
    %6520 = vmatprep.subr.bf16.mxu0 0
    %6521 = vmatpush1.bf16.msra.mxu0 0
    %6522 = vmatprep.subr.bf16.mxu0 %v6364
    %6523 = vmatpush1.bf16.msra.mxu0 %v6363
    %6524 = vmatprep.subr.bf16.mxu0 0
    %6525 = vmatpush2.bf16.msra.mxu0 0
    %6526 = vmatprep.subr.bf16.mxu0 0
    %6527 = vmatpush2.bf16.msra.mxu0 0
    %6528 = vmatprep.subr.bf16.mxu0 0
    %6529 = vmatpush2.bf16.msra.mxu0 0
    %6530 = vmatprep.subr.bf16.mxu0 0
    %6531 = vmatpush2.bf16.msra.mxu0 0
    %6532 = vmatprep.subr.bf16.mxu0 0
    %6533 = vmatpush2.bf16.msra.mxu0 0
    %6534 = vmatprep.subr.bf16.mxu0 0
    %6535 = vmatpush2.bf16.msra.mxu0 0
    %6536 = vmatprep.subr.bf16.mxu0 0
    %6537 = vmatpush2.bf16.msra.mxu0 0
    %6538 = vmatprep.subr.bf16.mxu0 0
    %6539 = vmatpush2.bf16.msra.mxu0 0
    %6540 = vmatprep.mubr.bf16.mxu0 0
    %6541 = vmatmul.mubr.bf16.gmra.mxu0 %v6372
    %v6542 = vpop.f32.mrf.mxu0
    %v6543 = vadd.f32 0.0, %v6542
    %v6544 = vpop.f32.mrf.mxu0
    %v6545 = vadd.f32 0.0, %v6544
    %v6546 = vpop.f32.mrf.mxu0
    %v6547 = vadd.f32 0.0, %v6546
    %v6548 = vpop.f32.mrf.mxu0
    %v6549 = vadd.f32 0.0, %v6548
    %6550 = vmatprep.mubr.bf16.mxu0 0
    %6551 = vmatmul.mubr.bf16.gmra.mxu0 %v6375
    %v6552 = vpop.f32.mrf.mxu0
    %v6553 = vadd.f32 0.0, %v6552
    %v6554 = vpop.f32.mrf.mxu0
    %v6555 = vadd.f32 0.0, %v6554
    %v6556 = vpop.f32.mrf.mxu0
    %v6557 = vadd.f32 0.0, %v6556
    %v6558 = vpop.f32.mrf.mxu0
    %v6559 = vadd.f32 0.0, %v6558
    %6560 = vmatprep.mubr.bf16.mxu0 0
    %6561 = vmatmul.mubr.bf16.gmra.mxu0 %v6378
    %v6562 = vpop.f32.mrf.mxu0
    %v6563 = vadd.f32 0.0, %v6562
    %v6564 = vpop.f32.mrf.mxu0
    %v6565 = vadd.f32 0.0, %v6564
    %v6566 = vpop.f32.mrf.mxu0
    %v6567 = vadd.f32 0.0, %v6566
    %v6568 = vpop.f32.mrf.mxu0
    %v6569 = vadd.f32 0.0, %v6568
    %6570 = vmatprep.mubr.bf16.mxu0 0
    %6571 = vmatmul.mubr.bf16.gmra.mxu0 %v6381
    %v6572 = vpop.f32.mrf.mxu0
    %v6573 = vadd.f32 0.0, %v6572
    %v6574 = vpop.f32.mrf.mxu0
    %v6575 = vadd.f32 0.0, %v6574
    %v6576 = vpop.f32.mrf.mxu0
    %v6577 = vadd.f32 0.0, %v6576
    %v6578 = vpop.f32.mrf.mxu0
    %v6579 = vadd.f32 0.0, %v6578
    %6580 = vmatprep.mubr.bf16.mxu0 0
    %6581 = vmatmul.mubr.bf16.gmra.mxu0 %v6384
    %v6582 = vpop.f32.mrf.mxu0
    %v6583 = vadd.f32 0.0, %v6582
    %v6584 = vpop.f32.mrf.mxu0
    %v6585 = vadd.f32 0.0, %v6584
    %v6586 = vpop.f32.mrf.mxu0
    %v6587 = vadd.f32 0.0, %v6586
    %v6588 = vpop.f32.mrf.mxu0
    %v6589 = vadd.f32 0.0, %v6588
    %6590 = vmatprep.mubr.bf16.mxu0 0
    %6591 = vmatmul.mubr.bf16.gmra.mxu0 %v6387
    %v6592 = vpop.f32.mrf.mxu0
    %v6593 = vadd.f32 0.0, %v6592
    %v6594 = vpop.f32.mrf.mxu0
    %v6595 = vadd.f32 0.0, %v6594
    %v6596 = vpop.f32.mrf.mxu0
    %v6597 = vadd.f32 0.0, %v6596
    %v6598 = vpop.f32.mrf.mxu0
    %v6599 = vadd.f32 0.0, %v6598
    %6600 = vmatprep.mubr.bf16.mxu0 0
    %6601 = vmatmul.mubr.bf16.gmra.mxu0 %v6390
    %v6602 = vpop.f32.mrf.mxu0
    %v6603 = vadd.f32 0.0, %v6602
    %v6604 = vpop.f32.mrf.mxu0
    %v6605 = vadd.f32 0.0, %v6604
    %v6606 = vpop.f32.mrf.mxu0
    %v6607 = vadd.f32 0.0, %v6606
    %v6608 = vpop.f32.mrf.mxu0
    %v6609 = vadd.f32 0.0, %v6608
    %6610 = vmatprep.mubr.bf16.mxu0 0
    %6611 = vmatmul.mubr.bf16.gmra.mxu0 %v6393
    %v6612 = vpop.f32.mrf.mxu0
    %v6613 = vadd.f32 0.0, %v6612
    %v6614 = vpop.f32.mrf.mxu0
    %v6615 = vadd.f32 0.0, %v6614
    %v6616 = vpop.f32.mrf.mxu0
    %v6617 = vadd.f32 0.0, %v6616
    %v6618 = vpop.f32.mrf.mxu0
    %v6619 = vadd.f32 0.0, %v6618
    %6620 = vdwg.mxu0
    %6621 = vmatprep.subr.bf16.mxu0 0
    %6622 = vmatpush1.bf16.msra.mxu0 0
    %6623 = vmatprep.subr.bf16.mxu0 0
    %6624 = vmatpush1.bf16.msra.mxu0 0
    %6625 = vmatprep.subr.bf16.mxu0 0
    %6626 = vmatpush1.bf16.msra.mxu0 0
    %6627 = vmatprep.subr.bf16.mxu0 0
    %6628 = vmatpush1.bf16.msra.mxu0 0
    %6629 = vmatprep.subr.bf16.mxu0 0
    %6630 = vmatpush1.bf16.msra.mxu0 0
    %6631 = vmatprep.subr.bf16.mxu0 0
    %6632 = vmatpush1.bf16.msra.mxu0 0
    %6633 = vmatprep.subr.bf16.mxu0 0
    %6634 = vmatpush1.bf16.msra.mxu0 0
    %6635 = vmatprep.subr.bf16.mxu0 0
    %6636 = vmatpush1.bf16.msra.mxu0 %v6365
    %6637 = vmatprep.subr.bf16.mxu0 0
    %6638 = vmatpush2.bf16.msra.mxu0 0
    %6639 = vmatprep.subr.bf16.mxu0 0
    %6640 = vmatpush2.bf16.msra.mxu0 0
    %6641 = vmatprep.subr.bf16.mxu0 0
    %6642 = vmatpush2.bf16.msra.mxu0 0
    %6643 = vmatprep.subr.bf16.mxu0 0
    %6644 = vmatpush2.bf16.msra.mxu0 0
    %6645 = vmatprep.subr.bf16.mxu0 0
    %6646 = vmatpush2.bf16.msra.mxu0 0
    %6647 = vmatprep.subr.bf16.mxu0 0
    %6648 = vmatpush2.bf16.msra.mxu0 0
    %6649 = vmatprep.subr.bf16.mxu0 0
    %6650 = vmatpush2.bf16.msra.mxu0 0
    %6651 = vmatprep.subr.bf16.mxu0 0
    %6652 = vmatpush2.bf16.msra.mxu0 0
    %6653 = vmatprep.mubr.bf16.mxu0 0
    %6654 = vmatmul.mubr.bf16.gmra.mxu0 %v6372
    %v6655 = vpop.f32.mrf.mxu0
    %v6656 = vadd.f32 0.0, %v6655
    %v6657 = vpop.f32.mrf.mxu0
    %v6658 = vpop.f32.mrf.mxu0
    %v6659 = vadd.f32 0.0, %v6658
    %v6660 = vpop.f32.mrf.mxu0
    %6661 = vmatprep.mubr.bf16.mxu0 0
    %6662 = vmatmul.mubr.bf16.gmra.mxu0 %v6375
    %v6663 = vpop.f32.mrf.mxu0
    %v6664 = vadd.f32 0.0, %v6663
    %v6665 = vpop.f32.mrf.mxu0
    %v6666 = vpop.f32.mrf.mxu0
    %v6667 = vadd.f32 0.0, %v6666
    %v6668 = vpop.f32.mrf.mxu0
    %6669 = vmatprep.mubr.bf16.mxu0 0
    %6670 = vmatmul.mubr.bf16.gmra.mxu0 %v6378
    %v6671 = vpop.f32.mrf.mxu0
    %v6672 = vadd.f32 0.0, %v6671
    %v6673 = vpop.f32.mrf.mxu0
    %v6674 = vpop.f32.mrf.mxu0
    %v6675 = vadd.f32 0.0, %v6674
    %v6676 = vpop.f32.mrf.mxu0
    %6677 = vmatprep.mubr.bf16.mxu0 0
    %6678 = vmatmul.mubr.bf16.gmra.mxu0 %v6381
    %v6679 = vpop.f32.mrf.mxu0
    %v6680 = vadd.f32 0.0, %v6679
    %v6681 = vpop.f32.mrf.mxu0
    %v6682 = vpop.f32.mrf.mxu0
    %v6683 = vadd.f32 0.0, %v6682
    %v6684 = vpop.f32.mrf.mxu0
    %6685 = vmatprep.mubr.bf16.mxu0 0
    %6686 = vmatmul.mubr.bf16.gmra.mxu0 %v6384
    %v6687 = vpop.f32.mrf.mxu0
    %v6688 = vadd.f32 0.0, %v6687
    %v6689 = vpop.f32.mrf.mxu0
    %v6690 = vpop.f32.mrf.mxu0
    %v6691 = vadd.f32 0.0, %v6690
    %v6692 = vpop.f32.mrf.mxu0
    %6693 = vmatprep.mubr.bf16.mxu0 0
    %6694 = vmatmul.mubr.bf16.gmra.mxu0 %v6387
    %v6695 = vpop.f32.mrf.mxu0
    %v6696 = vadd.f32 0.0, %v6695
    %v6697 = vpop.f32.mrf.mxu0
    %v6698 = vpop.f32.mrf.mxu0
    %v6699 = vadd.f32 0.0, %v6698
    %v6700 = vpop.f32.mrf.mxu0
    %6701 = vmatprep.mubr.bf16.mxu0 0
    %6702 = vmatmul.mubr.bf16.gmra.mxu0 %v6390
    %v6703 = vpop.f32.mrf.mxu0
    %v6704 = vadd.f32 0.0, %v6703
    %v6705 = vpop.f32.mrf.mxu0
    %v6706 = vpop.f32.mrf.mxu0
    %v6707 = vadd.f32 0.0, %v6706
    %v6708 = vpop.f32.mrf.mxu0
    %6709 = vmatprep.mubr.bf16.mxu0 0
    %6710 = vmatmul.mubr.bf16.gmra.mxu0 %v6393
    %v6711 = vpop.f32.mrf.mxu0
    %v6712 = vadd.f32 0.0, %v6711
    %v6713 = vpop.f32.mrf.mxu0
    %v6714 = vpop.f32.mrf.mxu0
    %v6715 = vadd.f32 0.0, %v6714
    %v6716 = vpop.f32.mrf.mxu0
    %6717 = vdwg.mxu0
    %6734 = vrot.lane.b32.xlu0 %v6430, 64
    %v6735 = vpop.permute.xlu0 %6734
    %6736 = vrot.lane.b32.xlu0 %v6434, 64
    %v6737 = vpop.permute.xlu0 %6736
    %6738 = vrot.lane.b32.xlu0 %v6440, 64
    %v6739 = vpop.permute.xlu0 %6738
    %6740 = vrot.lane.b32.xlu0 %v6444, 64
    %v6741 = vpop.permute.xlu0 %6740
    %6742 = vrot.lane.b32.xlu0 %v6450, 64
    %v6743 = vpop.permute.xlu0 %6742
    %6744 = vrot.lane.b32.xlu0 %v6454, 64
    %v6745 = vpop.permute.xlu0 %6744
    %6746 = vrot.lane.b32.xlu0 %v6460, 64
    %v6747 = vpop.permute.xlu0 %6746
    %6748 = vrot.lane.b32.xlu0 %v6464, 64
    %v6749 = vpop.permute.xlu0 %6748
    %6750 = vrot.lane.b32.xlu0 %v6470, 64
    %v6751 = vpop.permute.xlu0 %6750
    %6752 = vrot.lane.b32.xlu0 %v6474, 64
    %v6753 = vpop.permute.xlu0 %6752
    %6754 = vrot.lane.b32.xlu0 %v6480, 64
    %v6755 = vpop.permute.xlu0 %6754
    %6756 = vrot.lane.b32.xlu0 %v6484, 64
    %v6757 = vpop.permute.xlu0 %6756
    %6758 = vrot.lane.b32.xlu0 %v6490, 64
    %v6759 = vpop.permute.xlu0 %6758
    %6760 = vrot.lane.b32.xlu0 %v6494, 64
    %v6761 = vpop.permute.xlu0 %6760
    %6762 = vrot.lane.b32.xlu0 %v6500, 64
    %v6763 = vpop.permute.xlu0 %6762
    %6764 = vrot.lane.b32.xlu0 %v6504, 64
    %v6765 = vpop.permute.xlu0 %6764
    %6798 = vrot.lane.b32.xlu0 %v6432, 64
    %v6799 = vpop.permute.xlu0 %6798
    %6800 = vrot.lane.b32.xlu0 %v6436, 64
    %v6801 = vpop.permute.xlu0 %6800
    %6802 = vrot.lane.b32.xlu0 %v6442, 64
    %v6803 = vpop.permute.xlu0 %6802
    %6804 = vrot.lane.b32.xlu0 %v6446, 64
    %v6805 = vpop.permute.xlu0 %6804
    %6806 = vrot.lane.b32.xlu0 %v6452, 64
    %v6807 = vpop.permute.xlu0 %6806
    %6808 = vrot.lane.b32.xlu0 %v6456, 64
    %v6809 = vpop.permute.xlu0 %6808
    %6810 = vrot.lane.b32.xlu0 %v6462, 64
    %v6811 = vpop.permute.xlu0 %6810
    %6812 = vrot.lane.b32.xlu0 %v6466, 64
    %v6813 = vpop.permute.xlu0 %6812
    %6814 = vrot.lane.b32.xlu0 %v6472, 64
    %v6815 = vpop.permute.xlu0 %6814
    %6816 = vrot.lane.b32.xlu0 %v6476, 64
    %v6817 = vpop.permute.xlu0 %6816
    %6818 = vrot.lane.b32.xlu0 %v6482, 64
    %v6819 = vpop.permute.xlu0 %6818
    %6820 = vrot.lane.b32.xlu0 %v6486, 64
    %v6821 = vpop.permute.xlu0 %6820
    %6822 = vrot.lane.b32.xlu0 %v6492, 64
    %v6823 = vpop.permute.xlu0 %6822
    %6824 = vrot.lane.b32.xlu0 %v6496, 64
    %v6825 = vpop.permute.xlu0 %6824
    %6826 = vrot.lane.b32.xlu0 %v6502, 64
    %v6827 = vpop.permute.xlu0 %6826
    %6828 = vrot.lane.b32.xlu0 %v6506, 64
    %v6829 = vpop.permute.xlu0 %6828
    %6862 = vrot.lane.b32.xlu0 %v6543, 64
    %v6863 = vpop.permute.xlu0 %6862
    %6864 = vrot.lane.b32.xlu0 %v6547, 64
    %v6865 = vpop.permute.xlu0 %6864
    %6866 = vrot.lane.b32.xlu0 %v6553, 64
    %v6867 = vpop.permute.xlu0 %6866
    %6868 = vrot.lane.b32.xlu0 %v6557, 64
    %v6869 = vpop.permute.xlu0 %6868
    %6870 = vrot.lane.b32.xlu0 %v6563, 64
    %v6871 = vpop.permute.xlu0 %6870
    %6872 = vrot.lane.b32.xlu0 %v6567, 64
    %v6873 = vpop.permute.xlu0 %6872
    %6874 = vrot.lane.b32.xlu0 %v6573, 64
    %v6875 = vpop.permute.xlu0 %6874
    %6876 = vrot.lane.b32.xlu0 %v6577, 64
    %v6877 = vpop.permute.xlu0 %6876
    %6878 = vrot.lane.b32.xlu0 %v6583, 64
    %v6879 = vpop.permute.xlu0 %6878
    %6880 = vrot.lane.b32.xlu0 %v6587, 64
    %v6881 = vpop.permute.xlu0 %6880
    %6882 = vrot.lane.b32.xlu0 %v6593, 64
    %v6883 = vpop.permute.xlu0 %6882
    %6884 = vrot.lane.b32.xlu0 %v6597, 64
    %v6885 = vpop.permute.xlu0 %6884
    %6886 = vrot.lane.b32.xlu0 %v6603, 64
    %v6887 = vpop.permute.xlu0 %6886
    %6888 = vrot.lane.b32.xlu0 %v6607, 64
    %v6889 = vpop.permute.xlu0 %6888
    %6890 = vrot.lane.b32.xlu0 %v6613, 64
    %v6891 = vpop.permute.xlu0 %6890
    %6892 = vrot.lane.b32.xlu0 %v6617, 64
    %v6893 = vpop.permute.xlu0 %6892
    %6926 = vrot.lane.b32.xlu0 %v6545, 64
    %v6927 = vpop.permute.xlu0 %6926
    %6928 = vrot.lane.b32.xlu0 %v6549, 64
    %v6929 = vpop.permute.xlu0 %6928
    %6930 = vrot.lane.b32.xlu0 %v6555, 64
    %v6931 = vpop.permute.xlu0 %6930
    %6932 = vrot.lane.b32.xlu0 %v6559, 64
    %v6933 = vpop.permute.xlu0 %6932
    %6934 = vrot.lane.b32.xlu0 %v6565, 64
    %v6935 = vpop.permute.xlu0 %6934
    %6936 = vrot.lane.b32.xlu0 %v6569, 64
    %v6937 = vpop.permute.xlu0 %6936
    %6938 = vrot.lane.b32.xlu0 %v6575, 64
    %v6939 = vpop.permute.xlu0 %6938
    %6940 = vrot.lane.b32.xlu0 %v6579, 64
    %v6941 = vpop.permute.xlu0 %6940
    %6942 = vrot.lane.b32.xlu0 %v6585, 64
    %v6943 = vpop.permute.xlu0 %6942
    %6944 = vrot.lane.b32.xlu0 %v6589, 64
    %v6945 = vpop.permute.xlu0 %6944
    %6946 = vrot.lane.b32.xlu0 %v6595, 64
    %v6947 = vpop.permute.xlu0 %6946
    %6948 = vrot.lane.b32.xlu0 %v6599, 64
    %v6949 = vpop.permute.xlu0 %6948
    %6950 = vrot.lane.b32.xlu0 %v6605, 64
    %v6951 = vpop.permute.xlu0 %6950
    %6952 = vrot.lane.b32.xlu0 %v6609, 64
    %v6953 = vpop.permute.xlu0 %6952
    %6954 = vrot.lane.b32.xlu0 %v6615, 64
    %v6955 = vpop.permute.xlu0 %6954
    %6956 = vrot.lane.b32.xlu0 %v6619, 64
    %v6957 = vpop.permute.xlu0 %6956
    %v6974 = vpack.c.bf16 %v6434, %v6430
    %v6975 = vpack.c.bf16 %v6444, %v6440
    %v6976 = vpack.c.bf16 %v6454, %v6450
    %v6977 = vpack.c.bf16 %v6464, %v6460
    %v6978 = vpack.c.bf16 %v6474, %v6470
    %v6979 = vpack.c.bf16 %v6484, %v6480
    %v6980 = vpack.c.bf16 %v6494, %v6490
    %v6981 = vpack.c.bf16 %v6504, %v6500
    %v6982 = vpack.c.bf16 %v6737, %v6735
    %v6983 = vpack.c.bf16 %v6741, %v6739
    %v6984 = vpack.c.bf16 %v6745, %v6743
    %v6985 = vpack.c.bf16 %v6749, %v6747
    %v6986 = vpack.c.bf16 %v6753, %v6751
    %v6987 = vpack.c.bf16 %v6757, %v6755
    %v6988 = vpack.c.bf16 %v6761, %v6759
    %v6989 = vpack.c.bf16 %v6765, %v6763
    %v6990 = vpack.c.bf16 %v6436, %v6432
    %v6991 = vpack.c.bf16 %v6446, %v6442
    %v6992 = vpack.c.bf16 %v6456, %v6452
    %v6993 = vpack.c.bf16 %v6466, %v6462
    %v6994 = vpack.c.bf16 %v6476, %v6472
    %v6995 = vpack.c.bf16 %v6486, %v6482
    %v6996 = vpack.c.bf16 %v6496, %v6492
    %v6997 = vpack.c.bf16 %v6506, %v6502
    %v6998 = vpack.c.bf16 %v6801, %v6799
    %v6999 = vpack.c.bf16 %v6805, %v6803
    %v7000 = vpack.c.bf16 %v6809, %v6807
    %v7001 = vpack.c.bf16 %v6813, %v6811
    %v7002 = vpack.c.bf16 %v6817, %v6815
    %v7003 = vpack.c.bf16 %v6821, %v6819
    %v7004 = vpack.c.bf16 %v6825, %v6823
    %v7005 = vpack.c.bf16 %v6829, %v6827
    %v7006 = vpack.c.bf16 %v6547, %v6543
    %v7007 = vpack.c.bf16 %v6557, %v6553
    %v7008 = vpack.c.bf16 %v6567, %v6563
    %v7009 = vpack.c.bf16 %v6577, %v6573
    %v7010 = vpack.c.bf16 %v6587, %v6583
    %v7011 = vpack.c.bf16 %v6597, %v6593
    %v7012 = vpack.c.bf16 %v6607, %v6603
    %v7013 = vpack.c.bf16 %v6617, %v6613
    %v7014 = vpack.c.bf16 %v6865, %v6863
    %v7015 = vpack.c.bf16 %v6869, %v6867
    %v7016 = vpack.c.bf16 %v6873, %v6871
    %v7017 = vpack.c.bf16 %v6877, %v6875
    %v7018 = vpack.c.bf16 %v6881, %v6879
    %v7019 = vpack.c.bf16 %v6885, %v6883
    %v7020 = vpack.c.bf16 %v6889, %v6887
    %v7021 = vpack.c.bf16 %v6893, %v6891
    %v7022 = vpack.c.bf16 %v6549, %v6545
    %v7023 = vpack.c.bf16 %v6559, %v6555
    %v7024 = vpack.c.bf16 %v6569, %v6565
    %v7025 = vpack.c.bf16 %v6579, %v6575
    %v7026 = vpack.c.bf16 %v6589, %v6585
    %v7027 = vpack.c.bf16 %v6599, %v6595
    %v7028 = vpack.c.bf16 %v6609, %v6605
    %v7029 = vpack.c.bf16 %v6619, %v6615
    %v7030 = vpack.c.bf16 %v6929, %v6927
    %v7031 = vpack.c.bf16 %v6933, %v6931
    %v7032 = vpack.c.bf16 %v6937, %v6935
    %v7033 = vpack.c.bf16 %v6941, %v6939
    %v7034 = vpack.c.bf16 %v6945, %v6943
    %v7035 = vpack.c.bf16 %v6949, %v6947
    %v7036 = vpack.c.bf16 %v6953, %v6951
    %v7037 = vpack.c.bf16 %v6957, %v6955
    %v7038 = vpack.c.bf16 %v6659, %v6656
    %v7039 = vpack.c.bf16 %v6667, %v6664
    %v7040 = vpack.c.bf16 %v6675, %v6672
    %v7041 = vpack.c.bf16 %v6683, %v6680
    %v7042 = vpack.c.bf16 %v6691, %v6688
    %v7043 = vpack.c.bf16 %v6699, %v6696
    %v7044 = vpack.c.bf16 %v6707, %v6704
    %v7045 = vpack.c.bf16 %v6715, %v6712
    %v7046 = vld [vmem:[%s14] sm:$0xff]
    %v7047 = vld [vmem:[%s14 + $0x8] sm:$0xff]
    %v7048 = vld [vmem:[%s14 + $0x10] sm:$0xff]
    %v7049 = vld [vmem:[%s14 + $0x18] sm:$0xff]
    %v7050 = vld [vmem:[%s14 + $0x20] sm:$0xf]
    %v7051 = vld [vmem:[%s14 + $0x24] sm:$0xff]
    %v7052 = vld [vmem:[%s14 + $0x2c] sm:$0xff]
    %v7053 = vld [vmem:[%s14 + $0x34] sm:$0xff]
    %v7054 = vld [vmem:[%s14 + $0x3c] sm:$0xff]
    %v7055 = vld [vmem:[%s14 + $0x44] sm:$0xf]
    %v7056 = vld [vmem:[%s14 + $0x48] sm:$0xff]
    %v7057 = vld [vmem:[%s14 + $0x50] sm:$0xff]
    %v7058 = vld [vmem:[%s14 + $0x58] sm:$0xff]
    %v7059 = vld [vmem:[%s14 + $0x60] sm:$0xff]
    %v7060 = vld [vmem:[%s14 + $0x68] sm:$0xf]
    %v7061 = vld [vmem:[%s14 + $0x6c] sm:$0xff]
    %v7062 = vld [vmem:[%s14 + $0x74] sm:$0xff]
    %v7063 = vld [vmem:[%s14 + $0x7c] sm:$0xff]
    %v7064 = vld [vmem:[%s14 + $0x84] sm:$0xff]
    %v7065 = vld [vmem:[%s14 + $0x8c] sm:$0xf]
    %v7066 = vld [vmem:[%s14 + $0x90] sm:$0xff]
    %v7067 = vld [vmem:[%s14 + $0x98] sm:$0xff]
    %v7068 = vld [vmem:[%s14 + $0xa0] sm:$0xff]
    %v7069 = vld [vmem:[%s14 + $0xa8] sm:$0xff]
    %v7070 = vld [vmem:[%s14 + $0xb0] sm:$0xf]
    %v7071 = vld [vmem:[%s14 + $0xb4] sm:$0xff]
    %v7072 = vld [vmem:[%s14 + $0xbc] sm:$0xff]
    %v7073 = vld [vmem:[%s14 + $0xc4] sm:$0xff]
    %v7074 = vld [vmem:[%s14 + $0xcc] sm:$0xff]
    %v7075 = vld [vmem:[%s14 + $0xd4] sm:$0xf]
    %v7076 = vld [vmem:[%s14 + $0xd8] sm:$0xff]
    %v7077 = vld [vmem:[%s14 + $0xe0] sm:$0xff]
    %v7078 = vld [vmem:[%s14 + $0xe8] sm:$0xff]
    %v7079 = vld [vmem:[%s14 + $0xf0] sm:$0xff]
    %v7080 = vld [vmem:[%s14 + $0xf8] sm:$0xf]
    %v7081 = vld [vmem:[%s14 + $0xfc] sm:$0xff]
    %v7082 = vld [vmem:[%s14 + $0x104] sm:$0xff]
    %v7083 = vld [vmem:[%s14 + $0x10c] sm:$0xff]
    %v7084 = vld [vmem:[%s14 + $0x114] sm:$0xff]
    %v7085 = vld [vmem:[%s14 + $0x11c] sm:$0xf]
    %v7126 = vunpack.c.l.b16 %v7046
    %v7127 = vunpack.c.h.b16 %v7046
    %v7128 = vunpack.c.l.b16 %v7047
    %v7129 = vunpack.c.h.b16 %v7047
    %v7130 = vunpack.c.l.b16 %v7048
    %v7131 = vunpack.c.h.b16 %v7048
    %v7132 = vunpack.c.l.b16 %v7049
    %v7133 = vunpack.c.h.b16 %v7049
    %v7134 = vunpack.c.l.b16 %v7050
    %v7135 = vunpack.c.l.b16 %v7051
    %v7136 = vunpack.c.h.b16 %v7051
    %v7137 = vunpack.c.l.b16 %v7052
    %v7138 = vunpack.c.h.b16 %v7052
    %v7139 = vunpack.c.l.b16 %v7053
    %v7140 = vunpack.c.h.b16 %v7053
    %v7141 = vunpack.c.l.b16 %v7054
    %v7142 = vunpack.c.h.b16 %v7054
    %v7143 = vunpack.c.l.b16 %v7055
    %v7144 = vunpack.c.l.b16 %v7056
    %v7145 = vunpack.c.h.b16 %v7056
    %v7146 = vunpack.c.l.b16 %v7057
    %v7147 = vunpack.c.h.b16 %v7057
    %v7148 = vunpack.c.l.b16 %v7058
    %v7149 = vunpack.c.h.b16 %v7058
    %v7150 = vunpack.c.l.b16 %v7059
    %v7151 = vunpack.c.h.b16 %v7059
    %v7152 = vunpack.c.l.b16 %v7060
    %v7153 = vunpack.c.l.b16 %v7061
    %v7154 = vunpack.c.h.b16 %v7061
    %v7155 = vunpack.c.l.b16 %v7062
    %v7156 = vunpack.c.h.b16 %v7062
    %v7157 = vunpack.c.l.b16 %v7063
    %v7158 = vunpack.c.h.b16 %v7063
    %v7159 = vunpack.c.l.b16 %v7064
    %v7160 = vunpack.c.h.b16 %v7064
    %v7161 = vunpack.c.l.b16 %v7065
    %v7162 = vunpack.c.l.b16 %v7066
    %v7163 = vunpack.c.h.b16 %v7066
    %v7164 = vunpack.c.l.b16 %v7067
    %v7165 = vunpack.c.h.b16 %v7067
    %v7166 = vunpack.c.l.b16 %v7068
    %v7167 = vunpack.c.h.b16 %v7068
    %v7168 = vunpack.c.l.b16 %v7069
    %v7169 = vunpack.c.h.b16 %v7069
    %v7170 = vunpack.c.l.b16 %v7070
    %v7171 = vunpack.c.l.b16 %v7071
    %v7172 = vunpack.c.h.b16 %v7071
    %v7173 = vunpack.c.l.b16 %v7072
    %v7174 = vunpack.c.h.b16 %v7072
    %v7175 = vunpack.c.l.b16 %v7073
    %v7176 = vunpack.c.h.b16 %v7073
    %v7177 = vunpack.c.l.b16 %v7074
    %v7178 = vunpack.c.h.b16 %v7074
    %v7179 = vunpack.c.l.b16 %v7075
    %v7180 = vunpack.c.l.b16 %v7076
    %v7181 = vunpack.c.h.b16 %v7076
    %v7182 = vunpack.c.l.b16 %v7077
    %v7183 = vunpack.c.h.b16 %v7077
    %v7184 = vunpack.c.l.b16 %v7078
    %v7185 = vunpack.c.h.b16 %v7078
    %v7186 = vunpack.c.l.b16 %v7079
    %v7187 = vunpack.c.h.b16 %v7079
    %v7188 = vunpack.c.l.b16 %v7080
    %v7189 = vunpack.c.l.b16 %v7081
    %v7190 = vunpack.c.h.b16 %v7081
    %v7191 = vunpack.c.l.b16 %v7082
    %v7192 = vunpack.c.h.b16 %v7082
    %v7193 = vunpack.c.l.b16 %v7083
    %v7194 = vunpack.c.h.b16 %v7083
    %v7195 = vunpack.c.l.b16 %v7084
    %v7196 = vunpack.c.h.b16 %v7084
    %v7197 = vunpack.c.l.b16 %v7085
    %v7198 = vpack.c.b16 %v7135, %v7126
    %v7199 = vpack.c.b16 %v7136, %v7127
    %v7200 = vpack.c.b16 %v7137, %v7128
    %v7201 = vpack.c.b16 %v7138, %v7129
    %v7202 = vpack.c.b16 %v7139, %v7130
    %v7203 = vpack.c.b16 %v7140, %v7131
    %v7204 = vpack.c.b16 %v7141, %v7132
    %v7205 = vpack.c.b16 %v7142, %v7133
    %v7206 = vpack.c.b16 %v7143, %v7134
    %v7207 = vpack.c.b16 %v7153, %v7144
    %v7208 = vpack.c.b16 %v7154, %v7145
    %v7209 = vpack.c.b16 %v7155, %v7146
    %v7210 = vpack.c.b16 %v7156, %v7147
    %v7211 = vpack.c.b16 %v7157, %v7148
    %v7212 = vpack.c.b16 %v7158, %v7149
    %v7213 = vpack.c.b16 %v7159, %v7150
    %v7214 = vpack.c.b16 %v7160, %v7151
    %v7215 = vpack.c.b16 %v7161, %v7152
    %v7216 = vpack.c.b16 %v7171, %v7162
    %v7217 = vpack.c.b16 %v7172, %v7163
    %v7218 = vpack.c.b16 %v7173, %v7164
    %v7219 = vpack.c.b16 %v7174, %v7165
    %v7220 = vpack.c.b16 %v7175, %v7166
    %v7221 = vpack.c.b16 %v7176, %v7167
    %v7222 = vpack.c.b16 %v7177, %v7168
    %v7223 = vpack.c.b16 %v7178, %v7169
    %v7224 = vpack.c.b16 %v7179, %v7170
    %v7225 = vpack.c.b16 %v7189, %v7180
    %v7226 = vpack.c.b16 %v7190, %v7181
    %v7227 = vpack.c.b16 %v7191, %v7182
    %v7228 = vpack.c.b16 %v7192, %v7183
    %v7229 = vpack.c.b16 %v7193, %v7184
    %v7230 = vpack.c.b16 %v7194, %v7185
    %v7231 = vpack.c.b16 %v7195, %v7186
    %v7232 = vpack.c.b16 %v7196, %v7187
    %v7233 = vpack.c.b16 %v7197, %v7188
    %7270 = vmatprep.subr.bf16.mxu0 0
    %7271 = vmatpush1.bf16.msra.mxu0 %v6981
    %7272 = vmatprep.subr.bf16.mxu0 0
    %7273 = vmatpush1.bf16.msra.mxu0 %v6980
    %7274 = vmatprep.subr.bf16.mxu0 0
    %7275 = vmatpush1.bf16.msra.mxu0 %v6979
    %7276 = vmatprep.subr.bf16.mxu0 0
    %7277 = vmatpush1.bf16.msra.mxu0 %v6978
    %7278 = vmatprep.subr.bf16.mxu0 0
    %7279 = vmatpush1.bf16.msra.mxu0 %v6977
    %7280 = vmatprep.subr.bf16.mxu0 0
    %7281 = vmatpush1.bf16.msra.mxu0 %v6976
    %7282 = vmatprep.subr.bf16.mxu0 0
    %7283 = vmatpush1.bf16.msra.mxu0 %v6975
    %7284 = vmatprep.subr.bf16.mxu0 0
    %7285 = vmatpush1.bf16.msra.mxu0 %v6974
    %7286 = vmatprep.subr.bf16.mxu0 0
    %7287 = vmatpush2.bf16.msra.mxu0 %v6989
    %7288 = vmatprep.subr.bf16.mxu0 0
    %7289 = vmatpush2.bf16.msra.mxu0 %v6988
    %7290 = vmatprep.subr.bf16.mxu0 0
    %7291 = vmatpush2.bf16.msra.mxu0 %v6987
    %7292 = vmatprep.subr.bf16.mxu0 0
    %7293 = vmatpush2.bf16.msra.mxu0 %v6986
    %7294 = vmatprep.subr.bf16.mxu0 0
    %7295 = vmatpush2.bf16.msra.mxu0 %v6985
    %7296 = vmatprep.subr.bf16.mxu0 0
    %7297 = vmatpush2.bf16.msra.mxu0 %v6984
    %7298 = vmatprep.subr.bf16.mxu0 0
    %7299 = vmatpush2.bf16.msra.mxu0 %v6983
    %7300 = vmatprep.subr.bf16.mxu0 0
    %7301 = vmatpush2.bf16.msra.mxu0 %v6982
    %7302 = vmatprep.mubr.bf16.mxu0 %v7199
    %7303 = vmatmul.mubr.bf16.gmra.mxu0 %v7198
    %v7304 = vpop.f32.mrf.mxu0
    %v7305 = vadd.f32 0.0, %v7304
    %v7306 = vpop.f32.mrf.mxu0
    %v7307 = vpop.f32.mrf.mxu0
    %v7308 = vadd.f32 0.0, %v7307
    %v7309 = vpop.f32.mrf.mxu0
    %7310 = vmatprep.mubr.bf16.mxu0 %v7208
    %7311 = vmatmul.mubr.bf16.gmra.mxu0 %v7207
    %v7312 = vpop.f32.mrf.mxu0
    %v7313 = vadd.f32 0.0, %v7312
    %v7314 = vpop.f32.mrf.mxu0
    %v7315 = vpop.f32.mrf.mxu0
    %v7316 = vadd.f32 0.0, %v7315
    %v7317 = vpop.f32.mrf.mxu0
    %7318 = vmatprep.mubr.bf16.mxu0 %v7217
    %7319 = vmatmul.mubr.bf16.gmra.mxu0 %v7216
    %v7320 = vpop.f32.mrf.mxu0
    %v7321 = vadd.f32 0.0, %v7320
    %v7322 = vpop.f32.mrf.mxu0
    %v7323 = vpop.f32.mrf.mxu0
    %v7324 = vadd.f32 0.0, %v7323
    %v7325 = vpop.f32.mrf.mxu0
    %7326 = vmatprep.mubr.bf16.mxu0 %v7226
    %7327 = vmatmul.mubr.bf16.gmra.mxu0 %v7225
    %v7328 = vpop.f32.mrf.mxu0
    %v7329 = vadd.f32 0.0, %v7328
    %v7330 = vpop.f32.mrf.mxu0
    %v7331 = vpop.f32.mrf.mxu0
    %v7332 = vadd.f32 0.0, %v7331
    %v7333 = vpop.f32.mrf.mxu0
    %7334 = vdwg.mxu0
    %7335 = vmatprep.subr.bf16.mxu0 0
    %7336 = vmatpush1.bf16.msra.mxu0 %v6997
    %7337 = vmatprep.subr.bf16.mxu0 0
    %7338 = vmatpush1.bf16.msra.mxu0 %v6996
    %7339 = vmatprep.subr.bf16.mxu0 0
    %7340 = vmatpush1.bf16.msra.mxu0 %v6995
    %7341 = vmatprep.subr.bf16.mxu0 0
    %7342 = vmatpush1.bf16.msra.mxu0 %v6994
    %7343 = vmatprep.subr.bf16.mxu0 0
    %7344 = vmatpush1.bf16.msra.mxu0 %v6993
    %7345 = vmatprep.subr.bf16.mxu0 0
    %7346 = vmatpush1.bf16.msra.mxu0 %v6992
    %7347 = vmatprep.subr.bf16.mxu0 0
    %7348 = vmatpush1.bf16.msra.mxu0 %v6991
    %7349 = vmatprep.subr.bf16.mxu0 0
    %7350 = vmatpush1.bf16.msra.mxu0 %v6990
    %7351 = vmatprep.subr.bf16.mxu0 0
    %7352 = vmatpush2.bf16.msra.mxu0 %v7005
    %7353 = vmatprep.subr.bf16.mxu0 0
    %7354 = vmatpush2.bf16.msra.mxu0 %v7004
    %7355 = vmatprep.subr.bf16.mxu0 0
    %7356 = vmatpush2.bf16.msra.mxu0 %v7003
    %7357 = vmatprep.subr.bf16.mxu0 0
    %7358 = vmatpush2.bf16.msra.mxu0 %v7002
    %7359 = vmatprep.subr.bf16.mxu0 0
    %7360 = vmatpush2.bf16.msra.mxu0 %v7001
    %7361 = vmatprep.subr.bf16.mxu0 0
    %7362 = vmatpush2.bf16.msra.mxu0 %v7000
    %7363 = vmatprep.subr.bf16.mxu0 0
    %7364 = vmatpush2.bf16.msra.mxu0 %v6999
    %7365 = vmatprep.subr.bf16.mxu0 0
    %7366 = vmatpush2.bf16.msra.mxu0 %v6998
    %7367 = vmatprep.mubr.bf16.mxu0 %v7201
    %7368 = vmatmul.mubr.bf16.gmra.mxu0 %v7200
    %v7369 = vpop.f32.mrf.mxu0
    %v7370 = vadd.f32 %v7305, %v7369
    %v7371 = vpop.f32.mrf.mxu0
    %v7372 = vpop.f32.mrf.mxu0
    %v7373 = vadd.f32 %v7308, %v7372
    %v7374 = vpop.f32.mrf.mxu0
    %7375 = vmatprep.mubr.bf16.mxu0 %v7210
    %7376 = vmatmul.mubr.bf16.gmra.mxu0 %v7209
    %v7377 = vpop.f32.mrf.mxu0
    %v7378 = vadd.f32 %v7313, %v7377
    %v7379 = vpop.f32.mrf.mxu0
    %v7380 = vpop.f32.mrf.mxu0
    %v7381 = vadd.f32 %v7316, %v7380
    %v7382 = vpop.f32.mrf.mxu0
    %7383 = vmatprep.mubr.bf16.mxu0 %v7219
    %7384 = vmatmul.mubr.bf16.gmra.mxu0 %v7218
    %v7385 = vpop.f32.mrf.mxu0
    %v7386 = vadd.f32 %v7321, %v7385
    %v7387 = vpop.f32.mrf.mxu0
    %v7388 = vpop.f32.mrf.mxu0
    %v7389 = vadd.f32 %v7324, %v7388
    %v7390 = vpop.f32.mrf.mxu0
    %7391 = vmatprep.mubr.bf16.mxu0 %v7228
    %7392 = vmatmul.mubr.bf16.gmra.mxu0 %v7227
    %v7393 = vpop.f32.mrf.mxu0
    %v7394 = vadd.f32 %v7329, %v7393
    %v7395 = vpop.f32.mrf.mxu0
    %v7396 = vpop.f32.mrf.mxu0
    %v7397 = vadd.f32 %v7332, %v7396
    %v7398 = vpop.f32.mrf.mxu0
    %7399 = vdwg.mxu0
    %7400 = vmatprep.subr.bf16.mxu0 0
    %7401 = vmatpush1.bf16.msra.mxu0 %v7013
    %7402 = vmatprep.subr.bf16.mxu0 0
    %7403 = vmatpush1.bf16.msra.mxu0 %v7012
    %7404 = vmatprep.subr.bf16.mxu0 0
    %7405 = vmatpush1.bf16.msra.mxu0 %v7011
    %7406 = vmatprep.subr.bf16.mxu0 0
    %7407 = vmatpush1.bf16.msra.mxu0 %v7010
    %7408 = vmatprep.subr.bf16.mxu0 0
    %7409 = vmatpush1.bf16.msra.mxu0 %v7009
    %7410 = vmatprep.subr.bf16.mxu0 0
    %7411 = vmatpush1.bf16.msra.mxu0 %v7008
    %7412 = vmatprep.subr.bf16.mxu0 0
    %7413 = vmatpush1.bf16.msra.mxu0 %v7007
    %7414 = vmatprep.subr.bf16.mxu0 0
    %7415 = vmatpush1.bf16.msra.mxu0 %v7006
    %7416 = vmatprep.subr.bf16.mxu0 0
    %7417 = vmatpush2.bf16.msra.mxu0 %v7021
    %7418 = vmatprep.subr.bf16.mxu0 0
    %7419 = vmatpush2.bf16.msra.mxu0 %v7020
    %7420 = vmatprep.subr.bf16.mxu0 0
    %7421 = vmatpush2.bf16.msra.mxu0 %v7019
    %7422 = vmatprep.subr.bf16.mxu0 0
    %7423 = vmatpush2.bf16.msra.mxu0 %v7018
    %7424 = vmatprep.subr.bf16.mxu0 0
    %7425 = vmatpush2.bf16.msra.mxu0 %v7017
    %7426 = vmatprep.subr.bf16.mxu0 0
    %7427 = vmatpush2.bf16.msra.mxu0 %v7016
    %7428 = vmatprep.subr.bf16.mxu0 0
    %7429 = vmatpush2.bf16.msra.mxu0 %v7015
    %7430 = vmatprep.subr.bf16.mxu0 0
    %7431 = vmatpush2.bf16.msra.mxu0 %v7014
    %7432 = vmatprep.mubr.bf16.mxu0 %v7203
    %7433 = vmatmul.mubr.bf16.gmra.mxu0 %v7202
    %v7434 = vpop.f32.mrf.mxu0
    %v7435 = vadd.f32 %v7370, %v7434
    %v7436 = vpop.f32.mrf.mxu0
    %v7437 = vpop.f32.mrf.mxu0
    %v7438 = vadd.f32 %v7373, %v7437
    %v7439 = vpop.f32.mrf.mxu0
    %7440 = vmatprep.mubr.bf16.mxu0 %v7212
    %7441 = vmatmul.mubr.bf16.gmra.mxu0 %v7211
    %v7442 = vpop.f32.mrf.mxu0
    %v7443 = vadd.f32 %v7378, %v7442
    %v7444 = vpop.f32.mrf.mxu0
    %v7445 = vpop.f32.mrf.mxu0
    %v7446 = vadd.f32 %v7381, %v7445
    %v7447 = vpop.f32.mrf.mxu0
    %7448 = vmatprep.mubr.bf16.mxu0 %v7221
    %7449 = vmatmul.mubr.bf16.gmra.mxu0 %v7220
    %v7450 = vpop.f32.mrf.mxu0
    %v7451 = vadd.f32 %v7386, %v7450
    %v7452 = vpop.f32.mrf.mxu0
    %v7453 = vpop.f32.mrf.mxu0
    %v7454 = vadd.f32 %v7389, %v7453
    %v7455 = vpop.f32.mrf.mxu0
    %7456 = vmatprep.mubr.bf16.mxu0 %v7230
    %7457 = vmatmul.mubr.bf16.gmra.mxu0 %v7229
    %v7458 = vpop.f32.mrf.mxu0
    %v7459 = vadd.f32 %v7394, %v7458
    %v7460 = vpop.f32.mrf.mxu0
    %v7461 = vpop.f32.mrf.mxu0
    %v7462 = vadd.f32 %v7397, %v7461
    %v7463 = vpop.f32.mrf.mxu0
    %7464 = vdwg.mxu0
    %7465 = vmatprep.subr.bf16.mxu0 0
    %7466 = vmatpush1.bf16.msra.mxu0 %v7029
    %7467 = vmatprep.subr.bf16.mxu0 0
    %7468 = vmatpush1.bf16.msra.mxu0 %v7028
    %7469 = vmatprep.subr.bf16.mxu0 0
    %7470 = vmatpush1.bf16.msra.mxu0 %v7027
    %7471 = vmatprep.subr.bf16.mxu0 0
    %7472 = vmatpush1.bf16.msra.mxu0 %v7026
    %7473 = vmatprep.subr.bf16.mxu0 0
    %7474 = vmatpush1.bf16.msra.mxu0 %v7025
    %7475 = vmatprep.subr.bf16.mxu0 0
    %7476 = vmatpush1.bf16.msra.mxu0 %v7024
    %7477 = vmatprep.subr.bf16.mxu0 0
    %7478 = vmatpush1.bf16.msra.mxu0 %v7023
    %7479 = vmatprep.subr.bf16.mxu0 0
    %7480 = vmatpush1.bf16.msra.mxu0 %v7022
    %7481 = vmatprep.subr.bf16.mxu0 0
    %7482 = vmatpush2.bf16.msra.mxu0 %v7037
    %7483 = vmatprep.subr.bf16.mxu0 0
    %7484 = vmatpush2.bf16.msra.mxu0 %v7036
    %7485 = vmatprep.subr.bf16.mxu0 0
    %7486 = vmatpush2.bf16.msra.mxu0 %v7035
    %7487 = vmatprep.subr.bf16.mxu0 0
    %7488 = vmatpush2.bf16.msra.mxu0 %v7034
    %7489 = vmatprep.subr.bf16.mxu0 0
    %7490 = vmatpush2.bf16.msra.mxu0 %v7033
    %7491 = vmatprep.subr.bf16.mxu0 0
    %7492 = vmatpush2.bf16.msra.mxu0 %v7032
    %7493 = vmatprep.subr.bf16.mxu0 0
    %7494 = vmatpush2.bf16.msra.mxu0 %v7031
    %7495 = vmatprep.subr.bf16.mxu0 0
    %7496 = vmatpush2.bf16.msra.mxu0 %v7030
    %7497 = vmatprep.mubr.bf16.mxu0 %v7205
    %7498 = vmatmul.mubr.bf16.gmra.mxu0 %v7204
    %v7499 = vpop.f32.mrf.mxu0
    %v7500 = vadd.f32 %v7435, %v7499
    %v7501 = vpop.f32.mrf.mxu0
    %v7502 = vpop.f32.mrf.mxu0
    %v7503 = vadd.f32 %v7438, %v7502
    %v7504 = vpop.f32.mrf.mxu0
    %7505 = vmatprep.mubr.bf16.mxu0 %v7214
    %7506 = vmatmul.mubr.bf16.gmra.mxu0 %v7213
    %v7507 = vpop.f32.mrf.mxu0
    %v7508 = vadd.f32 %v7443, %v7507
    %v7509 = vpop.f32.mrf.mxu0
    %v7510 = vpop.f32.mrf.mxu0
    %v7511 = vadd.f32 %v7446, %v7510
    %v7512 = vpop.f32.mrf.mxu0
    %7513 = vmatprep.mubr.bf16.mxu0 %v7223
    %7514 = vmatmul.mubr.bf16.gmra.mxu0 %v7222
    %v7515 = vpop.f32.mrf.mxu0
    %v7516 = vadd.f32 %v7451, %v7515
    %v7517 = vpop.f32.mrf.mxu0
    %v7518 = vpop.f32.mrf.mxu0
    %v7519 = vadd.f32 %v7454, %v7518
    %v7520 = vpop.f32.mrf.mxu0
    %7521 = vmatprep.mubr.bf16.mxu0 %v7232
    %7522 = vmatmul.mubr.bf16.gmra.mxu0 %v7231
    %v7523 = vpop.f32.mrf.mxu0
    %v7524 = vadd.f32 %v7459, %v7523
    %v7525 = vpop.f32.mrf.mxu0
    %v7526 = vpop.f32.mrf.mxu0
    %v7527 = vadd.f32 %v7462, %v7526
    %v7528 = vpop.f32.mrf.mxu0
    %7529 = vdwg.mxu0
    %7530 = vmatprep.subr.bf16.mxu0 0
    %7531 = vmatpush1.bf16.msra.mxu0 %v7045
    %7532 = vmatprep.subr.bf16.mxu0 0
    %7533 = vmatpush1.bf16.msra.mxu0 %v7044
    %7534 = vmatprep.subr.bf16.mxu0 0
    %7535 = vmatpush1.bf16.msra.mxu0 %v7043
    %7536 = vmatprep.subr.bf16.mxu0 0
    %7537 = vmatpush1.bf16.msra.mxu0 %v7042
    %7538 = vmatprep.subr.bf16.mxu0 0
    %7539 = vmatpush1.bf16.msra.mxu0 %v7041
    %7540 = vmatprep.subr.bf16.mxu0 0
    %7541 = vmatpush1.bf16.msra.mxu0 %v7040
    %7542 = vmatprep.subr.bf16.mxu0 0
    %7543 = vmatpush1.bf16.msra.mxu0 %v7039
    %7544 = vmatprep.subr.bf16.mxu0 0
    %7545 = vmatpush1.bf16.msra.mxu0 %v7038
    %7546 = vmatprep.subr.bf16.mxu0 0
    %7547 = vmatpush2.bf16.msra.mxu0 0
    %7548 = vmatprep.subr.bf16.mxu0 0
    %7549 = vmatpush2.bf16.msra.mxu0 0
    %7550 = vmatprep.subr.bf16.mxu0 0
    %7551 = vmatpush2.bf16.msra.mxu0 0
    %7552 = vmatprep.subr.bf16.mxu0 0
    %7553 = vmatpush2.bf16.msra.mxu0 0
    %7554 = vmatprep.subr.bf16.mxu0 0
    %7555 = vmatpush2.bf16.msra.mxu0 0
    %7556 = vmatprep.subr.bf16.mxu0 0
    %7557 = vmatpush2.bf16.msra.mxu0 0
    %7558 = vmatprep.subr.bf16.mxu0 0
    %7559 = vmatpush2.bf16.msra.mxu0 0
    %7560 = vmatprep.subr.bf16.mxu0 0
    %7561 = vmatpush2.bf16.msra.mxu0 0
    %7562 = vmatprep.mubr.bf16.mxu0 0
    %7563 = vmatmul.mubr.bf16.gmra.mxu0 %v7206
    %v7564 = vpop.f32.mrf.mxu0
    %v7565 = vadd.f32 %v7500, %v7564
    %v7566 = vpop.f32.mrf.mxu0
    %v7567 = vpop.f32.mrf.mxu0
    %v7568 = vadd.f32 %v7503, %v7567
    %v7569 = vpop.f32.mrf.mxu0
    %7570 = vmatprep.mubr.bf16.mxu0 0
    %7571 = vmatmul.mubr.bf16.gmra.mxu0 %v7215
    %v7572 = vpop.f32.mrf.mxu0
    %v7573 = vadd.f32 %v7508, %v7572
    %v7574 = vpop.f32.mrf.mxu0
    %v7575 = vpop.f32.mrf.mxu0
    %v7576 = vadd.f32 %v7511, %v7575
    %v7577 = vpop.f32.mrf.mxu0
    %7578 = vmatprep.mubr.bf16.mxu0 0
    %7579 = vmatmul.mubr.bf16.gmra.mxu0 %v7224
    %v7580 = vpop.f32.mrf.mxu0
    %v7581 = vadd.f32 %v7516, %v7580
    %v7582 = vpop.f32.mrf.mxu0
    %v7583 = vpop.f32.mrf.mxu0
    %v7584 = vadd.f32 %v7519, %v7583
    %v7585 = vpop.f32.mrf.mxu0
    %7586 = vmatprep.mubr.bf16.mxu0 0
    %7587 = vmatmul.mubr.bf16.gmra.mxu0 %v7233
    %v7588 = vpop.f32.mrf.mxu0
    %v7589 = vadd.f32 %v7524, %v7588
    %v7590 = vpop.f32.mrf.mxu0
    %v7591 = vpop.f32.mrf.mxu0
    %v7592 = vadd.f32 %v7527, %v7591
    %v7593 = vpop.f32.mrf.mxu0
    %7594 = vdwg.mxu0
    %v7595 = vld [vmem:[%s20 + $0xe8] sm:$0xff]
    %v7596 = vld [vmem:[%s20 + $0xf0] sm:$0xff]
    %v7597 = vld [vmem:[%s20 + $0xf8] sm:$0xff]
    %v7598 = vld [vmem:[%s20 + $0x100] sm:$0xff]
    %v7599 = vsel %vm985, %v7565, 0.0
    %7600 = vadd.xlane.f32.xlu0 %v7599
    %v7601 = vpop.xlane.xlu0 %7600
    %v7602 = vsel %vm985, %v7568, 0.0
    %7603 = vadd.xlane.f32.xlu0 %v7602
    %v7604 = vpop.xlane.xlu0 %7603
    %v7605 = vsel %vm985, %v7573, 0.0
    %7606 = vadd.xlane.f32.xlu0 %v7605
    %v7607 = vpop.xlane.xlu0 %7606
    %v7608 = vsel %vm985, %v7576, 0.0
    %7609 = vadd.xlane.f32.xlu0 %v7608
    %v7610 = vpop.xlane.xlu0 %7609
    %v7611 = vsel %vm985, %v7581, 0.0
    %7612 = vadd.xlane.f32.xlu0 %v7611
    %v7613 = vpop.xlane.xlu0 %7612
    %v7614 = vsel %vm985, %v7584, 0.0
    %7615 = vadd.xlane.f32.xlu0 %v7614
    %v7616 = vpop.xlane.xlu0 %7615
    %v7617 = vsel %vm985, %v7589, 0.0
    %7618 = vadd.xlane.f32.xlu0 %v7617
    %v7619 = vpop.xlane.xlu0 %7618
    %v7620 = vsel %vm985, %v7592, 0.0
    %7621 = vadd.xlane.f32.xlu0 %v7620
    %v7622 = vpop.xlane.xlu0 %7621
    %v7623 = vmul.f32 %v7565, %v7565
    %v7624 = vmul.f32 %v7568, %v7568
    %v7625 = vmul.f32 %v7573, %v7573
    %v7626 = vmul.f32 %v7576, %v7576
    %v7627 = vmul.f32 %v7581, %v7581
    %v7628 = vmul.f32 %v7584, %v7584
    %v7629 = vmul.f32 %v7589, %v7589
    %v7630 = vmul.f32 %v7592, %v7592
    %v7631 = vsel %vm985, %v7623, 0.0
    %7632 = vadd.xlane.f32.xlu0 %v7631
    %v7633 = vpop.xlane.xlu0 %7632
    %v7634 = vsel %vm985, %v7624, 0.0
    %7635 = vadd.xlane.f32.xlu0 %v7634
    %v7636 = vpop.xlane.xlu0 %7635
    %v7637 = vsel %vm985, %v7625, 0.0
    %7638 = vadd.xlane.f32.xlu0 %v7637
    %v7639 = vpop.xlane.xlu0 %7638
    %v7640 = vsel %vm985, %v7626, 0.0
    %7641 = vadd.xlane.f32.xlu0 %v7640
    %v7642 = vpop.xlane.xlu0 %7641
    %v7643 = vsel %vm985, %v7627, 0.0
    %7644 = vadd.xlane.f32.xlu0 %v7643
    %v7645 = vpop.xlane.xlu0 %7644
    %v7646 = vsel %vm985, %v7628, 0.0
    %7647 = vadd.xlane.f32.xlu0 %v7646
    %v7648 = vpop.xlane.xlu0 %7647
    %v7649 = vsel %vm985, %v7629, 0.0
    %7650 = vadd.xlane.f32.xlu0 %v7649
    %v7651 = vpop.xlane.xlu0 %7650
    %v7652 = vsel %vm985, %v7630, 0.0
    %7653 = vadd.xlane.f32.xlu0 %v7652
    %v7654 = vpop.xlane.xlu0 %7653
    %v7655 = vadd.f32 %v7601, %v7613
    %v7656 = vadd.f32 %v7604, %v7616
    %v7657 = vadd.f32 %v7607, %v7619
    %v7658 = vadd.f32 %v7610, %v7622
    %v7659 = vadd.f32 %v7633, %v7645
    %v7660 = vadd.f32 %v7636, %v7648
    %v7661 = vadd.f32 %v7639, %v7651
    %v7662 = vadd.f32 %v7642, %v7654
    %v7663 = vmul.f32 %v7655, 0.0078125
    %v7664 = vmul.f32 %v7656, 0.0078125
    %v7665 = vmul.f32 %v7657, 0.0078125
    %v7666 = vmul.f32 %v7658, 0.0078125
    %v7667 = vmul.f32 %v7659, 0.0078125
    %v7668 = vmul.f32 %v7660, 0.0078125
    %v7669 = vmul.f32 %v7661, 0.0078125
    %v7670 = vmul.f32 %v7662, 0.0078125
    %v7671 = vmul.f32 %v7663, %v7663
    %v7672 = vmul.f32 %v7664, %v7664
    %v7673 = vmul.f32 %v7665, %v7665
    %v7674 = vmul.f32 %v7666, %v7666
    %v7675 = vsub.f32 %v7667, %v7671
    %v7676 = vsub.f32 %v7668, %v7672
    %v7677 = vsub.f32 %v7669, %v7673
    %v7678 = vsub.f32 %v7670, %v7674
    %v7679 = vmax.f32 %v7675, 0.0
    %v7680 = vmax.f32 %v7676, 0.0
    %v7681 = vmax.f32 %v7677, 0.0
    %v7682 = vmax.f32 %v7678, 0.0
    %v7683 = vadd.f32 %v7679, 1e-05
    %v7684 = vadd.f32 %v7680, 1e-05
    %v7685 = vadd.f32 %v7681, 1e-05
    %v7686 = vadd.f32 %v7682, 1e-05
    %v7687 = vrsqrt.pop %v7683
    %v7688 = vrsqrt.pop %v7684
    %v7689 = vrsqrt.pop %v7685
    %v7690 = vrsqrt.pop %v7686
    %v7691 = vmul.f32 %v7595, %v7687
    %v7692 = vmul.f32 %v7596, %v7688
    %v7693 = vmul.f32 %v7597, %v7689
    %v7694 = vmul.f32 %v7598, %v7690
    %v7695 = vmul.f32 %v7663, %v7691
    %v7696 = vmul.f32 %v7664, %v7692
    %v7697 = vmul.f32 %v7665, %v7693
    %v7698 = vmul.f32 %v7666, %v7694
    %7703 = vrot.lane.b32.xlu0 %v7695, 1
    %v7704 = vpop.permute.xlu0 %7703
    %7705 = vrot.lane.b32.xlu0 %v7696, 1
    %v7706 = vpop.permute.xlu0 %7705
    %7707 = vrot.lane.b32.xlu0 %v7697, 1
    %v7708 = vpop.permute.xlu0 %7707
    %7709 = vrot.lane.b32.xlu0 %v7698, 1
    %v7710 = vpop.permute.xlu0 %7709
    %v7715 = vsub.f32 %v7595, %v7704
    %v7716 = vsub.f32 %v7596, %v7706
    %v7717 = vsub.f32 %v7597, %v7708
    %v7718 = vsub.f32 %v7598, %v7710
    %7720 = vset.pattern.permute.xlu0 0
    %7721 = vperm.xlu0 %7720, %v7691
    %v7722 = vpop.permute.xlu0 %7721
    %7725 = vset.pattern.permute.xlu0 0
    %7726 = vperm.xlu0 %7725, %v7692
    %v7727 = vpop.permute.xlu0 %7726
    %7730 = vset.pattern.permute.xlu0 0
    %7731 = vperm.xlu0 %7730, %v7693
    %v7732 = vpop.permute.xlu0 %7731
    %7735 = vset.pattern.permute.xlu0 0
    %7736 = vperm.xlu0 %7735, %v7694
    %v7737 = vpop.permute.xlu0 %7736
    %v7739 = vmul.f32 %v7565, %v7722
    %v7740 = vmul.f32 %v7568, %v7727
    %v7741 = vmul.f32 %v7573, %v7732
    %v7742 = vmul.f32 %v7576, %v7737
    %v7743 = vmul.f32 %v7581, %v7722
    %v7744 = vmul.f32 %v7584, %v7727
    %v7745 = vmul.f32 %v7589, %v7732
    %v7746 = vmul.f32 %v7592, %v7737
    %7748 = vset.pattern.permute.xlu0 1
    %7749 = vperm.xlu0 %7748, %v7715
    %v7750 = vpop.permute.xlu0 %7749
    %7753 = vset.pattern.permute.xlu0 1
    %7754 = vperm.xlu0 %7753, %v7716
    %v7755 = vpop.permute.xlu0 %7754
    %7758 = vset.pattern.permute.xlu0 1
    %7759 = vperm.xlu0 %7758, %v7717
    %v7760 = vpop.permute.xlu0 %7759
    %7763 = vset.pattern.permute.xlu0 1
    %7764 = vperm.xlu0 %7763, %v7718
    %v7765 = vpop.permute.xlu0 %7764
    %v7767 = vadd.f32 %v7739, %v7750
    %v7768 = vadd.f32 %v7740, %v7755
    %v7769 = vadd.f32 %v7741, %v7760
    %v7770 = vadd.f32 %v7742, %v7765
    %v7771 = vadd.f32 %v7743, %v7750
    %v7772 = vadd.f32 %v7744, %v7755
    %v7773 = vadd.f32 %v7745, %v7760
    %v7774 = vadd.f32 %v7746, %v7765
    %vm7775 = vcmp.ge.f32.partialorder %v7767, 0.0
    %vm7776 = vcmp.ge.f32.partialorder %v7768, 0.0
    %vm7777 = vcmp.ge.f32.partialorder %v7769, 0.0
    %vm7778 = vcmp.ge.f32.partialorder %v7770, 0.0
    %vm7779 = vcmp.ge.f32.partialorder %v7771, 0.0
    %vm7780 = vcmp.ge.f32.partialorder %v7772, 0.0
    %vm7781 = vcmp.ge.f32.partialorder %v7773, 0.0
    %vm7782 = vcmp.ge.f32.partialorder %v7774, 0.0
    %v7783 = vmul.f32 %v7767, 0.01
    %v7784 = vmul.f32 %v7768, 0.01
    %v7785 = vmul.f32 %v7769, 0.01
    %v7786 = vmul.f32 %v7770, 0.01
    %v7787 = vmul.f32 %v7771, 0.01
    %v7788 = vmul.f32 %v7772, 0.01
    %v7789 = vmul.f32 %v7773, 0.01
    %v7790 = vmul.f32 %v7774, 0.01
    %v7791 = vsel %vm7775, %v7767, %v7783
    %v7792 = vsel %vm7776, %v7768, %v7784
    %v7793 = vsel %vm7777, %v7769, %v7785
    %v7794 = vsel %vm7778, %v7770, %v7786
    %v7795 = vsel %vm7779, %v7771, %v7787
    %v7796 = vsel %vm7780, %v7772, %v7788
    %v7797 = vsel %vm7781, %v7773, %v7789
    %v7798 = vsel %vm7782, %v7774, %v7790
    %v7799 = vpack.c.bf16 %v7792, %v7791
    %v7800 = vpack.c.bf16 %v7794, %v7793
    %v7801 = vpack.c.bf16 %v7796, %v7795
    %v7802 = vpack.c.bf16 %v7798, %v7797
    %v7803 = vld [vmem:[%s17] sm:$0xff]
    %v7804 = vld [vmem:[%s17 + $0x8] sm:$0xff]
    %v7805 = vld [vmem:[%s17 + $0x10] sm:$0xff]
    %v7806 = vld [vmem:[%s17 + $0x18] sm:$0xff]
    %v7807 = vld [vmem:[%s17 + $0x20] sm:$0xff]
    %v7808 = vld [vmem:[%s17 + $0x28] sm:$0xff]
    %v7809 = vld [vmem:[%s17 + $0x30] sm:$0xff]
    %v7810 = vld [vmem:[%s17 + $0x38] sm:$0xff]
    %v7811 = vld [vmem:[%s17 + $0x40] sm:$0xff]
    %v7812 = vld [vmem:[%s17 + $0x48] sm:$0xff]
    %v7813 = vld [vmem:[%s17 + $0x50] sm:$0xff]
    %v7814 = vld [vmem:[%s17 + $0x58] sm:$0xff]
    %v7815 = vld [vmem:[%s17 + $0x60] sm:$0xff]
    %v7816 = vld [vmem:[%s17 + $0x68] sm:$0xff]
    %v7817 = vld [vmem:[%s17 + $0x70] sm:$0xff]
    %v7818 = vld [vmem:[%s17 + $0x78] sm:$0xff]
    %v7819 = vld [vmem:[%s17 + $0x80] sm:$0xff]
    %v7820 = vld [vmem:[%s17 + $0x88] sm:$0xff]
    %v7821 = vld [vmem:[%s17 + $0x90] sm:$0xff]
    %v7822 = vld [vmem:[%s17 + $0x98] sm:$0xff]
    %v7823 = vld [vmem:[%s17 + $0xa0] sm:$0xff]
    %v7824 = vld [vmem:[%s17 + $0xa8] sm:$0xff]
    %v7825 = vld [vmem:[%s17 + $0xb0] sm:$0xff]
    %v7826 = vld [vmem:[%s17 + $0xb8] sm:$0xff]
    %v7827 = vld [vmem:[%s17 + $0xc0] sm:$0xff]
    %v7828 = vld [vmem:[%s17 + $0xc8] sm:$0xff]
    %v7829 = vld [vmem:[%s17 + $0xd0] sm:$0xff]
    %v7830 = vld [vmem:[%s17 + $0xd8] sm:$0xff]
    %v7831 = vld [vmem:[%s17 + $0xe0] sm:$0xff]
    %v7832 = vld [vmem:[%s17 + $0xe8] sm:$0xff]
    %v7833 = vld [vmem:[%s17 + $0xf0] sm:$0xff]
    %v7834 = vld [vmem:[%s17 + $0xf8] sm:$0xff]
    %v7835 = vld [vmem:[%s17 + $0x100] sm:$0xff]
    %v7836 = vld [vmem:[%s17 + $0x108] sm:$0xff]
    %v7837 = vld [vmem:[%s17 + $0x110] sm:$0xff]
    %v7838 = vld [vmem:[%s17 + $0x118] sm:$0xff]
    %v7839 = vld [vmem:[%s17 + $0x120] sm:$0xff]
    %v7840 = vld [vmem:[%s17 + $0x128] sm:$0xff]
    %v7841 = vld [vmem:[%s17 + $0x130] sm:$0xff]
    %v7842 = vld [vmem:[%s17 + $0x138] sm:$0xff]
    %v7843 = vld [vmem:[%s17 + $0x140] sm:$0xff]
    %v7844 = vld [vmem:[%s17 + $0x148] sm:$0xff]
    %v7845 = vld [vmem:[%s17 + $0x150] sm:$0xff]
    %v7846 = vld [vmem:[%s17 + $0x158] sm:$0xff]
    %v7847 = vld [vmem:[%s17 + $0x160] sm:$0xff]
    %v7848 = vld [vmem:[%s17 + $0x168] sm:$0xff]
    %v7849 = vld [vmem:[%s17 + $0x170] sm:$0xff]
    %v7850 = vld [vmem:[%s17 + $0x178] sm:$0xff]
    %v7851 = vld [vmem:[%s17 + $0x180] sm:$0xff]
    %v7852 = vld [vmem:[%s17 + $0x188] sm:$0xff]
    %v7853 = vld [vmem:[%s17 + $0x190] sm:$0xff]
    %v7854 = vld [vmem:[%s17 + $0x198] sm:$0xff]
    %v7855 = vld [vmem:[%s17 + $0x1a0] sm:$0xff]
    %v7856 = vld [vmem:[%s17 + $0x1a8] sm:$0xff]
    %v7857 = vld [vmem:[%s17 + $0x1b0] sm:$0xff]
    %v7858 = vld [vmem:[%s17 + $0x1b8] sm:$0xff]
    %v7859 = vld [vmem:[%s17 + $0x1c0] sm:$0xff]
    %v7860 = vld [vmem:[%s17 + $0x1c8] sm:$0xff]
    %v7861 = vld [vmem:[%s17 + $0x1d0] sm:$0xff]
    %v7862 = vld [vmem:[%s17 + $0x1d8] sm:$0xff]
    %v7863 = vld [vmem:[%s17 + $0x1e0] sm:$0xff]
    %v7864 = vld [vmem:[%s17 + $0x1e8] sm:$0xff]
    %v7865 = vld [vmem:[%s17 + $0x1f0] sm:$0xff]
    %v7866 = vld [vmem:[%s17 + $0x1f8] sm:$0xff]
    %v7867 = vld [vmem:[%s17 + $0x200] sm:$0xff]
    %v7868 = vld [vmem:[%s17 + $0x208] sm:$0xff]
    %v7869 = vld [vmem:[%s17 + $0x210] sm:$0xff]
    %v7870 = vld [vmem:[%s17 + $0x218] sm:$0xff]
    %v7871 = vld [vmem:[%s17 + $0x220] sm:$0xff]
    %v7872 = vld [vmem:[%s17 + $0x228] sm:$0xff]
    %v7873 = vld [vmem:[%s17 + $0x230] sm:$0xff]
    %v7874 = vld [vmem:[%s17 + $0x238] sm:$0xff]
    %v7947 = vunpack.c.l.b16 %v7803
    %v7948 = vunpack.c.h.b16 %v7803
    %v7949 = vunpack.c.l.b16 %v7804
    %v7950 = vunpack.c.h.b16 %v7804
    %v7951 = vunpack.c.l.b16 %v7805
    %v7952 = vunpack.c.h.b16 %v7805
    %v7953 = vunpack.c.l.b16 %v7806
    %v7954 = vunpack.c.h.b16 %v7806
    %v7955 = vunpack.c.l.b16 %v7807
    %v7956 = vunpack.c.h.b16 %v7807
    %v7957 = vunpack.c.l.b16 %v7808
    %v7958 = vunpack.c.h.b16 %v7808
    %v7959 = vunpack.c.l.b16 %v7809
    %v7960 = vunpack.c.h.b16 %v7809
    %v7961 = vunpack.c.l.b16 %v7810
    %v7962 = vunpack.c.h.b16 %v7810
    %v7963 = vunpack.c.l.b16 %v7811
    %v7964 = vunpack.c.h.b16 %v7811
    %v7965 = vunpack.c.l.b16 %v7812
    %v7966 = vunpack.c.h.b16 %v7812
    %v7967 = vunpack.c.l.b16 %v7813
    %v7968 = vunpack.c.h.b16 %v7813
    %v7969 = vunpack.c.l.b16 %v7814
    %v7970 = vunpack.c.h.b16 %v7814
    %v7971 = vunpack.c.l.b16 %v7815
    %v7972 = vunpack.c.h.b16 %v7815
    %v7973 = vunpack.c.l.b16 %v7816
    %v7974 = vunpack.c.h.b16 %v7816
    %v7975 = vunpack.c.l.b16 %v7817
    %v7976 = vunpack.c.h.b16 %v7817
    %v7977 = vunpack.c.l.b16 %v7818
    %v7978 = vunpack.c.h.b16 %v7818
    %v7979 = vunpack.c.l.b16 %v7819
    %v7980 = vunpack.c.h.b16 %v7819
    %v7981 = vunpack.c.l.b16 %v7820
    %v7982 = vunpack.c.h.b16 %v7820
    %v7983 = vunpack.c.l.b16 %v7821
    %v7984 = vunpack.c.h.b16 %v7821
    %v7985 = vunpack.c.l.b16 %v7822
    %v7986 = vunpack.c.h.b16 %v7822
    %v7987 = vunpack.c.l.b16 %v7823
    %v7988 = vunpack.c.h.b16 %v7823
    %v7989 = vunpack.c.l.b16 %v7824
    %v7990 = vunpack.c.h.b16 %v7824
    %v7991 = vunpack.c.l.b16 %v7825
    %v7992 = vunpack.c.h.b16 %v7825
    %v7993 = vunpack.c.l.b16 %v7826
    %v7994 = vunpack.c.h.b16 %v7826
    %v7995 = vunpack.c.l.b16 %v7827
    %v7996 = vunpack.c.h.b16 %v7827
    %v7997 = vunpack.c.l.b16 %v7828
    %v7998 = vunpack.c.h.b16 %v7828
    %v7999 = vunpack.c.l.b16 %v7829
    %v8000 = vunpack.c.h.b16 %v7829
    %v8001 = vunpack.c.l.b16 %v7830
    %v8002 = vunpack.c.h.b16 %v7830
    %v8003 = vunpack.c.l.b16 %v7831
    %v8004 = vunpack.c.h.b16 %v7831
    %v8005 = vunpack.c.l.b16 %v7832
    %v8006 = vunpack.c.h.b16 %v7832
    %v8007 = vunpack.c.l.b16 %v7833
    %v8008 = vunpack.c.h.b16 %v7833
    %v8009 = vunpack.c.l.b16 %v7834
    %v8010 = vunpack.c.h.b16 %v7834
    %v8011 = vunpack.c.l.b16 %v7835
    %v8012 = vunpack.c.h.b16 %v7835
    %v8013 = vunpack.c.l.b16 %v7836
    %v8014 = vunpack.c.h.b16 %v7836
    %v8015 = vunpack.c.l.b16 %v7837
    %v8016 = vunpack.c.h.b16 %v7837
    %v8017 = vunpack.c.l.b16 %v7838
    %v8018 = vunpack.c.h.b16 %v7838
    %v8019 = vunpack.c.l.b16 %v7839
    %v8020 = vunpack.c.h.b16 %v7839
    %v8021 = vunpack.c.l.b16 %v7840
    %v8022 = vunpack.c.h.b16 %v7840
    %v8023 = vunpack.c.l.b16 %v7841
    %v8024 = vunpack.c.h.b16 %v7841
    %v8025 = vunpack.c.l.b16 %v7842
    %v8026 = vunpack.c.h.b16 %v7842
    %v8027 = vunpack.c.l.b16 %v7843
    %v8028 = vunpack.c.h.b16 %v7843
    %v8029 = vunpack.c.l.b16 %v7844
    %v8030 = vunpack.c.h.b16 %v7844
    %v8031 = vunpack.c.l.b16 %v7845
    %v8032 = vunpack.c.h.b16 %v7845
    %v8033 = vunpack.c.l.b16 %v7846
    %v8034 = vunpack.c.h.b16 %v7846
    %v8035 = vunpack.c.l.b16 %v7847
    %v8036 = vunpack.c.h.b16 %v7847
    %v8037 = vunpack.c.l.b16 %v7848
    %v8038 = vunpack.c.h.b16 %v7848
    %v8039 = vunpack.c.l.b16 %v7849
    %v8040 = vunpack.c.h.b16 %v7849
    %v8041 = vunpack.c.l.b16 %v7850
    %v8042 = vunpack.c.h.b16 %v7850
    %v8043 = vunpack.c.l.b16 %v7851
    %v8044 = vunpack.c.h.b16 %v7851
    %v8045 = vunpack.c.l.b16 %v7852
    %v8046 = vunpack.c.h.b16 %v7852
    %v8047 = vunpack.c.l.b16 %v7853
    %v8048 = vunpack.c.h.b16 %v7853
    %v8049 = vunpack.c.l.b16 %v7854
    %v8050 = vunpack.c.h.b16 %v7854
    %v8051 = vunpack.c.l.b16 %v7855
    %v8052 = vunpack.c.h.b16 %v7855
    %v8053 = vunpack.c.l.b16 %v7856
    %v8054 = vunpack.c.h.b16 %v7856
    %v8055 = vunpack.c.l.b16 %v7857
    %v8056 = vunpack.c.h.b16 %v7857
    %v8057 = vunpack.c.l.b16 %v7858
    %v8058 = vunpack.c.h.b16 %v7858
    %v8059 = vunpack.c.l.b16 %v7859
    %v8060 = vunpack.c.h.b16 %v7859
    %v8061 = vunpack.c.l.b16 %v7860
    %v8062 = vunpack.c.h.b16 %v7860
    %v8063 = vunpack.c.l.b16 %v7861
    %v8064 = vunpack.c.h.b16 %v7861
    %v8065 = vunpack.c.l.b16 %v7862
    %v8066 = vunpack.c.h.b16 %v7862
    %v8067 = vunpack.c.l.b16 %v7863
    %v8068 = vunpack.c.h.b16 %v7863
    %v8069 = vunpack.c.l.b16 %v7864
    %v8070 = vunpack.c.h.b16 %v7864
    %v8071 = vunpack.c.l.b16 %v7865
    %v8072 = vunpack.c.h.b16 %v7865
    %v8073 = vunpack.c.l.b16 %v7866
    %v8074 = vunpack.c.h.b16 %v7866
    %v8075 = vunpack.c.l.b16 %v7867
    %v8076 = vunpack.c.h.b16 %v7867
    %v8077 = vunpack.c.l.b16 %v7868
    %v8078 = vunpack.c.h.b16 %v7868
    %v8079 = vunpack.c.l.b16 %v7869
    %v8080 = vunpack.c.h.b16 %v7869
    %v8081 = vunpack.c.l.b16 %v7870
    %v8082 = vunpack.c.h.b16 %v7870
    %v8083 = vunpack.c.l.b16 %v7871
    %v8084 = vunpack.c.h.b16 %v7871
    %v8085 = vunpack.c.l.b16 %v7872
    %v8086 = vunpack.c.h.b16 %v7872
    %v8087 = vunpack.c.l.b16 %v7873
    %v8088 = vunpack.c.h.b16 %v7873
    %v8089 = vunpack.c.l.b16 %v7874
    %v8090 = vunpack.c.h.b16 %v7874
    %v8091 = vpack.c.b16 %v7965, %v7947
    %v8092 = vpack.c.b16 %v7966, %v7948
    %v8093 = vpack.c.b16 %v7967, %v7949
    %v8094 = vpack.c.b16 %v7968, %v7950
    %v8095 = vpack.c.b16 %v7969, %v7951
    %v8096 = vpack.c.b16 %v7970, %v7952
    %v8097 = vpack.c.b16 %v7971, %v7953
    %v8098 = vpack.c.b16 %v7972, %v7954
    %v8099 = vpack.c.b16 %v7973, %v7955
    %v8100 = vpack.c.b16 %v7974, %v7956
    %v8101 = vpack.c.b16 %v7975, %v7957
    %v8102 = vpack.c.b16 %v7976, %v7958
    %v8103 = vpack.c.b16 %v7977, %v7959
    %v8104 = vpack.c.b16 %v7978, %v7960
    %v8105 = vpack.c.b16 %v7979, %v7961
    %v8106 = vpack.c.b16 %v7980, %v7962
    %v8107 = vpack.c.b16 %v7981, %v7963
    %v8108 = vpack.c.b16 %v7982, %v7964
    %v8109 = vpack.c.b16 %v8001, %v7983
    %v8110 = vpack.c.b16 %v8002, %v7984
    %v8111 = vpack.c.b16 %v8003, %v7985
    %v8112 = vpack.c.b16 %v8004, %v7986
    %v8113 = vpack.c.b16 %v8005, %v7987
    %v8114 = vpack.c.b16 %v8006, %v7988
    %v8115 = vpack.c.b16 %v8007, %v7989
    %v8116 = vpack.c.b16 %v8008, %v7990
    %v8117 = vpack.c.b16 %v8009, %v7991
    %v8118 = vpack.c.b16 %v8010, %v7992
    %v8119 = vpack.c.b16 %v8011, %v7993
    %v8120 = vpack.c.b16 %v8012, %v7994
    %v8121 = vpack.c.b16 %v8013, %v7995
    %v8122 = vpack.c.b16 %v8014, %v7996
    %v8123 = vpack.c.b16 %v8015, %v7997
    %v8124 = vpack.c.b16 %v8016, %v7998
    %v8125 = vpack.c.b16 %v8017, %v7999
    %v8126 = vpack.c.b16 %v8018, %v8000
    %v8127 = vpack.c.b16 %v8037, %v8019
    %v8128 = vpack.c.b16 %v8038, %v8020
    %v8129 = vpack.c.b16 %v8039, %v8021
    %v8130 = vpack.c.b16 %v8040, %v8022
    %v8131 = vpack.c.b16 %v8041, %v8023
    %v8132 = vpack.c.b16 %v8042, %v8024
    %v8133 = vpack.c.b16 %v8043, %v8025
    %v8134 = vpack.c.b16 %v8044, %v8026
    %v8135 = vpack.c.b16 %v8045, %v8027
    %v8136 = vpack.c.b16 %v8046, %v8028
    %v8137 = vpack.c.b16 %v8047, %v8029
    %v8138 = vpack.c.b16 %v8048, %v8030
    %v8139 = vpack.c.b16 %v8049, %v8031
    %v8140 = vpack.c.b16 %v8050, %v8032
    %v8141 = vpack.c.b16 %v8051, %v8033
    %v8142 = vpack.c.b16 %v8052, %v8034
    %v8143 = vpack.c.b16 %v8053, %v8035
    %v8144 = vpack.c.b16 %v8054, %v8036
    %v8145 = vpack.c.b16 %v8073, %v8055
    %v8146 = vpack.c.b16 %v8074, %v8056
    %v8147 = vpack.c.b16 %v8075, %v8057
    %v8148 = vpack.c.b16 %v8076, %v8058
    %v8149 = vpack.c.b16 %v8077, %v8059
    %v8150 = vpack.c.b16 %v8078, %v8060
    %v8151 = vpack.c.b16 %v8079, %v8061
    %v8152 = vpack.c.b16 %v8080, %v8062
    %v8153 = vpack.c.b16 %v8081, %v8063
    %v8154 = vpack.c.b16 %v8082, %v8064
    %v8155 = vpack.c.b16 %v8083, %v8065
    %v8156 = vpack.c.b16 %v8084, %v8066
    %v8157 = vpack.c.b16 %v8085, %v8067
    %v8158 = vpack.c.b16 %v8086, %v8068
    %v8159 = vpack.c.b16 %v8087, %v8069
    %v8160 = vpack.c.b16 %v8088, %v8070
    %v8161 = vpack.c.b16 %v8089, %v8071
    %v8162 = vpack.c.b16 %v8090, %v8072
    %v8236 = vsel %vm985, %v7799, 0
    %v8239 = vsel %vm985, %v7800, 0
    %v8242 = vsel %vm985, %v7801, 0
    %v8245 = vsel %vm985, %v7802, 0
    %8247 = vmatprep.subr.bf16.mxu0 0
    %8248 = vmatpush1.bf16.msra.mxu0 0
    %8249 = vmatprep.subr.bf16.mxu0 0
    %8250 = vmatpush1.bf16.msra.mxu0 0
    %8251 = vmatprep.subr.bf16.mxu0 0
    %8252 = vmatpush1.bf16.msra.mxu0 0
    %8253 = vmatprep.subr.bf16.mxu0 0
    %8254 = vmatpush1.bf16.msra.mxu0 0
    %8255 = vmatprep.subr.bf16.mxu0 %v8146
    %8256 = vmatpush1.bf16.msra.mxu0 %v8145
    %8257 = vmatprep.subr.bf16.mxu0 %v8128
    %8258 = vmatpush1.bf16.msra.mxu0 %v8127
    %8259 = vmatprep.subr.bf16.mxu0 %v8110
    %8260 = vmatpush1.bf16.msra.mxu0 %v8109
    %8261 = vmatprep.subr.bf16.mxu0 %v8092
    %8262 = vmatpush1.bf16.msra.mxu0 %v8091
    %8263 = vmatprep.subr.bf16.mxu0 0
    %8264 = vmatpush2.bf16.msra.mxu0 0
    %8265 = vmatprep.subr.bf16.mxu0 0
    %8266 = vmatpush2.bf16.msra.mxu0 0
    %8267 = vmatprep.subr.bf16.mxu0 0
    %8268 = vmatpush2.bf16.msra.mxu0 0
    %8269 = vmatprep.subr.bf16.mxu0 0
    %8270 = vmatpush2.bf16.msra.mxu0 0
    %8271 = vmatprep.subr.bf16.mxu0 0
    %8272 = vmatpush2.bf16.msra.mxu0 0
    %8273 = vmatprep.subr.bf16.mxu0 0
    %8274 = vmatpush2.bf16.msra.mxu0 0
    %8275 = vmatprep.subr.bf16.mxu0 0
    %8276 = vmatpush2.bf16.msra.mxu0 0
    %8277 = vmatprep.subr.bf16.mxu0 0
    %8278 = vmatpush2.bf16.msra.mxu0 0
    %8279 = vmatprep.mubr.bf16.mxu0 0
    %8280 = vmatmul.mubr.bf16.gmra.mxu0 %v8236
    %v8281 = vpop.f32.mrf.mxu0
    %v8282 = vadd.f32 0.0, %v8281
    %v8283 = vpop.f32.mrf.mxu0
    %v8284 = vadd.f32 0.0, %v8283
    %v8285 = vpop.f32.mrf.mxu0
    %v8286 = vadd.f32 0.0, %v8285
    %v8287 = vpop.f32.mrf.mxu0
    %v8288 = vadd.f32 0.0, %v8287
    %8289 = vmatprep.mubr.bf16.mxu0 0
    %8290 = vmatmul.mubr.bf16.gmra.mxu0 %v8239
    %v8291 = vpop.f32.mrf.mxu0
    %v8292 = vadd.f32 0.0, %v8291
    %v8293 = vpop.f32.mrf.mxu0
    %v8294 = vadd.f32 0.0, %v8293
    %v8295 = vpop.f32.mrf.mxu0
    %v8296 = vadd.f32 0.0, %v8295
    %v8297 = vpop.f32.mrf.mxu0
    %v8298 = vadd.f32 0.0, %v8297
    %8299 = vmatprep.mubr.bf16.mxu0 0
    %8300 = vmatmul.mubr.bf16.gmra.mxu0 %v8242
    %v8301 = vpop.f32.mrf.mxu0
    %v8302 = vadd.f32 0.0, %v8301
    %v8303 = vpop.f32.mrf.mxu0
    %v8304 = vadd.f32 0.0, %v8303
    %v8305 = vpop.f32.mrf.mxu0
    %v8306 = vadd.f32 0.0, %v8305
    %v8307 = vpop.f32.mrf.mxu0
    %v8308 = vadd.f32 0.0, %v8307
    %8309 = vmatprep.mubr.bf16.mxu0 0
    %8310 = vmatmul.mubr.bf16.gmra.mxu0 %v8245
    %v8311 = vpop.f32.mrf.mxu0
    %v8312 = vadd.f32 0.0, %v8311
    %v8313 = vpop.f32.mrf.mxu0
    %v8314 = vadd.f32 0.0, %v8313
    %v8315 = vpop.f32.mrf.mxu0
    %v8316 = vadd.f32 0.0, %v8315
    %v8317 = vpop.f32.mrf.mxu0
    %v8318 = vadd.f32 0.0, %v8317
    %8319 = vdwg.mxu0
    %8320 = vmatprep.subr.bf16.mxu0 0
    %8321 = vmatpush1.bf16.msra.mxu0 0
    %8322 = vmatprep.subr.bf16.mxu0 0
    %8323 = vmatpush1.bf16.msra.mxu0 0
    %8324 = vmatprep.subr.bf16.mxu0 0
    %8325 = vmatpush1.bf16.msra.mxu0 0
    %8326 = vmatprep.subr.bf16.mxu0 0
    %8327 = vmatpush1.bf16.msra.mxu0 0
    %8328 = vmatprep.subr.bf16.mxu0 %v8148
    %8329 = vmatpush1.bf16.msra.mxu0 %v8147
    %8330 = vmatprep.subr.bf16.mxu0 %v8130
    %8331 = vmatpush1.bf16.msra.mxu0 %v8129
    %8332 = vmatprep.subr.bf16.mxu0 %v8112
    %8333 = vmatpush1.bf16.msra.mxu0 %v8111
    %8334 = vmatprep.subr.bf16.mxu0 %v8094
    %8335 = vmatpush1.bf16.msra.mxu0 %v8093
    %8336 = vmatprep.subr.bf16.mxu0 0
    %8337 = vmatpush2.bf16.msra.mxu0 0
    %8338 = vmatprep.subr.bf16.mxu0 0
    %8339 = vmatpush2.bf16.msra.mxu0 0
    %8340 = vmatprep.subr.bf16.mxu0 0
    %8341 = vmatpush2.bf16.msra.mxu0 0
    %8342 = vmatprep.subr.bf16.mxu0 0
    %8343 = vmatpush2.bf16.msra.mxu0 0
    %8344 = vmatprep.subr.bf16.mxu0 0
    %8345 = vmatpush2.bf16.msra.mxu0 0
    %8346 = vmatprep.subr.bf16.mxu0 0
    %8347 = vmatpush2.bf16.msra.mxu0 0
    %8348 = vmatprep.subr.bf16.mxu0 0
    %8349 = vmatpush2.bf16.msra.mxu0 0
    %8350 = vmatprep.subr.bf16.mxu0 0
    %8351 = vmatpush2.bf16.msra.mxu0 0
    %8352 = vmatprep.mubr.bf16.mxu0 0
    %8353 = vmatmul.mubr.bf16.gmra.mxu0 %v8236
    %v8354 = vpop.f32.mrf.mxu0
    %v8355 = vadd.f32 0.0, %v8354
    %v8356 = vpop.f32.mrf.mxu0
    %v8357 = vadd.f32 0.0, %v8356
    %v8358 = vpop.f32.mrf.mxu0
    %v8359 = vadd.f32 0.0, %v8358
    %v8360 = vpop.f32.mrf.mxu0
    %v8361 = vadd.f32 0.0, %v8360
    %8362 = vmatprep.mubr.bf16.mxu0 0
    %8363 = vmatmul.mubr.bf16.gmra.mxu0 %v8239
    %v8364 = vpop.f32.mrf.mxu0
    %v8365 = vadd.f32 0.0, %v8364
    %v8366 = vpop.f32.mrf.mxu0
    %v8367 = vadd.f32 0.0, %v8366
    %v8368 = vpop.f32.mrf.mxu0
    %v8369 = vadd.f32 0.0, %v8368
    %v8370 = vpop.f32.mrf.mxu0
    %v8371 = vadd.f32 0.0, %v8370
    %8372 = vmatprep.mubr.bf16.mxu0 0
    %8373 = vmatmul.mubr.bf16.gmra.mxu0 %v8242
    %v8374 = vpop.f32.mrf.mxu0
    %v8375 = vadd.f32 0.0, %v8374
    %v8376 = vpop.f32.mrf.mxu0
    %v8377 = vadd.f32 0.0, %v8376
    %v8378 = vpop.f32.mrf.mxu0
    %v8379 = vadd.f32 0.0, %v8378
    %v8380 = vpop.f32.mrf.mxu0
    %v8381 = vadd.f32 0.0, %v8380
    %8382 = vmatprep.mubr.bf16.mxu0 0
    %8383 = vmatmul.mubr.bf16.gmra.mxu0 %v8245
    %v8384 = vpop.f32.mrf.mxu0
    %v8385 = vadd.f32 0.0, %v8384
    %v8386 = vpop.f32.mrf.mxu0
    %v8387 = vadd.f32 0.0, %v8386
    %v8388 = vpop.f32.mrf.mxu0
    %v8389 = vadd.f32 0.0, %v8388
    %v8390 = vpop.f32.mrf.mxu0
    %v8391 = vadd.f32 0.0, %v8390
    %8392 = vdwg.mxu0
    %8393 = vmatprep.subr.bf16.mxu0 0
    %8394 = vmatpush1.bf16.msra.mxu0 0
    %8395 = vmatprep.subr.bf16.mxu0 0
    %8396 = vmatpush1.bf16.msra.mxu0 0
    %8397 = vmatprep.subr.bf16.mxu0 0
    %8398 = vmatpush1.bf16.msra.mxu0 0
    %8399 = vmatprep.subr.bf16.mxu0 0
    %8400 = vmatpush1.bf16.msra.mxu0 0
    %8401 = vmatprep.subr.bf16.mxu0 %v8150
    %8402 = vmatpush1.bf16.msra.mxu0 %v8149
    %8403 = vmatprep.subr.bf16.mxu0 %v8132
    %8404 = vmatpush1.bf16.msra.mxu0 %v8131
    %8405 = vmatprep.subr.bf16.mxu0 %v8114
    %8406 = vmatpush1.bf16.msra.mxu0 %v8113
    %8407 = vmatprep.subr.bf16.mxu0 %v8096
    %8408 = vmatpush1.bf16.msra.mxu0 %v8095
    %8409 = vmatprep.subr.bf16.mxu0 0
    %8410 = vmatpush2.bf16.msra.mxu0 0
    %8411 = vmatprep.subr.bf16.mxu0 0
    %8412 = vmatpush2.bf16.msra.mxu0 0
    %8413 = vmatprep.subr.bf16.mxu0 0
    %8414 = vmatpush2.bf16.msra.mxu0 0
    %8415 = vmatprep.subr.bf16.mxu0 0
    %8416 = vmatpush2.bf16.msra.mxu0 0
    %8417 = vmatprep.subr.bf16.mxu0 0
    %8418 = vmatpush2.bf16.msra.mxu0 0
    %8419 = vmatprep.subr.bf16.mxu0 0
    %8420 = vmatpush2.bf16.msra.mxu0 0
    %8421 = vmatprep.subr.bf16.mxu0 0
    %8422 = vmatpush2.bf16.msra.mxu0 0
    %8423 = vmatprep.subr.bf16.mxu0 0
    %8424 = vmatpush2.bf16.msra.mxu0 0
    %8425 = vmatprep.mubr.bf16.mxu0 0
    %8426 = vmatmul.mubr.bf16.gmra.mxu0 %v8236
    %v8427 = vpop.f32.mrf.mxu0
    %v8428 = vadd.f32 0.0, %v8427
    %v8429 = vpop.f32.mrf.mxu0
    %v8430 = vadd.f32 0.0, %v8429
    %v8431 = vpop.f32.mrf.mxu0
    %v8432 = vadd.f32 0.0, %v8431
    %v8433 = vpop.f32.mrf.mxu0
    %v8434 = vadd.f32 0.0, %v8433
    %8435 = vmatprep.mubr.bf16.mxu0 0
    %8436 = vmatmul.mubr.bf16.gmra.mxu0 %v8239
    %v8437 = vpop.f32.mrf.mxu0
    %v8438 = vadd.f32 0.0, %v8437
    %v8439 = vpop.f32.mrf.mxu0
    %v8440 = vadd.f32 0.0, %v8439
    %v8441 = vpop.f32.mrf.mxu0
    %v8442 = vadd.f32 0.0, %v8441
    %v8443 = vpop.f32.mrf.mxu0
    %v8444 = vadd.f32 0.0, %v8443
    %8445 = vmatprep.mubr.bf16.mxu0 0
    %8446 = vmatmul.mubr.bf16.gmra.mxu0 %v8242
    %v8447 = vpop.f32.mrf.mxu0
    %v8448 = vadd.f32 0.0, %v8447
    %v8449 = vpop.f32.mrf.mxu0
    %v8450 = vadd.f32 0.0, %v8449
    %v8451 = vpop.f32.mrf.mxu0
    %v8452 = vadd.f32 0.0, %v8451
    %v8453 = vpop.f32.mrf.mxu0
    %v8454 = vadd.f32 0.0, %v8453
    %8455 = vmatprep.mubr.bf16.mxu0 0
    %8456 = vmatmul.mubr.bf16.gmra.mxu0 %v8245
    %v8457 = vpop.f32.mrf.mxu0
    %v8458 = vadd.f32 0.0, %v8457
    %v8459 = vpop.f32.mrf.mxu0
    %v8460 = vadd.f32 0.0, %v8459
    %v8461 = vpop.f32.mrf.mxu0
    %v8462 = vadd.f32 0.0, %v8461
    %v8463 = vpop.f32.mrf.mxu0
    %v8464 = vadd.f32 0.0, %v8463
    %8465 = vdwg.mxu0
    %8466 = vmatprep.subr.bf16.mxu0 0
    %8467 = vmatpush1.bf16.msra.mxu0 0
    %8468 = vmatprep.subr.bf16.mxu0 0
    %8469 = vmatpush1.bf16.msra.mxu0 0
    %8470 = vmatprep.subr.bf16.mxu0 0
    %8471 = vmatpush1.bf16.msra.mxu0 0
    %8472 = vmatprep.subr.bf16.mxu0 0
    %8473 = vmatpush1.bf16.msra.mxu0 0
    %8474 = vmatprep.subr.bf16.mxu0 %v8152
    %8475 = vmatpush1.bf16.msra.mxu0 %v8151
    %8476 = vmatprep.subr.bf16.mxu0 %v8134
    %8477 = vmatpush1.bf16.msra.mxu0 %v8133
    %8478 = vmatprep.subr.bf16.mxu0 %v8116
    %8479 = vmatpush1.bf16.msra.mxu0 %v8115
    %8480 = vmatprep.subr.bf16.mxu0 %v8098
    %8481 = vmatpush1.bf16.msra.mxu0 %v8097
    %8482 = vmatprep.subr.bf16.mxu0 0
    %8483 = vmatpush2.bf16.msra.mxu0 0
    %8484 = vmatprep.subr.bf16.mxu0 0
    %8485 = vmatpush2.bf16.msra.mxu0 0
    %8486 = vmatprep.subr.bf16.mxu0 0
    %8487 = vmatpush2.bf16.msra.mxu0 0
    %8488 = vmatprep.subr.bf16.mxu0 0
    %8489 = vmatpush2.bf16.msra.mxu0 0
    %8490 = vmatprep.subr.bf16.mxu0 0
    %8491 = vmatpush2.bf16.msra.mxu0 0
    %8492 = vmatprep.subr.bf16.mxu0 0
    %8493 = vmatpush2.bf16.msra.mxu0 0
    %8494 = vmatprep.subr.bf16.mxu0 0
    %8495 = vmatpush2.bf16.msra.mxu0 0
    %8496 = vmatprep.subr.bf16.mxu0 0
    %8497 = vmatpush2.bf16.msra.mxu0 0
    %8498 = vmatprep.mubr.bf16.mxu0 0
    %8499 = vmatmul.mubr.bf16.gmra.mxu0 %v8236
    %v8500 = vpop.f32.mrf.mxu0
    %v8501 = vadd.f32 0.0, %v8500
    %v8502 = vpop.f32.mrf.mxu0
    %v8503 = vadd.f32 0.0, %v8502
    %v8504 = vpop.f32.mrf.mxu0
    %v8505 = vadd.f32 0.0, %v8504
    %v8506 = vpop.f32.mrf.mxu0
    %v8507 = vadd.f32 0.0, %v8506
    %8508 = vmatprep.mubr.bf16.mxu0 0
    %8509 = vmatmul.mubr.bf16.gmra.mxu0 %v8239
    %v8510 = vpop.f32.mrf.mxu0
    %v8511 = vadd.f32 0.0, %v8510
    %v8512 = vpop.f32.mrf.mxu0
    %v8513 = vadd.f32 0.0, %v8512
    %v8514 = vpop.f32.mrf.mxu0
    %v8515 = vadd.f32 0.0, %v8514
    %v8516 = vpop.f32.mrf.mxu0
    %v8517 = vadd.f32 0.0, %v8516
    %8518 = vmatprep.mubr.bf16.mxu0 0
    %8519 = vmatmul.mubr.bf16.gmra.mxu0 %v8242
    %v8520 = vpop.f32.mrf.mxu0
    %v8521 = vadd.f32 0.0, %v8520
    %v8522 = vpop.f32.mrf.mxu0
    %v8523 = vadd.f32 0.0, %v8522
    %v8524 = vpop.f32.mrf.mxu0
    %v8525 = vadd.f32 0.0, %v8524
    %v8526 = vpop.f32.mrf.mxu0
    %v8527 = vadd.f32 0.0, %v8526
    %8528 = vmatprep.mubr.bf16.mxu0 0
    %8529 = vmatmul.mubr.bf16.gmra.mxu0 %v8245
    %v8530 = vpop.f32.mrf.mxu0
    %v8531 = vadd.f32 0.0, %v8530
    %v8532 = vpop.f32.mrf.mxu0
    %v8533 = vadd.f32 0.0, %v8532
    %v8534 = vpop.f32.mrf.mxu0
    %v8535 = vadd.f32 0.0, %v8534
    %v8536 = vpop.f32.mrf.mxu0
    %v8537 = vadd.f32 0.0, %v8536
    %8538 = vdwg.mxu0
    %8539 = vmatprep.subr.bf16.mxu0 0
    %8540 = vmatpush1.bf16.msra.mxu0 0
    %8541 = vmatprep.subr.bf16.mxu0 0
    %8542 = vmatpush1.bf16.msra.mxu0 0
    %8543 = vmatprep.subr.bf16.mxu0 0
    %8544 = vmatpush1.bf16.msra.mxu0 0
    %8545 = vmatprep.subr.bf16.mxu0 0
    %8546 = vmatpush1.bf16.msra.mxu0 0
    %8547 = vmatprep.subr.bf16.mxu0 %v8154
    %8548 = vmatpush1.bf16.msra.mxu0 %v8153
    %8549 = vmatprep.subr.bf16.mxu0 %v8136
    %8550 = vmatpush1.bf16.msra.mxu0 %v8135
    %8551 = vmatprep.subr.bf16.mxu0 %v8118
    %8552 = vmatpush1.bf16.msra.mxu0 %v8117
    %8553 = vmatprep.subr.bf16.mxu0 %v8100
    %8554 = vmatpush1.bf16.msra.mxu0 %v8099
    %8555 = vmatprep.subr.bf16.mxu0 0
    %8556 = vmatpush2.bf16.msra.mxu0 0
    %8557 = vmatprep.subr.bf16.mxu0 0
    %8558 = vmatpush2.bf16.msra.mxu0 0
    %8559 = vmatprep.subr.bf16.mxu0 0
    %8560 = vmatpush2.bf16.msra.mxu0 0
    %8561 = vmatprep.subr.bf16.mxu0 0
    %8562 = vmatpush2.bf16.msra.mxu0 0
    %8563 = vmatprep.subr.bf16.mxu0 0
    %8564 = vmatpush2.bf16.msra.mxu0 0
    %8565 = vmatprep.subr.bf16.mxu0 0
    %8566 = vmatpush2.bf16.msra.mxu0 0
    %8567 = vmatprep.subr.bf16.mxu0 0
    %8568 = vmatpush2.bf16.msra.mxu0 0
    %8569 = vmatprep.subr.bf16.mxu0 0
    %8570 = vmatpush2.bf16.msra.mxu0 0
    %8571 = vmatprep.mubr.bf16.mxu0 0
    %8572 = vmatmul.mubr.bf16.gmra.mxu0 %v8236
    %v8573 = vpop.f32.mrf.mxu0
    %v8574 = vadd.f32 0.0, %v8573
    %v8575 = vpop.f32.mrf.mxu0
    %v8576 = vadd.f32 0.0, %v8575
    %v8577 = vpop.f32.mrf.mxu0
    %v8578 = vadd.f32 0.0, %v8577
    %v8579 = vpop.f32.mrf.mxu0
    %v8580 = vadd.f32 0.0, %v8579
    %8581 = vmatprep.mubr.bf16.mxu0 0
    %8582 = vmatmul.mubr.bf16.gmra.mxu0 %v8239
    %v8583 = vpop.f32.mrf.mxu0
    %v8584 = vadd.f32 0.0, %v8583
    %v8585 = vpop.f32.mrf.mxu0
    %v8586 = vadd.f32 0.0, %v8585
    %v8587 = vpop.f32.mrf.mxu0
    %v8588 = vadd.f32 0.0, %v8587
    %v8589 = vpop.f32.mrf.mxu0
    %v8590 = vadd.f32 0.0, %v8589
    %8591 = vmatprep.mubr.bf16.mxu0 0
    %8592 = vmatmul.mubr.bf16.gmra.mxu0 %v8242
    %v8593 = vpop.f32.mrf.mxu0
    %v8594 = vadd.f32 0.0, %v8593
    %v8595 = vpop.f32.mrf.mxu0
    %v8596 = vadd.f32 0.0, %v8595
    %v8597 = vpop.f32.mrf.mxu0
    %v8598 = vadd.f32 0.0, %v8597
    %v8599 = vpop.f32.mrf.mxu0
    %v8600 = vadd.f32 0.0, %v8599
    %8601 = vmatprep.mubr.bf16.mxu0 0
    %8602 = vmatmul.mubr.bf16.gmra.mxu0 %v8245
    %v8603 = vpop.f32.mrf.mxu0
    %v8604 = vadd.f32 0.0, %v8603
    %v8605 = vpop.f32.mrf.mxu0
    %v8606 = vadd.f32 0.0, %v8605
    %v8607 = vpop.f32.mrf.mxu0
    %v8608 = vadd.f32 0.0, %v8607
    %v8609 = vpop.f32.mrf.mxu0
    %v8610 = vadd.f32 0.0, %v8609
    %8611 = vdwg.mxu0
    %8612 = vmatprep.subr.bf16.mxu0 0
    %8613 = vmatpush1.bf16.msra.mxu0 0
    %8614 = vmatprep.subr.bf16.mxu0 0
    %8615 = vmatpush1.bf16.msra.mxu0 0
    %8616 = vmatprep.subr.bf16.mxu0 0
    %8617 = vmatpush1.bf16.msra.mxu0 0
    %8618 = vmatprep.subr.bf16.mxu0 0
    %8619 = vmatpush1.bf16.msra.mxu0 0
    %8620 = vmatprep.subr.bf16.mxu0 %v8156
    %8621 = vmatpush1.bf16.msra.mxu0 %v8155
    %8622 = vmatprep.subr.bf16.mxu0 %v8138
    %8623 = vmatpush1.bf16.msra.mxu0 %v8137
    %8624 = vmatprep.subr.bf16.mxu0 %v8120
    %8625 = vmatpush1.bf16.msra.mxu0 %v8119
    %8626 = vmatprep.subr.bf16.mxu0 %v8102
    %8627 = vmatpush1.bf16.msra.mxu0 %v8101
    %8628 = vmatprep.subr.bf16.mxu0 0
    %8629 = vmatpush2.bf16.msra.mxu0 0
    %8630 = vmatprep.subr.bf16.mxu0 0
    %8631 = vmatpush2.bf16.msra.mxu0 0
    %8632 = vmatprep.subr.bf16.mxu0 0
    %8633 = vmatpush2.bf16.msra.mxu0 0
    %8634 = vmatprep.subr.bf16.mxu0 0
    %8635 = vmatpush2.bf16.msra.mxu0 0
    %8636 = vmatprep.subr.bf16.mxu0 0
    %8637 = vmatpush2.bf16.msra.mxu0 0
    %8638 = vmatprep.subr.bf16.mxu0 0
    %8639 = vmatpush2.bf16.msra.mxu0 0
    %8640 = vmatprep.subr.bf16.mxu0 0
    %8641 = vmatpush2.bf16.msra.mxu0 0
    %8642 = vmatprep.subr.bf16.mxu0 0
    %8643 = vmatpush2.bf16.msra.mxu0 0
    %8644 = vmatprep.mubr.bf16.mxu0 0
    %8645 = vmatmul.mubr.bf16.gmra.mxu0 %v8236
    %v8646 = vpop.f32.mrf.mxu0
    %v8647 = vadd.f32 0.0, %v8646
    %v8648 = vpop.f32.mrf.mxu0
    %v8649 = vadd.f32 0.0, %v8648
    %v8650 = vpop.f32.mrf.mxu0
    %v8651 = vadd.f32 0.0, %v8650
    %v8652 = vpop.f32.mrf.mxu0
    %v8653 = vadd.f32 0.0, %v8652
    %8654 = vmatprep.mubr.bf16.mxu0 0
    %8655 = vmatmul.mubr.bf16.gmra.mxu0 %v8239
    %v8656 = vpop.f32.mrf.mxu0
    %v8657 = vadd.f32 0.0, %v8656
    %v8658 = vpop.f32.mrf.mxu0
    %v8659 = vadd.f32 0.0, %v8658
    %v8660 = vpop.f32.mrf.mxu0
    %v8661 = vadd.f32 0.0, %v8660
    %v8662 = vpop.f32.mrf.mxu0
    %v8663 = vadd.f32 0.0, %v8662
    %8664 = vmatprep.mubr.bf16.mxu0 0
    %8665 = vmatmul.mubr.bf16.gmra.mxu0 %v8242
    %v8666 = vpop.f32.mrf.mxu0
    %v8667 = vadd.f32 0.0, %v8666
    %v8668 = vpop.f32.mrf.mxu0
    %v8669 = vadd.f32 0.0, %v8668
    %v8670 = vpop.f32.mrf.mxu0
    %v8671 = vadd.f32 0.0, %v8670
    %v8672 = vpop.f32.mrf.mxu0
    %v8673 = vadd.f32 0.0, %v8672
    %8674 = vmatprep.mubr.bf16.mxu0 0
    %8675 = vmatmul.mubr.bf16.gmra.mxu0 %v8245
    %v8676 = vpop.f32.mrf.mxu0
    %v8677 = vadd.f32 0.0, %v8676
    %v8678 = vpop.f32.mrf.mxu0
    %v8679 = vadd.f32 0.0, %v8678
    %v8680 = vpop.f32.mrf.mxu0
    %v8681 = vadd.f32 0.0, %v8680
    %v8682 = vpop.f32.mrf.mxu0
    %v8683 = vadd.f32 0.0, %v8682
    %8684 = vdwg.mxu0
    %8685 = vmatprep.subr.bf16.mxu0 0
    %8686 = vmatpush1.bf16.msra.mxu0 0
    %8687 = vmatprep.subr.bf16.mxu0 0
    %8688 = vmatpush1.bf16.msra.mxu0 0
    %8689 = vmatprep.subr.bf16.mxu0 0
    %8690 = vmatpush1.bf16.msra.mxu0 0
    %8691 = vmatprep.subr.bf16.mxu0 0
    %8692 = vmatpush1.bf16.msra.mxu0 0
    %8693 = vmatprep.subr.bf16.mxu0 %v8158
    %8694 = vmatpush1.bf16.msra.mxu0 %v8157
    %8695 = vmatprep.subr.bf16.mxu0 %v8140
    %8696 = vmatpush1.bf16.msra.mxu0 %v8139
    %8697 = vmatprep.subr.bf16.mxu0 %v8122
    %8698 = vmatpush1.bf16.msra.mxu0 %v8121
    %8699 = vmatprep.subr.bf16.mxu0 %v8104
    %8700 = vmatpush1.bf16.msra.mxu0 %v8103
    %8701 = vmatprep.subr.bf16.mxu0 0
    %8702 = vmatpush2.bf16.msra.mxu0 0
    %8703 = vmatprep.subr.bf16.mxu0 0
    %8704 = vmatpush2.bf16.msra.mxu0 0
    %8705 = vmatprep.subr.bf16.mxu0 0
    %8706 = vmatpush2.bf16.msra.mxu0 0
    %8707 = vmatprep.subr.bf16.mxu0 0
    %8708 = vmatpush2.bf16.msra.mxu0 0
    %8709 = vmatprep.subr.bf16.mxu0 0
    %8710 = vmatpush2.bf16.msra.mxu0 0
    %8711 = vmatprep.subr.bf16.mxu0 0
    %8712 = vmatpush2.bf16.msra.mxu0 0
    %8713 = vmatprep.subr.bf16.mxu0 0
    %8714 = vmatpush2.bf16.msra.mxu0 0
    %8715 = vmatprep.subr.bf16.mxu0 0
    %8716 = vmatpush2.bf16.msra.mxu0 0
    %8717 = vmatprep.mubr.bf16.mxu0 0
    %8718 = vmatmul.mubr.bf16.gmra.mxu0 %v8236
    %v8719 = vpop.f32.mrf.mxu0
    %v8720 = vadd.f32 0.0, %v8719
    %v8721 = vpop.f32.mrf.mxu0
    %v8722 = vadd.f32 0.0, %v8721
    %v8723 = vpop.f32.mrf.mxu0
    %v8724 = vadd.f32 0.0, %v8723
    %v8725 = vpop.f32.mrf.mxu0
    %v8726 = vadd.f32 0.0, %v8725
    %8727 = vmatprep.mubr.bf16.mxu0 0
    %8728 = vmatmul.mubr.bf16.gmra.mxu0 %v8239
    %v8729 = vpop.f32.mrf.mxu0
    %v8730 = vadd.f32 0.0, %v8729
    %v8731 = vpop.f32.mrf.mxu0
    %v8732 = vadd.f32 0.0, %v8731
    %v8733 = vpop.f32.mrf.mxu0
    %v8734 = vadd.f32 0.0, %v8733
    %v8735 = vpop.f32.mrf.mxu0
    %v8736 = vadd.f32 0.0, %v8735
    %8737 = vmatprep.mubr.bf16.mxu0 0
    %8738 = vmatmul.mubr.bf16.gmra.mxu0 %v8242
    %v8739 = vpop.f32.mrf.mxu0
    %v8740 = vadd.f32 0.0, %v8739
    %v8741 = vpop.f32.mrf.mxu0
    %v8742 = vadd.f32 0.0, %v8741
    %v8743 = vpop.f32.mrf.mxu0
    %v8744 = vadd.f32 0.0, %v8743
    %v8745 = vpop.f32.mrf.mxu0
    %v8746 = vadd.f32 0.0, %v8745
    %8747 = vmatprep.mubr.bf16.mxu0 0
    %8748 = vmatmul.mubr.bf16.gmra.mxu0 %v8245
    %v8749 = vpop.f32.mrf.mxu0
    %v8750 = vadd.f32 0.0, %v8749
    %v8751 = vpop.f32.mrf.mxu0
    %v8752 = vadd.f32 0.0, %v8751
    %v8753 = vpop.f32.mrf.mxu0
    %v8754 = vadd.f32 0.0, %v8753
    %v8755 = vpop.f32.mrf.mxu0
    %v8756 = vadd.f32 0.0, %v8755
    %8757 = vdwg.mxu0
    %8758 = vmatprep.subr.bf16.mxu0 0
    %8759 = vmatpush1.bf16.msra.mxu0 0
    %8760 = vmatprep.subr.bf16.mxu0 0
    %8761 = vmatpush1.bf16.msra.mxu0 0
    %8762 = vmatprep.subr.bf16.mxu0 0
    %8763 = vmatpush1.bf16.msra.mxu0 0
    %8764 = vmatprep.subr.bf16.mxu0 0
    %8765 = vmatpush1.bf16.msra.mxu0 0
    %8766 = vmatprep.subr.bf16.mxu0 %v8160
    %8767 = vmatpush1.bf16.msra.mxu0 %v8159
    %8768 = vmatprep.subr.bf16.mxu0 %v8142
    %8769 = vmatpush1.bf16.msra.mxu0 %v8141
    %8770 = vmatprep.subr.bf16.mxu0 %v8124
    %8771 = vmatpush1.bf16.msra.mxu0 %v8123
    %8772 = vmatprep.subr.bf16.mxu0 %v8106
    %8773 = vmatpush1.bf16.msra.mxu0 %v8105
    %8774 = vmatprep.subr.bf16.mxu0 0
    %8775 = vmatpush2.bf16.msra.mxu0 0
    %8776 = vmatprep.subr.bf16.mxu0 0
    %8777 = vmatpush2.bf16.msra.mxu0 0
    %8778 = vmatprep.subr.bf16.mxu0 0
    %8779 = vmatpush2.bf16.msra.mxu0 0
    %8780 = vmatprep.subr.bf16.mxu0 0
    %8781 = vmatpush2.bf16.msra.mxu0 0
    %8782 = vmatprep.subr.bf16.mxu0 0
    %8783 = vmatpush2.bf16.msra.mxu0 0
    %8784 = vmatprep.subr.bf16.mxu0 0
    %8785 = vmatpush2.bf16.msra.mxu0 0
    %8786 = vmatprep.subr.bf16.mxu0 0
    %8787 = vmatpush2.bf16.msra.mxu0 0
    %8788 = vmatprep.subr.bf16.mxu0 0
    %8789 = vmatpush2.bf16.msra.mxu0 0
    %8790 = vmatprep.mubr.bf16.mxu0 0
    %8791 = vmatmul.mubr.bf16.gmra.mxu0 %v8236
    %v8792 = vpop.f32.mrf.mxu0
    %v8793 = vadd.f32 0.0, %v8792
    %v8794 = vpop.f32.mrf.mxu0
    %v8795 = vadd.f32 0.0, %v8794
    %v8796 = vpop.f32.mrf.mxu0
    %v8797 = vadd.f32 0.0, %v8796
    %v8798 = vpop.f32.mrf.mxu0
    %v8799 = vadd.f32 0.0, %v8798
    %8800 = vmatprep.mubr.bf16.mxu0 0
    %8801 = vmatmul.mubr.bf16.gmra.mxu0 %v8239
    %v8802 = vpop.f32.mrf.mxu0
    %v8803 = vadd.f32 0.0, %v8802
    %v8804 = vpop.f32.mrf.mxu0
    %v8805 = vadd.f32 0.0, %v8804
    %v8806 = vpop.f32.mrf.mxu0
    %v8807 = vadd.f32 0.0, %v8806
    %v8808 = vpop.f32.mrf.mxu0
    %v8809 = vadd.f32 0.0, %v8808
    %8810 = vmatprep.mubr.bf16.mxu0 0
    %8811 = vmatmul.mubr.bf16.gmra.mxu0 %v8242
    %v8812 = vpop.f32.mrf.mxu0
    %v8813 = vadd.f32 0.0, %v8812
    %v8814 = vpop.f32.mrf.mxu0
    %v8815 = vadd.f32 0.0, %v8814
    %v8816 = vpop.f32.mrf.mxu0
    %v8817 = vadd.f32 0.0, %v8816
    %v8818 = vpop.f32.mrf.mxu0
    %v8819 = vadd.f32 0.0, %v8818
    %8820 = vmatprep.mubr.bf16.mxu0 0
    %8821 = vmatmul.mubr.bf16.gmra.mxu0 %v8245
    %v8822 = vpop.f32.mrf.mxu0
    %v8823 = vadd.f32 0.0, %v8822
    %v8824 = vpop.f32.mrf.mxu0
    %v8825 = vadd.f32 0.0, %v8824
    %v8826 = vpop.f32.mrf.mxu0
    %v8827 = vadd.f32 0.0, %v8826
    %v8828 = vpop.f32.mrf.mxu0
    %v8829 = vadd.f32 0.0, %v8828
    %8830 = vdwg.mxu0
    %8831 = vmatprep.subr.bf16.mxu0 0
    %8832 = vmatpush1.bf16.msra.mxu0 0
    %8833 = vmatprep.subr.bf16.mxu0 0
    %8834 = vmatpush1.bf16.msra.mxu0 0
    %8835 = vmatprep.subr.bf16.mxu0 0
    %8836 = vmatpush1.bf16.msra.mxu0 0
    %8837 = vmatprep.subr.bf16.mxu0 0
    %8838 = vmatpush1.bf16.msra.mxu0 0
    %8839 = vmatprep.subr.bf16.mxu0 %v8162
    %8840 = vmatpush1.bf16.msra.mxu0 %v8161
    %8841 = vmatprep.subr.bf16.mxu0 %v8144
    %8842 = vmatpush1.bf16.msra.mxu0 %v8143
    %8843 = vmatprep.subr.bf16.mxu0 %v8126
    %8844 = vmatpush1.bf16.msra.mxu0 %v8125
    %8845 = vmatprep.subr.bf16.mxu0 %v8108
    %8846 = vmatpush1.bf16.msra.mxu0 %v8107
    %8847 = vmatprep.subr.bf16.mxu0 0
    %8848 = vmatpush2.bf16.msra.mxu0 0
    %8849 = vmatprep.subr.bf16.mxu0 0
    %8850 = vmatpush2.bf16.msra.mxu0 0
    %8851 = vmatprep.subr.bf16.mxu0 0
    %8852 = vmatpush2.bf16.msra.mxu0 0
    %8853 = vmatprep.subr.bf16.mxu0 0
    %8854 = vmatpush2.bf16.msra.mxu0 0
    %8855 = vmatprep.subr.bf16.mxu0 0
    %8856 = vmatpush2.bf16.msra.mxu0 0
    %8857 = vmatprep.subr.bf16.mxu0 0
    %8858 = vmatpush2.bf16.msra.mxu0 0
    %8859 = vmatprep.subr.bf16.mxu0 0
    %8860 = vmatpush2.bf16.msra.mxu0 0
    %8861 = vmatprep.subr.bf16.mxu0 0
    %8862 = vmatpush2.bf16.msra.mxu0 0
    %8863 = vmatprep.mubr.bf16.mxu0 0
    %8864 = vmatmul.mubr.bf16.gmra.mxu0 %v8236
    %v8865 = vpop.f32.mrf.mxu0
    %v8866 = vadd.f32 0.0, %v8865
    %v8867 = vpop.f32.mrf.mxu0
    %v8868 = vadd.f32 0.0, %v8867
    %v8869 = vpop.f32.mrf.mxu0
    %v8870 = vadd.f32 0.0, %v8869
    %v8871 = vpop.f32.mrf.mxu0
    %v8872 = vadd.f32 0.0, %v8871
    %8873 = vmatprep.mubr.bf16.mxu0 0
    %8874 = vmatmul.mubr.bf16.gmra.mxu0 %v8239
    %v8875 = vpop.f32.mrf.mxu0
    %v8876 = vadd.f32 0.0, %v8875
    %v8877 = vpop.f32.mrf.mxu0
    %v8878 = vadd.f32 0.0, %v8877
    %v8879 = vpop.f32.mrf.mxu0
    %v8880 = vadd.f32 0.0, %v8879
    %v8881 = vpop.f32.mrf.mxu0
    %v8882 = vadd.f32 0.0, %v8881
    %8883 = vmatprep.mubr.bf16.mxu0 0
    %8884 = vmatmul.mubr.bf16.gmra.mxu0 %v8242
    %v8885 = vpop.f32.mrf.mxu0
    %v8886 = vadd.f32 0.0, %v8885
    %v8887 = vpop.f32.mrf.mxu0
    %v8888 = vadd.f32 0.0, %v8887
    %v8889 = vpop.f32.mrf.mxu0
    %v8890 = vadd.f32 0.0, %v8889
    %v8891 = vpop.f32.mrf.mxu0
    %v8892 = vadd.f32 0.0, %v8891
    %8893 = vmatprep.mubr.bf16.mxu0 0
    %8894 = vmatmul.mubr.bf16.gmra.mxu0 %v8245
    %v8895 = vpop.f32.mrf.mxu0
    %v8896 = vadd.f32 0.0, %v8895
    %v8897 = vpop.f32.mrf.mxu0
    %v8898 = vadd.f32 0.0, %v8897
    %v8899 = vpop.f32.mrf.mxu0
    %v8900 = vadd.f32 0.0, %v8899
    %v8901 = vpop.f32.mrf.mxu0
    %v8902 = vadd.f32 0.0, %v8901
    %8903 = vdwg.mxu0
    %v8904 = vpack.c.bf16 %v8286, %v8282
    %v8905 = vpack.c.bf16 %v8288, %v8284
    %v8906 = vpack.c.bf16 %v8296, %v8292
    %v8907 = vpack.c.bf16 %v8298, %v8294
    %v8908 = vpack.c.bf16 %v8306, %v8302
    %v8909 = vpack.c.bf16 %v8308, %v8304
    %v8910 = vpack.c.bf16 %v8316, %v8312
    %v8911 = vpack.c.bf16 %v8318, %v8314
    %v8912 = vpack.c.bf16 %v8359, %v8355
    %v8913 = vpack.c.bf16 %v8361, %v8357
    %v8914 = vpack.c.bf16 %v8369, %v8365
    %v8915 = vpack.c.bf16 %v8371, %v8367
    %v8916 = vpack.c.bf16 %v8379, %v8375
    %v8917 = vpack.c.bf16 %v8381, %v8377
    %v8918 = vpack.c.bf16 %v8389, %v8385
    %v8919 = vpack.c.bf16 %v8391, %v8387
    %v8920 = vpack.c.bf16 %v8432, %v8428
    %v8921 = vpack.c.bf16 %v8434, %v8430
    %v8922 = vpack.c.bf16 %v8442, %v8438
    %v8923 = vpack.c.bf16 %v8444, %v8440
    %v8924 = vpack.c.bf16 %v8452, %v8448
    %v8925 = vpack.c.bf16 %v8454, %v8450
    %v8926 = vpack.c.bf16 %v8462, %v8458
    %v8927 = vpack.c.bf16 %v8464, %v8460
    %v8928 = vpack.c.bf16 %v8505, %v8501
    %v8929 = vpack.c.bf16 %v8507, %v8503
    %v8930 = vpack.c.bf16 %v8515, %v8511
    %v8931 = vpack.c.bf16 %v8517, %v8513
    %v8932 = vpack.c.bf16 %v8525, %v8521
    %v8933 = vpack.c.bf16 %v8527, %v8523
    %v8934 = vpack.c.bf16 %v8535, %v8531
    %v8935 = vpack.c.bf16 %v8537, %v8533
    %v8936 = vpack.c.bf16 %v8578, %v8574
    %v8937 = vpack.c.bf16 %v8580, %v8576
    %v8938 = vpack.c.bf16 %v8588, %v8584
    %v8939 = vpack.c.bf16 %v8590, %v8586
    %v8940 = vpack.c.bf16 %v8598, %v8594
    %v8941 = vpack.c.bf16 %v8600, %v8596
    %v8942 = vpack.c.bf16 %v8608, %v8604
    %v8943 = vpack.c.bf16 %v8610, %v8606
    %v8944 = vpack.c.bf16 %v8651, %v8647
    %v8945 = vpack.c.bf16 %v8653, %v8649
    %v8946 = vpack.c.bf16 %v8661, %v8657
    %v8947 = vpack.c.bf16 %v8663, %v8659
    %v8948 = vpack.c.bf16 %v8671, %v8667
    %v8949 = vpack.c.bf16 %v8673, %v8669
    %v8950 = vpack.c.bf16 %v8681, %v8677
    %v8951 = vpack.c.bf16 %v8683, %v8679
    %v8952 = vpack.c.bf16 %v8724, %v8720
    %v8953 = vpack.c.bf16 %v8726, %v8722
    %v8954 = vpack.c.bf16 %v8734, %v8730
    %v8955 = vpack.c.bf16 %v8736, %v8732
    %v8956 = vpack.c.bf16 %v8744, %v8740
    %v8957 = vpack.c.bf16 %v8746, %v8742
    %v8958 = vpack.c.bf16 %v8754, %v8750
    %v8959 = vpack.c.bf16 %v8756, %v8752
    %v8960 = vpack.c.bf16 %v8797, %v8793
    %v8961 = vpack.c.bf16 %v8799, %v8795
    %v8962 = vpack.c.bf16 %v8807, %v8803
    %v8963 = vpack.c.bf16 %v8809, %v8805
    %v8964 = vpack.c.bf16 %v8817, %v8813
    %v8965 = vpack.c.bf16 %v8819, %v8815
    %v8966 = vpack.c.bf16 %v8827, %v8823
    %v8967 = vpack.c.bf16 %v8829, %v8825
    %v8968 = vpack.c.bf16 %v8870, %v8866
    %v8969 = vpack.c.bf16 %v8872, %v8868
    %v8970 = vpack.c.bf16 %v8880, %v8876
    %v8971 = vpack.c.bf16 %v8882, %v8878
    %v8972 = vpack.c.bf16 %v8890, %v8886
    %v8973 = vpack.c.bf16 %v8892, %v8888
    %v8974 = vpack.c.bf16 %v8900, %v8896
    %v8975 = vpack.c.bf16 %v8902, %v8898
    %v8976 = vld [vmem:[#allocation15] sm:$0xff]
    %v8977 = vld [vmem:[#allocation15 + $0x8] sm:$0xff]
    %v8978 = vld [vmem:[#allocation15 + $0x10] sm:$0xf]
    %v8979 = vld [vmem:[#allocation15 + $0x14] sm:$0xff]
    %v8980 = vld [vmem:[#allocation15 + $0x1c] sm:$0xff]
    %v8981 = vld [vmem:[#allocation15 + $0x24] sm:$0xf]
    %v8982 = vld [vmem:[#allocation15 + $0x28] sm:$0xff]
    %v8983 = vld [vmem:[#allocation15 + $0x30] sm:$0xff]
    %v8984 = vld [vmem:[#allocation15 + $0x38] sm:$0xf]
    %v8985 = vld [vmem:[#allocation15 + $0x3c] sm:$0xff]
    %v8986 = vld [vmem:[#allocation15 + $0x44] sm:$0xff]
    %v8987 = vld [vmem:[#allocation15 + $0x4c] sm:$0xf]
    %v8988 = vld [vmem:[#allocation15 + $0x50] sm:$0xff]
    %v8989 = vld [vmem:[#allocation15 + $0x58] sm:$0xff]
    %v8990 = vld [vmem:[#allocation15 + $0x60] sm:$0xf]
    %v8991 = vld [vmem:[#allocation15 + $0x64] sm:$0xff]
    %v8992 = vld [vmem:[#allocation15 + $0x6c] sm:$0xff]
    %v8993 = vld [vmem:[#allocation15 + $0x74] sm:$0xf]
    %v8994 = vld [vmem:[#allocation15 + $0x78] sm:$0xff]
    %v8995 = vld [vmem:[#allocation15 + $0x80] sm:$0xff]
    %v8996 = vld [vmem:[#allocation15 + $0x88] sm:$0xf]
    %v8997 = vld [vmem:[#allocation15 + $0x8c] sm:$0xff]
    %v8998 = vld [vmem:[#allocation15 + $0x94] sm:$0xff]
    %v8999 = vld [vmem:[#allocation15 + $0x9c] sm:$0xf]
    %v9024 = vunpack.c.l.b16 %v8976
    %v9025 = vunpack.c.h.b16 %v8976
    %v9026 = vunpack.c.l.b16 %v8977
    %v9027 = vunpack.c.h.b16 %v8977
    %v9028 = vunpack.c.l.b16 %v8978
    %v9029 = vunpack.c.l.b16 %v8979
    %v9030 = vunpack.c.h.b16 %v8979
    %v9031 = vunpack.c.l.b16 %v8980
    %v9032 = vunpack.c.h.b16 %v8980
    %v9033 = vunpack.c.l.b16 %v8981
    %v9034 = vunpack.c.l.b16 %v8982
    %v9035 = vunpack.c.h.b16 %v8982
    %v9036 = vunpack.c.l.b16 %v8983
    %v9037 = vunpack.c.h.b16 %v8983
    %v9038 = vunpack.c.l.b16 %v8984
    %v9039 = vunpack.c.l.b16 %v8985
    %v9040 = vunpack.c.h.b16 %v8985
    %v9041 = vunpack.c.l.b16 %v8986
    %v9042 = vunpack.c.h.b16 %v8986
    %v9043 = vunpack.c.l.b16 %v8987
    %v9044 = vunpack.c.l.b16 %v8988
    %v9045 = vunpack.c.h.b16 %v8988
    %v9046 = vunpack.c.l.b16 %v8989
    %v9047 = vunpack.c.h.b16 %v8989
    %v9048 = vunpack.c.l.b16 %v8990
    %v9049 = vunpack.c.l.b16 %v8991
    %v9050 = vunpack.c.h.b16 %v8991
    %v9051 = vunpack.c.l.b16 %v8992
    %v9052 = vunpack.c.h.b16 %v8992
    %v9053 = vunpack.c.l.b16 %v8993
    %v9054 = vunpack.c.l.b16 %v8994
    %v9055 = vunpack.c.h.b16 %v8994
    %v9056 = vunpack.c.l.b16 %v8995
    %v9057 = vunpack.c.h.b16 %v8995
    %v9058 = vunpack.c.l.b16 %v8996
    %v9059 = vunpack.c.l.b16 %v8997
    %v9060 = vunpack.c.h.b16 %v8997
    %v9061 = vunpack.c.l.b16 %v8998
    %v9062 = vunpack.c.h.b16 %v8998
    %v9063 = vunpack.c.l.b16 %v8999
    %v9064 = vpack.c.b16 %v9029, %v9024
    %v9065 = vpack.c.b16 %v9030, %v9025
    %v9066 = vpack.c.b16 %v9031, %v9026
    %v9067 = vpack.c.b16 %v9032, %v9027
    %v9068 = vpack.c.b16 %v9033, %v9028
    %v9069 = vpack.c.b16 %v9039, %v9034
    %v9070 = vpack.c.b16 %v9040, %v9035
    %v9071 = vpack.c.b16 %v9041, %v9036
    %v9072 = vpack.c.b16 %v9042, %v9037
    %v9073 = vpack.c.b16 %v9043, %v9038
    %v9074 = vpack.c.b16 %v9049, %v9044
    %v9075 = vpack.c.b16 %v9050, %v9045
    %v9076 = vpack.c.b16 %v9051, %v9046
    %v9077 = vpack.c.b16 %v9052, %v9047
    %v9078 = vpack.c.b16 %v9053, %v9048
    %v9079 = vpack.c.b16 %v9059, %v9054
    %v9080 = vpack.c.b16 %v9060, %v9055
    %v9081 = vpack.c.b16 %v9061, %v9056
    %v9082 = vpack.c.b16 %v9062, %v9057
    %v9083 = vpack.c.b16 %v9063, %v9058
    %v9101 = vsel %vm985, %v9068, 0
    %v9104 = vsel %vm985, %v9073, 0
    %v9107 = vsel %vm985, %v9078, 0
    %v9110 = vsel %vm985, %v9083, 0
    %9112 = vmatprep.subr.bf16.mxu0 %v8919
    %9113 = vmatpush1.bf16.msra.mxu0 %v8918
    %9114 = vmatprep.subr.bf16.mxu0 %v8917
    %9115 = vmatpush1.bf16.msra.mxu0 %v8916
    %9116 = vmatprep.subr.bf16.mxu0 %v8915
    %9117 = vmatpush1.bf16.msra.mxu0 %v8914
    %9118 = vmatprep.subr.bf16.mxu0 %v8913
    %9119 = vmatpush1.bf16.msra.mxu0 %v8912
    %9120 = vmatprep.subr.bf16.mxu0 %v8911
    %9121 = vmatpush1.bf16.msra.mxu0 %v8910
    %9122 = vmatprep.subr.bf16.mxu0 %v8909
    %9123 = vmatpush1.bf16.msra.mxu0 %v8908
    %9124 = vmatprep.subr.bf16.mxu0 %v8907
    %9125 = vmatpush1.bf16.msra.mxu0 %v8906
    %9126 = vmatprep.subr.bf16.mxu0 %v8905
    %9127 = vmatpush1.bf16.msra.mxu0 %v8904
    %9128 = vmatprep.subr.bf16.mxu0 %v8935
    %9129 = vmatpush2.bf16.msra.mxu0 %v8934
    %9130 = vmatprep.subr.bf16.mxu0 %v8933
    %9131 = vmatpush2.bf16.msra.mxu0 %v8932
    %9132 = vmatprep.subr.bf16.mxu0 %v8931
    %9133 = vmatpush2.bf16.msra.mxu0 %v8930
    %9134 = vmatprep.subr.bf16.mxu0 %v8929
    %9135 = vmatpush2.bf16.msra.mxu0 %v8928
    %9136 = vmatprep.subr.bf16.mxu0 %v8927
    %9137 = vmatpush2.bf16.msra.mxu0 %v8926
    %9138 = vmatprep.subr.bf16.mxu0 %v8925
    %9139 = vmatpush2.bf16.msra.mxu0 %v8924
    %9140 = vmatprep.subr.bf16.mxu0 %v8923
    %9141 = vmatpush2.bf16.msra.mxu0 %v8922
    %9142 = vmatprep.subr.bf16.mxu0 %v8921
    %9143 = vmatpush2.bf16.msra.mxu0 %v8920
    %9144 = vmatprep.mubr.bf16.mxu0 %v9065
    %9145 = vmatmul.mubr.bf16.gmra.mxu0 %v9064
    %v9146 = vpop.f32.mrf.mxu0
    %v9147 = vadd.f32 0.0, %v9146
    %v9148 = vpop.f32.mrf.mxu0
    %v9149 = vadd.f32 0.0, %v9148
    %v9150 = vpop.f32.mrf.mxu0
    %v9151 = vadd.f32 0.0, %v9150
    %v9152 = vpop.f32.mrf.mxu0
    %v9153 = vadd.f32 0.0, %v9152
    %9154 = vmatprep.mubr.bf16.mxu0 %v9070
    %9155 = vmatmul.mubr.bf16.gmra.mxu0 %v9069
    %v9156 = vpop.f32.mrf.mxu0
    %v9157 = vadd.f32 0.0, %v9156
    %v9158 = vpop.f32.mrf.mxu0
    %v9159 = vadd.f32 0.0, %v9158
    %v9160 = vpop.f32.mrf.mxu0
    %v9161 = vadd.f32 0.0, %v9160
    %v9162 = vpop.f32.mrf.mxu0
    %v9163 = vadd.f32 0.0, %v9162
    %9164 = vmatprep.mubr.bf16.mxu0 %v9075
    %9165 = vmatmul.mubr.bf16.gmra.mxu0 %v9074
    %v9166 = vpop.f32.mrf.mxu0
    %v9167 = vadd.f32 0.0, %v9166
    %v9168 = vpop.f32.mrf.mxu0
    %v9169 = vadd.f32 0.0, %v9168
    %v9170 = vpop.f32.mrf.mxu0
    %v9171 = vadd.f32 0.0, %v9170
    %v9172 = vpop.f32.mrf.mxu0
    %v9173 = vadd.f32 0.0, %v9172
    %9174 = vmatprep.mubr.bf16.mxu0 %v9080
    %9175 = vmatmul.mubr.bf16.gmra.mxu0 %v9079
    %v9176 = vpop.f32.mrf.mxu0
    %v9177 = vadd.f32 0.0, %v9176
    %v9178 = vpop.f32.mrf.mxu0
    %v9179 = vadd.f32 0.0, %v9178
    %v9180 = vpop.f32.mrf.mxu0
    %v9181 = vadd.f32 0.0, %v9180
    %v9182 = vpop.f32.mrf.mxu0
    %v9183 = vadd.f32 0.0, %v9182
    %9184 = vdwg.mxu0
    %9185 = vmatprep.subr.bf16.mxu0 %v8951
    %9186 = vmatpush1.bf16.msra.mxu0 %v8950
    %9187 = vmatprep.subr.bf16.mxu0 %v8949
    %9188 = vmatpush1.bf16.msra.mxu0 %v8948
    %9189 = vmatprep.subr.bf16.mxu0 %v8947
    %9190 = vmatpush1.bf16.msra.mxu0 %v8946
    %9191 = vmatprep.subr.bf16.mxu0 %v8945
    %9192 = vmatpush1.bf16.msra.mxu0 %v8944
    %9193 = vmatprep.subr.bf16.mxu0 %v8943
    %9194 = vmatpush1.bf16.msra.mxu0 %v8942
    %9195 = vmatprep.subr.bf16.mxu0 %v8941
    %9196 = vmatpush1.bf16.msra.mxu0 %v8940
    %9197 = vmatprep.subr.bf16.mxu0 %v8939
    %9198 = vmatpush1.bf16.msra.mxu0 %v8938
    %9199 = vmatprep.subr.bf16.mxu0 %v8937
    %9200 = vmatpush1.bf16.msra.mxu0 %v8936
    %9201 = vmatprep.subr.bf16.mxu0 %v8967
    %9202 = vmatpush2.bf16.msra.mxu0 %v8966
    %9203 = vmatprep.subr.bf16.mxu0 %v8965
    %9204 = vmatpush2.bf16.msra.mxu0 %v8964
    %9205 = vmatprep.subr.bf16.mxu0 %v8963
    %9206 = vmatpush2.bf16.msra.mxu0 %v8962
    %9207 = vmatprep.subr.bf16.mxu0 %v8961
    %9208 = vmatpush2.bf16.msra.mxu0 %v8960
    %9209 = vmatprep.subr.bf16.mxu0 %v8959
    %9210 = vmatpush2.bf16.msra.mxu0 %v8958
    %9211 = vmatprep.subr.bf16.mxu0 %v8957
    %9212 = vmatpush2.bf16.msra.mxu0 %v8956
    %9213 = vmatprep.subr.bf16.mxu0 %v8955
    %9214 = vmatpush2.bf16.msra.mxu0 %v8954
    %9215 = vmatprep.subr.bf16.mxu0 %v8953
    %9216 = vmatpush2.bf16.msra.mxu0 %v8952
    %9217 = vmatprep.mubr.bf16.mxu0 %v9067
    %9218 = vmatmul.mubr.bf16.gmra.mxu0 %v9066
    %v9219 = vpop.f32.mrf.mxu0
    %v9220 = vadd.f32 %v9147, %v9219
    %v9221 = vpop.f32.mrf.mxu0
    %v9222 = vadd.f32 %v9149, %v9221
    %v9223 = vpop.f32.mrf.mxu0
    %v9224 = vadd.f32 %v9151, %v9223
    %v9225 = vpop.f32.mrf.mxu0
    %v9226 = vadd.f32 %v9153, %v9225
    %9227 = vmatprep.mubr.bf16.mxu0 %v9072
    %9228 = vmatmul.mubr.bf16.gmra.mxu0 %v9071
    %v9229 = vpop.f32.mrf.mxu0
    %v9230 = vadd.f32 %v9157, %v9229
    %v9231 = vpop.f32.mrf.mxu0
    %v9232 = vadd.f32 %v9159, %v9231
    %v9233 = vpop.f32.mrf.mxu0
    %v9234 = vadd.f32 %v9161, %v9233
    %v9235 = vpop.f32.mrf.mxu0
    %v9236 = vadd.f32 %v9163, %v9235
    %9237 = vmatprep.mubr.bf16.mxu0 %v9077
    %9238 = vmatmul.mubr.bf16.gmra.mxu0 %v9076
    %v9239 = vpop.f32.mrf.mxu0
    %v9240 = vadd.f32 %v9167, %v9239
    %v9241 = vpop.f32.mrf.mxu0
    %v9242 = vadd.f32 %v9169, %v9241
    %v9243 = vpop.f32.mrf.mxu0
    %v9244 = vadd.f32 %v9171, %v9243
    %v9245 = vpop.f32.mrf.mxu0
    %v9246 = vadd.f32 %v9173, %v9245
    %9247 = vmatprep.mubr.bf16.mxu0 %v9082
    %9248 = vmatmul.mubr.bf16.gmra.mxu0 %v9081
    %v9249 = vpop.f32.mrf.mxu0
    %v9250 = vadd.f32 %v9177, %v9249
    %v9251 = vpop.f32.mrf.mxu0
    %v9252 = vadd.f32 %v9179, %v9251
    %v9253 = vpop.f32.mrf.mxu0
    %v9254 = vadd.f32 %v9181, %v9253
    %v9255 = vpop.f32.mrf.mxu0
    %v9256 = vadd.f32 %v9183, %v9255
    %9257 = vdwg.mxu0
    %9258 = vmatprep.subr.bf16.mxu0 0
    %9259 = vmatpush1.bf16.msra.mxu0 0
    %9260 = vmatprep.subr.bf16.mxu0 0
    %9261 = vmatpush1.bf16.msra.mxu0 0
    %9262 = vmatprep.subr.bf16.mxu0 0
    %9263 = vmatpush1.bf16.msra.mxu0 0
    %9264 = vmatprep.subr.bf16.mxu0 0
    %9265 = vmatpush1.bf16.msra.mxu0 0
    %9266 = vmatprep.subr.bf16.mxu0 %v8975
    %9267 = vmatpush1.bf16.msra.mxu0 %v8974
    %9268 = vmatprep.subr.bf16.mxu0 %v8973
    %9269 = vmatpush1.bf16.msra.mxu0 %v8972
    %9270 = vmatprep.subr.bf16.mxu0 %v8971
    %9271 = vmatpush1.bf16.msra.mxu0 %v8970
    %9272 = vmatprep.subr.bf16.mxu0 %v8969
    %9273 = vmatpush1.bf16.msra.mxu0 %v8968
    %9274 = vmatprep.subr.bf16.mxu0 0
    %9275 = vmatpush2.bf16.msra.mxu0 0
    %9276 = vmatprep.subr.bf16.mxu0 0
    %9277 = vmatpush2.bf16.msra.mxu0 0
    %9278 = vmatprep.subr.bf16.mxu0 0
    %9279 = vmatpush2.bf16.msra.mxu0 0
    %9280 = vmatprep.subr.bf16.mxu0 0
    %9281 = vmatpush2.bf16.msra.mxu0 0
    %9282 = vmatprep.subr.bf16.mxu0 0
    %9283 = vmatpush2.bf16.msra.mxu0 0
    %9284 = vmatprep.subr.bf16.mxu0 0
    %9285 = vmatpush2.bf16.msra.mxu0 0
    %9286 = vmatprep.subr.bf16.mxu0 0
    %9287 = vmatpush2.bf16.msra.mxu0 0
    %9288 = vmatprep.subr.bf16.mxu0 0
    %9289 = vmatpush2.bf16.msra.mxu0 0
    %9290 = vmatprep.mubr.bf16.mxu0 0
    %9291 = vmatmul.mubr.bf16.gmra.mxu0 %v9101
    %v9292 = vpop.f32.mrf.mxu0
    %v9293 = vadd.f32 %v9220, %v9292
    %v9294 = vpop.f32.mrf.mxu0
    %v9295 = vadd.f32 %v9222, %v9294
    %v9296 = vpop.f32.mrf.mxu0
    %v9297 = vadd.f32 %v9224, %v9296
    %v9298 = vpop.f32.mrf.mxu0
    %v9299 = vadd.f32 %v9226, %v9298
    %9300 = vmatprep.mubr.bf16.mxu0 0
    %9301 = vmatmul.mubr.bf16.gmra.mxu0 %v9104
    %v9302 = vpop.f32.mrf.mxu0
    %v9303 = vadd.f32 %v9230, %v9302
    %v9304 = vpop.f32.mrf.mxu0
    %v9305 = vadd.f32 %v9232, %v9304
    %v9306 = vpop.f32.mrf.mxu0
    %v9307 = vadd.f32 %v9234, %v9306
    %v9308 = vpop.f32.mrf.mxu0
    %v9309 = vadd.f32 %v9236, %v9308
    %9310 = vmatprep.mubr.bf16.mxu0 0
    %9311 = vmatmul.mubr.bf16.gmra.mxu0 %v9107
    %v9312 = vpop.f32.mrf.mxu0
    %v9313 = vadd.f32 %v9240, %v9312
    %v9314 = vpop.f32.mrf.mxu0
    %v9315 = vadd.f32 %v9242, %v9314
    %v9316 = vpop.f32.mrf.mxu0
    %v9317 = vadd.f32 %v9244, %v9316
    %v9318 = vpop.f32.mrf.mxu0
    %v9319 = vadd.f32 %v9246, %v9318
    %9320 = vmatprep.mubr.bf16.mxu0 0
    %9321 = vmatmul.mubr.bf16.gmra.mxu0 %v9110
    %v9322 = vpop.f32.mrf.mxu0
    %v9323 = vadd.f32 %v9250, %v9322
    %v9324 = vpop.f32.mrf.mxu0
    %v9325 = vadd.f32 %v9252, %v9324
    %v9326 = vpop.f32.mrf.mxu0
    %v9327 = vadd.f32 %v9254, %v9326
    %v9328 = vpop.f32.mrf.mxu0
    %v9329 = vadd.f32 %v9256, %v9328
    %9330 = vdwg.mxu0
    %v9331 = vld [vmem:[%s20 + $0x108] sm:$0xff]
    %v9332 = vld [vmem:[%s20 + $0x110] sm:$0xff]
    %v9333 = vld [vmem:[%s20 + $0x118] sm:$0xff]
    %v9334 = vld [vmem:[%s20 + $0x120] sm:$0xff]
    %v9335 = vadd.f32 %v9293, %v9295
    %9336 = vadd.xlane.f32.xlu0 %v9335
    %v9337 = vpop.xlane.xlu0 %9336
    %v9338 = vadd.f32 %v9297, %v9299
    %9339 = vadd.xlane.f32.xlu0 %v9338
    %v9340 = vpop.xlane.xlu0 %9339
    %v9341 = vadd.f32 %v9303, %v9305
    %9342 = vadd.xlane.f32.xlu0 %v9341
    %v9343 = vpop.xlane.xlu0 %9342
    %v9344 = vadd.f32 %v9307, %v9309
    %9345 = vadd.xlane.f32.xlu0 %v9344
    %v9346 = vpop.xlane.xlu0 %9345
    %v9347 = vadd.f32 %v9313, %v9315
    %9348 = vadd.xlane.f32.xlu0 %v9347
    %v9349 = vpop.xlane.xlu0 %9348
    %v9350 = vadd.f32 %v9317, %v9319
    %9351 = vadd.xlane.f32.xlu0 %v9350
    %v9352 = vpop.xlane.xlu0 %9351
    %v9353 = vadd.f32 %v9323, %v9325
    %9354 = vadd.xlane.f32.xlu0 %v9353
    %v9355 = vpop.xlane.xlu0 %9354
    %v9356 = vadd.f32 %v9327, %v9329
    %9357 = vadd.xlane.f32.xlu0 %v9356
    %v9358 = vpop.xlane.xlu0 %9357
    %v9359 = vmul.f32 %v9293, %v9293
    %v9360 = vmul.f32 %v9295, %v9295
    %v9361 = vmul.f32 %v9297, %v9297
    %v9362 = vmul.f32 %v9299, %v9299
    %v9363 = vmul.f32 %v9303, %v9303
    %v9364 = vmul.f32 %v9305, %v9305
    %v9365 = vmul.f32 %v9307, %v9307
    %v9366 = vmul.f32 %v9309, %v9309
    %v9367 = vmul.f32 %v9313, %v9313
    %v9368 = vmul.f32 %v9315, %v9315
    %v9369 = vmul.f32 %v9317, %v9317
    %v9370 = vmul.f32 %v9319, %v9319
    %v9371 = vmul.f32 %v9323, %v9323
    %v9372 = vmul.f32 %v9325, %v9325
    %v9373 = vmul.f32 %v9327, %v9327
    %v9374 = vmul.f32 %v9329, %v9329
    %v9375 = vadd.f32 %v9359, %v9360
    %9376 = vadd.xlane.f32.xlu0 %v9375
    %v9377 = vpop.xlane.xlu0 %9376
    %v9378 = vadd.f32 %v9361, %v9362
    %9379 = vadd.xlane.f32.xlu0 %v9378
    %v9380 = vpop.xlane.xlu0 %9379
    %v9381 = vadd.f32 %v9363, %v9364
    %9382 = vadd.xlane.f32.xlu0 %v9381
    %v9383 = vpop.xlane.xlu0 %9382
    %v9384 = vadd.f32 %v9365, %v9366
    %9385 = vadd.xlane.f32.xlu0 %v9384
    %v9386 = vpop.xlane.xlu0 %9385
    %v9387 = vadd.f32 %v9367, %v9368
    %9388 = vadd.xlane.f32.xlu0 %v9387
    %v9389 = vpop.xlane.xlu0 %9388
    %v9390 = vadd.f32 %v9369, %v9370
    %9391 = vadd.xlane.f32.xlu0 %v9390
    %v9392 = vpop.xlane.xlu0 %9391
    %v9393 = vadd.f32 %v9371, %v9372
    %9394 = vadd.xlane.f32.xlu0 %v9393
    %v9395 = vpop.xlane.xlu0 %9394
    %v9396 = vadd.f32 %v9373, %v9374
    %9397 = vadd.xlane.f32.xlu0 %v9396
    %v9398 = vpop.xlane.xlu0 %9397
    %v9399 = vadd.f32 %v9337, %v9349
    %v9400 = vadd.f32 %v9340, %v9352
    %v9401 = vadd.f32 %v9343, %v9355
    %v9402 = vadd.f32 %v9346, %v9358
    %v9403 = vadd.f32 %v9377, %v9389
    %v9404 = vadd.f32 %v9380, %v9392
    %v9405 = vadd.f32 %v9383, %v9395
    %v9406 = vadd.f32 %v9386, %v9398
    %v9407 = vmul.f32 %v9399, 0.001953125
    %v9408 = vmul.f32 %v9400, 0.001953125
    %v9409 = vmul.f32 %v9401, 0.001953125
    %v9410 = vmul.f32 %v9402, 0.001953125
    %v9411 = vmul.f32 %v9403, 0.001953125
    %v9412 = vmul.f32 %v9404, 0.001953125
    %v9413 = vmul.f32 %v9405, 0.001953125
    %v9414 = vmul.f32 %v9406, 0.001953125
    %v9415 = vmul.f32 %v9407, %v9407
    %v9416 = vmul.f32 %v9408, %v9408
    %v9417 = vmul.f32 %v9409, %v9409
    %v9418 = vmul.f32 %v9410, %v9410
    %v9419 = vsub.f32 %v9411, %v9415
    %v9420 = vsub.f32 %v9412, %v9416
    %v9421 = vsub.f32 %v9413, %v9417
    %v9422 = vsub.f32 %v9414, %v9418
    %v9423 = vmax.f32 %v9419, 0.0
    %v9424 = vmax.f32 %v9420, 0.0
    %v9425 = vmax.f32 %v9421, 0.0
    %v9426 = vmax.f32 %v9422, 0.0
    %v9427 = vadd.f32 %v9423, 1e-05
    %v9428 = vadd.f32 %v9424, 1e-05
    %v9429 = vadd.f32 %v9425, 1e-05
    %v9430 = vadd.f32 %v9426, 1e-05
    %v9431 = vrsqrt.pop %v9427
    %v9432 = vrsqrt.pop %v9428
    %v9433 = vrsqrt.pop %v9429
    %v9434 = vrsqrt.pop %v9430
    %v9435 = vmul.f32 %v9331, %v9431
    %v9436 = vmul.f32 %v9332, %v9432
    %v9437 = vmul.f32 %v9333, %v9433
    %v9438 = vmul.f32 %v9334, %v9434
    %v9439 = vmul.f32 %v9407, %v9435
    %v9440 = vmul.f32 %v9408, %v9436
    %v9441 = vmul.f32 %v9409, %v9437
    %v9442 = vmul.f32 %v9410, %v9438
    %9447 = vrot.lane.b32.xlu0 %v9439, 1
    %v9448 = vpop.permute.xlu0 %9447
    %9449 = vrot.lane.b32.xlu0 %v9440, 1
    %v9450 = vpop.permute.xlu0 %9449
    %9451 = vrot.lane.b32.xlu0 %v9441, 1
    %v9452 = vpop.permute.xlu0 %9451
    %9453 = vrot.lane.b32.xlu0 %v9442, 1
    %v9454 = vpop.permute.xlu0 %9453
    %v9459 = vsub.f32 %v9331, %v9448
    %v9460 = vsub.f32 %v9332, %v9450
    %v9461 = vsub.f32 %v9333, %v9452
    %v9462 = vsub.f32 %v9334, %v9454
    %9464 = vset.pattern.permute.xlu0 0
    %9465 = vperm.xlu0 %9464, %v9435
    %v9466 = vpop.permute.xlu0 %9465
    %9469 = vset.pattern.permute.xlu0 0
    %9470 = vperm.xlu0 %9469, %v9436
    %v9471 = vpop.permute.xlu0 %9470
    %9474 = vset.pattern.permute.xlu0 0
    %9475 = vperm.xlu0 %9474, %v9437
    %v9476 = vpop.permute.xlu0 %9475
    %9479 = vset.pattern.permute.xlu0 0
    %9480 = vperm.xlu0 %9479, %v9438
    %v9481 = vpop.permute.xlu0 %9480
    %v9483 = vmul.f32 %v9293, %v9466
    %v9484 = vmul.f32 %v9295, %v9466
    %v9485 = vmul.f32 %v9297, %v9471
    %v9486 = vmul.f32 %v9299, %v9471
    %v9487 = vmul.f32 %v9303, %v9476
    %v9488 = vmul.f32 %v9305, %v9476
    %v9489 = vmul.f32 %v9307, %v9481
    %v9490 = vmul.f32 %v9309, %v9481
    %v9491 = vmul.f32 %v9313, %v9466
    %v9492 = vmul.f32 %v9315, %v9466
    %v9493 = vmul.f32 %v9317, %v9471
    %v9494 = vmul.f32 %v9319, %v9471
    %v9495 = vmul.f32 %v9323, %v9476
    %v9496 = vmul.f32 %v9325, %v9476
    %v9497 = vmul.f32 %v9327, %v9481
    %v9498 = vmul.f32 %v9329, %v9481
    %9500 = vset.pattern.permute.xlu0 1
    %9501 = vperm.xlu0 %9500, %v9459
    %v9502 = vpop.permute.xlu0 %9501
    %9505 = vset.pattern.permute.xlu0 1
    %9506 = vperm.xlu0 %9505, %v9460
    %v9507 = vpop.permute.xlu0 %9506
    %9510 = vset.pattern.permute.xlu0 1
    %9511 = vperm.xlu0 %9510, %v9461
    %v9512 = vpop.permute.xlu0 %9511
    %9515 = vset.pattern.permute.xlu0 1
    %9516 = vperm.xlu0 %9515, %v9462
    %v9517 = vpop.permute.xlu0 %9516
    %v9519 = vadd.f32 %v9483, %v9502
    %v9520 = vadd.f32 %v9484, %v9502
    %v9521 = vadd.f32 %v9485, %v9507
    %v9522 = vadd.f32 %v9486, %v9507
    %v9523 = vadd.f32 %v9487, %v9512
    %v9524 = vadd.f32 %v9488, %v9512
    %v9525 = vadd.f32 %v9489, %v9517
    %v9526 = vadd.f32 %v9490, %v9517
    %v9527 = vadd.f32 %v9491, %v9502
    %v9528 = vadd.f32 %v9492, %v9502
    %v9529 = vadd.f32 %v9493, %v9507
    %v9530 = vadd.f32 %v9494, %v9507
    %v9531 = vadd.f32 %v9495, %v9512
    %v9532 = vadd.f32 %v9496, %v9512
    %v9533 = vadd.f32 %v9497, %v9517
    %v9534 = vadd.f32 %v9498, %v9517
    %vm9535 = vcmp.ge.f32.partialorder %v9519, 0.0
    %vm9536 = vcmp.ge.f32.partialorder %v9520, 0.0
    %vm9537 = vcmp.ge.f32.partialorder %v9521, 0.0
    %vm9538 = vcmp.ge.f32.partialorder %v9522, 0.0
    %vm9539 = vcmp.ge.f32.partialorder %v9523, 0.0
    %vm9540 = vcmp.ge.f32.partialorder %v9524, 0.0
    %vm9541 = vcmp.ge.f32.partialorder %v9525, 0.0
    %vm9542 = vcmp.ge.f32.partialorder %v9526, 0.0
    %vm9543 = vcmp.ge.f32.partialorder %v9527, 0.0
    %vm9544 = vcmp.ge.f32.partialorder %v9528, 0.0
    %vm9545 = vcmp.ge.f32.partialorder %v9529, 0.0
    %vm9546 = vcmp.ge.f32.partialorder %v9530, 0.0
    %vm9547 = vcmp.ge.f32.partialorder %v9531, 0.0
    %vm9548 = vcmp.ge.f32.partialorder %v9532, 0.0
    %vm9549 = vcmp.ge.f32.partialorder %v9533, 0.0
    %vm9550 = vcmp.ge.f32.partialorder %v9534, 0.0
    %v9551 = vmul.f32 %v9519, 0.01
    %v9552 = vmul.f32 %v9520, 0.01
    %v9553 = vmul.f32 %v9521, 0.01
    %v9554 = vmul.f32 %v9522, 0.01
    %v9555 = vmul.f32 %v9523, 0.01
    %v9556 = vmul.f32 %v9524, 0.01
    %v9557 = vmul.f32 %v9525, 0.01
    %v9558 = vmul.f32 %v9526, 0.01
    %v9559 = vmul.f32 %v9527, 0.01
    %v9560 = vmul.f32 %v9528, 0.01
    %v9561 = vmul.f32 %v9529, 0.01
    %v9562 = vmul.f32 %v9530, 0.01
    %v9563 = vmul.f32 %v9531, 0.01
    %v9564 = vmul.f32 %v9532, 0.01
    %v9565 = vmul.f32 %v9533, 0.01
    %v9566 = vmul.f32 %v9534, 0.01
    %v9567 = vsel %vm9535, %v9519, %v9551
    %v9568 = vsel %vm9536, %v9520, %v9552
    %v9569 = vsel %vm9537, %v9521, %v9553
    %v9570 = vsel %vm9538, %v9522, %v9554
    %v9571 = vsel %vm9539, %v9523, %v9555
    %v9572 = vsel %vm9540, %v9524, %v9556
    %v9573 = vsel %vm9541, %v9525, %v9557
    %v9574 = vsel %vm9542, %v9526, %v9558
    %v9575 = vsel %vm9543, %v9527, %v9559
    %v9576 = vsel %vm9544, %v9528, %v9560
    %v9577 = vsel %vm9545, %v9529, %v9561
    %v9578 = vsel %vm9546, %v9530, %v9562
    %v9579 = vsel %vm9547, %v9531, %v9563
    %v9580 = vsel %vm9548, %v9532, %v9564
    %v9581 = vsel %vm9549, %v9533, %v9565
    %v9582 = vsel %vm9550, %v9534, %v9566
    %v9583 = vpack.c.bf16 %v9569, %v9567
    %v9584 = vpack.c.bf16 %v9570, %v9568
    %v9585 = vpack.c.bf16 %v9573, %v9571
    %v9586 = vpack.c.bf16 %v9574, %v9572
    %v9587 = vpack.c.bf16 %v9577, %v9575
    %v9588 = vpack.c.bf16 %v9578, %v9576
    %v9589 = vpack.c.bf16 %v9581, %v9579
    %v9590 = vpack.c.bf16 %v9582, %v9580
    %v9591 = vld [vmem:[%s19] sm:$0xff]
    %v9592 = vld [vmem:[%s19 + $0x8] sm:$0xff]
    %v9593 = vld [vmem:[%s19 + $0x10] sm:$0xff]
    %v9594 = vld [vmem:[%s19 + $0x18] sm:$0xff]
    %v9595 = vld [vmem:[%s19 + $0x20] sm:$0xff]
    %v9596 = vld [vmem:[%s19 + $0x28] sm:$0xff]
    %v9597 = vld [vmem:[%s19 + $0x30] sm:$0xff]
    %v9598 = vld [vmem:[%s19 + $0x38] sm:$0xff]
    %v9599 = vld [vmem:[%s19 + $0x40] sm:$0xff]
    %v9600 = vld [vmem:[%s19 + $0x48] sm:$0xff]
    %v9601 = vld [vmem:[%s19 + $0x50] sm:$0xff]
    %v9602 = vld [vmem:[%s19 + $0x58] sm:$0xff]
    %v9603 = vld [vmem:[%s19 + $0x60] sm:$0xff]
    %v9604 = vld [vmem:[%s19 + $0x68] sm:$0xff]
    %v9605 = vld [vmem:[%s19 + $0x70] sm:$0xff]
    %v9606 = vld [vmem:[%s19 + $0x78] sm:$0xff]
    %v9607 = vld [vmem:[%s19 + $0x80] sm:$0xff]
    %v9608 = vld [vmem:[%s19 + $0x88] sm:$0xff]
    %v9609 = vld [vmem:[%s19 + $0x90] sm:$0xff]
    %v9610 = vld [vmem:[%s19 + $0x98] sm:$0xff]
    %v9611 = vld [vmem:[%s19 + $0xa0] sm:$0xff]
    %v9612 = vld [vmem:[%s19 + $0xa8] sm:$0xff]
    %v9613 = vld [vmem:[%s19 + $0xb0] sm:$0xff]
    %v9614 = vld [vmem:[%s19 + $0xb8] sm:$0xff]
    %v9615 = vld [vmem:[%s19 + $0xc0] sm:$0xff]
    %v9616 = vld [vmem:[%s19 + $0xc8] sm:$0xff]
    %v9617 = vld [vmem:[%s19 + $0xd0] sm:$0xff]
    %v9618 = vld [vmem:[%s19 + $0xd8] sm:$0xff]
    %v9619 = vld [vmem:[%s19 + $0xe0] sm:$0xff]
    %v9620 = vld [vmem:[%s19 + $0xe8] sm:$0xff]
    %v9621 = vld [vmem:[%s19 + $0xf0] sm:$0xff]
    %v9622 = vld [vmem:[%s19 + $0xf8] sm:$0xff]
    %v9623 = vld [vmem:[%s19 + $0x100] sm:$0xff]
    %v9624 = vld [vmem:[%s19 + $0x108] sm:$0xff]
    %v9625 = vld [vmem:[%s19 + $0x110] sm:$0xff]
    %v9626 = vld [vmem:[%s19 + $0x118] sm:$0xff]
    %v9627 = vld [vmem:[%s19 + $0x120] sm:$0xff]
    %v9628 = vld [vmem:[%s19 + $0x128] sm:$0xff]
    %v9629 = vld [vmem:[%s19 + $0x130] sm:$0xff]
    %v9630 = vld [vmem:[%s19 + $0x138] sm:$0xff]
    %v9631 = vld [vmem:[%s19 + $0x140] sm:$0xff]
    %v9632 = vld [vmem:[%s19 + $0x148] sm:$0xff]
    %v9633 = vld [vmem:[%s19 + $0x150] sm:$0xff]
    %v9634 = vld [vmem:[%s19 + $0x158] sm:$0xff]
    %v9635 = vld [vmem:[%s19 + $0x160] sm:$0xff]
    %v9636 = vld [vmem:[%s19 + $0x168] sm:$0xff]
    %v9637 = vld [vmem:[%s19 + $0x170] sm:$0xff]
    %v9638 = vld [vmem:[%s19 + $0x178] sm:$0xff]
    %v9639 = vld [vmem:[%s19 + $0x180] sm:$0xff]
    %v9640 = vld [vmem:[%s19 + $0x188] sm:$0xff]
    %v9641 = vld [vmem:[%s19 + $0x190] sm:$0xff]
    %v9642 = vld [vmem:[%s19 + $0x198] sm:$0xff]
    %v9643 = vld [vmem:[%s19 + $0x1a0] sm:$0xff]
    %v9644 = vld [vmem:[%s19 + $0x1a8] sm:$0xff]
    %v9645 = vld [vmem:[%s19 + $0x1b0] sm:$0xff]
    %v9646 = vld [vmem:[%s19 + $0x1b8] sm:$0xff]
    %v9647 = vld [vmem:[%s19 + $0x1c0] sm:$0xff]
    %v9648 = vld [vmem:[%s19 + $0x1c8] sm:$0xff]
    %v9649 = vld [vmem:[%s19 + $0x1d0] sm:$0xff]
    %v9650 = vld [vmem:[%s19 + $0x1d8] sm:$0xff]
    %v9651 = vld [vmem:[%s19 + $0x1e0] sm:$0xff]
    %v9652 = vld [vmem:[%s19 + $0x1e8] sm:$0xff]
    %v9653 = vld [vmem:[%s19 + $0x1f0] sm:$0xff]
    %v9654 = vld [vmem:[%s19 + $0x1f8] sm:$0xff]
    %v9655 = vld [vmem:[%s19 + $0x200] sm:$0xff]
    %v9656 = vld [vmem:[%s19 + $0x208] sm:$0xff]
    %v9657 = vld [vmem:[%s19 + $0x210] sm:$0xff]
    %v9658 = vld [vmem:[%s19 + $0x218] sm:$0xff]
    %v9659 = vld [vmem:[%s19 + $0x220] sm:$0xff]
    %v9660 = vld [vmem:[%s19 + $0x228] sm:$0xff]
    %v9661 = vld [vmem:[%s19 + $0x230] sm:$0xff]
    %v9662 = vld [vmem:[%s19 + $0x238] sm:$0xff]
    %v9663 = vld [vmem:[%s19 + $0x240] sm:$0xff]
    %v9664 = vld [vmem:[%s19 + $0x248] sm:$0xff]
    %v9665 = vld [vmem:[%s19 + $0x250] sm:$0xff]
    %v9666 = vld [vmem:[%s19 + $0x258] sm:$0xff]
    %v9667 = vld [vmem:[%s19 + $0x260] sm:$0xff]
    %v9668 = vld [vmem:[%s19 + $0x268] sm:$0xff]
    %v9669 = vld [vmem:[%s19 + $0x270] sm:$0xff]
    %v9670 = vld [vmem:[%s19 + $0x278] sm:$0xff]
    %v9671 = vld [vmem:[%s19 + $0x280] sm:$0xff]
    %v9672 = vld [vmem:[%s19 + $0x288] sm:$0xff]
    %v9673 = vld [vmem:[%s19 + $0x290] sm:$0xff]
    %v9674 = vld [vmem:[%s19 + $0x298] sm:$0xff]
    %v9675 = vld [vmem:[%s19 + $0x2a0] sm:$0xff]
    %v9676 = vld [vmem:[%s19 + $0x2a8] sm:$0xff]
    %v9677 = vld [vmem:[%s19 + $0x2b0] sm:$0xff]
    %v9678 = vld [vmem:[%s19 + $0x2b8] sm:$0xff]
    %v9679 = vld [vmem:[%s19 + $0x2c0] sm:$0xff]
    %v9680 = vld [vmem:[%s19 + $0x2c8] sm:$0xff]
    %v9681 = vld [vmem:[%s19 + $0x2d0] sm:$0xff]
    %v9682 = vld [vmem:[%s19 + $0x2d8] sm:$0xff]
    %v9683 = vld [vmem:[%s19 + $0x2e0] sm:$0xff]
    %v9684 = vld [vmem:[%s19 + $0x2e8] sm:$0xff]
    %v9685 = vld [vmem:[%s19 + $0x2f0] sm:$0xff]
    %v9686 = vld [vmem:[%s19 + $0x2f8] sm:$0xff]
    %v9687 = vld [vmem:[%s19 + $0x300] sm:$0xff]
    %v9688 = vld [vmem:[%s19 + $0x308] sm:$0xff]
    %v9689 = vld [vmem:[%s19 + $0x310] sm:$0xff]
    %v9690 = vld [vmem:[%s19 + $0x318] sm:$0xff]
    %v9691 = vld [vmem:[%s19 + $0x320] sm:$0xff]
    %v9692 = vld [vmem:[%s19 + $0x328] sm:$0xff]
    %v9693 = vld [vmem:[%s19 + $0x330] sm:$0xff]
    %v9694 = vld [vmem:[%s19 + $0x338] sm:$0xff]
    %v9695 = vld [vmem:[%s19 + $0x340] sm:$0xff]
    %v9696 = vld [vmem:[%s19 + $0x348] sm:$0xff]
    %v9697 = vld [vmem:[%s19 + $0x350] sm:$0xff]
    %v9698 = vld [vmem:[%s19 + $0x358] sm:$0xff]
    %v9699 = vld [vmem:[%s19 + $0x360] sm:$0xff]
    %v9700 = vld [vmem:[%s19 + $0x368] sm:$0xff]
    %v9701 = vld [vmem:[%s19 + $0x370] sm:$0xff]
    %v9702 = vld [vmem:[%s19 + $0x378] sm:$0xff]
    %v9703 = vld [vmem:[%s19 + $0x380] sm:$0xff]
    %v9704 = vld [vmem:[%s19 + $0x388] sm:$0xff]
    %v9705 = vld [vmem:[%s19 + $0x390] sm:$0xff]
    %v9706 = vld [vmem:[%s19 + $0x398] sm:$0xff]
    %v9707 = vld [vmem:[%s19 + $0x3a0] sm:$0xff]
    %v9708 = vld [vmem:[%s19 + $0x3a8] sm:$0xff]
    %v9709 = vld [vmem:[%s19 + $0x3b0] sm:$0xff]
    %v9710 = vld [vmem:[%s19 + $0x3b8] sm:$0xff]
    %v9711 = vld [vmem:[%s19 + $0x3c0] sm:$0xff]
    %v9712 = vld [vmem:[%s19 + $0x3c8] sm:$0xff]
    %v9713 = vld [vmem:[%s19 + $0x3d0] sm:$0xff]
    %v9714 = vld [vmem:[%s19 + $0x3d8] sm:$0xff]
    %v9715 = vld [vmem:[%s19 + $0x3e0] sm:$0xff]
    %v9716 = vld [vmem:[%s19 + $0x3e8] sm:$0xff]
    %v9717 = vld [vmem:[%s19 + $0x3f0] sm:$0xff]
    %v9718 = vld [vmem:[%s19 + $0x3f8] sm:$0xff]
    %v9847 = vunpack.c.l.b16 %v9591
    %v9848 = vunpack.c.h.b16 %v9591
    %v9849 = vunpack.c.l.b16 %v9592
    %v9850 = vunpack.c.h.b16 %v9592
    %v9851 = vunpack.c.l.b16 %v9593
    %v9852 = vunpack.c.h.b16 %v9593
    %v9853 = vunpack.c.l.b16 %v9594
    %v9854 = vunpack.c.h.b16 %v9594
    %v9855 = vunpack.c.l.b16 %v9595
    %v9856 = vunpack.c.h.b16 %v9595
    %v9857 = vunpack.c.l.b16 %v9596
    %v9858 = vunpack.c.h.b16 %v9596
    %v9859 = vunpack.c.l.b16 %v9597
    %v9860 = vunpack.c.h.b16 %v9597
    %v9861 = vunpack.c.l.b16 %v9598
    %v9862 = vunpack.c.h.b16 %v9598
    %v9863 = vunpack.c.l.b16 %v9599
    %v9864 = vunpack.c.h.b16 %v9599
    %v9865 = vunpack.c.l.b16 %v9600
    %v9866 = vunpack.c.h.b16 %v9600
    %v9867 = vunpack.c.l.b16 %v9601
    %v9868 = vunpack.c.h.b16 %v9601
    %v9869 = vunpack.c.l.b16 %v9602
    %v9870 = vunpack.c.h.b16 %v9602
    %v9871 = vunpack.c.l.b16 %v9603
    %v9872 = vunpack.c.h.b16 %v9603
    %v9873 = vunpack.c.l.b16 %v9604
    %v9874 = vunpack.c.h.b16 %v9604
    %v9875 = vunpack.c.l.b16 %v9605
    %v9876 = vunpack.c.h.b16 %v9605
    %v9877 = vunpack.c.l.b16 %v9606
    %v9878 = vunpack.c.h.b16 %v9606
    %v9879 = vunpack.c.l.b16 %v9607
    %v9880 = vunpack.c.h.b16 %v9607
    %v9881 = vunpack.c.l.b16 %v9608
    %v9882 = vunpack.c.h.b16 %v9608
    %v9883 = vunpack.c.l.b16 %v9609
    %v9884 = vunpack.c.h.b16 %v9609
    %v9885 = vunpack.c.l.b16 %v9610
    %v9886 = vunpack.c.h.b16 %v9610
    %v9887 = vunpack.c.l.b16 %v9611
    %v9888 = vunpack.c.h.b16 %v9611
    %v9889 = vunpack.c.l.b16 %v9612
    %v9890 = vunpack.c.h.b16 %v9612
    %v9891 = vunpack.c.l.b16 %v9613
    %v9892 = vunpack.c.h.b16 %v9613
    %v9893 = vunpack.c.l.b16 %v9614
    %v9894 = vunpack.c.h.b16 %v9614
    %v9895 = vunpack.c.l.b16 %v9615
    %v9896 = vunpack.c.h.b16 %v9615
    %v9897 = vunpack.c.l.b16 %v9616
    %v9898 = vunpack.c.h.b16 %v9616
    %v9899 = vunpack.c.l.b16 %v9617
    %v9900 = vunpack.c.h.b16 %v9617
    %v9901 = vunpack.c.l.b16 %v9618
    %v9902 = vunpack.c.h.b16 %v9618
    %v9903 = vunpack.c.l.b16 %v9619
    %v9904 = vunpack.c.h.b16 %v9619
    %v9905 = vunpack.c.l.b16 %v9620
    %v9906 = vunpack.c.h.b16 %v9620
    %v9907 = vunpack.c.l.b16 %v9621
    %v9908 = vunpack.c.h.b16 %v9621
    %v9909 = vunpack.c.l.b16 %v9622
    %v9910 = vunpack.c.h.b16 %v9622
    %v9911 = vunpack.c.l.b16 %v9623
    %v9912 = vunpack.c.h.b16 %v9623
    %v9913 = vunpack.c.l.b16 %v9624
    %v9914 = vunpack.c.h.b16 %v9624
    %v9915 = vunpack.c.l.b16 %v9625
    %v9916 = vunpack.c.h.b16 %v9625
    %v9917 = vunpack.c.l.b16 %v9626
    %v9918 = vunpack.c.h.b16 %v9626
    %v9919 = vunpack.c.l.b16 %v9627
    %v9920 = vunpack.c.h.b16 %v9627
    %v9921 = vunpack.c.l.b16 %v9628
    %v9922 = vunpack.c.h.b16 %v9628
    %v9923 = vunpack.c.l.b16 %v9629
    %v9924 = vunpack.c.h.b16 %v9629
    %v9925 = vunpack.c.l.b16 %v9630
    %v9926 = vunpack.c.h.b16 %v9630
    %v9927 = vunpack.c.l.b16 %v9631
    %v9928 = vunpack.c.h.b16 %v9631
    %v9929 = vunpack.c.l.b16 %v9632
    %v9930 = vunpack.c.h.b16 %v9632
    %v9931 = vunpack.c.l.b16 %v9633
    %v9932 = vunpack.c.h.b16 %v9633
    %v9933 = vunpack.c.l.b16 %v9634
    %v9934 = vunpack.c.h.b16 %v9634
    %v9935 = vunpack.c.l.b16 %v9635
    %v9936 = vunpack.c.h.b16 %v9635
    %v9937 = vunpack.c.l.b16 %v9636
    %v9938 = vunpack.c.h.b16 %v9636
    %v9939 = vunpack.c.l.b16 %v9637
    %v9940 = vunpack.c.h.b16 %v9637
    %v9941 = vunpack.c.l.b16 %v9638
    %v9942 = vunpack.c.h.b16 %v9638
    %v9943 = vunpack.c.l.b16 %v9639
    %v9944 = vunpack.c.h.b16 %v9639
    %v9945 = vunpack.c.l.b16 %v9640
    %v9946 = vunpack.c.h.b16 %v9640
    %v9947 = vunpack.c.l.b16 %v9641
    %v9948 = vunpack.c.h.b16 %v9641
    %v9949 = vunpack.c.l.b16 %v9642
    %v9950 = vunpack.c.h.b16 %v9642
    %v9951 = vunpack.c.l.b16 %v9643
    %v9952 = vunpack.c.h.b16 %v9643
    %v9953 = vunpack.c.l.b16 %v9644
    %v9954 = vunpack.c.h.b16 %v9644
    %v9955 = vunpack.c.l.b16 %v9645
    %v9956 = vunpack.c.h.b16 %v9645
    %v9957 = vunpack.c.l.b16 %v9646
    %v9958 = vunpack.c.h.b16 %v9646
    %v9959 = vunpack.c.l.b16 %v9647
    %v9960 = vunpack.c.h.b16 %v9647
    %v9961 = vunpack.c.l.b16 %v9648
    %v9962 = vunpack.c.h.b16 %v9648
    %v9963 = vunpack.c.l.b16 %v9649
    %v9964 = vunpack.c.h.b16 %v9649
    %v9965 = vunpack.c.l.b16 %v9650
    %v9966 = vunpack.c.h.b16 %v9650
    %v9967 = vunpack.c.l.b16 %v9651
    %v9968 = vunpack.c.h.b16 %v9651
    %v9969 = vunpack.c.l.b16 %v9652
    %v9970 = vunpack.c.h.b16 %v9652
    %v9971 = vunpack.c.l.b16 %v9653
    %v9972 = vunpack.c.h.b16 %v9653
    %v9973 = vunpack.c.l.b16 %v9654
    %v9974 = vunpack.c.h.b16 %v9654
    %v9975 = vunpack.c.l.b16 %v9655
    %v9976 = vunpack.c.h.b16 %v9655
    %v9977 = vunpack.c.l.b16 %v9656
    %v9978 = vunpack.c.h.b16 %v9656
    %v9979 = vunpack.c.l.b16 %v9657
    %v9980 = vunpack.c.h.b16 %v9657
    %v9981 = vunpack.c.l.b16 %v9658
    %v9982 = vunpack.c.h.b16 %v9658
    %v9983 = vunpack.c.l.b16 %v9659
    %v9984 = vunpack.c.h.b16 %v9659
    %v9985 = vunpack.c.l.b16 %v9660
    %v9986 = vunpack.c.h.b16 %v9660
    %v9987 = vunpack.c.l.b16 %v9661
    %v9988 = vunpack.c.h.b16 %v9661
    %v9989 = vunpack.c.l.b16 %v9662
    %v9990 = vunpack.c.h.b16 %v9662
    %v9991 = vunpack.c.l.b16 %v9663
    %v9992 = vunpack.c.h.b16 %v9663
    %v9993 = vunpack.c.l.b16 %v9664
    %v9994 = vunpack.c.h.b16 %v9664
    %v9995 = vunpack.c.l.b16 %v9665
    %v9996 = vunpack.c.h.b16 %v9665
    %v9997 = vunpack.c.l.b16 %v9666
    %v9998 = vunpack.c.h.b16 %v9666
    %v9999 = vunpack.c.l.b16 %v9667
    %v10000 = vunpack.c.h.b16 %v9667
    %v10001 = vunpack.c.l.b16 %v9668
    %v10002 = vunpack.c.h.b16 %v9668
    %v10003 = vunpack.c.l.b16 %v9669
    %v10004 = vunpack.c.h.b16 %v9669
    %v10005 = vunpack.c.l.b16 %v9670
    %v10006 = vunpack.c.h.b16 %v9670
    %v10007 = vunpack.c.l.b16 %v9671
    %v10008 = vunpack.c.h.b16 %v9671
    %v10009 = vunpack.c.l.b16 %v9672
    %v10010 = vunpack.c.h.b16 %v9672
    %v10011 = vunpack.c.l.b16 %v9673
    %v10012 = vunpack.c.h.b16 %v9673
    %v10013 = vunpack.c.l.b16 %v9674
    %v10014 = vunpack.c.h.b16 %v9674
    %v10015 = vunpack.c.l.b16 %v9675
    %v10016 = vunpack.c.h.b16 %v9675
    %v10017 = vunpack.c.l.b16 %v9676
    %v10018 = vunpack.c.h.b16 %v9676
    %v10019 = vunpack.c.l.b16 %v9677
    %v10020 = vunpack.c.h.b16 %v9677
    %v10021 = vunpack.c.l.b16 %v9678
    %v10022 = vunpack.c.h.b16 %v9678
    %v10023 = vunpack.c.l.b16 %v9679
    %v10024 = vunpack.c.h.b16 %v9679
    %v10025 = vunpack.c.l.b16 %v9680
    %v10026 = vunpack.c.h.b16 %v9680
    %v10027 = vunpack.c.l.b16 %v9681
    %v10028 = vunpack.c.h.b16 %v9681
    %v10029 = vunpack.c.l.b16 %v9682
    %v10030 = vunpack.c.h.b16 %v9682
    %v10031 = vunpack.c.l.b16 %v9683
    %v10032 = vunpack.c.h.b16 %v9683
    %v10033 = vunpack.c.l.b16 %v9684
    %v10034 = vunpack.c.h.b16 %v9684
    %v10035 = vunpack.c.l.b16 %v9685
    %v10036 = vunpack.c.h.b16 %v9685
    %v10037 = vunpack.c.l.b16 %v9686
    %v10038 = vunpack.c.h.b16 %v9686
    %v10039 = vunpack.c.l.b16 %v9687
    %v10040 = vunpack.c.h.b16 %v9687
    %v10041 = vunpack.c.l.b16 %v9688
    %v10042 = vunpack.c.h.b16 %v9688
    %v10043 = vunpack.c.l.b16 %v9689
    %v10044 = vunpack.c.h.b16 %v9689
    %v10045 = vunpack.c.l.b16 %v9690
    %v10046 = vunpack.c.h.b16 %v9690
    %v10047 = vunpack.c.l.b16 %v9691
    %v10048 = vunpack.c.h.b16 %v9691
    %v10049 = vunpack.c.l.b16 %v9692
    %v10050 = vunpack.c.h.b16 %v9692
    %v10051 = vunpack.c.l.b16 %v9693
    %v10052 = vunpack.c.h.b16 %v9693
    %v10053 = vunpack.c.l.b16 %v9694
    %v10054 = vunpack.c.h.b16 %v9694
    %v10055 = vunpack.c.l.b16 %v9695
    %v10056 = vunpack.c.h.b16 %v9695
    %v10057 = vunpack.c.l.b16 %v9696
    %v10058 = vunpack.c.h.b16 %v9696
    %v10059 = vunpack.c.l.b16 %v9697
    %v10060 = vunpack.c.h.b16 %v9697
    %v10061 = vunpack.c.l.b16 %v9698
    %v10062 = vunpack.c.h.b16 %v9698
    %v10063 = vunpack.c.l.b16 %v9699
    %v10064 = vunpack.c.h.b16 %v9699
    %v10065 = vunpack.c.l.b16 %v9700
    %v10066 = vunpack.c.h.b16 %v9700
    %v10067 = vunpack.c.l.b16 %v9701
    %v10068 = vunpack.c.h.b16 %v9701
    %v10069 = vunpack.c.l.b16 %v9702
    %v10070 = vunpack.c.h.b16 %v9702
    %v10071 = vunpack.c.l.b16 %v9703
    %v10072 = vunpack.c.h.b16 %v9703
    %v10073 = vunpack.c.l.b16 %v9704
    %v10074 = vunpack.c.h.b16 %v9704
    %v10075 = vunpack.c.l.b16 %v9705
    %v10076 = vunpack.c.h.b16 %v9705
    %v10077 = vunpack.c.l.b16 %v9706
    %v10078 = vunpack.c.h.b16 %v9706
    %v10079 = vunpack.c.l.b16 %v9707
    %v10080 = vunpack.c.h.b16 %v9707
    %v10081 = vunpack.c.l.b16 %v9708
    %v10082 = vunpack.c.h.b16 %v9708
    %v10083 = vunpack.c.l.b16 %v9709
    %v10084 = vunpack.c.h.b16 %v9709
    %v10085 = vunpack.c.l.b16 %v9710
    %v10086 = vunpack.c.h.b16 %v9710
    %v10087 = vunpack.c.l.b16 %v9711
    %v10088 = vunpack.c.h.b16 %v9711
    %v10089 = vunpack.c.l.b16 %v9712
    %v10090 = vunpack.c.h.b16 %v9712
    %v10091 = vunpack.c.l.b16 %v9713
    %v10092 = vunpack.c.h.b16 %v9713
    %v10093 = vunpack.c.l.b16 %v9714
    %v10094 = vunpack.c.h.b16 %v9714
    %v10095 = vunpack.c.l.b16 %v9715
    %v10096 = vunpack.c.h.b16 %v9715
    %v10097 = vunpack.c.l.b16 %v9716
    %v10098 = vunpack.c.h.b16 %v9716
    %v10099 = vunpack.c.l.b16 %v9717
    %v10100 = vunpack.c.h.b16 %v9717
    %v10101 = vunpack.c.l.b16 %v9718
    %v10102 = vunpack.c.h.b16 %v9718
    %v10103 = vpack.c.b16 %v9855, %v9847
    %v10104 = vpack.c.b16 %v9856, %v9848
    %v10105 = vpack.c.b16 %v9857, %v9849
    %v10106 = vpack.c.b16 %v9858, %v9850
    %v10107 = vpack.c.b16 %v9859, %v9851
    %v10108 = vpack.c.b16 %v9860, %v9852
    %v10109 = vpack.c.b16 %v9861, %v9853
    %v10110 = vpack.c.b16 %v9862, %v9854
    %v10111 = vpack.c.b16 %v9871, %v9863
    %v10112 = vpack.c.b16 %v9872, %v9864
    %v10113 = vpack.c.b16 %v9873, %v9865
    %v10114 = vpack.c.b16 %v9874, %v9866
    %v10115 = vpack.c.b16 %v9875, %v9867
    %v10116 = vpack.c.b16 %v9876, %v9868
    %v10117 = vpack.c.b16 %v9877, %v9869
    %v10118 = vpack.c.b16 %v9878, %v9870
    %v10119 = vpack.c.b16 %v9887, %v9879
    %v10120 = vpack.c.b16 %v9888, %v9880
    %v10121 = vpack.c.b16 %v9889, %v9881
    %v10122 = vpack.c.b16 %v9890, %v9882
    %v10123 = vpack.c.b16 %v9891, %v9883
    %v10124 = vpack.c.b16 %v9892, %v9884
    %v10125 = vpack.c.b16 %v9893, %v9885
    %v10126 = vpack.c.b16 %v9894, %v9886
    %v10127 = vpack.c.b16 %v9903, %v9895
    %v10128 = vpack.c.b16 %v9904, %v9896
    %v10129 = vpack.c.b16 %v9905, %v9897
    %v10130 = vpack.c.b16 %v9906, %v9898
    %v10131 = vpack.c.b16 %v9907, %v9899
    %v10132 = vpack.c.b16 %v9908, %v9900
    %v10133 = vpack.c.b16 %v9909, %v9901
    %v10134 = vpack.c.b16 %v9910, %v9902
    %v10135 = vpack.c.b16 %v9919, %v9911
    %v10136 = vpack.c.b16 %v9920, %v9912
    %v10137 = vpack.c.b16 %v9921, %v9913
    %v10138 = vpack.c.b16 %v9922, %v9914
    %v10139 = vpack.c.b16 %v9923, %v9915
    %v10140 = vpack.c.b16 %v9924, %v9916
    %v10141 = vpack.c.b16 %v9925, %v9917
    %v10142 = vpack.c.b16 %v9926, %v9918
    %v10143 = vpack.c.b16 %v9935, %v9927
    %v10144 = vpack.c.b16 %v9936, %v9928
    %v10145 = vpack.c.b16 %v9937, %v9929
    %v10146 = vpack.c.b16 %v9938, %v9930
    %v10147 = vpack.c.b16 %v9939, %v9931
    %v10148 = vpack.c.b16 %v9940, %v9932
    %v10149 = vpack.c.b16 %v9941, %v9933
    %v10150 = vpack.c.b16 %v9942, %v9934
    %v10151 = vpack.c.b16 %v9951, %v9943
    %v10152 = vpack.c.b16 %v9952, %v9944
    %v10153 = vpack.c.b16 %v9953, %v9945
    %v10154 = vpack.c.b16 %v9954, %v9946
    %v10155 = vpack.c.b16 %v9955, %v9947
    %v10156 = vpack.c.b16 %v9956, %v9948
    %v10157 = vpack.c.b16 %v9957, %v9949
    %v10158 = vpack.c.b16 %v9958, %v9950
    %v10159 = vpack.c.b16 %v9967, %v9959
    %v10160 = vpack.c.b16 %v9968, %v9960
    %v10161 = vpack.c.b16 %v9969, %v9961
    %v10162 = vpack.c.b16 %v9970, %v9962
    %v10163 = vpack.c.b16 %v9971, %v9963
    %v10164 = vpack.c.b16 %v9972, %v9964
    %v10165 = vpack.c.b16 %v9973, %v9965
    %v10166 = vpack.c.b16 %v9974, %v9966
    %v10167 = vpack.c.b16 %v9983, %v9975
    %v10168 = vpack.c.b16 %v9984, %v9976
    %v10169 = vpack.c.b16 %v9985, %v9977
    %v10170 = vpack.c.b16 %v9986, %v9978
    %v10171 = vpack.c.b16 %v9987, %v9979
    %v10172 = vpack.c.b16 %v9988, %v9980
    %v10173 = vpack.c.b16 %v9989, %v9981
    %v10174 = vpack.c.b16 %v9990, %v9982
    %v10175 = vpack.c.b16 %v9999, %v9991
    %v10176 = vpack.c.b16 %v10000, %v9992
    %v10177 = vpack.c.b16 %v10001, %v9993
    %v10178 = vpack.c.b16 %v10002, %v9994
    %v10179 = vpack.c.b16 %v10003, %v9995
    %v10180 = vpack.c.b16 %v10004, %v9996
    %v10181 = vpack.c.b16 %v10005, %v9997
    %v10182 = vpack.c.b16 %v10006, %v9998
    %v10183 = vpack.c.b16 %v10015, %v10007
    %v10184 = vpack.c.b16 %v10016, %v10008
    %v10185 = vpack.c.b16 %v10017, %v10009
    %v10186 = vpack.c.b16 %v10018, %v10010
    %v10187 = vpack.c.b16 %v10019, %v10011
    %v10188 = vpack.c.b16 %v10020, %v10012
    %v10189 = vpack.c.b16 %v10021, %v10013
    %v10190 = vpack.c.b16 %v10022, %v10014
    %v10191 = vpack.c.b16 %v10031, %v10023
    %v10192 = vpack.c.b16 %v10032, %v10024
    %v10193 = vpack.c.b16 %v10033, %v10025
    %v10194 = vpack.c.b16 %v10034, %v10026
    %v10195 = vpack.c.b16 %v10035, %v10027
    %v10196 = vpack.c.b16 %v10036, %v10028
    %v10197 = vpack.c.b16 %v10037, %v10029
    %v10198 = vpack.c.b16 %v10038, %v10030
    %v10199 = vpack.c.b16 %v10047, %v10039
    %v10200 = vpack.c.b16 %v10048, %v10040
    %v10201 = vpack.c.b16 %v10049, %v10041
    %v10202 = vpack.c.b16 %v10050, %v10042
    %v10203 = vpack.c.b16 %v10051, %v10043
    %v10204 = vpack.c.b16 %v10052, %v10044
    %v10205 = vpack.c.b16 %v10053, %v10045
    %v10206 = vpack.c.b16 %v10054, %v10046
    %v10207 = vpack.c.b16 %v10063, %v10055
    %v10208 = vpack.c.b16 %v10064, %v10056
    %v10209 = vpack.c.b16 %v10065, %v10057
    %v10210 = vpack.c.b16 %v10066, %v10058
    %v10211 = vpack.c.b16 %v10067, %v10059
    %v10212 = vpack.c.b16 %v10068, %v10060
    %v10213 = vpack.c.b16 %v10069, %v10061
    %v10214 = vpack.c.b16 %v10070, %v10062
    %v10215 = vpack.c.b16 %v10079, %v10071
    %v10216 = vpack.c.b16 %v10080, %v10072
    %v10217 = vpack.c.b16 %v10081, %v10073
    %v10218 = vpack.c.b16 %v10082, %v10074
    %v10219 = vpack.c.b16 %v10083, %v10075
    %v10220 = vpack.c.b16 %v10084, %v10076
    %v10221 = vpack.c.b16 %v10085, %v10077
    %v10222 = vpack.c.b16 %v10086, %v10078
    %v10223 = vpack.c.b16 %v10095, %v10087
    %v10224 = vpack.c.b16 %v10096, %v10088
    %v10225 = vpack.c.b16 %v10097, %v10089
    %v10226 = vpack.c.b16 %v10098, %v10090
    %v10227 = vpack.c.b16 %v10099, %v10091
    %v10228 = vpack.c.b16 %v10100, %v10092
    %v10229 = vpack.c.b16 %v10101, %v10093
    %v10230 = vpack.c.b16 %v10102, %v10094
    %10359 = vmatprep.subr.bf16.mxu0 %v10160
    %10360 = vmatpush1.bf16.msra.mxu0 %v10159
    %10361 = vmatprep.subr.bf16.mxu0 %v10152
    %10362 = vmatpush1.bf16.msra.mxu0 %v10151
    %10363 = vmatprep.subr.bf16.mxu0 %v10144
    %10364 = vmatpush1.bf16.msra.mxu0 %v10143
    %10365 = vmatprep.subr.bf16.mxu0 %v10136
    %10366 = vmatpush1.bf16.msra.mxu0 %v10135
    %10367 = vmatprep.subr.bf16.mxu0 %v10128
    %10368 = vmatpush1.bf16.msra.mxu0 %v10127
    %10369 = vmatprep.subr.bf16.mxu0 %v10120
    %10370 = vmatpush1.bf16.msra.mxu0 %v10119
    %10371 = vmatprep.subr.bf16.mxu0 %v10112
    %10372 = vmatpush1.bf16.msra.mxu0 %v10111
    %10373 = vmatprep.subr.bf16.mxu0 %v10104
    %10374 = vmatpush1.bf16.msra.mxu0 %v10103
    %10375 = vmatprep.subr.bf16.mxu0 %v10224
    %10376 = vmatpush2.bf16.msra.mxu0 %v10223
    %10377 = vmatprep.subr.bf16.mxu0 %v10216
    %10378 = vmatpush2.bf16.msra.mxu0 %v10215
    %10379 = vmatprep.subr.bf16.mxu0 %v10208
    %10380 = vmatpush2.bf16.msra.mxu0 %v10207
    %10381 = vmatprep.subr.bf16.mxu0 %v10200
    %10382 = vmatpush2.bf16.msra.mxu0 %v10199
    %10383 = vmatprep.subr.bf16.mxu0 %v10192
    %10384 = vmatpush2.bf16.msra.mxu0 %v10191
    %10385 = vmatprep.subr.bf16.mxu0 %v10184
    %10386 = vmatpush2.bf16.msra.mxu0 %v10183
    %10387 = vmatprep.subr.bf16.mxu0 %v10176
    %10388 = vmatpush2.bf16.msra.mxu0 %v10175
    %10389 = vmatprep.subr.bf16.mxu0 %v10168
    %10390 = vmatpush2.bf16.msra.mxu0 %v10167
    %10391 = vmatprep.mubr.bf16.mxu0 %v9584
    %10392 = vmatmul.mubr.bf16.gmra.mxu0 %v9583
    %v10393 = vpop.f32.mrf.mxu0
    %v10394 = vadd.f32 0.0, %v10393
    %v10395 = vpop.f32.mrf.mxu0
    %v10396 = vadd.f32 0.0, %v10395
    %v10397 = vpop.f32.mrf.mxu0
    %v10398 = vadd.f32 0.0, %v10397
    %v10399 = vpop.f32.mrf.mxu0
    %v10400 = vadd.f32 0.0, %v10399
    %10401 = vmatprep.mubr.bf16.mxu0 %v9586
    %10402 = vmatmul.mubr.bf16.gmra.mxu0 %v9585
    %v10403 = vpop.f32.mrf.mxu0
    %v10404 = vadd.f32 0.0, %v10403
    %v10405 = vpop.f32.mrf.mxu0
    %v10406 = vadd.f32 0.0, %v10405
    %v10407 = vpop.f32.mrf.mxu0
    %v10408 = vadd.f32 0.0, %v10407
    %v10409 = vpop.f32.mrf.mxu0
    %v10410 = vadd.f32 0.0, %v10409
    %10411 = vmatprep.mubr.bf16.mxu0 %v9588
    %10412 = vmatmul.mubr.bf16.gmra.mxu0 %v9587
    %v10413 = vpop.f32.mrf.mxu0
    %v10414 = vadd.f32 0.0, %v10413
    %v10415 = vpop.f32.mrf.mxu0
    %v10416 = vadd.f32 0.0, %v10415
    %v10417 = vpop.f32.mrf.mxu0
    %v10418 = vadd.f32 0.0, %v10417
    %v10419 = vpop.f32.mrf.mxu0
    %v10420 = vadd.f32 0.0, %v10419
    %10421 = vmatprep.mubr.bf16.mxu0 %v9590
    %10422 = vmatmul.mubr.bf16.gmra.mxu0 %v9589
    %v10423 = vpop.f32.mrf.mxu0
    %v10424 = vadd.f32 0.0, %v10423
    %v10425 = vpop.f32.mrf.mxu0
    %v10426 = vadd.f32 0.0, %v10425
    %v10427 = vpop.f32.mrf.mxu0
    %v10428 = vadd.f32 0.0, %v10427
    %v10429 = vpop.f32.mrf.mxu0
    %v10430 = vadd.f32 0.0, %v10429
    %10431 = vdwg.mxu0
    %10432 = vmatprep.subr.bf16.mxu0 %v10162
    %10433 = vmatpush1.bf16.msra.mxu0 %v10161
    %10434 = vmatprep.subr.bf16.mxu0 %v10154
    %10435 = vmatpush1.bf16.msra.mxu0 %v10153
    %10436 = vmatprep.subr.bf16.mxu0 %v10146
    %10437 = vmatpush1.bf16.msra.mxu0 %v10145
    %10438 = vmatprep.subr.bf16.mxu0 %v10138
    %10439 = vmatpush1.bf16.msra.mxu0 %v10137
    %10440 = vmatprep.subr.bf16.mxu0 %v10130
    %10441 = vmatpush1.bf16.msra.mxu0 %v10129
    %10442 = vmatprep.subr.bf16.mxu0 %v10122
    %10443 = vmatpush1.bf16.msra.mxu0 %v10121
    %10444 = vmatprep.subr.bf16.mxu0 %v10114
    %10445 = vmatpush1.bf16.msra.mxu0 %v10113
    %10446 = vmatprep.subr.bf16.mxu0 %v10106
    %10447 = vmatpush1.bf16.msra.mxu0 %v10105
    %10448 = vmatprep.subr.bf16.mxu0 %v10226
    %10449 = vmatpush2.bf16.msra.mxu0 %v10225
    %10450 = vmatprep.subr.bf16.mxu0 %v10218
    %10451 = vmatpush2.bf16.msra.mxu0 %v10217
    %10452 = vmatprep.subr.bf16.mxu0 %v10210
    %10453 = vmatpush2.bf16.msra.mxu0 %v10209
    %10454 = vmatprep.subr.bf16.mxu0 %v10202
    %10455 = vmatpush2.bf16.msra.mxu0 %v10201
    %10456 = vmatprep.subr.bf16.mxu0 %v10194
    %10457 = vmatpush2.bf16.msra.mxu0 %v10193
    %10458 = vmatprep.subr.bf16.mxu0 %v10186
    %10459 = vmatpush2.bf16.msra.mxu0 %v10185
    %10460 = vmatprep.subr.bf16.mxu0 %v10178
    %10461 = vmatpush2.bf16.msra.mxu0 %v10177
    %10462 = vmatprep.subr.bf16.mxu0 %v10170
    %10463 = vmatpush2.bf16.msra.mxu0 %v10169
    %10464 = vmatprep.mubr.bf16.mxu0 %v9584
    %10465 = vmatmul.mubr.bf16.gmra.mxu0 %v9583
    %v10466 = vpop.f32.mrf.mxu0
    %v10467 = vadd.f32 0.0, %v10466
    %v10468 = vpop.f32.mrf.mxu0
    %v10469 = vadd.f32 0.0, %v10468
    %v10470 = vpop.f32.mrf.mxu0
    %v10471 = vadd.f32 0.0, %v10470
    %v10472 = vpop.f32.mrf.mxu0
    %v10473 = vadd.f32 0.0, %v10472
    %10474 = vmatprep.mubr.bf16.mxu0 %v9586
    %10475 = vmatmul.mubr.bf16.gmra.mxu0 %v9585
    %v10476 = vpop.f32.mrf.mxu0
    %v10477 = vadd.f32 0.0, %v10476
    %v10478 = vpop.f32.mrf.mxu0
    %v10479 = vadd.f32 0.0, %v10478
    %v10480 = vpop.f32.mrf.mxu0
    %v10481 = vadd.f32 0.0, %v10480
    %v10482 = vpop.f32.mrf.mxu0
    %v10483 = vadd.f32 0.0, %v10482
    %10484 = vmatprep.mubr.bf16.mxu0 %v9588
    %10485 = vmatmul.mubr.bf16.gmra.mxu0 %v9587
    %v10486 = vpop.f32.mrf.mxu0
    %v10487 = vadd.f32 0.0, %v10486
    %v10488 = vpop.f32.mrf.mxu0
    %v10489 = vadd.f32 0.0, %v10488
    %v10490 = vpop.f32.mrf.mxu0
    %v10491 = vadd.f32 0.0, %v10490
    %v10492 = vpop.f32.mrf.mxu0
    %v10493 = vadd.f32 0.0, %v10492
    %10494 = vmatprep.mubr.bf16.mxu0 %v9590
    %10495 = vmatmul.mubr.bf16.gmra.mxu0 %v9589
    %v10496 = vpop.f32.mrf.mxu0
    %v10497 = vadd.f32 0.0, %v10496
    %v10498 = vpop.f32.mrf.mxu0
    %v10499 = vadd.f32 0.0, %v10498
    %v10500 = vpop.f32.mrf.mxu0
    %v10501 = vadd.f32 0.0, %v10500
    %v10502 = vpop.f32.mrf.mxu0
    %v10503 = vadd.f32 0.0, %v10502
    %10504 = vdwg.mxu0
    %10505 = vmatprep.subr.bf16.mxu0 %v10164
    %10506 = vmatpush1.bf16.msra.mxu0 %v10163
    %10507 = vmatprep.subr.bf16.mxu0 %v10156
    %10508 = vmatpush1.bf16.msra.mxu0 %v10155
    %10509 = vmatprep.subr.bf16.mxu0 %v10148
    %10510 = vmatpush1.bf16.msra.mxu0 %v10147
    %10511 = vmatprep.subr.bf16.mxu0 %v10140
    %10512 = vmatpush1.bf16.msra.mxu0 %v10139
    %10513 = vmatprep.subr.bf16.mxu0 %v10132
    %10514 = vmatpush1.bf16.msra.mxu0 %v10131
    %10515 = vmatprep.subr.bf16.mxu0 %v10124
    %10516 = vmatpush1.bf16.msra.mxu0 %v10123
    %10517 = vmatprep.subr.bf16.mxu0 %v10116
    %10518 = vmatpush1.bf16.msra.mxu0 %v10115
    %10519 = vmatprep.subr.bf16.mxu0 %v10108
    %10520 = vmatpush1.bf16.msra.mxu0 %v10107
    %10521 = vmatprep.subr.bf16.mxu0 %v10228
    %10522 = vmatpush2.bf16.msra.mxu0 %v10227
    %10523 = vmatprep.subr.bf16.mxu0 %v10220
    %10524 = vmatpush2.bf16.msra.mxu0 %v10219
    %10525 = vmatprep.subr.bf16.mxu0 %v10212
    %10526 = vmatpush2.bf16.msra.mxu0 %v10211
    %10527 = vmatprep.subr.bf16.mxu0 %v10204
    %10528 = vmatpush2.bf16.msra.mxu0 %v10203
    %10529 = vmatprep.subr.bf16.mxu0 %v10196
    %10530 = vmatpush2.bf16.msra.mxu0 %v10195
    %10531 = vmatprep.subr.bf16.mxu0 %v10188
    %10532 = vmatpush2.bf16.msra.mxu0 %v10187
    %10533 = vmatprep.subr.bf16.mxu0 %v10180
    %10534 = vmatpush2.bf16.msra.mxu0 %v10179
    %10535 = vmatprep.subr.bf16.mxu0 %v10172
    %10536 = vmatpush2.bf16.msra.mxu0 %v10171
    %10537 = vmatprep.mubr.bf16.mxu0 %v9584
    %10538 = vmatmul.mubr.bf16.gmra.mxu0 %v9583
    %v10539 = vpop.f32.mrf.mxu0
    %v10540 = vadd.f32 0.0, %v10539
    %v10541 = vpop.f32.mrf.mxu0
    %v10542 = vadd.f32 0.0, %v10541
    %v10543 = vpop.f32.mrf.mxu0
    %v10544 = vadd.f32 0.0, %v10543
    %v10545 = vpop.f32.mrf.mxu0
    %v10546 = vadd.f32 0.0, %v10545
    %10547 = vmatprep.mubr.bf16.mxu0 %v9586
    %10548 = vmatmul.mubr.bf16.gmra.mxu0 %v9585
    %v10549 = vpop.f32.mrf.mxu0
    %v10550 = vadd.f32 0.0, %v10549
    %v10551 = vpop.f32.mrf.mxu0
    %v10552 = vadd.f32 0.0, %v10551
    %v10553 = vpop.f32.mrf.mxu0
    %v10554 = vadd.f32 0.0, %v10553
    %v10555 = vpop.f32.mrf.mxu0
    %v10556 = vadd.f32 0.0, %v10555
    %10557 = vmatprep.mubr.bf16.mxu0 %v9588
    %10558 = vmatmul.mubr.bf16.gmra.mxu0 %v9587
    %v10559 = vpop.f32.mrf.mxu0
    %v10560 = vadd.f32 0.0, %v10559
    %v10561 = vpop.f32.mrf.mxu0
    %v10562 = vadd.f32 0.0, %v10561
    %v10563 = vpop.f32.mrf.mxu0
    %v10564 = vadd.f32 0.0, %v10563
    %v10565 = vpop.f32.mrf.mxu0
    %v10566 = vadd.f32 0.0, %v10565
    %10567 = vmatprep.mubr.bf16.mxu0 %v9590
    %10568 = vmatmul.mubr.bf16.gmra.mxu0 %v9589
    %v10569 = vpop.f32.mrf.mxu0
    %v10570 = vadd.f32 0.0, %v10569
    %v10571 = vpop.f32.mrf.mxu0
    %v10572 = vadd.f32 0.0, %v10571
    %v10573 = vpop.f32.mrf.mxu0
    %v10574 = vadd.f32 0.0, %v10573
    %v10575 = vpop.f32.mrf.mxu0
    %v10576 = vadd.f32 0.0, %v10575
    %10577 = vdwg.mxu0
    %10578 = vmatprep.subr.bf16.mxu0 %v10166
    %10579 = vmatpush1.bf16.msra.mxu0 %v10165
    %10580 = vmatprep.subr.bf16.mxu0 %v10158
    %10581 = vmatpush1.bf16.msra.mxu0 %v10157
    %10582 = vmatprep.subr.bf16.mxu0 %v10150
    %10583 = vmatpush1.bf16.msra.mxu0 %v10149
    %10584 = vmatprep.subr.bf16.mxu0 %v10142
    %10585 = vmatpush1.bf16.msra.mxu0 %v10141
    %10586 = vmatprep.subr.bf16.mxu0 %v10134
    %10587 = vmatpush1.bf16.msra.mxu0 %v10133
    %10588 = vmatprep.subr.bf16.mxu0 %v10126
    %10589 = vmatpush1.bf16.msra.mxu0 %v10125
    %10590 = vmatprep.subr.bf16.mxu0 %v10118
    %10591 = vmatpush1.bf16.msra.mxu0 %v10117
    %10592 = vmatprep.subr.bf16.mxu0 %v10110
    %10593 = vmatpush1.bf16.msra.mxu0 %v10109
    %10594 = vmatprep.subr.bf16.mxu0 %v10230
    %10595 = vmatpush2.bf16.msra.mxu0 %v10229
    %10596 = vmatprep.subr.bf16.mxu0 %v10222
    %10597 = vmatpush2.bf16.msra.mxu0 %v10221
    %10598 = vmatprep.subr.bf16.mxu0 %v10214
    %10599 = vmatpush2.bf16.msra.mxu0 %v10213
    %10600 = vmatprep.subr.bf16.mxu0 %v10206
    %10601 = vmatpush2.bf16.msra.mxu0 %v10205
    %10602 = vmatprep.subr.bf16.mxu0 %v10198
    %10603 = vmatpush2.bf16.msra.mxu0 %v10197
    %10604 = vmatprep.subr.bf16.mxu0 %v10190
    %10605 = vmatpush2.bf16.msra.mxu0 %v10189
    %10606 = vmatprep.subr.bf16.mxu0 %v10182
    %10607 = vmatpush2.bf16.msra.mxu0 %v10181
    %10608 = vmatprep.subr.bf16.mxu0 %v10174
    %10609 = vmatpush2.bf16.msra.mxu0 %v10173
    %10610 = vmatprep.mubr.bf16.mxu0 %v9584
    %10611 = vmatmul.mubr.bf16.gmra.mxu0 %v9583
    %v10612 = vpop.f32.mrf.mxu0
    %v10613 = vadd.f32 0.0, %v10612
    %v10614 = vpop.f32.mrf.mxu0
    %v10615 = vadd.f32 0.0, %v10614
    %v10616 = vpop.f32.mrf.mxu0
    %v10617 = vadd.f32 0.0, %v10616
    %v10618 = vpop.f32.mrf.mxu0
    %v10619 = vadd.f32 0.0, %v10618
    %10620 = vmatprep.mubr.bf16.mxu0 %v9586
    %10621 = vmatmul.mubr.bf16.gmra.mxu0 %v9585
    %v10622 = vpop.f32.mrf.mxu0
    %v10623 = vadd.f32 0.0, %v10622
    %v10624 = vpop.f32.mrf.mxu0
    %v10625 = vadd.f32 0.0, %v10624
    %v10626 = vpop.f32.mrf.mxu0
    %v10627 = vadd.f32 0.0, %v10626
    %v10628 = vpop.f32.mrf.mxu0
    %v10629 = vadd.f32 0.0, %v10628
    %10630 = vmatprep.mubr.bf16.mxu0 %v9588
    %10631 = vmatmul.mubr.bf16.gmra.mxu0 %v9587
    %v10632 = vpop.f32.mrf.mxu0
    %v10633 = vadd.f32 0.0, %v10632
    %v10634 = vpop.f32.mrf.mxu0
    %v10635 = vadd.f32 0.0, %v10634
    %v10636 = vpop.f32.mrf.mxu0
    %v10637 = vadd.f32 0.0, %v10636
    %v10638 = vpop.f32.mrf.mxu0
    %v10639 = vadd.f32 0.0, %v10638
    %10640 = vmatprep.mubr.bf16.mxu0 %v9590
    %10641 = vmatmul.mubr.bf16.gmra.mxu0 %v9589
    %v10642 = vpop.f32.mrf.mxu0
    %v10643 = vadd.f32 0.0, %v10642
    %v10644 = vpop.f32.mrf.mxu0
    %v10645 = vadd.f32 0.0, %v10644
    %v10646 = vpop.f32.mrf.mxu0
    %v10647 = vadd.f32 0.0, %v10646
    %v10648 = vpop.f32.mrf.mxu0
    %v10649 = vadd.f32 0.0, %v10648
    %10650 = vdwg.mxu0
    %v10651 = vpack.c.bf16 %v10398, %v10394
    %v10652 = vpack.c.bf16 %v10400, %v10396
    %v10653 = vpack.c.bf16 %v10408, %v10404
    %v10654 = vpack.c.bf16 %v10410, %v10406
    %v10655 = vpack.c.bf16 %v10418, %v10414
    %v10656 = vpack.c.bf16 %v10420, %v10416
    %v10657 = vpack.c.bf16 %v10428, %v10424
    %v10658 = vpack.c.bf16 %v10430, %v10426
    %v10659 = vpack.c.bf16 %v10471, %v10467
    %v10660 = vpack.c.bf16 %v10473, %v10469
    %v10661 = vpack.c.bf16 %v10481, %v10477
    %v10662 = vpack.c.bf16 %v10483, %v10479
    %v10663 = vpack.c.bf16 %v10491, %v10487
    %v10664 = vpack.c.bf16 %v10493, %v10489
    %v10665 = vpack.c.bf16 %v10501, %v10497
    %v10666 = vpack.c.bf16 %v10503, %v10499
    %v10667 = vpack.c.bf16 %v10544, %v10540
    %v10668 = vpack.c.bf16 %v10546, %v10542
    %v10669 = vpack.c.bf16 %v10554, %v10550
    %v10670 = vpack.c.bf16 %v10556, %v10552
    %v10671 = vpack.c.bf16 %v10564, %v10560
    %v10672 = vpack.c.bf16 %v10566, %v10562
    %v10673 = vpack.c.bf16 %v10574, %v10570
    %v10674 = vpack.c.bf16 %v10576, %v10572
    %v10675 = vpack.c.bf16 %v10617, %v10613
    %v10676 = vpack.c.bf16 %v10619, %v10615
    %v10677 = vpack.c.bf16 %v10627, %v10623
    %v10678 = vpack.c.bf16 %v10629, %v10625
    %v10679 = vpack.c.bf16 %v10637, %v10633
    %v10680 = vpack.c.bf16 %v10639, %v10635
    %v10681 = vpack.c.bf16 %v10647, %v10643
    %v10682 = vpack.c.bf16 %v10649, %v10645
    %v10683 = vld [vmem:[#allocation16] sm:$0x3]
    %v10686 = vunpack.c.l.s4 1966171168
    %v10687 = vunpack.c.0.s8 %v10686
    %v10688 = vlaneseq
    %v10689 = vshrl.u32 %v10688, 7
    %v10690 = vsub.s32 %v10687, %v10689
    %v10691 = vrot.slane %v10683, %v10690
    %v10692 = vcombine.high %v10691, %v10691
    %v10694 = vunpack.c.l.s4 1966171168
    %v10695 = vunpack.c.0.s8 %v10694
    %v10696 = vlaneseq
    %v10697 = vshrl.u32 %v10696, 7
    %v10698 = vsub.s32 %v10695, %v10697
    %v10699 = vrot.slane %v10691, %v10698
    %v10701 = vunpack.c.l.s4 1966171168
    %v10702 = vunpack.c.0.s8 %v10701
    %v10703 = vlaneseq
    %v10704 = vshrl.u32 %v10703, 7
    %v10705 = vsub.s32 %v10702, %v10704
    %v10706 = vrot.slane %v10692, %v10705
    %10709 = vmatprep.subr.bf16.mxu0 %v10666
    %10710 = vmatpush1.bf16.msra.mxu0 %v10665
    %10711 = vmatprep.subr.bf16.mxu0 %v10664
    %10712 = vmatpush1.bf16.msra.mxu0 %v10663
    %10713 = vmatprep.subr.bf16.mxu0 %v10662
    %10714 = vmatpush1.bf16.msra.mxu0 %v10661
    %10715 = vmatprep.subr.bf16.mxu0 %v10660
    %10716 = vmatpush1.bf16.msra.mxu0 %v10659
    %10717 = vmatprep.subr.bf16.mxu0 %v10658
    %10718 = vmatpush1.bf16.msra.mxu0 %v10657
    %10719 = vmatprep.subr.bf16.mxu0 %v10656
    %10720 = vmatpush1.bf16.msra.mxu0 %v10655
    %10721 = vmatprep.subr.bf16.mxu0 %v10654
    %10722 = vmatpush1.bf16.msra.mxu0 %v10653
    %10723 = vmatprep.subr.bf16.mxu0 %v10652
    %10724 = vmatpush1.bf16.msra.mxu0 %v10651
    %10725 = vmatprep.subr.bf16.mxu0 %v10682
    %10726 = vmatpush2.bf16.msra.mxu0 %v10681
    %10727 = vmatprep.subr.bf16.mxu0 %v10680
    %10728 = vmatpush2.bf16.msra.mxu0 %v10679
    %10729 = vmatprep.subr.bf16.mxu0 %v10678
    %10730 = vmatpush2.bf16.msra.mxu0 %v10677
    %10731 = vmatprep.subr.bf16.mxu0 %v10676
    %10732 = vmatpush2.bf16.msra.mxu0 %v10675
    %10733 = vmatprep.subr.bf16.mxu0 %v10674
    %10734 = vmatpush2.bf16.msra.mxu0 %v10673
    %10735 = vmatprep.subr.bf16.mxu0 %v10672
    %10736 = vmatpush2.bf16.msra.mxu0 %v10671
    %10737 = vmatprep.subr.bf16.mxu0 %v10670
    %10738 = vmatpush2.bf16.msra.mxu0 %v10669
    %10739 = vmatprep.subr.bf16.mxu0 %v10668
    %10740 = vmatpush2.bf16.msra.mxu0 %v10667
    %10741 = vmatprep.mubr.bf16.mxu0 %v10706
    %10742 = vmatmul.mubr.bf16.gmra.mxu0 %v10699
    %v10743 = vpop.f32.mrf.mxu0
    %v10744 = vadd.f32 0.0, %v10743
    %v10745 = vpop.f32.mrf.mxu0
    %v10746 = vadd.f32 0.0, %v10745
    %v10747 = vpop.f32.mrf.mxu0
    %v10748 = vpop.f32.mrf.mxu0
    %10749 = vdwg.mxu0
    %v10750 = vld [vmem:[%s20 + $0x128] sm:$0x1]
    %v10751 = vsel %vm3887, %v10744, 0.0
    %v10752 = vsel %vm3887, %v10746, 0.0
    %v10753 = vadd.f32 %v10751, %v10752
    %10754 = vadd.xlane.f32.xlu0 %v10753
    %v10755 = vpop.xlane.xlu0 %10754
    %v10756 = vmul.f32 %v10744, %v10744
    %v10757 = vmul.f32 %v10746, %v10746
    %v10758 = vsel %vm3887, %v10756, 0.0
    %v10759 = vsel %vm3887, %v10757, 0.0
    %v10760 = vadd.f32 %v10758, %v10759
    %10761 = vadd.xlane.f32.xlu0 %v10760
    %v10762 = vpop.xlane.xlu0 %10761
    %v10764 = vrot.slane %v10755, 1
    %v10766 = vadd.f32 %v10755, %v10764
    %v10768 = vrot.slane %v10762, 1
    %v10770 = vadd.f32 %v10762, %v10768
    %v10771 = vmul.f32 %v10766, 0.001953125
    %v10772 = vmul.f32 %v10770, 0.001953125
    %v10773 = vmul.f32 %v10771, %v10771
    %v10774 = vsub.f32 %v10772, %v10773
    %v10775 = vmax.f32 %v10774, 0.0
    %v10776 = vadd.f32 %v10775, 1e-05
    %v10777 = vrsqrt.pop %v10776
    %v10778 = vmul.f32 %v10750, %v10777
    %v10779 = vmul.f32 %v10771, %v10778
    %10781 = vrot.lane.b32.xlu0 %v10779, 1
    %v10782 = vpop.permute.xlu0 %10781
    %v10784 = vsub.f32 %v10750, %v10782
    %v10786 = vrot.slane %v10778, 7
    %vm10788 = vcmask 1040384
    %v10789 = vsel %vm10788, %v10778, %v10786
    %v10791 = vrot.slane %v10784, 7
    %v10793 = vsel %vm10788, %v10784, %v10791
    %10795 = vset.pattern.permute.xlu0 0
    %10796 = vperm.xlu0 %10795, %v10789
    %v10797 = vpop.permute.xlu0 %10796
    %v10799 = vmul.f32 %v10744, %v10797
    %v10800 = vmul.f32 %v10746, %v10797
    %10802 = vset.pattern.permute.xlu0 1
    %10803 = vperm.xlu0 %10802, %v10793
    %v10804 = vpop.permute.xlu0 %10803
    %v10806 = vadd.f32 %v10799, %v10804
    %v10807 = vadd.f32 %v10800, %v10804
    %v10810 = vcombine.low %v10806, %v10807
    %v10812 = vunpack.c.l.s4 1983009808
    %v10813 = vunpack.c.0.s8 %v10812
    %v10814 = vlaneseq
    %v10815 = vshrl.u32 %v10814, 7
    %v10816 = vsub.s32 %v10813, %v10815
    %v10817 = vrot.slane %v10810, %v10816
    %10819 = vst [vmem:[%s25] sm:$0xf] %v10817
    %vm10820 = vcmask 7168
    %10821 = vst.msk [vmem:[%s26] sm:$0xff] %vm10820, %v4493
    %10822 = vst.msk [vmem:[%s26 + $0x8] sm:$0xff] %vm10820, %v4498
    %10823 = vst.msk [vmem:[%s26 + $0x10] sm:$0xff] %vm10820, %v4503
    %10824 = vst.msk [vmem:[%s26 + $0x18] sm:$0xff] %vm10820, %v4508
    %10825 = vst.msk [vmem:[%s27] sm:$0xff] %vm10820, %v4513
    %10826 = vst.msk [vmem:[%s27 + $0x8] sm:$0xff] %vm10820, %v4518
    %10827 = vst.msk [vmem:[%s27 + $0x10] sm:$0xff] %vm10820, %v4523
    %10828 = vst.msk [vmem:[%s27 + $0x18] sm:$0xff] %vm10820, %v4528
    // Predicated region
    $region142: #{forward.1} parent=1 // pred_check
      _
    $region143: #{forward.1} parent=1 // pred_check_branch
      %10830 = sbr.rel (0) target = $region145
    $region144: #{forward.1} parent=1 // pred_region
      _
    $region145: #{forward.1} parent=1 // pred_fallthru
      _
    // Predicated region
    $region146: #{forward.1} parent=1 // pred_check
      _
    $region147: #{forward.1} parent=1 // pred_check_branch
      %10832 = sbr.rel (0) target = $region149
    $region148: #{forward.1} parent=1 // pred_region
      _
    $region149: #{forward.1} parent=1 // pred_fallthru
      _
    // Predicated region
    $region150: #{forward.1} parent=1 // pred_check
      _
    $region151: #{forward.1} parent=1 // pred_check_branch
      %10834 = sbr.rel (0) target = $region153
    $region152: #{forward.1} parent=1 // pred_region
      _
    $region153: #{forward.1} parent=1 // pred_fallthru
      _
    // Predicated region
    $region154: #{forward.1} parent=1 // pred_check
      _
    $region155: #{forward.1} parent=1 // pred_check_branch
      %10836 = sbr.rel (0) target = $region157
    $region156: #{forward.1} parent=1 // pred_region
      _
    $region157: #{forward.1} parent=1 // pred_fallthru
      _
    // Predicated region
    $region158: #{forward.1} parent=1 // pred_check
      _
    $region159: #{forward.1} parent=1 // pred_check_branch
      %10838 = sbr.rel (0) target = $region161
    $region160: #{forward.1} parent=1 // pred_region
      _
    $region161: #{forward.1} parent=1 // pred_fallthru
      _
    // Predicated region
    $region162: #{forward.1} parent=1 // pred_check
      _
    $region163: #{forward.1} parent=1 // pred_check_branch
      %10840 = sbr.rel (0) target = $region165
    $region164: #{forward.1} parent=1 // pred_region
      _
    $region165: #{forward.1} parent=1 // pred_fallthru
      _
    %10841 = vsyncpa [#allocation3], 1
    %10842 = vsyncpa [#allocation5], 1
    %10843 = vsyncpa [#allocation8], 1
    %10844 = vsyncpa [#allocation11], 1
    %10845 = vsyncpa [#allocation14], 1
    %10846 = vsyncpa [#allocation17], 1

</llo_original>
